<compile_context>
chip_gen: v5e
topology: v5e:2x2
jax: 0.10.0
libtpu: 0.0.40
codegen_flags: <defaults>
</compile_context>

<pallas_src>
import math

import jax
import jax.numpy as jnp
from jax.experimental import pallas as pl
from jax.experimental.pallas import tpu as pltpu

# ---------------------------------------------------------------------------
# Small synthetic MBart config
# ---------------------------------------------------------------------------
VOCAB = 64
V_PAD = 128          # vocab padded to a full 128-lane vreg for lane-dense stores
D_MODEL = 32
N_HEADS = 4
HEAD_DIM = D_MODEL // N_HEADS
FFN_DIM = 64
N_ENC_LAYERS = 2
N_DEC_LAYERS = 2
MAX_POS = 32         # max_position_embeddings
POS_OFFSET = 2       # MBartLearnedPositionalEmbedding offset
EPS = 1e-5
NEG_INF = -1e9

# Per-layer weight field names (stacked along a leading layer axis at init).
_ENC_LAYER_FIELDS = ("sa_ln_g", "sa_ln_b", "sa_wqkv", "sa_bqkv", "sa_wo", "sa_bo",
                     "fin_ln_g", "fin_ln_b", "fc1_w", "fc1_b", "fc2_w", "fc2_b")
_DEC_LAYER_FIELDS = _ENC_LAYER_FIELDS + ("ca_ln_g", "ca_ln_b", "ca_wq", "ca_bq",
                                         "ca_wkv", "ca_bkv", "ca_wo", "ca_bo")

# Fixed ordering of weight refs passed to the fused kernel.
WEIGHT_KEYS = (
    ["enc_emb_ln_g", "enc_emb_ln_b"]
    + ["enc_" + f for f in _ENC_LAYER_FIELDS]
    + ["enc_final_ln_g", "enc_final_ln_b", "dec_emb_ln_g", "dec_emb_ln_b"]
    + ["dec_" + f for f in _DEC_LAYER_FIELDS]
    + ["dec_final_ln_g", "dec_final_ln_b", "lm_head_w", "final_logits_bias"]
)


# ---------------------------------------------------------------------------
# In-kernel helpers (traced inline into the single fused kernel)
# ---------------------------------------------------------------------------
def _ln(x, g, b):
    mean = jnp.mean(x, axis=-1, keepdims=True)
    var = jnp.mean((x - mean) ** 2, axis=-1, keepdims=True)
    return (x - mean) * jax.lax.rsqrt(var + EPS) * g + b


def _gelu(y):
    # TODO(synk): HF MBart uses exact erf-based GELU; tanh approximation used
    # here to stay on ops with guaranteed Mosaic lowering (exp/tanh on EUP).
    c = jnp.float32(math.sqrt(2.0 / math.pi))
    return 0.5 * y * (1.0 + jnp.tanh(c * (y + 0.044715 * y * y * y)))


def _mha(q_all, k_all, v_all, bias, wo):
    """Multi-head attention + single fused output projection.

    q_all: (Tq, D) f32, k_all/v_all: (Tk, D) f32, bias: (1 or Tq, Tk) f32,
    wo: (D, D) bf16.  Q weights were pre-scaled by 1/sqrt(head_dim) at init.
    Returns (Tq, D) f32.
    """
    q_all = q_all.astype(jnp.bfloat16)
    k_all = k_all.astype(jnp.bfloat16)
    v_all = v_all.astype(jnp.bfloat16)
    ctx = []
    for h in range(N_HEADS):
        lo, hi = h * HEAD_DIM, (h + 1) * HEAD_DIM
        s = jnp.einsum("qd,kd->qk", q_all[:, lo:hi], k_all[:, lo:hi],
                       preferred_element_type=jnp.float32) + bias
        s = s - jnp.max(s, axis=-1, keepdims=True)
        p = jnp.exp(s)
        p = p * pl.reciprocal(jnp.sum(p, axis=-1, keepdims=True), approx=True)
        ctx.append(jnp.dot(p.astype(jnp.bfloat16), v_all[:, lo:hi],
                           preferred_element_type=jnp.float32))
    ctx_all = jnp.concatenate(ctx, axis=-1)                       # (Tq, D) f32
    # single out-projection for all heads (one MXU push instead of 4)
    return jnp.dot(ctx_all.astype(jnp.bfloat16), wo,
                   preferred_element_type=jnp.float32)


def _self_attn_block(x, bias, ln_g, ln_b, wqkv, bqkv, wo, bo):
    h = _ln(x, ln_g, ln_b)
    qkv = jnp.dot(h.astype(jnp.bfloat16), wqkv,
                  preferred_element_type=jnp.float32) + bqkv
    attn = _mha(qkv[:, :D_MODEL], qkv[:, D_MODEL:2 * D_MODEL],
                qkv[:, 2 * D_MODEL:], bias, wo)
    return x + attn + bo


def _cross_attn_block(x, enc_bf16, bias, ln_g, ln_b, wq, bq, wkv, bkv, wo, bo):
    h = _ln(x, ln_g, ln_b)
    q = jnp.dot(h.astype(jnp.bfloat16), wq,
                preferred_element_type=jnp.float32) + bq
    kv = jnp.dot(enc_bf16, wkv, preferred_element_type=jnp.float32) + bkv
    attn = _mha(q, kv[:, :D_MODEL], kv[:, D_MODEL:], bias, wo)
    return x + attn + bo


def _ffn_block(x, ln_g, ln_b, w1, b1, w2, b2):
    h = _ln(x, ln_g, ln_b)
    h1 = _gelu(jnp.dot(h.astype(jnp.bfloat16), w1,
                       preferred_element_type=jnp.float32) + b1)
    return x + jnp.dot(h1.astype(jnp.bfloat16), w2,
                       preferred_element_type=jnp.float32) + b2


# ---------------------------------------------------------------------------
# The single fused forward kernel (one grid step == one batch element)
# ---------------------------------------------------------------------------
def _mbart_forward_kernel(*refs):
    enc_x_ref, dec_x_ref, enc_bias_ref, dec_pad_ref = refs[:4]
    o_ref = refs[-1]
    w = dict(zip(WEIGHT_KEYS, refs[4:-1]))

    # -------------------------------- encoder --------------------------------
    enc_bias = enc_bias_ref[0]                                    # (1, S) pad bias
    h = _ln(enc_x_ref[0], w["enc_emb_ln_g"][...], w["enc_emb_ln_b"][...])
    for l in range(N_ENC_LAYERS):
        h = _self_attn_block(
            h, enc_bias,
            w["enc_sa_ln_g"][l], w["enc_sa_ln_b"][l],
            w["enc_sa_wqkv"][l], w["enc_sa_bqkv"][l],
            w["enc_sa_wo"][l], w["enc_sa_bo"][l])
        h = _ffn_block(
            h,
            w["enc_fin_ln_g"][l], w["enc_fin_ln_b"][l],
            w["enc_fc1_w"][l], w["enc_fc1_b"][l],
            w["enc_fc2_w"][l], w["enc_fc2_b"][l])
    enc_out = _ln(h, w["enc_final_ln_g"][...], w["enc_final_ln_b"][...])
    enc_out_bf = enc_out.astype(jnp.bfloat16)     # cast once, reused per layer

    # -------------------------------- decoder --------------------------------
    T = dec_x_ref.shape[1]
    row = jax.lax.broadcasted_iota(jnp.int32, (T, T), 0)
    col = jax.lax.broadcasted_iota(jnp.int32, (T, T), 1)
    causal = jnp.where(col > row, jnp.float32(NEG_INF), jnp.float32(0.0))
    dec_self_bias = jnp.maximum(dec_pad_ref[0] + causal, NEG_INF)  # (T, T)

    y = _ln(dec_x_ref[0], w["dec_emb_ln_g"][...], w["dec_emb_ln_b"][...])
    for l in range(N_DEC_LAYERS):
        y = _self_attn_block(
            y, dec_self_bias,
            w["dec_sa_ln_g"][l], w["dec_sa_ln_b"][l],
            w["dec_sa_wqkv"][l], w["dec_sa_bqkv"][l],
            w["dec_sa_wo"][l], w["dec_sa_bo"][l])
        y = _cross_attn_block(
            y, enc_out_bf, enc_bias,
            w["dec_ca_ln_g"][l], w["dec_ca_ln_b"][l],
            w["dec_ca_wq"][l], w["dec_ca_bq"][l],
            w["dec_ca_wkv"][l], w["dec_ca_bkv"][l],
            w["dec_ca_wo"][l], w["dec_ca_bo"][l])
        y = _ffn_block(
            y,
            w["dec_fin_ln_g"][l], w["dec_fin_ln_b"][l],
            w["dec_fc1_w"][l], w["dec_fc1_b"][l],
            w["dec_fc2_w"][l], w["dec_fc2_b"][l])

    # ---------- final LN + tied LM head (lane-padded to 128 logits) ----------
    yf = _ln(y, w["dec_final_ln_g"][...], w["dec_final_ln_b"][...])
    logits = (jnp.dot(yf.astype(jnp.bfloat16), w["lm_head_w"][...],
                      preferred_element_type=jnp.float32)
              + w["final_logits_bias"][...])
    o_ref[0] = logits.astype(o_ref.dtype)


# ---------------------------------------------------------------------------
# Wrapper: embeddings + mask bias in plain JAX, one pallas_call for the rest
# ---------------------------------------------------------------------------
def _batched_spec(shape):
    nd = len(shape)
    return pl.BlockSpec((1,) + tuple(shape[1:]),
                        lambda b: (b,) + (0,) * (nd - 1))


def _const_spec(shape):
    nd = len(shape)
    return pl.BlockSpec(tuple(shape), lambda b: (0,) * nd)


def _embed(table, pos_table, ids):
    """Token embed * sqrt(d_model) + learned positions (offset=2)."""
    T = ids.shape[1]
    tok = jnp.take(table, ids, axis=0) * jnp.float32(math.sqrt(D_MODEL))
    pos = pos_table[POS_OFFSET:POS_OFFSET + T][None, :, :]
    return tok + pos


def _pad_bias(mask):
    """mask: (B, Tk) in {0,1} -> additive bias (B, 1, Tk)."""
    return ((1.0 - mask.astype(jnp.float32)) * NEG_INF)[:, None, :]


def mbart_forward(params, enc_ids, enc_mask, dec_ids, dec_mask):
    B, S = enc_ids.shape
    T = dec_ids.shape[1]

    enc_x = _embed(params["embed_tokens"], params["enc_pos"], enc_ids)   # (B,S,D)
    dec_x = _embed(params["embed_tokens"], params["dec_pos"], dec_ids)   # (B,T,D)
    enc_bias = _pad_bias(enc_mask)                                        # (B,1,S)
    dec_pad = _pad_bias(dec_mask)                                         # (B,1,T)

    data = [enc_x, dec_x, enc_bias, dec_pad]
    weights = [params[k] for k in WEIGHT_KEYS]
    in_specs = ([_batched_spec(a.shape) for a in data]
                + [_const_spec(wt.shape) for wt in weights])

    logits_pad = pl.pallas_call(
        _mbart_forward_kernel,
        out_shape=jax.ShapeDtypeStruct((B, T, V_PAD), jnp.float32),
        grid=(B,),
        in_specs=in_specs,
        out_specs=pl.BlockSpec((1, T, V_PAD), lambda b: (b, 0, 0)),
        compiler_params=pltpu.CompilerParams(
            dimension_semantics=("parallel",)),
    )(*data, *weights)

    return logits_pad[:, :, :VOCAB]


# ---------------------------------------------------------------------------
# Deterministic parameter initialization (fused / pre-scaled / bf16 layouts)
# ---------------------------------------------------------------------------
def _normal(key, shape):
    return 0.02 * jax.random.normal(key, shape, jnp.float32)


def init_params(key):
    keys = iter(jax.random.split(key, 64))
    nk = lambda: next(keys)
    scale = jnp.float32(HEAD_DIM ** -0.5)
    ones_d = jnp.ones((1, D_MODEL), jnp.float32)
    zero_d = jnp.zeros((1, D_MODEL), jnp.float32)

    embed_tokens = _normal(nk(), (VOCAB, D_MODEL))
    enc_pos = _normal(nk(), (MAX_POS + POS_OFFSET, D_MODEL))
    dec_pos = _normal(nk(), (MAX_POS + POS_OFFSET, D_MODEL))

    def attn(fuse_qkv):
        # attention scale folded into the Q projection (bias is zero -> exact)
        wq = _normal(nk(), (D_MODEL, D_MODEL)) * scale
        wk = _normal(nk(), (D_MODEL, D_MODEL))
        wv = _normal(nk(), (D_MODEL, D_MODEL))
        wo = _normal(nk(), (D_MODEL, D_MODEL))
        if fuse_qkv:
            return {"wqkv": jnp.concatenate([wq, wk, wv], 1).astype(jnp.bfloat16),
                    "bqkv": jnp.zeros((1, 3 * D_MODEL), jnp.float32),
                    "wo": wo.astype(jnp.bfloat16), "bo": zero_d}
        return {"wq": wq.astype(jnp.bfloat16), "bq": zero_d,
                "wkv": jnp.concatenate([wk, wv], 1).astype(jnp.bfloat16),
                "bkv": jnp.zeros((1, 2 * D_MODEL), jnp.float32),
                "wo": wo.astype(jnp.bfloat16), "bo": zero_d}

    def layer(is_decoder):
        sa = attn(fuse_qkv=True)
        p = {"sa_ln_g": ones_d, "sa_ln_b": zero_d,
             "sa_wqkv": sa["wqkv"], "sa_bqkv": sa["bqkv"],
             "sa_wo": sa["wo"], "sa_bo": sa["bo"],
             "fin_ln_g": ones_d, "fin_ln_b": zero_d,
             "fc1_w": _normal(nk(), (D_MODEL, FFN_DIM)).astype(jnp.bfloat16),
             "fc1_b": jnp.zeros((1, FFN_DIM), jnp.float32),
             "fc2_w": _normal(nk(), (FFN_DIM, D_MODEL)).astype(jnp.bfloat16),
             "fc2_b": zero_d}
        if is_decoder:
            ca = attn(fuse_qkv=False)
            p.update({"ca_ln_g": ones_d, "ca_ln_b": zero_d,
                      "ca_wq": ca["wq"], "ca_bq": ca["bq"],
                      "ca_wkv": ca["wkv"], "ca_bkv": ca["bkv"],
                      "ca_wo": ca["wo"], "ca_bo": ca["bo"]})
        return p

    enc_layers = [layer(False) for _ in range(N_ENC_LAYERS)]
    dec_layers = [layer(True) for _ in range(N_DEC_LAYERS)]

    params = {
        "embed_tokens": embed_tokens, "enc_pos": enc_pos, "dec_pos": dec_pos,
        "enc_emb_ln_g": ones_d, "enc_emb_ln_b": zero_d,
        "dec_emb_ln_g": ones_d, "dec_emb_ln_b": zero_d,
        "enc_final_ln_g": ones_d, "enc_final_ln_b": zero_d,
        "dec_final_ln_g": ones_d, "dec_final_ln_b": zero_d,
        # tied LM head: pre-transposed once, lane-padded VOCAB -> V_PAD
        "lm_head_w": jnp.pad(embed_tokens.T,
                             ((0, 0), (0, V_PAD - VOCAB))).astype(jnp.bfloat16),
        "final_logits_bias": jnp.zeros((1, V_PAD), jnp.float32),
    }
    for f in _ENC_LAYER_FIELDS:
        params["enc_" + f] = jnp.stack([l[f] for l in enc_layers], axis=0)
    for f in _DEC_LAYER_FIELDS:
        params["dec_" + f] = jnp.stack([l[f] for l in dec_layers], axis=0)
    return params


# ---------------------------------------------------------------------------
# Main
# ---------------------------------------------------------------------------
if __name__ == "__main__":
    key = jax.random.PRNGKey(0)
    k_par, k_e, k_d = jax.random.split(key, 3)
    params = init_params(k_par)

    B, S, T = 2, 8, 8
    enc_ids = jax.random.randint(k_e, (B, S), 0, VOCAB, dtype=jnp.int32)
    dec_ids = jax.random.randint(k_d, (B, T), 0, VOCAB, dtype=jnp.int32)
    # attention masks: 1 = keep, 0 = pad (second sequence padded at the end)
    enc_mask = jnp.ones((B, S), jnp.int32).at[1, 6:].set(0)
    dec_mask = jnp.ones((B, T), jnp.int32).at[1, 5:].set(0)

    fwd = jax.jit(mbart_forward)
    logits = fwd(params, enc_ids, enc_mask, dec_ids, dec_mask)
    jax.block_until_ready(logits)

    assert logits.shape == (B, T, VOCAB)
    assert bool(jnp.all(jnp.isfinite(logits)))
    print("KERNEL_OK")
</pallas_src>

<mosaic_0001>
module attributes {stable_mosaic.version = 11 : i64} {
  func.func @_mbart_forward_kernel(%arg0: i32, %arg1: memref<1x8x32xf32, #tpu.memory_space<vmem>>, %arg2: memref<1x8x32xf32, #tpu.memory_space<vmem>>, %arg3: memref<1x1x8xf32, #tpu.memory_space<vmem>>, %arg4: memref<1x1x8xf32, #tpu.memory_space<vmem>>, %arg5: memref<1x32xf32, #tpu.memory_space<vmem>>, %arg6: memref<1x32xf32, #tpu.memory_space<vmem>>, %arg7: memref<2x1x32xf32, #tpu.memory_space<vmem>>, %arg8: memref<2x1x32xf32, #tpu.memory_space<vmem>>, %arg9: memref<2x32x96xbf16, #tpu.memory_space<vmem>>, %arg10: memref<2x1x96xf32, #tpu.memory_space<vmem>>, %arg11: memref<2x32x32xbf16, #tpu.memory_space<vmem>>, %arg12: memref<2x1x32xf32, #tpu.memory_space<vmem>>, %arg13: memref<2x1x32xf32, #tpu.memory_space<vmem>>, %arg14: memref<2x1x32xf32, #tpu.memory_space<vmem>>, %arg15: memref<2x32x64xbf16, #tpu.memory_space<vmem>>, %arg16: memref<2x1x64xf32, #tpu.memory_space<vmem>>, %arg17: memref<2x64x32xbf16, #tpu.memory_space<vmem>>, %arg18: memref<2x1x32xf32, #tpu.memory_space<vmem>>, %arg19: memref<1x32xf32, #tpu.memory_space<vmem>>, %arg20: memref<1x32xf32, #tpu.memory_space<vmem>>, %arg21: memref<1x32xf32, #tpu.memory_space<vmem>>, %arg22: memref<1x32xf32, #tpu.memory_space<vmem>>, %arg23: memref<2x1x32xf32, #tpu.memory_space<vmem>>, %arg24: memref<2x1x32xf32, #tpu.memory_space<vmem>>, %arg25: memref<2x32x96xbf16, #tpu.memory_space<vmem>>, %arg26: memref<2x1x96xf32, #tpu.memory_space<vmem>>, %arg27: memref<2x32x32xbf16, #tpu.memory_space<vmem>>, %arg28: memref<2x1x32xf32, #tpu.memory_space<vmem>>, %arg29: memref<2x1x32xf32, #tpu.memory_space<vmem>>, %arg30: memref<2x1x32xf32, #tpu.memory_space<vmem>>, %arg31: memref<2x32x64xbf16, #tpu.memory_space<vmem>>, %arg32: memref<2x1x64xf32, #tpu.memory_space<vmem>>, %arg33: memref<2x64x32xbf16, #tpu.memory_space<vmem>>, %arg34: memref<2x1x32xf32, #tpu.memory_space<vmem>>, %arg35: memref<2x1x32xf32, #tpu.memory_space<vmem>>, %arg36: memref<2x1x32xf32, #tpu.memory_space<vmem>>, %arg37: memref<2x32x32xbf16, #tpu.memory_space<vmem>>, %arg38: memref<2x1x32xf32, #tpu.memory_space<vmem>>, %arg39: memref<2x32x64xbf16, #tpu.memory_space<vmem>>, %arg40: memref<2x1x64xf32, #tpu.memory_space<vmem>>, %arg41: memref<2x32x32xbf16, #tpu.memory_space<vmem>>, %arg42: memref<2x1x32xf32, #tpu.memory_space<vmem>>, %arg43: memref<1x32xf32, #tpu.memory_space<vmem>>, %arg44: memref<1x32xf32, #tpu.memory_space<vmem>>, %arg45: memref<32x128xbf16, #tpu.memory_space<vmem>>, %arg46: memref<1x128xf32, #tpu.memory_space<vmem>>, %arg47: memref<1x8x128xf32, #tpu.memory_space<vmem>>) attributes {dimension_semantics = [#tpu.dimension_semantics<parallel>], iteration_bounds = array<i64: 2>, scalar_prefetch = 0 : i64, scratch_operands = 0 : i64, tpu.core_type = #tpu.core_type<tc>, window_params = [{transform_indices = @transform_0, window_bounds = array<i64: 1, 8, 32>}, {transform_indices = @transform_1, window_bounds = array<i64: 1, 8, 32>}, {transform_indices = @transform_2, window_bounds = array<i64: 1, 1, 8>}, {transform_indices = @transform_3, window_bounds = array<i64: 1, 1, 8>}, {pipeline_mode = #tpu.pipeline_mode<synchronous>, transform_indices = @transform_4, window_bounds = array<i64: 1, 32>}, {pipeline_mode = #tpu.pipeline_mode<synchronous>, transform_indices = @transform_5, window_bounds = array<i64: 1, 32>}, {pipeline_mode = #tpu.pipeline_mode<synchronous>, transform_indices = @transform_6, window_bounds = array<i64: 2, 1, 32>}, {pipeline_mode = #tpu.pipeline_mode<synchronous>, transform_indices = @transform_7, window_bounds = array<i64: 2, 1, 32>}, {pipeline_mode = #tpu.pipeline_mode<synchronous>, transform_indices = @transform_8, window_bounds = array<i64: 2, 32, 96>}, {pipeline_mode = #tpu.pipeline_mode<synchronous>, transform_indices = @transform_9, window_bounds = array<i64: 2, 1, 96>}, {pipeline_mode = #tpu.pipeline_mode<synchronous>, transform_indices = @transform_10, window_bounds = array<i64: 2, 32, 32>}, {pipeline_mode = #tpu.pipeline_mode<synchronous>, transform_indices = @transform_11, window_bounds = array<i64: 2, 1, 32>}, {pipeline_mode = #tpu.pipeline_mode<synchronous>, transform_indices = @transform_12, window_bounds = array<i64: 2, 1, 32>}, {pipeline_mode = #tpu.pipeline_mode<synchronous>, transform_indices = @transform_13, window_bounds = array<i64: 2, 1, 32>}, {pipeline_mode = #tpu.pipeline_mode<synchronous>, transform_indices = @transform_14, window_bounds = array<i64: 2, 32, 64>}, {pipeline_mode = #tpu.pipeline_mode<synchronous>, transform_indices = @transform_15, window_bounds = array<i64: 2, 1, 64>}, {pipeline_mode = #tpu.pipeline_mode<synchronous>, transform_indices = @transform_16, window_bounds = array<i64: 2, 64, 32>}, {pipeline_mode = #tpu.pipeline_mode<synchronous>, transform_indices = @transform_17, window_bounds = array<i64: 2, 1, 32>}, {pipeline_mode = #tpu.pipeline_mode<synchronous>, transform_indices = @transform_18, window_bounds = array<i64: 1, 32>}, {pipeline_mode = #tpu.pipeline_mode<synchronous>, transform_indices = @transform_19, window_bounds = array<i64: 1, 32>}, {pipeline_mode = #tpu.pipeline_mode<synchronous>, transform_indices = @transform_20, window_bounds = array<i64: 1, 32>}, {pipeline_mode = #tpu.pipeline_mode<synchronous>, transform_indices = @transform_21, window_bounds = array<i64: 1, 32>}, {pipeline_mode = #tpu.pipeline_mode<synchronous>, transform_indices = @transform_22, window_bounds = array<i64: 2, 1, 32>}, {pipeline_mode = #tpu.pipeline_mode<synchronous>, transform_indices = @transform_23, window_bounds = array<i64: 2, 1, 32>}, {pipeline_mode = #tpu.pipeline_mode<synchronous>, transform_indices = @transform_24, window_bounds = array<i64: 2, 32, 96>}, {pipeline_mode = #tpu.pipeline_mode<synchronous>, transform_indices = @transform_25, window_bounds = array<i64: 2, 1, 96>}, {pipeline_mode = #tpu.pipeline_mode<synchronous>, transform_indices = @transform_26, window_bounds = array<i64: 2, 32, 32>}, {pipeline_mode = #tpu.pipeline_mode<synchronous>, transform_indices = @transform_27, window_bounds = array<i64: 2, 1, 32>}, {pipeline_mode = #tpu.pipeline_mode<synchronous>, transform_indices = @transform_28, window_bounds = array<i64: 2, 1, 32>}, {pipeline_mode = #tpu.pipeline_mode<synchronous>, transform_indices = @transform_29, window_bounds = array<i64: 2, 1, 32>}, {pipeline_mode = #tpu.pipeline_mode<synchronous>, transform_indices = @transform_30, window_bounds = array<i64: 2, 32, 64>}, {pipeline_mode = #tpu.pipeline_mode<synchronous>, transform_indices = @transform_31, window_bounds = array<i64: 2, 1, 64>}, {pipeline_mode = #tpu.pipeline_mode<synchronous>, transform_indices = @transform_32, window_bounds = array<i64: 2, 64, 32>}, {pipeline_mode = #tpu.pipeline_mode<synchronous>, transform_indices = @transform_33, window_bounds = array<i64: 2, 1, 32>}, {pipeline_mode = #tpu.pipeline_mode<synchronous>, transform_indices = @transform_34, window_bounds = array<i64: 2, 1, 32>}, {pipeline_mode = #tpu.pipeline_mode<synchronous>, transform_indices = @transform_35, window_bounds = array<i64: 2, 1, 32>}, {pipeline_mode = #tpu.pipeline_mode<synchronous>, transform_indices = @transform_36, window_bounds = array<i64: 2, 32, 32>}, {pipeline_mode = #tpu.pipeline_mode<synchronous>, transform_indices = @transform_37, window_bounds = array<i64: 2, 1, 32>}, {pipeline_mode = #tpu.pipeline_mode<synchronous>, transform_indices = @transform_38, window_bounds = array<i64: 2, 32, 64>}, {pipeline_mode = #tpu.pipeline_mode<synchronous>, transform_indices = @transform_39, window_bounds = array<i64: 2, 1, 64>}, {pipeline_mode = #tpu.pipeline_mode<synchronous>, transform_indices = @transform_40, window_bounds = array<i64: 2, 32, 32>}, {pipeline_mode = #tpu.pipeline_mode<synchronous>, transform_indices = @transform_41, window_bounds = array<i64: 2, 1, 32>}, {pipeline_mode = #tpu.pipeline_mode<synchronous>, transform_indices = @transform_42, window_bounds = array<i64: 1, 32>}, {pipeline_mode = #tpu.pipeline_mode<synchronous>, transform_indices = @transform_43, window_bounds = array<i64: 1, 32>}, {pipeline_mode = #tpu.pipeline_mode<synchronous>, transform_indices = @transform_44, window_bounds = array<i64: 32, 128>}, {pipeline_mode = #tpu.pipeline_mode<synchronous>, transform_indices = @transform_45, window_bounds = array<i64: 1, 128>}, {transform_indices = @transform_46, window_bounds = array<i64: 1, 8, 128>}]} {
    %c0 = arith.constant 0 : index
    %c0_0 = arith.constant 0 : index
    %c0_1 = arith.constant 0 : index
    %0 = vector.load %arg3[%c0, %c0_0, %c0_1] : memref<1x1x8xf32, #tpu.memory_space<vmem>>, vector<1x1x8xf32>
    %1 = vector.shape_cast %0 : vector<1x1x8xf32> to vector<1x8xf32>
    %c0_2 = arith.constant 0 : index
    %c0_3 = arith.constant 0 : index
    %c0_4 = arith.constant 0 : index
    %2 = vector.load %arg1[%c0_2, %c0_3, %c0_4] : memref<1x8x32xf32, #tpu.memory_space<vmem>>, vector<1x8x32xf32>
    %3 = vector.shape_cast %2 : vector<1x8x32xf32> to vector<8x32xf32>
    %c0_5 = arith.constant 0 : index
    %c0_6 = arith.constant 0 : index
    %4 = vector.load %arg5[%c0_5, %c0_6] : memref<1x32xf32, #tpu.memory_space<vmem>>, vector<1x32xf32>
    %c0_7 = arith.constant 0 : index
    %c0_8 = arith.constant 0 : index
    %5 = vector.load %arg6[%c0_7, %c0_8] : memref<1x32xf32, #tpu.memory_space<vmem>>, vector<1x32xf32>
    %cst = arith.constant dense<0.000000e+00> : vector<8xf32>
    %6 = vector.multi_reduction <add>, %3, %cst [1] : vector<8x32xf32> to vector<8xf32>
    %7 = vector.shape_cast %6 : vector<8xf32> to vector<8x1xf32>
    %cst_9 = arith.constant 3.200000e+01 : f32
    %8 = vector.broadcast %cst_9 : f32 to vector<8x1xf32>
    %9 = arith.divf %7, %8 : vector<8x1xf32>
    %10 = vector.broadcast %9 : vector<8x1xf32> to vector<8x32xf32>
    %11 = arith.subf %3, %10 : vector<8x32xf32>
    %12 = arith.mulf %11, %11 : vector<8x32xf32>
    %cst_10 = arith.constant dense<0.000000e+00> : vector<8xf32>
    %13 = vector.multi_reduction <add>, %12, %cst_10 [1] : vector<8x32xf32> to vector<8xf32>
    %14 = vector.shape_cast %13 : vector<8xf32> to vector<8x1xf32>
    %cst_11 = arith.constant 3.200000e+01 : f32
    %15 = vector.broadcast %cst_11 : f32 to vector<8x1xf32>
    %16 = arith.divf %14, %15 : vector<8x1xf32>
    %17 = vector.broadcast %9 : vector<8x1xf32> to vector<8x32xf32>
    %18 = arith.subf %3, %17 : vector<8x32xf32>
    %cst_12 = arith.constant 9.99999974E-6 : f32
    %19 = vector.broadcast %cst_12 : f32 to vector<8x1xf32>
    %20 = arith.addf %16, %19 : vector<8x1xf32>
    %21 = math.rsqrt %20 : vector<8x1xf32>
    %22 = vector.broadcast %21 : vector<8x1xf32> to vector<8x32xf32>
    %23 = arith.mulf %18, %22 : vector<8x32xf32>
    %24 = vector.broadcast %4 : vector<1x32xf32> to vector<8x32xf32>
    %25 = arith.mulf %23, %24 : vector<8x32xf32>
    %26 = vector.broadcast %5 : vector<1x32xf32> to vector<8x32xf32>
    %27 = arith.addf %25, %26 : vector<8x32xf32>
    %c0_13 = arith.constant 0 : index
    %c0_14 = arith.constant 0 : index
    %c0_15 = arith.constant 0 : index
    %28 = vector.load %arg7[%c0_13, %c0_14, %c0_15] : memref<2x1x32xf32, #tpu.memory_space<vmem>>, vector<1x1x32xf32>
    %29 = vector.shape_cast %28 : vector<1x1x32xf32> to vector<1x32xf32>
    %c0_16 = arith.constant 0 : index
    %c0_17 = arith.constant 0 : index
    %c0_18 = arith.constant 0 : index
    %30 = vector.load %arg8[%c0_16, %c0_17, %c0_18] : memref<2x1x32xf32, #tpu.memory_space<vmem>>, vector<1x1x32xf32>
    %31 = vector.shape_cast %30 : vector<1x1x32xf32> to vector<1x32xf32>
    %c0_19 = arith.constant 0 : index
    %c0_20 = arith.constant 0 : index
    %c0_21 = arith.constant 0 : index
    %32 = vector.load %arg9[%c0_19, %c0_20, %c0_21] : memref<2x32x96xbf16, #tpu.memory_space<vmem>>, vector<1x32x96xbf16>
    %33 = vector.shape_cast %32 : vector<1x32x96xbf16> to vector<32x96xbf16>
    %c0_22 = arith.constant 0 : index
    %c0_23 = arith.constant 0 : index
    %c0_24 = arith.constant 0 : index
    %34 = vector.load %arg10[%c0_22, %c0_23, %c0_24] : memref<2x1x96xf32, #tpu.memory_space<vmem>>, vector<1x1x96xf32>
    %35 = vector.shape_cast %34 : vector<1x1x96xf32> to vector<1x96xf32>
    %c0_25 = arith.constant 0 : index
    %c0_26 = arith.constant 0 : index
    %c0_27 = arith.constant 0 : index
    %36 = vector.load %arg11[%c0_25, %c0_26, %c0_27] : memref<2x32x32xbf16, #tpu.memory_space<vmem>>, vector<1x32x32xbf16>
    %37 = vector.shape_cast %36 : vector<1x32x32xbf16> to vector<32x32xbf16>
    %c0_28 = arith.constant 0 : index
    %c0_29 = arith.constant 0 : index
    %c0_30 = arith.constant 0 : index
    %38 = vector.load %arg12[%c0_28, %c0_29, %c0_30] : memref<2x1x32xf32, #tpu.memory_space<vmem>>, vector<1x1x32xf32>
    %39 = vector.shape_cast %38 : vector<1x1x32xf32> to vector<1x32xf32>
    %cst_31 = arith.constant dense<0.000000e+00> : vector<8xf32>
    %40 = vector.multi_reduction <add>, %27, %cst_31 [1] : vector<8x32xf32> to vector<8xf32>
    %41 = vector.shape_cast %40 : vector<8xf32> to vector<8x1xf32>
    %cst_32 = arith.constant 3.200000e+01 : f32
    %42 = vector.broadcast %cst_32 : f32 to vector<8x1xf32>
    %43 = arith.divf %41, %42 : vector<8x1xf32>
    %44 = vector.broadcast %43 : vector<8x1xf32> to vector<8x32xf32>
    %45 = arith.subf %27, %44 : vector<8x32xf32>
    %46 = arith.mulf %45, %45 : vector<8x32xf32>
    %cst_33 = arith.constant dense<0.000000e+00> : vector<8xf32>
    %47 = vector.multi_reduction <add>, %46, %cst_33 [1] : vector<8x32xf32> to vector<8xf32>
    %48 = vector.shape_cast %47 : vector<8xf32> to vector<8x1xf32>
    %cst_34 = arith.constant 3.200000e+01 : f32
    %49 = vector.broadcast %cst_34 : f32 to vector<8x1xf32>
    %50 = arith.divf %48, %49 : vector<8x1xf32>
    %51 = vector.broadcast %43 : vector<8x1xf32> to vector<8x32xf32>
    %52 = arith.subf %27, %51 : vector<8x32xf32>
    %cst_35 = arith.constant 9.99999974E-6 : f32
    %53 = vector.broadcast %cst_35 : f32 to vector<8x1xf32>
    %54 = arith.addf %50, %53 : vector<8x1xf32>
    %55 = math.rsqrt %54 : vector<8x1xf32>
    %56 = vector.broadcast %55 : vector<8x1xf32> to vector<8x32xf32>
    %57 = arith.mulf %52, %56 : vector<8x32xf32>
    %58 = vector.broadcast %29 : vector<1x32xf32> to vector<8x32xf32>
    %59 = arith.mulf %57, %58 : vector<8x32xf32>
    %60 = vector.broadcast %31 : vector<1x32xf32> to vector<8x32xf32>
    %61 = arith.addf %59, %60 : vector<8x32xf32>
    %62 = arith.truncf %61 : vector<8x32xf32> to vector<8x32xbf16>
    %cst_36 = arith.constant dense<0.000000e+00> : vector<8x96xf32>
    %63 = tpu.matmul %62, %33, %cst_36 {dimension_numbers = #tpu.dot_dimension_numbers<[1], [0], [0], [1], [0, 0, 1, 1], [], []>} : vector<8x32xbf16>, vector<32x96xbf16>, vector<8x96xf32> -> vector<8x96xf32>
    %64 = vector.broadcast %35 : vector<1x96xf32> to vector<8x96xf32>
    %65 = arith.addf %63, %64 : vector<8x96xf32>
    %66 = vector.extract_strided_slice %65 {offsets = [0, 0], sizes = [8, 32], strides = [1, 1]} : vector<8x96xf32> to vector<8x32xf32>
    %67 = vector.extract_strided_slice %65 {offsets = [0, 32], sizes = [8, 32], strides = [1, 1]} : vector<8x96xf32> to vector<8x32xf32>
    %68 = vector.extract_strided_slice %65 {offsets = [0, 64], sizes = [8, 32], strides = [1, 1]} : vector<8x96xf32> to vector<8x32xf32>
    %69 = arith.truncf %66 : vector<8x32xf32> to vector<8x32xbf16>
    %70 = arith.truncf %67 : vector<8x32xf32> to vector<8x32xbf16>
    %71 = arith.truncf %68 : vector<8x32xf32> to vector<8x32xbf16>
    %72 = vector.extract_strided_slice %69 {offsets = [0, 0], sizes = [8, 8], strides = [1, 1]} : vector<8x32xbf16> to vector<8x8xbf16>
    %73 = vector.extract_strided_slice %70 {offsets = [0, 0], sizes = [8, 8], strides = [1, 1]} : vector<8x32xbf16> to vector<8x8xbf16>
    "tpu.trace_start"() <{level = 10 : i32, message = "qd,kd->qk"}> : () -> ()
    %cst_37 = arith.constant dense<0.000000e+00> : vector<8x8xf32>
    %74 = tpu.matmul %72, %73, %cst_37 {dimension_numbers = #tpu.dot_dimension_numbers<[1], [1], [0], [0], [0, 0, 1, 0], [], []>} : vector<8x8xbf16>, vector<8x8xbf16>, vector<8x8xf32> -> vector<8x8xf32>
    "tpu.trace_stop"() : () -> ()
    %75 = vector.broadcast %1 : vector<1x8xf32> to vector<8x8xf32>
    %76 = arith.addf %74, %75 : vector<8x8xf32>
    %cst_38 = arith.constant dense<0xFF800000> : vector<8xf32>
    %77 = vector.multi_reduction <maximumf>, %76, %cst_38 [1] : vector<8x8xf32> to vector<8xf32>
    %78 = vector.shape_cast %77 : vector<8xf32> to vector<8x1xf32>
    %79 = vector.broadcast %78 : vector<8x1xf32> to vector<8x8xf32>
    %80 = arith.subf %76, %79 : vector<8x8xf32>
    %81 = math.exp %80 : vector<8x8xf32>
    %cst_39 = arith.constant dense<0.000000e+00> : vector<8xf32>
    %82 = vector.multi_reduction <add>, %81, %cst_39 [1] : vector<8x8xf32> to vector<8xf32>
    %83 = vector.shape_cast %82 : vector<8xf32> to vector<8x1xf32>
    %84 = tpu.reciprocal %83 {approx = true} : vector<8x1xf32> -> vector<8x1xf32>
    %85 = vector.broadcast %84 : vector<8x1xf32> to vector<8x8xf32>
    %86 = arith.mulf %81, %85 : vector<8x8xf32>
    %87 = arith.truncf %86 : vector<8x8xf32> to vector<8x8xbf16>
    %88 = vector.extract_strided_slice %71 {offsets = [0, 0], sizes = [8, 8], strides = [1, 1]} : vector<8x32xbf16> to vector<8x8xbf16>
    %cst_40 = arith.constant dense<0.000000e+00> : vector<8x8xf32>
    %89 = tpu.matmul %87, %88, %cst_40 {dimension_numbers = #tpu.dot_dimension_numbers<[1], [0], [0], [1], [0, 0, 1, 1], [], []>} : vector<8x8xbf16>, vector<8x8xbf16>, vector<8x8xf32> -> vector<8x8xf32>
    %90 = vector.extract_strided_slice %69 {offsets = [0, 8], sizes = [8, 8], strides = [1, 1]} : vector<8x32xbf16> to vector<8x8xbf16>
    %91 = vector.extract_strided_slice %70 {offsets = [0, 8], sizes = [8, 8], strides = [1, 1]} : vector<8x32xbf16> to vector<8x8xbf16>
    "tpu.trace_start"() <{level = 10 : i32, message = "qd,kd->qk"}> : () -> ()
    %cst_41 = arith.constant dense<0.000000e+00> : vector<8x8xf32>
    %92 = tpu.matmul %90, %91, %cst_41 {dimension_numbers = #tpu.dot_dimension_numbers<[1], [1], [0], [0], [0, 0, 1, 0], [], []>} : vector<8x8xbf16>, vector<8x8xbf16>, vector<8x8xf32> -> vector<8x8xf32>
    "tpu.trace_stop"() : () -> ()
    %93 = vector.broadcast %1 : vector<1x8xf32> to vector<8x8xf32>
    %94 = arith.addf %92, %93 : vector<8x8xf32>
    %cst_42 = arith.constant dense<0xFF800000> : vector<8xf32>
    %95 = vector.multi_reduction <maximumf>, %94, %cst_42 [1] : vector<8x8xf32> to vector<8xf32>
    %96 = vector.shape_cast %95 : vector<8xf32> to vector<8x1xf32>
    %97 = vector.broadcast %96 : vector<8x1xf32> to vector<8x8xf32>
    %98 = arith.subf %94, %97 : vector<8x8xf32>
    %99 = math.exp %98 : vector<8x8xf32>
    %cst_43 = arith.constant dense<0.000000e+00> : vector<8xf32>
    %100 = vector.multi_reduction <add>, %99, %cst_43 [1] : vector<8x8xf32> to vector<8xf32>
    %101 = vector.shape_cast %100 : vector<8xf32> to vector<8x1xf32>
    %102 = tpu.reciprocal %101 {approx = true} : vector<8x1xf32> -> vector<8x1xf32>
    %103 = vector.broadcast %102 : vector<8x1xf32> to vector<8x8xf32>
    %104 = arith.mulf %99, %103 : vector<8x8xf32>
    %105 = arith.truncf %104 : vector<8x8xf32> to vector<8x8xbf16>
    %106 = vector.extract_strided_slice %71 {offsets = [0, 8], sizes = [8, 8], strides = [1, 1]} : vector<8x32xbf16> to vector<8x8xbf16>
    %cst_44 = arith.constant dense<0.000000e+00> : vector<8x8xf32>
    %107 = tpu.matmul %105, %106, %cst_44 {dimension_numbers = #tpu.dot_dimension_numbers<[1], [0], [0], [1], [0, 0, 1, 1], [], []>} : vector<8x8xbf16>, vector<8x8xbf16>, vector<8x8xf32> -> vector<8x8xf32>
    %108 = vector.extract_strided_slice %69 {offsets = [0, 16], sizes = [8, 8], strides = [1, 1]} : vector<8x32xbf16> to vector<8x8xbf16>
    %109 = vector.extract_strided_slice %70 {offsets = [0, 16], sizes = [8, 8], strides = [1, 1]} : vector<8x32xbf16> to vector<8x8xbf16>
    "tpu.trace_start"() <{level = 10 : i32, message = "qd,kd->qk"}> : () -> ()
    %cst_45 = arith.constant dense<0.000000e+00> : vector<8x8xf32>
    %110 = tpu.matmul %108, %109, %cst_45 {dimension_numbers = #tpu.dot_dimension_numbers<[1], [1], [0], [0], [0, 0, 1, 0], [], []>} : vector<8x8xbf16>, vector<8x8xbf16>, vector<8x8xf32> -> vector<8x8xf32>
    "tpu.trace_stop"() : () -> ()
    %111 = vector.broadcast %1 : vector<1x8xf32> to vector<8x8xf32>
    %112 = arith.addf %110, %111 : vector<8x8xf32>
    %cst_46 = arith.constant dense<0xFF800000> : vector<8xf32>
    %113 = vector.multi_reduction <maximumf>, %112, %cst_46 [1] : vector<8x8xf32> to vector<8xf32>
    %114 = vector.shape_cast %113 : vector<8xf32> to vector<8x1xf32>
    %115 = vector.broadcast %114 : vector<8x1xf32> to vector<8x8xf32>
    %116 = arith.subf %112, %115 : vector<8x8xf32>
    %117 = math.exp %116 : vector<8x8xf32>
    %cst_47 = arith.constant dense<0.000000e+00> : vector<8xf32>
    %118 = vector.multi_reduction <add>, %117, %cst_47 [1] : vector<8x8xf32> to vector<8xf32>
    %119 = vector.shape_cast %118 : vector<8xf32> to vector<8x1xf32>
    %120 = tpu.reciprocal %119 {approx = true} : vector<8x1xf32> -> vector<8x1xf32>
    %121 = vector.broadcast %120 : vector<8x1xf32> to vector<8x8xf32>
    %122 = arith.mulf %117, %121 : vector<8x8xf32>
    %123 = arith.truncf %122 : vector<8x8xf32> to vector<8x8xbf16>
    %124 = vector.extract_strided_slice %71 {offsets = [0, 16], sizes = [8, 8], strides = [1, 1]} : vector<8x32xbf16> to vector<8x8xbf16>
    %cst_48 = arith.constant dense<0.000000e+00> : vector<8x8xf32>
    %125 = tpu.matmul %123, %124, %cst_48 {dimension_numbers = #tpu.dot_dimension_numbers<[1], [0], [0], [1], [0, 0, 1, 1], [], []>} : vector<8x8xbf16>, vector<8x8xbf16>, vector<8x8xf32> -> vector<8x8xf32>
    %126 = vector.extract_strided_slice %69 {offsets = [0, 24], sizes = [8, 8], strides = [1, 1]} : vector<8x32xbf16> to vector<8x8xbf16>
    %127 = vector.extract_strided_slice %70 {offsets = [0, 24], sizes = [8, 8], strides = [1, 1]} : vector<8x32xbf16> to vector<8x8xbf16>
    "tpu.trace_start"() <{level = 10 : i32, message = "qd,kd->qk"}> : () -> ()
    %cst_49 = arith.constant dense<0.000000e+00> : vector<8x8xf32>
    %128 = tpu.matmul %126, %127, %cst_49 {dimension_numbers = #tpu.dot_dimension_numbers<[1], [1], [0], [0], [0, 0, 1, 0], [], []>} : vector<8x8xbf16>, vector<8x8xbf16>, vector<8x8xf32> -> vector<8x8xf32>
    "tpu.trace_stop"() : () -> ()
    %129 = vector.broadcast %1 : vector<1x8xf32> to vector<8x8xf32>
    %130 = arith.addf %128, %129 : vector<8x8xf32>
    %cst_50 = arith.constant dense<0xFF800000> : vector<8xf32>
    %131 = vector.multi_reduction <maximumf>, %130, %cst_50 [1] : vector<8x8xf32> to vector<8xf32>
    %132 = vector.shape_cast %131 : vector<8xf32> to vector<8x1xf32>
    %133 = vector.broadcast %132 : vector<8x1xf32> to vector<8x8xf32>
    %134 = arith.subf %130, %133 : vector<8x8xf32>
    %135 = math.exp %134 : vector<8x8xf32>
    %cst_51 = arith.constant dense<0.000000e+00> : vector<8xf32>
    %136 = vector.multi_reduction <add>, %135, %cst_51 [1] : vector<8x8xf32> to vector<8xf32>
    %137 = vector.shape_cast %136 : vector<8xf32> to vector<8x1xf32>
    %138 = tpu.reciprocal %137 {approx = true} : vector<8x1xf32> -> vector<8x1xf32>
    %139 = vector.broadcast %138 : vector<8x1xf32> to vector<8x8xf32>
    %140 = arith.mulf %135, %139 : vector<8x8xf32>
    %141 = arith.truncf %140 : vector<8x8xf32> to vector<8x8xbf16>
    %142 = vector.extract_strided_slice %71 {offsets = [0, 24], sizes = [8, 8], strides = [1, 1]} : vector<8x32xbf16> to vector<8x8xbf16>
    %cst_52 = arith.constant dense<0.000000e+00> : vector<8x8xf32>
    %143 = tpu.matmul %141, %142, %cst_52 {dimension_numbers = #tpu.dot_dimension_numbers<[1], [0], [0], [1], [0, 0, 1, 1], [], []>} : vector<8x8xbf16>, vector<8x8xbf16>, vector<8x8xf32> -> vector<8x8xf32>
    %144 = tpu.concatenate %89, %107, %125, %143 in 1 : vector<8x8xf32>, vector<8x8xf32>, vector<8x8xf32>, vector<8x8xf32> -> vector<8x32xf32>
    %145 = arith.truncf %144 : vector<8x32xf32> to vector<8x32xbf16>
    %cst_53 = arith.constant dense<0.000000e+00> : vector<8x32xf32>
    %146 = tpu.matmul %145, %37, %cst_53 {dimension_numbers = #tpu.dot_dimension_numbers<[1], [0], [0], [1], [0, 0, 1, 1], [], []>} : vector<8x32xbf16>, vector<32x32xbf16>, vector<8x32xf32> -> vector<8x32xf32>
    %147 = arith.addf %27, %146 : vector<8x32xf32>
    %148 = vector.broadcast %39 : vector<1x32xf32> to vector<8x32xf32>
    %149 = arith.addf %147, %148 : vector<8x32xf32>
    %c0_54 = arith.constant 0 : index
    %c0_55 = arith.constant 0 : index
    %c0_56 = arith.constant 0 : index
    %150 = vector.load %arg13[%c0_54, %c0_55, %c0_56] : memref<2x1x32xf32, #tpu.memory_space<vmem>>, vector<1x1x32xf32>
    %151 = vector.shape_cast %150 : vector<1x1x32xf32> to vector<1x32xf32>
    %c0_57 = arith.constant 0 : index
    %c0_58 = arith.constant 0 : index
    %c0_59 = arith.constant 0 : index
    %152 = vector.load %arg14[%c0_57, %c0_58, %c0_59] : memref<2x1x32xf32, #tpu.memory_space<vmem>>, vector<1x1x32xf32>
    %153 = vector.shape_cast %152 : vector<1x1x32xf32> to vector<1x32xf32>
    %c0_60 = arith.constant 0 : index
    %c0_61 = arith.constant 0 : index
    %c0_62 = arith.constant 0 : index
    %154 = vector.load %arg15[%c0_60, %c0_61, %c0_62] : memref<2x32x64xbf16, #tpu.memory_space<vmem>>, vector<1x32x64xbf16>
    %155 = vector.shape_cast %154 : vector<1x32x64xbf16> to vector<32x64xbf16>
    %c0_63 = arith.constant 0 : index
    %c0_64 = arith.constant 0 : index
    %c0_65 = arith.constant 0 : index
    %156 = vector.load %arg16[%c0_63, %c0_64, %c0_65] : memref<2x1x64xf32, #tpu.memory_space<vmem>>, vector<1x1x64xf32>
    %157 = vector.shape_cast %156 : vector<1x1x64xf32> to vector<1x64xf32>
    %c0_66 = arith.constant 0 : index
    %c0_67 = arith.constant 0 : index
    %c0_68 = arith.constant 0 : index
    %158 = vector.load %arg17[%c0_66, %c0_67, %c0_68] : memref<2x64x32xbf16, #tpu.memory_space<vmem>>, vector<1x64x32xbf16>
    %159 = vector.shape_cast %158 : vector<1x64x32xbf16> to vector<64x32xbf16>
    %c0_69 = arith.constant 0 : index
    %c0_70 = arith.constant 0 : index
    %c0_71 = arith.constant 0 : index
    %160 = vector.load %arg18[%c0_69, %c0_70, %c0_71] : memref<2x1x32xf32, #tpu.memory_space<vmem>>, vector<1x1x32xf32>
    %161 = vector.shape_cast %160 : vector<1x1x32xf32> to vector<1x32xf32>
    %cst_72 = arith.constant dense<0.000000e+00> : vector<8xf32>
    %162 = vector.multi_reduction <add>, %149, %cst_72 [1] : vector<8x32xf32> to vector<8xf32>
    %163 = vector.shape_cast %162 : vector<8xf32> to vector<8x1xf32>
    %cst_73 = arith.constant 3.200000e+01 : f32
    %164 = vector.broadcast %cst_73 : f32 to vector<8x1xf32>
    %165 = arith.divf %163, %164 : vector<8x1xf32>
    %166 = vector.broadcast %165 : vector<8x1xf32> to vector<8x32xf32>
    %167 = arith.subf %149, %166 : vector<8x32xf32>
    %168 = arith.mulf %167, %167 : vector<8x32xf32>
    %cst_74 = arith.constant dense<0.000000e+00> : vector<8xf32>
    %169 = vector.multi_reduction <add>, %168, %cst_74 [1] : vector<8x32xf32> to vector<8xf32>
    %170 = vector.shape_cast %169 : vector<8xf32> to vector<8x1xf32>
    %cst_75 = arith.constant 3.200000e+01 : f32
    %171 = vector.broadcast %cst_75 : f32 to vector<8x1xf32>
    %172 = arith.divf %170, %171 : vector<8x1xf32>
    %173 = vector.broadcast %165 : vector<8x1xf32> to vector<8x32xf32>
    %174 = arith.subf %149, %173 : vector<8x32xf32>
    %cst_76 = arith.constant 9.99999974E-6 : f32
    %175 = vector.broadcast %cst_76 : f32 to vector<8x1xf32>
    %176 = arith.addf %172, %175 : vector<8x1xf32>
    %177 = math.rsqrt %176 : vector<8x1xf32>
    %178 = vector.broadcast %177 : vector<8x1xf32> to vector<8x32xf32>
    %179 = arith.mulf %174, %178 : vector<8x32xf32>
    %180 = vector.broadcast %151 : vector<1x32xf32> to vector<8x32xf32>
    %181 = arith.mulf %179, %180 : vector<8x32xf32>
    %182 = vector.broadcast %153 : vector<1x32xf32> to vector<8x32xf32>
    %183 = arith.addf %181, %182 : vector<8x32xf32>
    %184 = arith.truncf %183 : vector<8x32xf32> to vector<8x32xbf16>
    %cst_77 = arith.constant dense<0.000000e+00> : vector<8x64xf32>
    %185 = tpu.matmul %184, %155, %cst_77 {dimension_numbers = #tpu.dot_dimension_numbers<[1], [0], [0], [1], [0, 0, 1, 1], [], []>} : vector<8x32xbf16>, vector<32x64xbf16>, vector<8x64xf32> -> vector<8x64xf32>
    %186 = vector.broadcast %157 : vector<1x64xf32> to vector<8x64xf32>
    %187 = arith.addf %185, %186 : vector<8x64xf32>
    %cst_78 = arith.constant 5.000000e-01 : f32
    %188 = vector.broadcast %cst_78 : f32 to vector<8x64xf32>
    %189 = arith.mulf %188, %187 : vector<8x64xf32>
    %cst_79 = arith.constant 4.471500e-02 : f32
    %190 = vector.broadcast %cst_79 : f32 to vector<8x64xf32>
    %191 = arith.mulf %190, %187 : vector<8x64xf32>
    %192 = arith.mulf %191, %187 : vector<8x64xf32>
    %193 = arith.mulf %192, %187 : vector<8x64xf32>
    %194 = arith.addf %187, %193 : vector<8x64xf32>
    %cst_80 = arith.constant 0.797884583 : f32
    %195 = vector.broadcast %cst_80 : f32 to vector<8x64xf32>
    %196 = arith.mulf %195, %194 : vector<8x64xf32>
    %197 = math.tanh %196 : vector<8x64xf32>
    %cst_81 = arith.constant 1.000000e+00 : f32
    %198 = vector.broadcast %cst_81 : f32 to vector<8x64xf32>
    %199 = arith.addf %198, %197 : vector<8x64xf32>
    %200 = arith.mulf %189, %199 : vector<8x64xf32>
    %201 = arith.truncf %200 : vector<8x64xf32> to vector<8x64xbf16>
    %cst_82 = arith.constant dense<0.000000e+00> : vector<8x32xf32>
    %202 = tpu.matmul %201, %159, %cst_82 {dimension_numbers = #tpu.dot_dimension_numbers<[1], [0], [0], [1], [0, 0, 1, 1], [], []>} : vector<8x64xbf16>, vector<64x32xbf16>, vector<8x32xf32> -> vector<8x32xf32>
    %203 = arith.addf %149, %202 : vector<8x32xf32>
    %204 = vector.broadcast %161 : vector<1x32xf32> to vector<8x32xf32>
    %205 = arith.addf %203, %204 : vector<8x32xf32>
    %c1 = arith.constant 1 : index
    %c0_83 = arith.constant 0 : index
    %c0_84 = arith.constant 0 : index
    %206 = vector.load %arg7[%c1, %c0_83, %c0_84] : memref<2x1x32xf32, #tpu.memory_space<vmem>>, vector<1x1x32xf32>
    %207 = vector.shape_cast %206 : vector<1x1x32xf32> to vector<1x32xf32>
    %c1_85 = arith.constant 1 : index
    %c0_86 = arith.constant 0 : index
    %c0_87 = arith.constant 0 : index
    %208 = vector.load %arg8[%c1_85, %c0_86, %c0_87] : memref<2x1x32xf32, #tpu.memory_space<vmem>>, vector<1x1x32xf32>
    %209 = vector.shape_cast %208 : vector<1x1x32xf32> to vector<1x32xf32>
    %c1_88 = arith.constant 1 : index
    %c0_89 = arith.constant 0 : index
    %c0_90 = arith.constant 0 : index
    %210 = vector.load %arg9[%c1_88, %c0_89, %c0_90] : memref<2x32x96xbf16, #tpu.memory_space<vmem>>, vector<1x32x96xbf16>
    %211 = vector.shape_cast %210 : vector<1x32x96xbf16> to vector<32x96xbf16>
    %c1_91 = arith.constant 1 : index
    %c0_92 = arith.constant 0 : index
    %c0_93 = arith.constant 0 : index
    %212 = vector.load %arg10[%c1_91, %c0_92, %c0_93] : memref<2x1x96xf32, #tpu.memory_space<vmem>>, vector<1x1x96xf32>
    %213 = vector.shape_cast %212 : vector<1x1x96xf32> to vector<1x96xf32>
    %c1_94 = arith.constant 1 : index
    %c0_95 = arith.constant 0 : index
    %c0_96 = arith.constant 0 : index
    %214 = vector.load %arg11[%c1_94, %c0_95, %c0_96] : memref<2x32x32xbf16, #tpu.memory_space<vmem>>, vector<1x32x32xbf16>
    %215 = vector.shape_cast %214 : vector<1x32x32xbf16> to vector<32x32xbf16>
    %c1_97 = arith.constant 1 : index
    %c0_98 = arith.constant 0 : index
    %c0_99 = arith.constant 0 : index
    %216 = vector.load %arg12[%c1_97, %c0_98, %c0_99] : memref<2x1x32xf32, #tpu.memory_space<vmem>>, vector<1x1x32xf32>
    %217 = vector.shape_cast %216 : vector<1x1x32xf32> to vector<1x32xf32>
    %cst_100 = arith.constant dense<0.000000e+00> : vector<8xf32>
    %218 = vector.multi_reduction <add>, %205, %cst_100 [1] : vector<8x32xf32> to vector<8xf32>
    %219 = vector.shape_cast %218 : vector<8xf32> to vector<8x1xf32>
    %cst_101 = arith.constant 3.200000e+01 : f32
    %220 = vector.broadcast %cst_101 : f32 to vector<8x1xf32>
    %221 = arith.divf %219, %220 : vector<8x1xf32>
    %222 = vector.broadcast %221 : vector<8x1xf32> to vector<8x32xf32>
    %223 = arith.subf %205, %222 : vector<8x32xf32>
    %224 = arith.mulf %223, %223 : vector<8x32xf32>
    %cst_102 = arith.constant dense<0.000000e+00> : vector<8xf32>
    %225 = vector.multi_reduction <add>, %224, %cst_102 [1] : vector<8x32xf32> to vector<8xf32>
    %226 = vector.shape_cast %225 : vector<8xf32> to vector<8x1xf32>
    %cst_103 = arith.constant 3.200000e+01 : f32
    %227 = vector.broadcast %cst_103 : f32 to vector<8x1xf32>
    %228 = arith.divf %226, %227 : vector<8x1xf32>
    %229 = vector.broadcast %221 : vector<8x1xf32> to vector<8x32xf32>
    %230 = arith.subf %205, %229 : vector<8x32xf32>
    %cst_104 = arith.constant 9.99999974E-6 : f32
    %231 = vector.broadcast %cst_104 : f32 to vector<8x1xf32>
    %232 = arith.addf %228, %231 : vector<8x1xf32>
    %233 = math.rsqrt %232 : vector<8x1xf32>
    %234 = vector.broadcast %233 : vector<8x1xf32> to vector<8x32xf32>
    %235 = arith.mulf %230, %234 : vector<8x32xf32>
    %236 = vector.broadcast %207 : vector<1x32xf32> to vector<8x32xf32>
    %237 = arith.mulf %235, %236 : vector<8x32xf32>
    %238 = vector.broadcast %209 : vector<1x32xf32> to vector<8x32xf32>
    %239 = arith.addf %237, %238 : vector<8x32xf32>
    %240 = arith.truncf %239 : vector<8x32xf32> to vector<8x32xbf16>
    %cst_105 = arith.constant dense<0.000000e+00> : vector<8x96xf32>
    %241 = tpu.matmul %240, %211, %cst_105 {dimension_numbers = #tpu.dot_dimension_numbers<[1], [0], [0], [1], [0, 0, 1, 1], [], []>} : vector<8x32xbf16>, vector<32x96xbf16>, vector<8x96xf32> -> vector<8x96xf32>
    %242 = vector.broadcast %213 : vector<1x96xf32> to vector<8x96xf32>
    %243 = arith.addf %241, %242 : vector<8x96xf32>
    %244 = vector.extract_strided_slice %243 {offsets = [0, 0], sizes = [8, 32], strides = [1, 1]} : vector<8x96xf32> to vector<8x32xf32>
    %245 = vector.extract_strided_slice %243 {offsets = [0, 32], sizes = [8, 32], strides = [1, 1]} : vector<8x96xf32> to vector<8x32xf32>
    %246 = vector.extract_strided_slice %243 {offsets = [0, 64], sizes = [8, 32], strides = [1, 1]} : vector<8x96xf32> to vector<8x32xf32>
    %247 = arith.truncf %244 : vector<8x32xf32> to vector<8x32xbf16>
    %248 = arith.truncf %245 : vector<8x32xf32> to vector<8x32xbf16>
    %249 = arith.truncf %246 : vector<8x32xf32> to vector<8x32xbf16>
    %250 = vector.extract_strided_slice %247 {offsets = [0, 0], sizes = [8, 8], strides = [1, 1]} : vector<8x32xbf16> to vector<8x8xbf16>
    %251 = vector.extract_strided_slice %248 {offsets = [0, 0], sizes = [8, 8], strides = [1, 1]} : vector<8x32xbf16> to vector<8x8xbf16>
    "tpu.trace_start"() <{level = 10 : i32, message = "qd,kd->qk"}> : () -> ()
    %cst_106 = arith.constant dense<0.000000e+00> : vector<8x8xf32>
    %252 = tpu.matmul %250, %251, %cst_106 {dimension_numbers = #tpu.dot_dimension_numbers<[1], [1], [0], [0], [0, 0, 1, 0], [], []>} : vector<8x8xbf16>, vector<8x8xbf16>, vector<8x8xf32> -> vector<8x8xf32>
    "tpu.trace_stop"() : () -> ()
    %253 = vector.broadcast %1 : vector<1x8xf32> to vector<8x8xf32>
    %254 = arith.addf %252, %253 : vector<8x8xf32>
    %cst_107 = arith.constant dense<0xFF800000> : vector<8xf32>
    %255 = vector.multi_reduction <maximumf>, %254, %cst_107 [1] : vector<8x8xf32> to vector<8xf32>
    %256 = vector.shape_cast %255 : vector<8xf32> to vector<8x1xf32>
    %257 = vector.broadcast %256 : vector<8x1xf32> to vector<8x8xf32>
    %258 = arith.subf %254, %257 : vector<8x8xf32>
    %259 = math.exp %258 : vector<8x8xf32>
    %cst_108 = arith.constant dense<0.000000e+00> : vector<8xf32>
    %260 = vector.multi_reduction <add>, %259, %cst_108 [1] : vector<8x8xf32> to vector<8xf32>
    %261 = vector.shape_cast %260 : vector<8xf32> to vector<8x1xf32>
    %262 = tpu.reciprocal %261 {approx = true} : vector<8x1xf32> -> vector<8x1xf32>
    %263 = vector.broadcast %262 : vector<8x1xf32> to vector<8x8xf32>
    %264 = arith.mulf %259, %263 : vector<8x8xf32>
    %265 = arith.truncf %264 : vector<8x8xf32> to vector<8x8xbf16>
    %266 = vector.extract_strided_slice %249 {offsets = [0, 0], sizes = [8, 8], strides = [1, 1]} : vector<8x32xbf16> to vector<8x8xbf16>
    %cst_109 = arith.constant dense<0.000000e+00> : vector<8x8xf32>
    %267 = tpu.matmul %265, %266, %cst_109 {dimension_numbers = #tpu.dot_dimension_numbers<[1], [0], [0], [1], [0, 0, 1, 1], [], []>} : vector<8x8xbf16>, vector<8x8xbf16>, vector<8x8xf32> -> vector<8x8xf32>
    %268 = vector.extract_strided_slice %247 {offsets = [0, 8], sizes = [8, 8], strides = [1, 1]} : vector<8x32xbf16> to vector<8x8xbf16>
    %269 = vector.extract_strided_slice %248 {offsets = [0, 8], sizes = [8, 8], strides = [1, 1]} : vector<8x32xbf16> to vector<8x8xbf16>
    "tpu.trace_start"() <{level = 10 : i32, message = "qd,kd->qk"}> : () -> ()
    %cst_110 = arith.constant dense<0.000000e+00> : vector<8x8xf32>
    %270 = tpu.matmul %268, %269, %cst_110 {dimension_numbers = #tpu.dot_dimension_numbers<[1], [1], [0], [0], [0, 0, 1, 0], [], []>} : vector<8x8xbf16>, vector<8x8xbf16>, vector<8x8xf32> -> vector<8x8xf32>
    "tpu.trace_stop"() : () -> ()
    %271 = vector.broadcast %1 : vector<1x8xf32> to vector<8x8xf32>
    %272 = arith.addf %270, %271 : vector<8x8xf32>
    %cst_111 = arith.constant dense<0xFF800000> : vector<8xf32>
    %273 = vector.multi_reduction <maximumf>, %272, %cst_111 [1] : vector<8x8xf32> to vector<8xf32>
    %274 = vector.shape_cast %273 : vector<8xf32> to vector<8x1xf32>
    %275 = vector.broadcast %274 : vector<8x1xf32> to vector<8x8xf32>
    %276 = arith.subf %272, %275 : vector<8x8xf32>
    %277 = math.exp %276 : vector<8x8xf32>
    %cst_112 = arith.constant dense<0.000000e+00> : vector<8xf32>
    %278 = vector.multi_reduction <add>, %277, %cst_112 [1] : vector<8x8xf32> to vector<8xf32>
    %279 = vector.shape_cast %278 : vector<8xf32> to vector<8x1xf32>
    %280 = tpu.reciprocal %279 {approx = true} : vector<8x1xf32> -> vector<8x1xf32>
    %281 = vector.broadcast %280 : vector<8x1xf32> to vector<8x8xf32>
    %282 = arith.mulf %277, %281 : vector<8x8xf32>
    %283 = arith.truncf %282 : vector<8x8xf32> to vector<8x8xbf16>
    %284 = vector.extract_strided_slice %249 {offsets = [0, 8], sizes = [8, 8], strides = [1, 1]} : vector<8x32xbf16> to vector<8x8xbf16>
    %cst_113 = arith.constant dense<0.000000e+00> : vector<8x8xf32>
    %285 = tpu.matmul %283, %284, %cst_113 {dimension_numbers = #tpu.dot_dimension_numbers<[1], [0], [0], [1], [0, 0, 1, 1], [], []>} : vector<8x8xbf16>, vector<8x8xbf16>, vector<8x8xf32> -> vector<8x8xf32>
    %286 = vector.extract_strided_slice %247 {offsets = [0, 16], sizes = [8, 8], strides = [1, 1]} : vector<8x32xbf16> to vector<8x8xbf16>
    %287 = vector.extract_strided_slice %248 {offsets = [0, 16], sizes = [8, 8], strides = [1, 1]} : vector<8x32xbf16> to vector<8x8xbf16>
    "tpu.trace_start"() <{level = 10 : i32, message = "qd,kd->qk"}> : () -> ()
    %cst_114 = arith.constant dense<0.000000e+00> : vector<8x8xf32>
    %288 = tpu.matmul %286, %287, %cst_114 {dimension_numbers = #tpu.dot_dimension_numbers<[1], [1], [0], [0], [0, 0, 1, 0], [], []>} : vector<8x8xbf16>, vector<8x8xbf16>, vector<8x8xf32> -> vector<8x8xf32>
    "tpu.trace_stop"() : () -> ()
    %289 = vector.broadcast %1 : vector<1x8xf32> to vector<8x8xf32>
    %290 = arith.addf %288, %289 : vector<8x8xf32>
    %cst_115 = arith.constant dense<0xFF800000> : vector<8xf32>
    %291 = vector.multi_reduction <maximumf>, %290, %cst_115 [1] : vector<8x8xf32> to vector<8xf32>
    %292 = vector.shape_cast %291 : vector<8xf32> to vector<8x1xf32>
    %293 = vector.broadcast %292 : vector<8x1xf32> to vector<8x8xf32>
    %294 = arith.subf %290, %293 : vector<8x8xf32>
    %295 = math.exp %294 : vector<8x8xf32>
    %cst_116 = arith.constant dense<0.000000e+00> : vector<8xf32>
    %296 = vector.multi_reduction <add>, %295, %cst_116 [1] : vector<8x8xf32> to vector<8xf32>
    %297 = vector.shape_cast %296 : vector<8xf32> to vector<8x1xf32>
    %298 = tpu.reciprocal %297 {approx = true} : vector<8x1xf32> -> vector<8x1xf32>
    %299 = vector.broadcast %298 : vector<8x1xf32> to vector<8x8xf32>
    %300 = arith.mulf %295, %299 : vector<8x8xf32>
    %301 = arith.truncf %300 : vector<8x8xf32> to vector<8x8xbf16>
    %302 = vector.extract_strided_slice %249 {offsets = [0, 16], sizes = [8, 8], strides = [1, 1]} : vector<8x32xbf16> to vector<8x8xbf16>
    %cst_117 = arith.constant dense<0.000000e+00> : vector<8x8xf32>
    %303 = tpu.matmul %301, %302, %cst_117 {dimension_numbers = #tpu.dot_dimension_numbers<[1], [0], [0], [1], [0, 0, 1, 1], [], []>} : vector<8x8xbf16>, vector<8x8xbf16>, vector<8x8xf32> -> vector<8x8xf32>
    %304 = vector.extract_strided_slice %247 {offsets = [0, 24], sizes = [8, 8], strides = [1, 1]} : vector<8x32xbf16> to vector<8x8xbf16>
    %305 = vector.extract_strided_slice %248 {offsets = [0, 24], sizes = [8, 8], strides = [1, 1]} : vector<8x32xbf16> to vector<8x8xbf16>
    "tpu.trace_start"() <{level = 10 : i32, message = "qd,kd->qk"}> : () -> ()
    %cst_118 = arith.constant dense<0.000000e+00> : vector<8x8xf32>
    %306 = tpu.matmul %304, %305, %cst_118 {dimension_numbers = #tpu.dot_dimension_numbers<[1], [1], [0], [0], [0, 0, 1, 0], [], []>} : vector<8x8xbf16>, vector<8x8xbf16>, vector<8x8xf32> -> vector<8x8xf32>
    "tpu.trace_stop"() : () -> ()
    %307 = vector.broadcast %1 : vector<1x8xf32> to vector<8x8xf32>
    %308 = arith.addf %306, %307 : vector<8x8xf32>
    %cst_119 = arith.constant dense<0xFF800000> : vector<8xf32>
    %309 = vector.multi_reduction <maximumf>, %308, %cst_119 [1] : vector<8x8xf32> to vector<8xf32>
    %310 = vector.shape_cast %309 : vector<8xf32> to vector<8x1xf32>
    %311 = vector.broadcast %310 : vector<8x1xf32> to vector<8x8xf32>
    %312 = arith.subf %308, %311 : vector<8x8xf32>
    %313 = math.exp %312 : vector<8x8xf32>
    %cst_120 = arith.constant dense<0.000000e+00> : vector<8xf32>
    %314 = vector.multi_reduction <add>, %313, %cst_120 [1] : vector<8x8xf32> to vector<8xf32>
    %315 = vector.shape_cast %314 : vector<8xf32> to vector<8x1xf32>
    %316 = tpu.reciprocal %315 {approx = true} : vector<8x1xf32> -> vector<8x1xf32>
    %317 = vector.broadcast %316 : vector<8x1xf32> to vector<8x8xf32>
    %318 = arith.mulf %313, %317 : vector<8x8xf32>
    %319 = arith.truncf %318 : vector<8x8xf32> to vector<8x8xbf16>
    %320 = vector.extract_strided_slice %249 {offsets = [0, 24], sizes = [8, 8], strides = [1, 1]} : vector<8x32xbf16> to vector<8x8xbf16>
    %cst_121 = arith.constant dense<0.000000e+00> : vector<8x8xf32>
    %321 = tpu.matmul %319, %320, %cst_121 {dimension_numbers = #tpu.dot_dimension_numbers<[1], [0], [0], [1], [0, 0, 1, 1], [], []>} : vector<8x8xbf16>, vector<8x8xbf16>, vector<8x8xf32> -> vector<8x8xf32>
    %322 = tpu.concatenate %267, %285, %303, %321 in 1 : vector<8x8xf32>, vector<8x8xf32>, vector<8x8xf32>, vector<8x8xf32> -> vector<8x32xf32>
    %323 = arith.truncf %322 : vector<8x32xf32> to vector<8x32xbf16>
    %cst_122 = arith.constant dense<0.000000e+00> : vector<8x32xf32>
    %324 = tpu.matmul %323, %215, %cst_122 {dimension_numbers = #tpu.dot_dimension_numbers<[1], [0], [0], [1], [0, 0, 1, 1], [], []>} : vector<8x32xbf16>, vector<32x32xbf16>, vector<8x32xf32> -> vector<8x32xf32>
    %325 = arith.addf %205, %324 : vector<8x32xf32>
    %326 = vector.broadcast %217 : vector<1x32xf32> to vector<8x32xf32>
    %327 = arith.addf %325, %326 : vector<8x32xf32>
    %c1_123 = arith.constant 1 : index
    %c0_124 = arith.constant 0 : index
    %c0_125 = arith.constant 0 : index
    %328 = vector.load %arg13[%c1_123, %c0_124, %c0_125] : memref<2x1x32xf32, #tpu.memory_space<vmem>>, vector<1x1x32xf32>
    %329 = vector.shape_cast %328 : vector<1x1x32xf32> to vector<1x32xf32>
    %c1_126 = arith.constant 1 : index
    %c0_127 = arith.constant 0 : index
    %c0_128 = arith.constant 0 : index
    %330 = vector.load %arg14[%c1_126, %c0_127, %c0_128] : memref<2x1x32xf32, #tpu.memory_space<vmem>>, vector<1x1x32xf32>
    %331 = vector.shape_cast %330 : vector<1x1x32xf32> to vector<1x32xf32>
    %c1_129 = arith.constant 1 : index
    %c0_130 = arith.constant 0 : index
    %c0_131 = arith.constant 0 : index
    %332 = vector.load %arg15[%c1_129, %c0_130, %c0_131] : memref<2x32x64xbf16, #tpu.memory_space<vmem>>, vector<1x32x64xbf16>
    %333 = vector.shape_cast %332 : vector<1x32x64xbf16> to vector<32x64xbf16>
    %c1_132 = arith.constant 1 : index
    %c0_133 = arith.constant 0 : index
    %c0_134 = arith.constant 0 : index
    %334 = vector.load %arg16[%c1_132, %c0_133, %c0_134] : memref<2x1x64xf32, #tpu.memory_space<vmem>>, vector<1x1x64xf32>
    %335 = vector.shape_cast %334 : vector<1x1x64xf32> to vector<1x64xf32>
    %c1_135 = arith.constant 1 : index
    %c0_136 = arith.constant 0 : index
    %c0_137 = arith.constant 0 : index
    %336 = vector.load %arg17[%c1_135, %c0_136, %c0_137] : memref<2x64x32xbf16, #tpu.memory_space<vmem>>, vector<1x64x32xbf16>
    %337 = vector.shape_cast %336 : vector<1x64x32xbf16> to vector<64x32xbf16>
    %c1_138 = arith.constant 1 : index
    %c0_139 = arith.constant 0 : index
    %c0_140 = arith.constant 0 : index
    %338 = vector.load %arg18[%c1_138, %c0_139, %c0_140] : memref<2x1x32xf32, #tpu.memory_space<vmem>>, vector<1x1x32xf32>
    %339 = vector.shape_cast %338 : vector<1x1x32xf32> to vector<1x32xf32>
    %cst_141 = arith.constant dense<0.000000e+00> : vector<8xf32>
    %340 = vector.multi_reduction <add>, %327, %cst_141 [1] : vector<8x32xf32> to vector<8xf32>
    %341 = vector.shape_cast %340 : vector<8xf32> to vector<8x1xf32>
    %cst_142 = arith.constant 3.200000e+01 : f32
    %342 = vector.broadcast %cst_142 : f32 to vector<8x1xf32>
    %343 = arith.divf %341, %342 : vector<8x1xf32>
    %344 = vector.broadcast %343 : vector<8x1xf32> to vector<8x32xf32>
    %345 = arith.subf %327, %344 : vector<8x32xf32>
    %346 = arith.mulf %345, %345 : vector<8x32xf32>
    %cst_143 = arith.constant dense<0.000000e+00> : vector<8xf32>
    %347 = vector.multi_reduction <add>, %346, %cst_143 [1] : vector<8x32xf32> to vector<8xf32>
    %348 = vector.shape_cast %347 : vector<8xf32> to vector<8x1xf32>
    %cst_144 = arith.constant 3.200000e+01 : f32
    %349 = vector.broadcast %cst_144 : f32 to vector<8x1xf32>
    %350 = arith.divf %348, %349 : vector<8x1xf32>
    %351 = vector.broadcast %343 : vector<8x1xf32> to vector<8x32xf32>
    %352 = arith.subf %327, %351 : vector<8x32xf32>
    %cst_145 = arith.constant 9.99999974E-6 : f32
    %353 = vector.broadcast %cst_145 : f32 to vector<8x1xf32>
    %354 = arith.addf %350, %353 : vector<8x1xf32>
    %355 = math.rsqrt %354 : vector<8x1xf32>
    %356 = vector.broadcast %355 : vector<8x1xf32> to vector<8x32xf32>
    %357 = arith.mulf %352, %356 : vector<8x32xf32>
    %358 = vector.broadcast %329 : vector<1x32xf32> to vector<8x32xf32>
    %359 = arith.mulf %357, %358 : vector<8x32xf32>
    %360 = vector.broadcast %331 : vector<1x32xf32> to vector<8x32xf32>
    %361 = arith.addf %359, %360 : vector<8x32xf32>
    %362 = arith.truncf %361 : vector<8x32xf32> to vector<8x32xbf16>
    %cst_146 = arith.constant dense<0.000000e+00> : vector<8x64xf32>
    %363 = tpu.matmul %362, %333, %cst_146 {dimension_numbers = #tpu.dot_dimension_numbers<[1], [0], [0], [1], [0, 0, 1, 1], [], []>} : vector<8x32xbf16>, vector<32x64xbf16>, vector<8x64xf32> -> vector<8x64xf32>
    %364 = vector.broadcast %335 : vector<1x64xf32> to vector<8x64xf32>
    %365 = arith.addf %363, %364 : vector<8x64xf32>
    %cst_147 = arith.constant 5.000000e-01 : f32
    %366 = vector.broadcast %cst_147 : f32 to vector<8x64xf32>
    %367 = arith.mulf %366, %365 : vector<8x64xf32>
    %cst_148 = arith.constant 4.471500e-02 : f32
    %368 = vector.broadcast %cst_148 : f32 to vector<8x64xf32>
    %369 = arith.mulf %368, %365 : vector<8x64xf32>
    %370 = arith.mulf %369, %365 : vector<8x64xf32>
    %371 = arith.mulf %370, %365 : vector<8x64xf32>
    %372 = arith.addf %365, %371 : vector<8x64xf32>
    %cst_149 = arith.constant 0.797884583 : f32
    %373 = vector.broadcast %cst_149 : f32 to vector<8x64xf32>
    %374 = arith.mulf %373, %372 : vector<8x64xf32>
    %375 = math.tanh %374 : vector<8x64xf32>
    %cst_150 = arith.constant 1.000000e+00 : f32
    %376 = vector.broadcast %cst_150 : f32 to vector<8x64xf32>
    %377 = arith.addf %376, %375 : vector<8x64xf32>
    %378 = arith.mulf %367, %377 : vector<8x64xf32>
    %379 = arith.truncf %378 : vector<8x64xf32> to vector<8x64xbf16>
    %cst_151 = arith.constant dense<0.000000e+00> : vector<8x32xf32>
    %380 = tpu.matmul %379, %337, %cst_151 {dimension_numbers = #tpu.dot_dimension_numbers<[1], [0], [0], [1], [0, 0, 1, 1], [], []>} : vector<8x64xbf16>, vector<64x32xbf16>, vector<8x32xf32> -> vector<8x32xf32>
    %381 = arith.addf %327, %380 : vector<8x32xf32>
    %382 = vector.broadcast %339 : vector<1x32xf32> to vector<8x32xf32>
    %383 = arith.addf %381, %382 : vector<8x32xf32>
    %c0_152 = arith.constant 0 : index
    %c0_153 = arith.constant 0 : index
    %384 = vector.load %arg19[%c0_152, %c0_153] : memref<1x32xf32, #tpu.memory_space<vmem>>, vector<1x32xf32>
    %c0_154 = arith.constant 0 : index
    %c0_155 = arith.constant 0 : index
    %385 = vector.load %arg20[%c0_154, %c0_155] : memref<1x32xf32, #tpu.memory_space<vmem>>, vector<1x32xf32>
    %cst_156 = arith.constant dense<0.000000e+00> : vector<8xf32>
    %386 = vector.multi_reduction <add>, %383, %cst_156 [1] : vector<8x32xf32> to vector<8xf32>
    %387 = vector.shape_cast %386 : vector<8xf32> to vector<8x1xf32>
    %cst_157 = arith.constant 3.200000e+01 : f32
    %388 = vector.broadcast %cst_157 : f32 to vector<8x1xf32>
    %389 = arith.divf %387, %388 : vector<8x1xf32>
    %390 = vector.broadcast %389 : vector<8x1xf32> to vector<8x32xf32>
    %391 = arith.subf %383, %390 : vector<8x32xf32>
    %392 = arith.mulf %391, %391 : vector<8x32xf32>
    %cst_158 = arith.constant dense<0.000000e+00> : vector<8xf32>
    %393 = vector.multi_reduction <add>, %392, %cst_158 [1] : vector<8x32xf32> to vector<8xf32>
    %394 = vector.shape_cast %393 : vector<8xf32> to vector<8x1xf32>
    %cst_159 = arith.constant 3.200000e+01 : f32
    %395 = vector.broadcast %cst_159 : f32 to vector<8x1xf32>
    %396 = arith.divf %394, %395 : vector<8x1xf32>
    %397 = vector.broadcast %389 : vector<8x1xf32> to vector<8x32xf32>
    %398 = arith.subf %383, %397 : vector<8x32xf32>
    %cst_160 = arith.constant 9.99999974E-6 : f32
    %399 = vector.broadcast %cst_160 : f32 to vector<8x1xf32>
    %400 = arith.addf %396, %399 : vector<8x1xf32>
    %401 = math.rsqrt %400 : vector<8x1xf32>
    %402 = vector.broadcast %401 : vector<8x1xf32> to vector<8x32xf32>
    %403 = arith.mulf %398, %402 : vector<8x32xf32>
    %404 = vector.broadcast %384 : vector<1x32xf32> to vector<8x32xf32>
    %405 = arith.mulf %403, %404 : vector<8x32xf32>
    %406 = vector.broadcast %385 : vector<1x32xf32> to vector<8x32xf32>
    %407 = arith.addf %405, %406 : vector<8x32xf32>
    %408 = arith.truncf %407 : vector<8x32xf32> to vector<8x32xbf16>
    %409 = tpu.iota {dimensions = array<i32: 0>} : vector<8x8xi32>
    %410 = tpu.iota {dimensions = array<i32: 1>} : vector<8x8xi32>
    %411 = arith.cmpi sgt, %410, %409 : vector<8x8xi32>
    %cst_161 = arith.constant -1.000000e+09 : f32
    %cst_162 = arith.constant 0.000000e+00 : f32
    %412 = vector.broadcast %cst_161 : f32 to vector<8x8xf32>
    %413 = vector.broadcast %cst_162 : f32 to vector<8x8xf32>
    %414 = arith.select %411, %412, %413 : vector<8x8xi1>, vector<8x8xf32>
    %c0_163 = arith.constant 0 : index
    %c0_164 = arith.constant 0 : index
    %c0_165 = arith.constant 0 : index
    %415 = vector.load %arg4[%c0_163, %c0_164, %c0_165] : memref<1x1x8xf32, #tpu.memory_space<vmem>>, vector<1x1x8xf32>
    %416 = vector.shape_cast %415 : vector<1x1x8xf32> to vector<1x8xf32>
    %417 = vector.broadcast %416 : vector<1x8xf32> to vector<8x8xf32>
    %418 = arith.addf %417, %414 : vector<8x8xf32>
    %cst_166 = arith.constant -1.000000e+09 : f32
    %419 = vector.broadcast %cst_166 : f32 to vector<8x8xf32>
    %420 = arith.maximumf %418, %419 : vector<8x8xf32>
    %c0_167 = arith.constant 0 : index
    %c0_168 = arith.constant 0 : index
    %c0_169 = arith.constant 0 : index
    %421 = vector.load %arg2[%c0_167, %c0_168, %c0_169] : memref<1x8x32xf32, #tpu.memory_space<vmem>>, vector<1x8x32xf32>
    %422 = vector.shape_cast %421 : vector<1x8x32xf32> to vector<8x32xf32>
    %c0_170 = arith.constant 0 : index
    %c0_171 = arith.constant 0 : index
    %423 = vector.load %arg21[%c0_170, %c0_171] : memref<1x32xf32, #tpu.memory_space<vmem>>, vector<1x32xf32>
    %c0_172 = arith.constant 0 : index
    %c0_173 = arith.constant 0 : index
    %424 = vector.load %arg22[%c0_172, %c0_173] : memref<1x32xf32, #tpu.memory_space<vmem>>, vector<1x32xf32>
    %cst_174 = arith.constant dense<0.000000e+00> : vector<8xf32>
    %425 = vector.multi_reduction <add>, %422, %cst_174 [1] : vector<8x32xf32> to vector<8xf32>
    %426 = vector.shape_cast %425 : vector<8xf32> to vector<8x1xf32>
    %cst_175 = arith.constant 3.200000e+01 : f32
    %427 = vector.broadcast %cst_175 : f32 to vector<8x1xf32>
    %428 = arith.divf %426, %427 : vector<8x1xf32>
    %429 = vector.broadcast %428 : vector<8x1xf32> to vector<8x32xf32>
    %430 = arith.subf %422, %429 : vector<8x32xf32>
    %431 = arith.mulf %430, %430 : vector<8x32xf32>
    %cst_176 = arith.constant dense<0.000000e+00> : vector<8xf32>
    %432 = vector.multi_reduction <add>, %431, %cst_176 [1] : vector<8x32xf32> to vector<8xf32>
    %433 = vector.shape_cast %432 : vector<8xf32> to vector<8x1xf32>
    %cst_177 = arith.constant 3.200000e+01 : f32
    %434 = vector.broadcast %cst_177 : f32 to vector<8x1xf32>
    %435 = arith.divf %433, %434 : vector<8x1xf32>
    %436 = vector.broadcast %428 : vector<8x1xf32> to vector<8x32xf32>
    %437 = arith.subf %422, %436 : vector<8x32xf32>
    %cst_178 = arith.constant 9.99999974E-6 : f32
    %438 = vector.broadcast %cst_178 : f32 to vector<8x1xf32>
    %439 = arith.addf %435, %438 : vector<8x1xf32>
    %440 = math.rsqrt %439 : vector<8x1xf32>
    %441 = vector.broadcast %440 : vector<8x1xf32> to vector<8x32xf32>
    %442 = arith.mulf %437, %441 : vector<8x32xf32>
    %443 = vector.broadcast %423 : vector<1x32xf32> to vector<8x32xf32>
    %444 = arith.mulf %442, %443 : vector<8x32xf32>
    %445 = vector.broadcast %424 : vector<1x32xf32> to vector<8x32xf32>
    %446 = arith.addf %444, %445 : vector<8x32xf32>
    %c0_179 = arith.constant 0 : index
    %c0_180 = arith.constant 0 : index
    %c0_181 = arith.constant 0 : index
    %447 = vector.load %arg23[%c0_179, %c0_180, %c0_181] : memref<2x1x32xf32, #tpu.memory_space<vmem>>, vector<1x1x32xf32>
    %448 = vector.shape_cast %447 : vector<1x1x32xf32> to vector<1x32xf32>
    %c0_182 = arith.constant 0 : index
    %c0_183 = arith.constant 0 : index
    %c0_184 = arith.constant 0 : index
    %449 = vector.load %arg24[%c0_182, %c0_183, %c0_184] : memref<2x1x32xf32, #tpu.memory_space<vmem>>, vector<1x1x32xf32>
    %450 = vector.shape_cast %449 : vector<1x1x32xf32> to vector<1x32xf32>
    %c0_185 = arith.constant 0 : index
    %c0_186 = arith.constant 0 : index
    %c0_187 = arith.constant 0 : index
    %451 = vector.load %arg25[%c0_185, %c0_186, %c0_187] : memref<2x32x96xbf16, #tpu.memory_space<vmem>>, vector<1x32x96xbf16>
    %452 = vector.shape_cast %451 : vector<1x32x96xbf16> to vector<32x96xbf16>
    %c0_188 = arith.constant 0 : index
    %c0_189 = arith.constant 0 : index
    %c0_190 = arith.constant 0 : index
    %453 = vector.load %arg26[%c0_188, %c0_189, %c0_190] : memref<2x1x96xf32, #tpu.memory_space<vmem>>, vector<1x1x96xf32>
    %454 = vector.shape_cast %453 : vector<1x1x96xf32> to vector<1x96xf32>
    %c0_191 = arith.constant 0 : index
    %c0_192 = arith.constant 0 : index
    %c0_193 = arith.constant 0 : index
    %455 = vector.load %arg27[%c0_191, %c0_192, %c0_193] : memref<2x32x32xbf16, #tpu.memory_space<vmem>>, vector<1x32x32xbf16>
    %456 = vector.shape_cast %455 : vector<1x32x32xbf16> to vector<32x32xbf16>
    %c0_194 = arith.constant 0 : index
    %c0_195 = arith.constant 0 : index
    %c0_196 = arith.constant 0 : index
    %457 = vector.load %arg28[%c0_194, %c0_195, %c0_196] : memref<2x1x32xf32, #tpu.memory_space<vmem>>, vector<1x1x32xf32>
    %458 = vector.shape_cast %457 : vector<1x1x32xf32> to vector<1x32xf32>
    %cst_197 = arith.constant dense<0.000000e+00> : vector<8xf32>
    %459 = vector.multi_reduction <add>, %446, %cst_197 [1] : vector<8x32xf32> to vector<8xf32>
    %460 = vector.shape_cast %459 : vector<8xf32> to vector<8x1xf32>
    %cst_198 = arith.constant 3.200000e+01 : f32
    %461 = vector.broadcast %cst_198 : f32 to vector<8x1xf32>
    %462 = arith.divf %460, %461 : vector<8x1xf32>
    %463 = vector.broadcast %462 : vector<8x1xf32> to vector<8x32xf32>
    %464 = arith.subf %446, %463 : vector<8x32xf32>
    %465 = arith.mulf %464, %464 : vector<8x32xf32>
    %cst_199 = arith.constant dense<0.000000e+00> : vector<8xf32>
    %466 = vector.multi_reduction <add>, %465, %cst_199 [1] : vector<8x32xf32> to vector<8xf32>
    %467 = vector.shape_cast %466 : vector<8xf32> to vector<8x1xf32>
    %cst_200 = arith.constant 3.200000e+01 : f32
    %468 = vector.broadcast %cst_200 : f32 to vector<8x1xf32>
    %469 = arith.divf %467, %468 : vector<8x1xf32>
    %470 = vector.broadcast %462 : vector<8x1xf32> to vector<8x32xf32>
    %471 = arith.subf %446, %470 : vector<8x32xf32>
    %cst_201 = arith.constant 9.99999974E-6 : f32
    %472 = vector.broadcast %cst_201 : f32 to vector<8x1xf32>
    %473 = arith.addf %469, %472 : vector<8x1xf32>
    %474 = math.rsqrt %473 : vector<8x1xf32>
    %475 = vector.broadcast %474 : vector<8x1xf32> to vector<8x32xf32>
    %476 = arith.mulf %471, %475 : vector<8x32xf32>
    %477 = vector.broadcast %448 : vector<1x32xf32> to vector<8x32xf32>
    %478 = arith.mulf %476, %477 : vector<8x32xf32>
    %479 = vector.broadcast %450 : vector<1x32xf32> to vector<8x32xf32>
    %480 = arith.addf %478, %479 : vector<8x32xf32>
    %481 = arith.truncf %480 : vector<8x32xf32> to vector<8x32xbf16>
    %cst_202 = arith.constant dense<0.000000e+00> : vector<8x96xf32>
    %482 = tpu.matmul %481, %452, %cst_202 {dimension_numbers = #tpu.dot_dimension_numbers<[1], [0], [0], [1], [0, 0, 1, 1], [], []>} : vector<8x32xbf16>, vector<32x96xbf16>, vector<8x96xf32> -> vector<8x96xf32>
    %483 = vector.broadcast %454 : vector<1x96xf32> to vector<8x96xf32>
    %484 = arith.addf %482, %483 : vector<8x96xf32>
    %485 = vector.extract_strided_slice %484 {offsets = [0, 0], sizes = [8, 32], strides = [1, 1]} : vector<8x96xf32> to vector<8x32xf32>
    %486 = vector.extract_strided_slice %484 {offsets = [0, 32], sizes = [8, 32], strides = [1, 1]} : vector<8x96xf32> to vector<8x32xf32>
    %487 = vector.extract_strided_slice %484 {offsets = [0, 64], sizes = [8, 32], strides = [1, 1]} : vector<8x96xf32> to vector<8x32xf32>
    %488 = arith.truncf %485 : vector<8x32xf32> to vector<8x32xbf16>
    %489 = arith.truncf %486 : vector<8x32xf32> to vector<8x32xbf16>
    %490 = arith.truncf %487 : vector<8x32xf32> to vector<8x32xbf16>
    %491 = vector.extract_strided_slice %488 {offsets = [0, 0], sizes = [8, 8], strides = [1, 1]} : vector<8x32xbf16> to vector<8x8xbf16>
    %492 = vector.extract_strided_slice %489 {offsets = [0, 0], sizes = [8, 8], strides = [1, 1]} : vector<8x32xbf16> to vector<8x8xbf16>
    "tpu.trace_start"() <{level = 10 : i32, message = "qd,kd->qk"}> : () -> ()
    %cst_203 = arith.constant dense<0.000000e+00> : vector<8x8xf32>
    %493 = tpu.matmul %491, %492, %cst_203 {dimension_numbers = #tpu.dot_dimension_numbers<[1], [1], [0], [0], [0, 0, 1, 0], [], []>} : vector<8x8xbf16>, vector<8x8xbf16>, vector<8x8xf32> -> vector<8x8xf32>
    "tpu.trace_stop"() : () -> ()
    %494 = arith.addf %493, %420 : vector<8x8xf32>
    %cst_204 = arith.constant dense<0xFF800000> : vector<8xf32>
    %495 = vector.multi_reduction <maximumf>, %494, %cst_204 [1] : vector<8x8xf32> to vector<8xf32>
    %496 = vector.shape_cast %495 : vector<8xf32> to vector<8x1xf32>
    %497 = vector.broadcast %496 : vector<8x1xf32> to vector<8x8xf32>
    %498 = arith.subf %494, %497 : vector<8x8xf32>
    %499 = math.exp %498 : vector<8x8xf32>
    %cst_205 = arith.constant dense<0.000000e+00> : vector<8xf32>
    %500 = vector.multi_reduction <add>, %499, %cst_205 [1] : vector<8x8xf32> to vector<8xf32>
    %501 = vector.shape_cast %500 : vector<8xf32> to vector<8x1xf32>
    %502 = tpu.reciprocal %501 {approx = true} : vector<8x1xf32> -> vector<8x1xf32>
    %503 = vector.broadcast %502 : vector<8x1xf32> to vector<8x8xf32>
    %504 = arith.mulf %499, %503 : vector<8x8xf32>
    %505 = arith.truncf %504 : vector<8x8xf32> to vector<8x8xbf16>
    %506 = vector.extract_strided_slice %490 {offsets = [0, 0], sizes = [8, 8], strides = [1, 1]} : vector<8x32xbf16> to vector<8x8xbf16>
    %cst_206 = arith.constant dense<0.000000e+00> : vector<8x8xf32>
    %507 = tpu.matmul %505, %506, %cst_206 {dimension_numbers = #tpu.dot_dimension_numbers<[1], [0], [0], [1], [0, 0, 1, 1], [], []>} : vector<8x8xbf16>, vector<8x8xbf16>, vector<8x8xf32> -> vector<8x8xf32>
    %508 = vector.extract_strided_slice %488 {offsets = [0, 8], sizes = [8, 8], strides = [1, 1]} : vector<8x32xbf16> to vector<8x8xbf16>
    %509 = vector.extract_strided_slice %489 {offsets = [0, 8], sizes = [8, 8], strides = [1, 1]} : vector<8x32xbf16> to vector<8x8xbf16>
    "tpu.trace_start"() <{level = 10 : i32, message = "qd,kd->qk"}> : () -> ()
    %cst_207 = arith.constant dense<0.000000e+00> : vector<8x8xf32>
    %510 = tpu.matmul %508, %509, %cst_207 {dimension_numbers = #tpu.dot_dimension_numbers<[1], [1], [0], [0], [0, 0, 1, 0], [], []>} : vector<8x8xbf16>, vector<8x8xbf16>, vector<8x8xf32> -> vector<8x8xf32>
    "tpu.trace_stop"() : () -> ()
    %511 = arith.addf %510, %420 : vector<8x8xf32>
    %cst_208 = arith.constant dense<0xFF800000> : vector<8xf32>
    %512 = vector.multi_reduction <maximumf>, %511, %cst_208 [1] : vector<8x8xf32> to vector<8xf32>
    %513 = vector.shape_cast %512 : vector<8xf32> to vector<8x1xf32>
    %514 = vector.broadcast %513 : vector<8x1xf32> to vector<8x8xf32>
    %515 = arith.subf %511, %514 : vector<8x8xf32>
    %516 = math.exp %515 : vector<8x8xf32>
    %cst_209 = arith.constant dense<0.000000e+00> : vector<8xf32>
    %517 = vector.multi_reduction <add>, %516, %cst_209 [1] : vector<8x8xf32> to vector<8xf32>
    %518 = vector.shape_cast %517 : vector<8xf32> to vector<8x1xf32>
    %519 = tpu.reciprocal %518 {approx = true} : vector<8x1xf32> -> vector<8x1xf32>
    %520 = vector.broadcast %519 : vector<8x1xf32> to vector<8x8xf32>
    %521 = arith.mulf %516, %520 : vector<8x8xf32>
    %522 = arith.truncf %521 : vector<8x8xf32> to vector<8x8xbf16>
    %523 = vector.extract_strided_slice %490 {offsets = [0, 8], sizes = [8, 8], strides = [1, 1]} : vector<8x32xbf16> to vector<8x8xbf16>
    %cst_210 = arith.constant dense<0.000000e+00> : vector<8x8xf32>
    %524 = tpu.matmul %522, %523, %cst_210 {dimension_numbers = #tpu.dot_dimension_numbers<[1], [0], [0], [1], [0, 0, 1, 1], [], []>} : vector<8x8xbf16>, vector<8x8xbf16>, vector<8x8xf32> -> vector<8x8xf32>
    %525 = vector.extract_strided_slice %488 {offsets = [0, 16], sizes = [8, 8], strides = [1, 1]} : vector<8x32xbf16> to vector<8x8xbf16>
    %526 = vector.extract_strided_slice %489 {offsets = [0, 16], sizes = [8, 8], strides = [1, 1]} : vector<8x32xbf16> to vector<8x8xbf16>
    "tpu.trace_start"() <{level = 10 : i32, message = "qd,kd->qk"}> : () -> ()
    %cst_211 = arith.constant dense<0.000000e+00> : vector<8x8xf32>
    %527 = tpu.matmul %525, %526, %cst_211 {dimension_numbers = #tpu.dot_dimension_numbers<[1], [1], [0], [0], [0, 0, 1, 0], [], []>} : vector<8x8xbf16>, vector<8x8xbf16>, vector<8x8xf32> -> vector<8x8xf32>
    "tpu.trace_stop"() : () -> ()
    %528 = arith.addf %527, %420 : vector<8x8xf32>
    %cst_212 = arith.constant dense<0xFF800000> : vector<8xf32>
    %529 = vector.multi_reduction <maximumf>, %528, %cst_212 [1] : vector<8x8xf32> to vector<8xf32>
    %530 = vector.shape_cast %529 : vector<8xf32> to vector<8x1xf32>
    %531 = vector.broadcast %530 : vector<8x1xf32> to vector<8x8xf32>
    %532 = arith.subf %528, %531 : vector<8x8xf32>
    %533 = math.exp %532 : vector<8x8xf32>
    %cst_213 = arith.constant dense<0.000000e+00> : vector<8xf32>
    %534 = vector.multi_reduction <add>, %533, %cst_213 [1] : vector<8x8xf32> to vector<8xf32>
    %535 = vector.shape_cast %534 : vector<8xf32> to vector<8x1xf32>
    %536 = tpu.reciprocal %535 {approx = true} : vector<8x1xf32> -> vector<8x1xf32>
    %537 = vector.broadcast %536 : vector<8x1xf32> to vector<8x8xf32>
    %538 = arith.mulf %533, %537 : vector<8x8xf32>
    %539 = arith.truncf %538 : vector<8x8xf32> to vector<8x8xbf16>
    %540 = vector.extract_strided_slice %490 {offsets = [0, 16], sizes = [8, 8], strides = [1, 1]} : vector<8x32xbf16> to vector<8x8xbf16>
    %cst_214 = arith.constant dense<0.000000e+00> : vector<8x8xf32>
    %541 = tpu.matmul %539, %540, %cst_214 {dimension_numbers = #tpu.dot_dimension_numbers<[1], [0], [0], [1], [0, 0, 1, 1], [], []>} : vector<8x8xbf16>, vector<8x8xbf16>, vector<8x8xf32> -> vector<8x8xf32>
    %542 = vector.extract_strided_slice %488 {offsets = [0, 24], sizes = [8, 8], strides = [1, 1]} : vector<8x32xbf16> to vector<8x8xbf16>
    %543 = vector.extract_strided_slice %489 {offsets = [0, 24], sizes = [8, 8], strides = [1, 1]} : vector<8x32xbf16> to vector<8x8xbf16>
    "tpu.trace_start"() <{level = 10 : i32, message = "qd,kd->qk"}> : () -> ()
    %cst_215 = arith.constant dense<0.000000e+00> : vector<8x8xf32>
    %544 = tpu.matmul %542, %543, %cst_215 {dimension_numbers = #tpu.dot_dimension_numbers<[1], [1], [0], [0], [0, 0, 1, 0], [], []>} : vector<8x8xbf16>, vector<8x8xbf16>, vector<8x8xf32> -> vector<8x8xf32>
    "tpu.trace_stop"() : () -> ()
    %545 = arith.addf %544, %420 : vector<8x8xf32>
    %cst_216 = arith.constant dense<0xFF800000> : vector<8xf32>
    %546 = vector.multi_reduction <maximumf>, %545, %cst_216 [1] : vector<8x8xf32> to vector<8xf32>
    %547 = vector.shape_cast %546 : vector<8xf32> to vector<8x1xf32>
    %548 = vector.broadcast %547 : vector<8x1xf32> to vector<8x8xf32>
    %549 = arith.subf %545, %548 : vector<8x8xf32>
    %550 = math.exp %549 : vector<8x8xf32>
    %cst_217 = arith.constant dense<0.000000e+00> : vector<8xf32>
    %551 = vector.multi_reduction <add>, %550, %cst_217 [1] : vector<8x8xf32> to vector<8xf32>
    %552 = vector.shape_cast %551 : vector<8xf32> to vector<8x1xf32>
    %553 = tpu.reciprocal %552 {approx = true} : vector<8x1xf32> -> vector<8x1xf32>
    %554 = vector.broadcast %553 : vector<8x1xf32> to vector<8x8xf32>
    %555 = arith.mulf %550, %554 : vector<8x8xf32>
    %556 = arith.truncf %555 : vector<8x8xf32> to vector<8x8xbf16>
    %557 = vector.extract_strided_slice %490 {offsets = [0, 24], sizes = [8, 8], strides = [1, 1]} : vector<8x32xbf16> to vector<8x8xbf16>
    %cst_218 = arith.constant dense<0.000000e+00> : vector<8x8xf32>
    %558 = tpu.matmul %556, %557, %cst_218 {dimension_numbers = #tpu.dot_dimension_numbers<[1], [0], [0], [1], [0, 0, 1, 1], [], []>} : vector<8x8xbf16>, vector<8x8xbf16>, vector<8x8xf32> -> vector<8x8xf32>
    %559 = tpu.concatenate %507, %524, %541, %558 in 1 : vector<8x8xf32>, vector<8x8xf32>, vector<8x8xf32>, vector<8x8xf32> -> vector<8x32xf32>
    %560 = arith.truncf %559 : vector<8x32xf32> to vector<8x32xbf16>
    %cst_219 = arith.constant dense<0.000000e+00> : vector<8x32xf32>
    %561 = tpu.matmul %560, %456, %cst_219 {dimension_numbers = #tpu.dot_dimension_numbers<[1], [0], [0], [1], [0, 0, 1, 1], [], []>} : vector<8x32xbf16>, vector<32x32xbf16>, vector<8x32xf32> -> vector<8x32xf32>
    %562 = arith.addf %446, %561 : vector<8x32xf32>
    %563 = vector.broadcast %458 : vector<1x32xf32> to vector<8x32xf32>
    %564 = arith.addf %562, %563 : vector<8x32xf32>
    %c0_220 = arith.constant 0 : index
    %c0_221 = arith.constant 0 : index
    %c0_222 = arith.constant 0 : index
    %565 = vector.load %arg35[%c0_220, %c0_221, %c0_222] : memref<2x1x32xf32, #tpu.memory_space<vmem>>, vector<1x1x32xf32>
    %566 = vector.shape_cast %565 : vector<1x1x32xf32> to vector<1x32xf32>
    %c0_223 = arith.constant 0 : index
    %c0_224 = arith.constant 0 : index
    %c0_225 = arith.constant 0 : index
    %567 = vector.load %arg36[%c0_223, %c0_224, %c0_225] : memref<2x1x32xf32, #tpu.memory_space<vmem>>, vector<1x1x32xf32>
    %568 = vector.shape_cast %567 : vector<1x1x32xf32> to vector<1x32xf32>
    %c0_226 = arith.constant 0 : index
    %c0_227 = arith.constant 0 : index
    %c0_228 = arith.constant 0 : index
    %569 = vector.load %arg37[%c0_226, %c0_227, %c0_228] : memref<2x32x32xbf16, #tpu.memory_space<vmem>>, vector<1x32x32xbf16>
    %570 = vector.shape_cast %569 : vector<1x32x32xbf16> to vector<32x32xbf16>
    %c0_229 = arith.constant 0 : index
    %c0_230 = arith.constant 0 : index
    %c0_231 = arith.constant 0 : index
    %571 = vector.load %arg38[%c0_229, %c0_230, %c0_231] : memref<2x1x32xf32, #tpu.memory_space<vmem>>, vector<1x1x32xf32>
    %572 = vector.shape_cast %571 : vector<1x1x32xf32> to vector<1x32xf32>
    %c0_232 = arith.constant 0 : index
    %c0_233 = arith.constant 0 : index
    %c0_234 = arith.constant 0 : index
    %573 = vector.load %arg39[%c0_232, %c0_233, %c0_234] : memref<2x32x64xbf16, #tpu.memory_space<vmem>>, vector<1x32x64xbf16>
    %574 = vector.shape_cast %573 : vector<1x32x64xbf16> to vector<32x64xbf16>
    %c0_235 = arith.constant 0 : index
    %c0_236 = arith.constant 0 : index
    %c0_237 = arith.constant 0 : index
    %575 = vector.load %arg40[%c0_235, %c0_236, %c0_237] : memref<2x1x64xf32, #tpu.memory_space<vmem>>, vector<1x1x64xf32>
    %576 = vector.shape_cast %575 : vector<1x1x64xf32> to vector<1x64xf32>
    %c0_238 = arith.constant 0 : index
    %c0_239 = arith.constant 0 : index
    %c0_240 = arith.constant 0 : index
    %577 = vector.load %arg41[%c0_238, %c0_239, %c0_240] : memref<2x32x32xbf16, #tpu.memory_space<vmem>>, vector<1x32x32xbf16>
    %578 = vector.shape_cast %577 : vector<1x32x32xbf16> to vector<32x32xbf16>
    %c0_241 = arith.constant 0 : index
    %c0_242 = arith.constant 0 : index
    %c0_243 = arith.constant 0 : index
    %579 = vector.load %arg42[%c0_241, %c0_242, %c0_243] : memref<2x1x32xf32, #tpu.memory_space<vmem>>, vector<1x1x32xf32>
    %580 = vector.shape_cast %579 : vector<1x1x32xf32> to vector<1x32xf32>
    %cst_244 = arith.constant dense<0.000000e+00> : vector<8xf32>
    %581 = vector.multi_reduction <add>, %564, %cst_244 [1] : vector<8x32xf32> to vector<8xf32>
    %582 = vector.shape_cast %581 : vector<8xf32> to vector<8x1xf32>
    %cst_245 = arith.constant 3.200000e+01 : f32
    %583 = vector.broadcast %cst_245 : f32 to vector<8x1xf32>
    %584 = arith.divf %582, %583 : vector<8x1xf32>
    %585 = vector.broadcast %584 : vector<8x1xf32> to vector<8x32xf32>
    %586 = arith.subf %564, %585 : vector<8x32xf32>
    %587 = arith.mulf %586, %586 : vector<8x32xf32>
    %cst_246 = arith.constant dense<0.000000e+00> : vector<8xf32>
    %588 = vector.multi_reduction <add>, %587, %cst_246 [1] : vector<8x32xf32> to vector<8xf32>
    %589 = vector.shape_cast %588 : vector<8xf32> to vector<8x1xf32>
    %cst_247 = arith.constant 3.200000e+01 : f32
    %590 = vector.broadcast %cst_247 : f32 to vector<8x1xf32>
    %591 = arith.divf %589, %590 : vector<8x1xf32>
    %592 = vector.broadcast %584 : vector<8x1xf32> to vector<8x32xf32>
    %593 = arith.subf %564, %592 : vector<8x32xf32>
    %cst_248 = arith.constant 9.99999974E-6 : f32
    %594 = vector.broadcast %cst_248 : f32 to vector<8x1xf32>
    %595 = arith.addf %591, %594 : vector<8x1xf32>
    %596 = math.rsqrt %595 : vector<8x1xf32>
    %597 = vector.broadcast %596 : vector<8x1xf32> to vector<8x32xf32>
    %598 = arith.mulf %593, %597 : vector<8x32xf32>
    %599 = vector.broadcast %566 : vector<1x32xf32> to vector<8x32xf32>
    %600 = arith.mulf %598, %599 : vector<8x32xf32>
    %601 = vector.broadcast %568 : vector<1x32xf32> to vector<8x32xf32>
    %602 = arith.addf %600, %601 : vector<8x32xf32>
    %603 = arith.truncf %602 : vector<8x32xf32> to vector<8x32xbf16>
    %cst_249 = arith.constant dense<0.000000e+00> : vector<8x32xf32>
    %604 = tpu.matmul %603, %570, %cst_249 {dimension_numbers = #tpu.dot_dimension_numbers<[1], [0], [0], [1], [0, 0, 1, 1], [], []>} : vector<8x32xbf16>, vector<32x32xbf16>, vector<8x32xf32> -> vector<8x32xf32>
    %605 = vector.broadcast %572 : vector<1x32xf32> to vector<8x32xf32>
    %606 = arith.addf %604, %605 : vector<8x32xf32>
    %cst_250 = arith.constant dense<0.000000e+00> : vector<8x64xf32>
    %607 = tpu.matmul %408, %574, %cst_250 {dimension_numbers = #tpu.dot_dimension_numbers<[1], [0], [0], [1], [0, 0, 1, 1], [], []>} : vector<8x32xbf16>, vector<32x64xbf16>, vector<8x64xf32> -> vector<8x64xf32>
    %608 = vector.broadcast %576 : vector<1x64xf32> to vector<8x64xf32>
    %609 = arith.addf %607, %608 : vector<8x64xf32>
    %610 = vector.extract_strided_slice %609 {offsets = [0, 0], sizes = [8, 32], strides = [1, 1]} : vector<8x64xf32> to vector<8x32xf32>
    %611 = vector.extract_strided_slice %609 {offsets = [0, 32], sizes = [8, 32], strides = [1, 1]} : vector<8x64xf32> to vector<8x32xf32>
    %612 = arith.truncf %606 : vector<8x32xf32> to vector<8x32xbf16>
    %613 = arith.truncf %610 : vector<8x32xf32> to vector<8x32xbf16>
    %614 = arith.truncf %611 : vector<8x32xf32> to vector<8x32xbf16>
    %615 = vector.extract_strided_slice %612 {offsets = [0, 0], sizes = [8, 8], strides = [1, 1]} : vector<8x32xbf16> to vector<8x8xbf16>
    %616 = vector.extract_strided_slice %613 {offsets = [0, 0], sizes = [8, 8], strides = [1, 1]} : vector<8x32xbf16> to vector<8x8xbf16>
    "tpu.trace_start"() <{level = 10 : i32, message = "qd,kd->qk"}> : () -> ()
    %cst_251 = arith.constant dense<0.000000e+00> : vector<8x8xf32>
    %617 = tpu.matmul %615, %616, %cst_251 {dimension_numbers = #tpu.dot_dimension_numbers<[1], [1], [0], [0], [0, 0, 1, 0], [], []>} : vector<8x8xbf16>, vector<8x8xbf16>, vector<8x8xf32> -> vector<8x8xf32>
    "tpu.trace_stop"() : () -> ()
    %618 = vector.broadcast %1 : vector<1x8xf32> to vector<8x8xf32>
    %619 = arith.addf %617, %618 : vector<8x8xf32>
    %cst_252 = arith.constant dense<0xFF800000> : vector<8xf32>
    %620 = vector.multi_reduction <maximumf>, %619, %cst_252 [1] : vector<8x8xf32> to vector<8xf32>
    %621 = vector.shape_cast %620 : vector<8xf32> to vector<8x1xf32>
    %622 = vector.broadcast %621 : vector<8x1xf32> to vector<8x8xf32>
    %623 = arith.subf %619, %622 : vector<8x8xf32>
    %624 = math.exp %623 : vector<8x8xf32>
    %cst_253 = arith.constant dense<0.000000e+00> : vector<8xf32>
    %625 = vector.multi_reduction <add>, %624, %cst_253 [1] : vector<8x8xf32> to vector<8xf32>
    %626 = vector.shape_cast %625 : vector<8xf32> to vector<8x1xf32>
    %627 = tpu.reciprocal %626 {approx = true} : vector<8x1xf32> -> vector<8x1xf32>
    %628 = vector.broadcast %627 : vector<8x1xf32> to vector<8x8xf32>
    %629 = arith.mulf %624, %628 : vector<8x8xf32>
    %630 = arith.truncf %629 : vector<8x8xf32> to vector<8x8xbf16>
    %631 = vector.extract_strided_slice %614 {offsets = [0, 0], sizes = [8, 8], strides = [1, 1]} : vector<8x32xbf16> to vector<8x8xbf16>
    %cst_254 = arith.constant dense<0.000000e+00> : vector<8x8xf32>
    %632 = tpu.matmul %630, %631, %cst_254 {dimension_numbers = #tpu.dot_dimension_numbers<[1], [0], [0], [1], [0, 0, 1, 1], [], []>} : vector<8x8xbf16>, vector<8x8xbf16>, vector<8x8xf32> -> vector<8x8xf32>
    %633 = vector.extract_strided_slice %612 {offsets = [0, 8], sizes = [8, 8], strides = [1, 1]} : vector<8x32xbf16> to vector<8x8xbf16>
    %634 = vector.extract_strided_slice %613 {offsets = [0, 8], sizes = [8, 8], strides = [1, 1]} : vector<8x32xbf16> to vector<8x8xbf16>
    "tpu.trace_start"() <{level = 10 : i32, message = "qd,kd->qk"}> : () -> ()
    %cst_255 = arith.constant dense<0.000000e+00> : vector<8x8xf32>
    %635 = tpu.matmul %633, %634, %cst_255 {dimension_numbers = #tpu.dot_dimension_numbers<[1], [1], [0], [0], [0, 0, 1, 0], [], []>} : vector<8x8xbf16>, vector<8x8xbf16>, vector<8x8xf32> -> vector<8x8xf32>
    "tpu.trace_stop"() : () -> ()
    %636 = vector.broadcast %1 : vector<1x8xf32> to vector<8x8xf32>
    %637 = arith.addf %635, %636 : vector<8x8xf32>
    %cst_256 = arith.constant dense<0xFF800000> : vector<8xf32>
    %638 = vector.multi_reduction <maximumf>, %637, %cst_256 [1] : vector<8x8xf32> to vector<8xf32>
    %639 = vector.shape_cast %638 : vector<8xf32> to vector<8x1xf32>
    %640 = vector.broadcast %639 : vector<8x1xf32> to vector<8x8xf32>
    %641 = arith.subf %637, %640 : vector<8x8xf32>
    %642 = math.exp %641 : vector<8x8xf32>
    %cst_257 = arith.constant dense<0.000000e+00> : vector<8xf32>
    %643 = vector.multi_reduction <add>, %642, %cst_257 [1] : vector<8x8xf32> to vector<8xf32>
    %644 = vector.shape_cast %643 : vector<8xf32> to vector<8x1xf32>
    %645 = tpu.reciprocal %644 {approx = true} : vector<8x1xf32> -> vector<8x1xf32>
    %646 = vector.broadcast %645 : vector<8x1xf32> to vector<8x8xf32>
    %647 = arith.mulf %642, %646 : vector<8x8xf32>
    %648 = arith.truncf %647 : vector<8x8xf32> to vector<8x8xbf16>
    %649 = vector.extract_strided_slice %614 {offsets = [0, 8], sizes = [8, 8], strides = [1, 1]} : vector<8x32xbf16> to vector<8x8xbf16>
    %cst_258 = arith.constant dense<0.000000e+00> : vector<8x8xf32>
    %650 = tpu.matmul %648, %649, %cst_258 {dimension_numbers = #tpu.dot_dimension_numbers<[1], [0], [0], [1], [0, 0, 1, 1], [], []>} : vector<8x8xbf16>, vector<8x8xbf16>, vector<8x8xf32> -> vector<8x8xf32>
    %651 = vector.extract_strided_slice %612 {offsets = [0, 16], sizes = [8, 8], strides = [1, 1]} : vector<8x32xbf16> to vector<8x8xbf16>
    %652 = vector.extract_strided_slice %613 {offsets = [0, 16], sizes = [8, 8], strides = [1, 1]} : vector<8x32xbf16> to vector<8x8xbf16>
    "tpu.trace_start"() <{level = 10 : i32, message = "qd,kd->qk"}> : () -> ()
    %cst_259 = arith.constant dense<0.000000e+00> : vector<8x8xf32>
    %653 = tpu.matmul %651, %652, %cst_259 {dimension_numbers = #tpu.dot_dimension_numbers<[1], [1], [0], [0], [0, 0, 1, 0], [], []>} : vector<8x8xbf16>, vector<8x8xbf16>, vector<8x8xf32> -> vector<8x8xf32>
    "tpu.trace_stop"() : () -> ()
    %654 = vector.broadcast %1 : vector<1x8xf32> to vector<8x8xf32>
    %655 = arith.addf %653, %654 : vector<8x8xf32>
    %cst_260 = arith.constant dense<0xFF800000> : vector<8xf32>
    %656 = vector.multi_reduction <maximumf>, %655, %cst_260 [1] : vector<8x8xf32> to vector<8xf32>
    %657 = vector.shape_cast %656 : vector<8xf32> to vector<8x1xf32>
    %658 = vector.broadcast %657 : vector<8x1xf32> to vector<8x8xf32>
    %659 = arith.subf %655, %658 : vector<8x8xf32>
    %660 = math.exp %659 : vector<8x8xf32>
    %cst_261 = arith.constant dense<0.000000e+00> : vector<8xf32>
    %661 = vector.multi_reduction <add>, %660, %cst_261 [1] : vector<8x8xf32> to vector<8xf32>
    %662 = vector.shape_cast %661 : vector<8xf32> to vector<8x1xf32>
    %663 = tpu.reciprocal %662 {approx = true} : vector<8x1xf32> -> vector<8x1xf32>
    %664 = vector.broadcast %663 : vector<8x1xf32> to vector<8x8xf32>
    %665 = arith.mulf %660, %664 : vector<8x8xf32>
    %666 = arith.truncf %665 : vector<8x8xf32> to vector<8x8xbf16>
    %667 = vector.extract_strided_slice %614 {offsets = [0, 16], sizes = [8, 8], strides = [1, 1]} : vector<8x32xbf16> to vector<8x8xbf16>
    %cst_262 = arith.constant dense<0.000000e+00> : vector<8x8xf32>
    %668 = tpu.matmul %666, %667, %cst_262 {dimension_numbers = #tpu.dot_dimension_numbers<[1], [0], [0], [1], [0, 0, 1, 1], [], []>} : vector<8x8xbf16>, vector<8x8xbf16>, vector<8x8xf32> -> vector<8x8xf32>
    %669 = vector.extract_strided_slice %612 {offsets = [0, 24], sizes = [8, 8], strides = [1, 1]} : vector<8x32xbf16> to vector<8x8xbf16>
    %670 = vector.extract_strided_slice %613 {offsets = [0, 24], sizes = [8, 8], strides = [1, 1]} : vector<8x32xbf16> to vector<8x8xbf16>
    "tpu.trace_start"() <{level = 10 : i32, message = "qd,kd->qk"}> : () -> ()
    %cst_263 = arith.constant dense<0.000000e+00> : vector<8x8xf32>
    %671 = tpu.matmul %669, %670, %cst_263 {dimension_numbers = #tpu.dot_dimension_numbers<[1], [1], [0], [0], [0, 0, 1, 0], [], []>} : vector<8x8xbf16>, vector<8x8xbf16>, vector<8x8xf32> -> vector<8x8xf32>
    "tpu.trace_stop"() : () -> ()
    %672 = vector.broadcast %1 : vector<1x8xf32> to vector<8x8xf32>
    %673 = arith.addf %671, %672 : vector<8x8xf32>
    %cst_264 = arith.constant dense<0xFF800000> : vector<8xf32>
    %674 = vector.multi_reduction <maximumf>, %673, %cst_264 [1] : vector<8x8xf32> to vector<8xf32>
    %675 = vector.shape_cast %674 : vector<8xf32> to vector<8x1xf32>
    %676 = vector.broadcast %675 : vector<8x1xf32> to vector<8x8xf32>
    %677 = arith.subf %673, %676 : vector<8x8xf32>
    %678 = math.exp %677 : vector<8x8xf32>
    %cst_265 = arith.constant dense<0.000000e+00> : vector<8xf32>
    %679 = vector.multi_reduction <add>, %678, %cst_265 [1] : vector<8x8xf32> to vector<8xf32>
    %680 = vector.shape_cast %679 : vector<8xf32> to vector<8x1xf32>
    %681 = tpu.reciprocal %680 {approx = true} : vector<8x1xf32> -> vector<8x1xf32>
    %682 = vector.broadcast %681 : vector<8x1xf32> to vector<8x8xf32>
    %683 = arith.mulf %678, %682 : vector<8x8xf32>
    %684 = arith.truncf %683 : vector<8x8xf32> to vector<8x8xbf16>
    %685 = vector.extract_strided_slice %614 {offsets = [0, 24], sizes = [8, 8], strides = [1, 1]} : vector<8x32xbf16> to vector<8x8xbf16>
    %cst_266 = arith.constant dense<0.000000e+00> : vector<8x8xf32>
    %686 = tpu.matmul %684, %685, %cst_266 {dimension_numbers = #tpu.dot_dimension_numbers<[1], [0], [0], [1], [0, 0, 1, 1], [], []>} : vector<8x8xbf16>, vector<8x8xbf16>, vector<8x8xf32> -> vector<8x8xf32>
    %687 = tpu.concatenate %632, %650, %668, %686 in 1 : vector<8x8xf32>, vector<8x8xf32>, vector<8x8xf32>, vector<8x8xf32> -> vector<8x32xf32>
    %688 = arith.truncf %687 : vector<8x32xf32> to vector<8x32xbf16>
    %cst_267 = arith.constant dense<0.000000e+00> : vector<8x32xf32>
    %689 = tpu.matmul %688, %578, %cst_267 {dimension_numbers = #tpu.dot_dimension_numbers<[1], [0], [0], [1], [0, 0, 1, 1], [], []>} : vector<8x32xbf16>, vector<32x32xbf16>, vector<8x32xf32> -> vector<8x32xf32>
    %690 = arith.addf %564, %689 : vector<8x32xf32>
    %691 = vector.broadcast %580 : vector<1x32xf32> to vector<8x32xf32>
    %692 = arith.addf %690, %691 : vector<8x32xf32>
    %c0_268 = arith.constant 0 : index
    %c0_269 = arith.constant 0 : index
    %c0_270 = arith.constant 0 : index
    %693 = vector.load %arg29[%c0_268, %c0_269, %c0_270] : memref<2x1x32xf32, #tpu.memory_space<vmem>>, vector<1x1x32xf32>
    %694 = vector.shape_cast %693 : vector<1x1x32xf32> to vector<1x32xf32>
    %c0_271 = arith.constant 0 : index
    %c0_272 = arith.constant 0 : index
    %c0_273 = arith.constant 0 : index
    %695 = vector.load %arg30[%c0_271, %c0_272, %c0_273] : memref<2x1x32xf32, #tpu.memory_space<vmem>>, vector<1x1x32xf32>
    %696 = vector.shape_cast %695 : vector<1x1x32xf32> to vector<1x32xf32>
    %c0_274 = arith.constant 0 : index
    %c0_275 = arith.constant 0 : index
    %c0_276 = arith.constant 0 : index
    %697 = vector.load %arg31[%c0_274, %c0_275, %c0_276] : memref<2x32x64xbf16, #tpu.memory_space<vmem>>, vector<1x32x64xbf16>
    %698 = vector.shape_cast %697 : vector<1x32x64xbf16> to vector<32x64xbf16>
    %c0_277 = arith.constant 0 : index
    %c0_278 = arith.constant 0 : index
    %c0_279 = arith.constant 0 : index
    %699 = vector.load %arg32[%c0_277, %c0_278, %c0_279] : memref<2x1x64xf32, #tpu.memory_space<vmem>>, vector<1x1x64xf32>
    %700 = vector.shape_cast %699 : vector<1x1x64xf32> to vector<1x64xf32>
    %c0_280 = arith.constant 0 : index
    %c0_281 = arith.constant 0 : index
    %c0_282 = arith.constant 0 : index
    %701 = vector.load %arg33[%c0_280, %c0_281, %c0_282] : memref<2x64x32xbf16, #tpu.memory_space<vmem>>, vector<1x64x32xbf16>
    %702 = vector.shape_cast %701 : vector<1x64x32xbf16> to vector<64x32xbf16>
    %c0_283 = arith.constant 0 : index
    %c0_284 = arith.constant 0 : index
    %c0_285 = arith.constant 0 : index
    %703 = vector.load %arg34[%c0_283, %c0_284, %c0_285] : memref<2x1x32xf32, #tpu.memory_space<vmem>>, vector<1x1x32xf32>
    %704 = vector.shape_cast %703 : vector<1x1x32xf32> to vector<1x32xf32>
    %cst_286 = arith.constant dense<0.000000e+00> : vector<8xf32>
    %705 = vector.multi_reduction <add>, %692, %cst_286 [1] : vector<8x32xf32> to vector<8xf32>
    %706 = vector.shape_cast %705 : vector<8xf32> to vector<8x1xf32>
    %cst_287 = arith.constant 3.200000e+01 : f32
    %707 = vector.broadcast %cst_287 : f32 to vector<8x1xf32>
    %708 = arith.divf %706, %707 : vector<8x1xf32>
    %709 = vector.broadcast %708 : vector<8x1xf32> to vector<8x32xf32>
    %710 = arith.subf %692, %709 : vector<8x32xf32>
    %711 = arith.mulf %710, %710 : vector<8x32xf32>
    %cst_288 = arith.constant dense<0.000000e+00> : vector<8xf32>
    %712 = vector.multi_reduction <add>, %711, %cst_288 [1] : vector<8x32xf32> to vector<8xf32>
    %713 = vector.shape_cast %712 : vector<8xf32> to vector<8x1xf32>
    %cst_289 = arith.constant 3.200000e+01 : f32
    %714 = vector.broadcast %cst_289 : f32 to vector<8x1xf32>
    %715 = arith.divf %713, %714 : vector<8x1xf32>
    %716 = vector.broadcast %708 : vector<8x1xf32> to vector<8x32xf32>
    %717 = arith.subf %692, %716 : vector<8x32xf32>
    %cst_290 = arith.constant 9.99999974E-6 : f32
    %718 = vector.broadcast %cst_290 : f32 to vector<8x1xf32>
    %719 = arith.addf %715, %718 : vector<8x1xf32>
    %720 = math.rsqrt %719 : vector<8x1xf32>
    %721 = vector.broadcast %720 : vector<8x1xf32> to vector<8x32xf32>
    %722 = arith.mulf %717, %721 : vector<8x32xf32>
    %723 = vector.broadcast %694 : vector<1x32xf32> to vector<8x32xf32>
    %724 = arith.mulf %722, %723 : vector<8x32xf32>
    %725 = vector.broadcast %696 : vector<1x32xf32> to vector<8x32xf32>
    %726 = arith.addf %724, %725 : vector<8x32xf32>
    %727 = arith.truncf %726 : vector<8x32xf32> to vector<8x32xbf16>
    %cst_291 = arith.constant dense<0.000000e+00> : vector<8x64xf32>
    %728 = tpu.matmul %727, %698, %cst_291 {dimension_numbers = #tpu.dot_dimension_numbers<[1], [0], [0], [1], [0, 0, 1, 1], [], []>} : vector<8x32xbf16>, vector<32x64xbf16>, vector<8x64xf32> -> vector<8x64xf32>
    %729 = vector.broadcast %700 : vector<1x64xf32> to vector<8x64xf32>
    %730 = arith.addf %728, %729 : vector<8x64xf32>
    %cst_292 = arith.constant 5.000000e-01 : f32
    %731 = vector.broadcast %cst_292 : f32 to vector<8x64xf32>
    %732 = arith.mulf %731, %730 : vector<8x64xf32>
    %cst_293 = arith.constant 4.471500e-02 : f32
    %733 = vector.broadcast %cst_293 : f32 to vector<8x64xf32>
    %734 = arith.mulf %733, %730 : vector<8x64xf32>
    %735 = arith.mulf %734, %730 : vector<8x64xf32>
    %736 = arith.mulf %735, %730 : vector<8x64xf32>
    %737 = arith.addf %730, %736 : vector<8x64xf32>
    %cst_294 = arith.constant 0.797884583 : f32
    %738 = vector.broadcast %cst_294 : f32 to vector<8x64xf32>
    %739 = arith.mulf %738, %737 : vector<8x64xf32>
    %740 = math.tanh %739 : vector<8x64xf32>
    %cst_295 = arith.constant 1.000000e+00 : f32
    %741 = vector.broadcast %cst_295 : f32 to vector<8x64xf32>
    %742 = arith.addf %741, %740 : vector<8x64xf32>
    %743 = arith.mulf %732, %742 : vector<8x64xf32>
    %744 = arith.truncf %743 : vector<8x64xf32> to vector<8x64xbf16>
    %cst_296 = arith.constant dense<0.000000e+00> : vector<8x32xf32>
    %745 = tpu.matmul %744, %702, %cst_296 {dimension_numbers = #tpu.dot_dimension_numbers<[1], [0], [0], [1], [0, 0, 1, 1], [], []>} : vector<8x64xbf16>, vector<64x32xbf16>, vector<8x32xf32> -> vector<8x32xf32>
    %746 = arith.addf %692, %745 : vector<8x32xf32>
    %747 = vector.broadcast %704 : vector<1x32xf32> to vector<8x32xf32>
    %748 = arith.addf %746, %747 : vector<8x32xf32>
    %c1_297 = arith.constant 1 : index
    %c0_298 = arith.constant 0 : index
    %c0_299 = arith.constant 0 : index
    %749 = vector.load %arg23[%c1_297, %c0_298, %c0_299] : memref<2x1x32xf32, #tpu.memory_space<vmem>>, vector<1x1x32xf32>
    %750 = vector.shape_cast %749 : vector<1x1x32xf32> to vector<1x32xf32>
    %c1_300 = arith.constant 1 : index
    %c0_301 = arith.constant 0 : index
    %c0_302 = arith.constant 0 : index
    %751 = vector.load %arg24[%c1_300, %c0_301, %c0_302] : memref<2x1x32xf32, #tpu.memory_space<vmem>>, vector<1x1x32xf32>
    %752 = vector.shape_cast %751 : vector<1x1x32xf32> to vector<1x32xf32>
    %c1_303 = arith.constant 1 : index
    %c0_304 = arith.constant 0 : index
    %c0_305 = arith.constant 0 : index
    %753 = vector.load %arg25[%c1_303, %c0_304, %c0_305] : memref<2x32x96xbf16, #tpu.memory_space<vmem>>, vector<1x32x96xbf16>
    %754 = vector.shape_cast %753 : vector<1x32x96xbf16> to vector<32x96xbf16>
    %c1_306 = arith.constant 1 : index
    %c0_307 = arith.constant 0 : index
    %c0_308 = arith.constant 0 : index
    %755 = vector.load %arg26[%c1_306, %c0_307, %c0_308] : memref<2x1x96xf32, #tpu.memory_space<vmem>>, vector<1x1x96xf32>
    %756 = vector.shape_cast %755 : vector<1x1x96xf32> to vector<1x96xf32>
    %c1_309 = arith.constant 1 : index
    %c0_310 = arith.constant 0 : index
    %c0_311 = arith.constant 0 : index
    %757 = vector.load %arg27[%c1_309, %c0_310, %c0_311] : memref<2x32x32xbf16, #tpu.memory_space<vmem>>, vector<1x32x32xbf16>
    %758 = vector.shape_cast %757 : vector<1x32x32xbf16> to vector<32x32xbf16>
    %c1_312 = arith.constant 1 : index
    %c0_313 = arith.constant 0 : index
    %c0_314 = arith.constant 0 : index
    %759 = vector.load %arg28[%c1_312, %c0_313, %c0_314] : memref<2x1x32xf32, #tpu.memory_space<vmem>>, vector<1x1x32xf32>
    %760 = vector.shape_cast %759 : vector<1x1x32xf32> to vector<1x32xf32>
    %cst_315 = arith.constant dense<0.000000e+00> : vector<8xf32>
    %761 = vector.multi_reduction <add>, %748, %cst_315 [1] : vector<8x32xf32> to vector<8xf32>
    %762 = vector.shape_cast %761 : vector<8xf32> to vector<8x1xf32>
    %cst_316 = arith.constant 3.200000e+01 : f32
    %763 = vector.broadcast %cst_316 : f32 to vector<8x1xf32>
    %764 = arith.divf %762, %763 : vector<8x1xf32>
    %765 = vector.broadcast %764 : vector<8x1xf32> to vector<8x32xf32>
    %766 = arith.subf %748, %765 : vector<8x32xf32>
    %767 = arith.mulf %766, %766 : vector<8x32xf32>
    %cst_317 = arith.constant dense<0.000000e+00> : vector<8xf32>
    %768 = vector.multi_reduction <add>, %767, %cst_317 [1] : vector<8x32xf32> to vector<8xf32>
    %769 = vector.shape_cast %768 : vector<8xf32> to vector<8x1xf32>
    %cst_318 = arith.constant 3.200000e+01 : f32
    %770 = vector.broadcast %cst_318 : f32 to vector<8x1xf32>
    %771 = arith.divf %769, %770 : vector<8x1xf32>
    %772 = vector.broadcast %764 : vector<8x1xf32> to vector<8x32xf32>
    %773 = arith.subf %748, %772 : vector<8x32xf32>
    %cst_319 = arith.constant 9.99999974E-6 : f32
    %774 = vector.broadcast %cst_319 : f32 to vector<8x1xf32>
    %775 = arith.addf %771, %774 : vector<8x1xf32>
    %776 = math.rsqrt %775 : vector<8x1xf32>
    %777 = vector.broadcast %776 : vector<8x1xf32> to vector<8x32xf32>
    %778 = arith.mulf %773, %777 : vector<8x32xf32>
    %779 = vector.broadcast %750 : vector<1x32xf32> to vector<8x32xf32>
    %780 = arith.mulf %778, %779 : vector<8x32xf32>
    %781 = vector.broadcast %752 : vector<1x32xf32> to vector<8x32xf32>
    %782 = arith.addf %780, %781 : vector<8x32xf32>
    %783 = arith.truncf %782 : vector<8x32xf32> to vector<8x32xbf16>
    %cst_320 = arith.constant dense<0.000000e+00> : vector<8x96xf32>
    %784 = tpu.matmul %783, %754, %cst_320 {dimension_numbers = #tpu.dot_dimension_numbers<[1], [0], [0], [1], [0, 0, 1, 1], [], []>} : vector<8x32xbf16>, vector<32x96xbf16>, vector<8x96xf32> -> vector<8x96xf32>
    %785 = vector.broadcast %756 : vector<1x96xf32> to vector<8x96xf32>
    %786 = arith.addf %784, %785 : vector<8x96xf32>
    %787 = vector.extract_strided_slice %786 {offsets = [0, 0], sizes = [8, 32], strides = [1, 1]} : vector<8x96xf32> to vector<8x32xf32>
    %788 = vector.extract_strided_slice %786 {offsets = [0, 32], sizes = [8, 32], strides = [1, 1]} : vector<8x96xf32> to vector<8x32xf32>
    %789 = vector.extract_strided_slice %786 {offsets = [0, 64], sizes = [8, 32], strides = [1, 1]} : vector<8x96xf32> to vector<8x32xf32>
    %790 = arith.truncf %787 : vector<8x32xf32> to vector<8x32xbf16>
    %791 = arith.truncf %788 : vector<8x32xf32> to vector<8x32xbf16>
    %792 = arith.truncf %789 : vector<8x32xf32> to vector<8x32xbf16>
    %793 = vector.extract_strided_slice %790 {offsets = [0, 0], sizes = [8, 8], strides = [1, 1]} : vector<8x32xbf16> to vector<8x8xbf16>
    %794 = vector.extract_strided_slice %791 {offsets = [0, 0], sizes = [8, 8], strides = [1, 1]} : vector<8x32xbf16> to vector<8x8xbf16>
    "tpu.trace_start"() <{level = 10 : i32, message = "qd,kd->qk"}> : () -> ()
    %cst_321 = arith.constant dense<0.000000e+00> : vector<8x8xf32>
    %795 = tpu.matmul %793, %794, %cst_321 {dimension_numbers = #tpu.dot_dimension_numbers<[1], [1], [0], [0], [0, 0, 1, 0], [], []>} : vector<8x8xbf16>, vector<8x8xbf16>, vector<8x8xf32> -> vector<8x8xf32>
    "tpu.trace_stop"() : () -> ()
    %796 = arith.addf %795, %420 : vector<8x8xf32>
    %cst_322 = arith.constant dense<0xFF800000> : vector<8xf32>
    %797 = vector.multi_reduction <maximumf>, %796, %cst_322 [1] : vector<8x8xf32> to vector<8xf32>
    %798 = vector.shape_cast %797 : vector<8xf32> to vector<8x1xf32>
    %799 = vector.broadcast %798 : vector<8x1xf32> to vector<8x8xf32>
    %800 = arith.subf %796, %799 : vector<8x8xf32>
    %801 = math.exp %800 : vector<8x8xf32>
    %cst_323 = arith.constant dense<0.000000e+00> : vector<8xf32>
    %802 = vector.multi_reduction <add>, %801, %cst_323 [1] : vector<8x8xf32> to vector<8xf32>
    %803 = vector.shape_cast %802 : vector<8xf32> to vector<8x1xf32>
    %804 = tpu.reciprocal %803 {approx = true} : vector<8x1xf32> -> vector<8x1xf32>
    %805 = vector.broadcast %804 : vector<8x1xf32> to vector<8x8xf32>
    %806 = arith.mulf %801, %805 : vector<8x8xf32>
    %807 = arith.truncf %806 : vector<8x8xf32> to vector<8x8xbf16>
    %808 = vector.extract_strided_slice %792 {offsets = [0, 0], sizes = [8, 8], strides = [1, 1]} : vector<8x32xbf16> to vector<8x8xbf16>
    %cst_324 = arith.constant dense<0.000000e+00> : vector<8x8xf32>
    %809 = tpu.matmul %807, %808, %cst_324 {dimension_numbers = #tpu.dot_dimension_numbers<[1], [0], [0], [1], [0, 0, 1, 1], [], []>} : vector<8x8xbf16>, vector<8x8xbf16>, vector<8x8xf32> -> vector<8x8xf32>
    %810 = vector.extract_strided_slice %790 {offsets = [0, 8], sizes = [8, 8], strides = [1, 1]} : vector<8x32xbf16> to vector<8x8xbf16>
    %811 = vector.extract_strided_slice %791 {offsets = [0, 8], sizes = [8, 8], strides = [1, 1]} : vector<8x32xbf16> to vector<8x8xbf16>
    "tpu.trace_start"() <{level = 10 : i32, message = "qd,kd->qk"}> : () -> ()
    %cst_325 = arith.constant dense<0.000000e+00> : vector<8x8xf32>
    %812 = tpu.matmul %810, %811, %cst_325 {dimension_numbers = #tpu.dot_dimension_numbers<[1], [1], [0], [0], [0, 0, 1, 0], [], []>} : vector<8x8xbf16>, vector<8x8xbf16>, vector<8x8xf32> -> vector<8x8xf32>
    "tpu.trace_stop"() : () -> ()
    %813 = arith.addf %812, %420 : vector<8x8xf32>
    %cst_326 = arith.constant dense<0xFF800000> : vector<8xf32>
    %814 = vector.multi_reduction <maximumf>, %813, %cst_326 [1] : vector<8x8xf32> to vector<8xf32>
    %815 = vector.shape_cast %814 : vector<8xf32> to vector<8x1xf32>
    %816 = vector.broadcast %815 : vector<8x1xf32> to vector<8x8xf32>
    %817 = arith.subf %813, %816 : vector<8x8xf32>
    %818 = math.exp %817 : vector<8x8xf32>
    %cst_327 = arith.constant dense<0.000000e+00> : vector<8xf32>
    %819 = vector.multi_reduction <add>, %818, %cst_327 [1] : vector<8x8xf32> to vector<8xf32>
    %820 = vector.shape_cast %819 : vector<8xf32> to vector<8x1xf32>
    %821 = tpu.reciprocal %820 {approx = true} : vector<8x1xf32> -> vector<8x1xf32>
    %822 = vector.broadcast %821 : vector<8x1xf32> to vector<8x8xf32>
    %823 = arith.mulf %818, %822 : vector<8x8xf32>
    %824 = arith.truncf %823 : vector<8x8xf32> to vector<8x8xbf16>
    %825 = vector.extract_strided_slice %792 {offsets = [0, 8], sizes = [8, 8], strides = [1, 1]} : vector<8x32xbf16> to vector<8x8xbf16>
    %cst_328 = arith.constant dense<0.000000e+00> : vector<8x8xf32>
    %826 = tpu.matmul %824, %825, %cst_328 {dimension_numbers = #tpu.dot_dimension_numbers<[1], [0], [0], [1], [0, 0, 1, 1], [], []>} : vector<8x8xbf16>, vector<8x8xbf16>, vector<8x8xf32> -> vector<8x8xf32>
    %827 = vector.extract_strided_slice %790 {offsets = [0, 16], sizes = [8, 8], strides = [1, 1]} : vector<8x32xbf16> to vector<8x8xbf16>
    %828 = vector.extract_strided_slice %791 {offsets = [0, 16], sizes = [8, 8], strides = [1, 1]} : vector<8x32xbf16> to vector<8x8xbf16>
    "tpu.trace_start"() <{level = 10 : i32, message = "qd,kd->qk"}> : () -> ()
    %cst_329 = arith.constant dense<0.000000e+00> : vector<8x8xf32>
    %829 = tpu.matmul %827, %828, %cst_329 {dimension_numbers = #tpu.dot_dimension_numbers<[1], [1], [0], [0], [0, 0, 1, 0], [], []>} : vector<8x8xbf16>, vector<8x8xbf16>, vector<8x8xf32> -> vector<8x8xf32>
    "tpu.trace_stop"() : () -> ()
    %830 = arith.addf %829, %420 : vector<8x8xf32>
    %cst_330 = arith.constant dense<0xFF800000> : vector<8xf32>
    %831 = vector.multi_reduction <maximumf>, %830, %cst_330 [1] : vector<8x8xf32> to vector<8xf32>
    %832 = vector.shape_cast %831 : vector<8xf32> to vector<8x1xf32>
    %833 = vector.broadcast %832 : vector<8x1xf32> to vector<8x8xf32>
    %834 = arith.subf %830, %833 : vector<8x8xf32>
    %835 = math.exp %834 : vector<8x8xf32>
    %cst_331 = arith.constant dense<0.000000e+00> : vector<8xf32>
    %836 = vector.multi_reduction <add>, %835, %cst_331 [1] : vector<8x8xf32> to vector<8xf32>
    %837 = vector.shape_cast %836 : vector<8xf32> to vector<8x1xf32>
    %838 = tpu.reciprocal %837 {approx = true} : vector<8x1xf32> -> vector<8x1xf32>
    %839 = vector.broadcast %838 : vector<8x1xf32> to vector<8x8xf32>
    %840 = arith.mulf %835, %839 : vector<8x8xf32>
    %841 = arith.truncf %840 : vector<8x8xf32> to vector<8x8xbf16>
    %842 = vector.extract_strided_slice %792 {offsets = [0, 16], sizes = [8, 8], strides = [1, 1]} : vector<8x32xbf16> to vector<8x8xbf16>
    %cst_332 = arith.constant dense<0.000000e+00> : vector<8x8xf32>
    %843 = tpu.matmul %841, %842, %cst_332 {dimension_numbers = #tpu.dot_dimension_numbers<[1], [0], [0], [1], [0, 0, 1, 1], [], []>} : vector<8x8xbf16>, vector<8x8xbf16>, vector<8x8xf32> -> vector<8x8xf32>
    %844 = vector.extract_strided_slice %790 {offsets = [0, 24], sizes = [8, 8], strides = [1, 1]} : vector<8x32xbf16> to vector<8x8xbf16>
    %845 = vector.extract_strided_slice %791 {offsets = [0, 24], sizes = [8, 8], strides = [1, 1]} : vector<8x32xbf16> to vector<8x8xbf16>
    "tpu.trace_start"() <{level = 10 : i32, message = "qd,kd->qk"}> : () -> ()
    %cst_333 = arith.constant dense<0.000000e+00> : vector<8x8xf32>
    %846 = tpu.matmul %844, %845, %cst_333 {dimension_numbers = #tpu.dot_dimension_numbers<[1], [1], [0], [0], [0, 0, 1, 0], [], []>} : vector<8x8xbf16>, vector<8x8xbf16>, vector<8x8xf32> -> vector<8x8xf32>
    "tpu.trace_stop"() : () -> ()
    %847 = arith.addf %846, %420 : vector<8x8xf32>
    %cst_334 = arith.constant dense<0xFF800000> : vector<8xf32>
    %848 = vector.multi_reduction <maximumf>, %847, %cst_334 [1] : vector<8x8xf32> to vector<8xf32>
    %849 = vector.shape_cast %848 : vector<8xf32> to vector<8x1xf32>
    %850 = vector.broadcast %849 : vector<8x1xf32> to vector<8x8xf32>
    %851 = arith.subf %847, %850 : vector<8x8xf32>
    %852 = math.exp %851 : vector<8x8xf32>
    %cst_335 = arith.constant dense<0.000000e+00> : vector<8xf32>
    %853 = vector.multi_reduction <add>, %852, %cst_335 [1] : vector<8x8xf32> to vector<8xf32>
    %854 = vector.shape_cast %853 : vector<8xf32> to vector<8x1xf32>
    %855 = tpu.reciprocal %854 {approx = true} : vector<8x1xf32> -> vector<8x1xf32>
    %856 = vector.broadcast %855 : vector<8x1xf32> to vector<8x8xf32>
    %857 = arith.mulf %852, %856 : vector<8x8xf32>
    %858 = arith.truncf %857 : vector<8x8xf32> to vector<8x8xbf16>
    %859 = vector.extract_strided_slice %792 {offsets = [0, 24], sizes = [8, 8], strides = [1, 1]} : vector<8x32xbf16> to vector<8x8xbf16>
    %cst_336 = arith.constant dense<0.000000e+00> : vector<8x8xf32>
    %860 = tpu.matmul %858, %859, %cst_336 {dimension_numbers = #tpu.dot_dimension_numbers<[1], [0], [0], [1], [0, 0, 1, 1], [], []>} : vector<8x8xbf16>, vector<8x8xbf16>, vector<8x8xf32> -> vector<8x8xf32>
    %861 = tpu.concatenate %809, %826, %843, %860 in 1 : vector<8x8xf32>, vector<8x8xf32>, vector<8x8xf32>, vector<8x8xf32> -> vector<8x32xf32>
    %862 = arith.truncf %861 : vector<8x32xf32> to vector<8x32xbf16>
    %cst_337 = arith.constant dense<0.000000e+00> : vector<8x32xf32>
    %863 = tpu.matmul %862, %758, %cst_337 {dimension_numbers = #tpu.dot_dimension_numbers<[1], [0], [0], [1], [0, 0, 1, 1], [], []>} : vector<8x32xbf16>, vector<32x32xbf16>, vector<8x32xf32> -> vector<8x32xf32>
    %864 = arith.addf %748, %863 : vector<8x32xf32>
    %865 = vector.broadcast %760 : vector<1x32xf32> to vector<8x32xf32>
    %866 = arith.addf %864, %865 : vector<8x32xf32>
    %c1_338 = arith.constant 1 : index
    %c0_339 = arith.constant 0 : index
    %c0_340 = arith.constant 0 : index
    %867 = vector.load %arg35[%c1_338, %c0_339, %c0_340] : memref<2x1x32xf32, #tpu.memory_space<vmem>>, vector<1x1x32xf32>
    %868 = vector.shape_cast %867 : vector<1x1x32xf32> to vector<1x32xf32>
    %c1_341 = arith.constant 1 : index
    %c0_342 = arith.constant 0 : index
    %c0_343 = arith.constant 0 : index
    %869 = vector.load %arg36[%c1_341, %c0_342, %c0_343] : memref<2x1x32xf32, #tpu.memory_space<vmem>>, vector<1x1x32xf32>
    %870 = vector.shape_cast %869 : vector<1x1x32xf32> to vector<1x32xf32>
    %c1_344 = arith.constant 1 : index
    %c0_345 = arith.constant 0 : index
    %c0_346 = arith.constant 0 : index
    %871 = vector.load %arg37[%c1_344, %c0_345, %c0_346] : memref<2x32x32xbf16, #tpu.memory_space<vmem>>, vector<1x32x32xbf16>
    %872 = vector.shape_cast %871 : vector<1x32x32xbf16> to vector<32x32xbf16>
    %c1_347 = arith.constant 1 : index
    %c0_348 = arith.constant 0 : index
    %c0_349 = arith.constant 0 : index
    %873 = vector.load %arg38[%c1_347, %c0_348, %c0_349] : memref<2x1x32xf32, #tpu.memory_space<vmem>>, vector<1x1x32xf32>
    %874 = vector.shape_cast %873 : vector<1x1x32xf32> to vector<1x32xf32>
    %c1_350 = arith.constant 1 : index
    %c0_351 = arith.constant 0 : index
    %c0_352 = arith.constant 0 : index
    %875 = vector.load %arg39[%c1_350, %c0_351, %c0_352] : memref<2x32x64xbf16, #tpu.memory_space<vmem>>, vector<1x32x64xbf16>
    %876 = vector.shape_cast %875 : vector<1x32x64xbf16> to vector<32x64xbf16>
    %c1_353 = arith.constant 1 : index
    %c0_354 = arith.constant 0 : index
    %c0_355 = arith.constant 0 : index
    %877 = vector.load %arg40[%c1_353, %c0_354, %c0_355] : memref<2x1x64xf32, #tpu.memory_space<vmem>>, vector<1x1x64xf32>
    %878 = vector.shape_cast %877 : vector<1x1x64xf32> to vector<1x64xf32>
    %c1_356 = arith.constant 1 : index
    %c0_357 = arith.constant 0 : index
    %c0_358 = arith.constant 0 : index
    %879 = vector.load %arg41[%c1_356, %c0_357, %c0_358] : memref<2x32x32xbf16, #tpu.memory_space<vmem>>, vector<1x32x32xbf16>
    %880 = vector.shape_cast %879 : vector<1x32x32xbf16> to vector<32x32xbf16>
    %c1_359 = arith.constant 1 : index
    %c0_360 = arith.constant 0 : index
    %c0_361 = arith.constant 0 : index
    %881 = vector.load %arg42[%c1_359, %c0_360, %c0_361] : memref<2x1x32xf32, #tpu.memory_space<vmem>>, vector<1x1x32xf32>
    %882 = vector.shape_cast %881 : vector<1x1x32xf32> to vector<1x32xf32>
    %cst_362 = arith.constant dense<0.000000e+00> : vector<8xf32>
    %883 = vector.multi_reduction <add>, %866, %cst_362 [1] : vector<8x32xf32> to vector<8xf32>
    %884 = vector.shape_cast %883 : vector<8xf32> to vector<8x1xf32>
    %cst_363 = arith.constant 3.200000e+01 : f32
    %885 = vector.broadcast %cst_363 : f32 to vector<8x1xf32>
    %886 = arith.divf %884, %885 : vector<8x1xf32>
    %887 = vector.broadcast %886 : vector<8x1xf32> to vector<8x32xf32>
    %888 = arith.subf %866, %887 : vector<8x32xf32>
    %889 = arith.mulf %888, %888 : vector<8x32xf32>
    %cst_364 = arith.constant dense<0.000000e+00> : vector<8xf32>
    %890 = vector.multi_reduction <add>, %889, %cst_364 [1] : vector<8x32xf32> to vector<8xf32>
    %891 = vector.shape_cast %890 : vector<8xf32> to vector<8x1xf32>
    %cst_365 = arith.constant 3.200000e+01 : f32
    %892 = vector.broadcast %cst_365 : f32 to vector<8x1xf32>
    %893 = arith.divf %891, %892 : vector<8x1xf32>
    %894 = vector.broadcast %886 : vector<8x1xf32> to vector<8x32xf32>
    %895 = arith.subf %866, %894 : vector<8x32xf32>
    %cst_366 = arith.constant 9.99999974E-6 : f32
    %896 = vector.broadcast %cst_366 : f32 to vector<8x1xf32>
    %897 = arith.addf %893, %896 : vector<8x1xf32>
    %898 = math.rsqrt %897 : vector<8x1xf32>
    %899 = vector.broadcast %898 : vector<8x1xf32> to vector<8x32xf32>
    %900 = arith.mulf %895, %899 : vector<8x32xf32>
    %901 = vector.broadcast %868 : vector<1x32xf32> to vector<8x32xf32>
    %902 = arith.mulf %900, %901 : vector<8x32xf32>
    %903 = vector.broadcast %870 : vector<1x32xf32> to vector<8x32xf32>
    %904 = arith.addf %902, %903 : vector<8x32xf32>
    %905 = arith.truncf %904 : vector<8x32xf32> to vector<8x32xbf16>
    %cst_367 = arith.constant dense<0.000000e+00> : vector<8x32xf32>
    %906 = tpu.matmul %905, %872, %cst_367 {dimension_numbers = #tpu.dot_dimension_numbers<[1], [0], [0], [1], [0, 0, 1, 1], [], []>} : vector<8x32xbf16>, vector<32x32xbf16>, vector<8x32xf32> -> vector<8x32xf32>
    %907 = vector.broadcast %874 : vector<1x32xf32> to vector<8x32xf32>
    %908 = arith.addf %906, %907 : vector<8x32xf32>
    %cst_368 = arith.constant dense<0.000000e+00> : vector<8x64xf32>
    %909 = tpu.matmul %408, %876, %cst_368 {dimension_numbers = #tpu.dot_dimension_numbers<[1], [0], [0], [1], [0, 0, 1, 1], [], []>} : vector<8x32xbf16>, vector<32x64xbf16>, vector<8x64xf32> -> vector<8x64xf32>
    %910 = vector.broadcast %878 : vector<1x64xf32> to vector<8x64xf32>
    %911 = arith.addf %909, %910 : vector<8x64xf32>
    %912 = vector.extract_strided_slice %911 {offsets = [0, 0], sizes = [8, 32], strides = [1, 1]} : vector<8x64xf32> to vector<8x32xf32>
    %913 = vector.extract_strided_slice %911 {offsets = [0, 32], sizes = [8, 32], strides = [1, 1]} : vector<8x64xf32> to vector<8x32xf32>
    %914 = arith.truncf %908 : vector<8x32xf32> to vector<8x32xbf16>
    %915 = arith.truncf %912 : vector<8x32xf32> to vector<8x32xbf16>
    %916 = arith.truncf %913 : vector<8x32xf32> to vector<8x32xbf16>
    %917 = vector.extract_strided_slice %914 {offsets = [0, 0], sizes = [8, 8], strides = [1, 1]} : vector<8x32xbf16> to vector<8x8xbf16>
    %918 = vector.extract_strided_slice %915 {offsets = [0, 0], sizes = [8, 8], strides = [1, 1]} : vector<8x32xbf16> to vector<8x8xbf16>
    "tpu.trace_start"() <{level = 10 : i32, message = "qd,kd->qk"}> : () -> ()
    %cst_369 = arith.constant dense<0.000000e+00> : vector<8x8xf32>
    %919 = tpu.matmul %917, %918, %cst_369 {dimension_numbers = #tpu.dot_dimension_numbers<[1], [1], [0], [0], [0, 0, 1, 0], [], []>} : vector<8x8xbf16>, vector<8x8xbf16>, vector<8x8xf32> -> vector<8x8xf32>
    "tpu.trace_stop"() : () -> ()
    %920 = vector.broadcast %1 : vector<1x8xf32> to vector<8x8xf32>
    %921 = arith.addf %919, %920 : vector<8x8xf32>
    %cst_370 = arith.constant dense<0xFF800000> : vector<8xf32>
    %922 = vector.multi_reduction <maximumf>, %921, %cst_370 [1] : vector<8x8xf32> to vector<8xf32>
    %923 = vector.shape_cast %922 : vector<8xf32> to vector<8x1xf32>
    %924 = vector.broadcast %923 : vector<8x1xf32> to vector<8x8xf32>
    %925 = arith.subf %921, %924 : vector<8x8xf32>
    %926 = math.exp %925 : vector<8x8xf32>
    %cst_371 = arith.constant dense<0.000000e+00> : vector<8xf32>
    %927 = vector.multi_reduction <add>, %926, %cst_371 [1] : vector<8x8xf32> to vector<8xf32>
    %928 = vector.shape_cast %927 : vector<8xf32> to vector<8x1xf32>
    %929 = tpu.reciprocal %928 {approx = true} : vector<8x1xf32> -> vector<8x1xf32>
    %930 = vector.broadcast %929 : vector<8x1xf32> to vector<8x8xf32>
    %931 = arith.mulf %926, %930 : vector<8x8xf32>
    %932 = arith.truncf %931 : vector<8x8xf32> to vector<8x8xbf16>
    %933 = vector.extract_strided_slice %916 {offsets = [0, 0], sizes = [8, 8], strides = [1, 1]} : vector<8x32xbf16> to vector<8x8xbf16>
    %cst_372 = arith.constant dense<0.000000e+00> : vector<8x8xf32>
    %934 = tpu.matmul %932, %933, %cst_372 {dimension_numbers = #tpu.dot_dimension_numbers<[1], [0], [0], [1], [0, 0, 1, 1], [], []>} : vector<8x8xbf16>, vector<8x8xbf16>, vector<8x8xf32> -> vector<8x8xf32>
    %935 = vector.extract_strided_slice %914 {offsets = [0, 8], sizes = [8, 8], strides = [1, 1]} : vector<8x32xbf16> to vector<8x8xbf16>
    %936 = vector.extract_strided_slice %915 {offsets = [0, 8], sizes = [8, 8], strides = [1, 1]} : vector<8x32xbf16> to vector<8x8xbf16>
    "tpu.trace_start"() <{level = 10 : i32, message = "qd,kd->qk"}> : () -> ()
    %cst_373 = arith.constant dense<0.000000e+00> : vector<8x8xf32>
    %937 = tpu.matmul %935, %936, %cst_373 {dimension_numbers = #tpu.dot_dimension_numbers<[1], [1], [0], [0], [0, 0, 1, 0], [], []>} : vector<8x8xbf16>, vector<8x8xbf16>, vector<8x8xf32> -> vector<8x8xf32>
    "tpu.trace_stop"() : () -> ()
    %938 = vector.broadcast %1 : vector<1x8xf32> to vector<8x8xf32>
    %939 = arith.addf %937, %938 : vector<8x8xf32>
    %cst_374 = arith.constant dense<0xFF800000> : vector<8xf32>
    %940 = vector.multi_reduction <maximumf>, %939, %cst_374 [1] : vector<8x8xf32> to vector<8xf32>
    %941 = vector.shape_cast %940 : vector<8xf32> to vector<8x1xf32>
    %942 = vector.broadcast %941 : vector<8x1xf32> to vector<8x8xf32>
    %943 = arith.subf %939, %942 : vector<8x8xf32>
    %944 = math.exp %943 : vector<8x8xf32>
    %cst_375 = arith.constant dense<0.000000e+00> : vector<8xf32>
    %945 = vector.multi_reduction <add>, %944, %cst_375 [1] : vector<8x8xf32> to vector<8xf32>
    %946 = vector.shape_cast %945 : vector<8xf32> to vector<8x1xf32>
    %947 = tpu.reciprocal %946 {approx = true} : vector<8x1xf32> -> vector<8x1xf32>
    %948 = vector.broadcast %947 : vector<8x1xf32> to vector<8x8xf32>
    %949 = arith.mulf %944, %948 : vector<8x8xf32>
    %950 = arith.truncf %949 : vector<8x8xf32> to vector<8x8xbf16>
    %951 = vector.extract_strided_slice %916 {offsets = [0, 8], sizes = [8, 8], strides = [1, 1]} : vector<8x32xbf16> to vector<8x8xbf16>
    %cst_376 = arith.constant dense<0.000000e+00> : vector<8x8xf32>
    %952 = tpu.matmul %950, %951, %cst_376 {dimension_numbers = #tpu.dot_dimension_numbers<[1], [0], [0], [1], [0, 0, 1, 1], [], []>} : vector<8x8xbf16>, vector<8x8xbf16>, vector<8x8xf32> -> vector<8x8xf32>
    %953 = vector.extract_strided_slice %914 {offsets = [0, 16], sizes = [8, 8], strides = [1, 1]} : vector<8x32xbf16> to vector<8x8xbf16>
    %954 = vector.extract_strided_slice %915 {offsets = [0, 16], sizes = [8, 8], strides = [1, 1]} : vector<8x32xbf16> to vector<8x8xbf16>
    "tpu.trace_start"() <{level = 10 : i32, message = "qd,kd->qk"}> : () -> ()
    %cst_377 = arith.constant dense<0.000000e+00> : vector<8x8xf32>
    %955 = tpu.matmul %953, %954, %cst_377 {dimension_numbers = #tpu.dot_dimension_numbers<[1], [1], [0], [0], [0, 0, 1, 0], [], []>} : vector<8x8xbf16>, vector<8x8xbf16>, vector<8x8xf32> -> vector<8x8xf32>
    "tpu.trace_stop"() : () -> ()
    %956 = vector.broadcast %1 : vector<1x8xf32> to vector<8x8xf32>
    %957 = arith.addf %955, %956 : vector<8x8xf32>
    %cst_378 = arith.constant dense<0xFF800000> : vector<8xf32>
    %958 = vector.multi_reduction <maximumf>, %957, %cst_378 [1] : vector<8x8xf32> to vector<8xf32>
    %959 = vector.shape_cast %958 : vector<8xf32> to vector<8x1xf32>
    %960 = vector.broadcast %959 : vector<8x1xf32> to vector<8x8xf32>
    %961 = arith.subf %957, %960 : vector<8x8xf32>
    %962 = math.exp %961 : vector<8x8xf32>
    %cst_379 = arith.constant dense<0.000000e+00> : vector<8xf32>
    %963 = vector.multi_reduction <add>, %962, %cst_379 [1] : vector<8x8xf32> to vector<8xf32>
    %964 = vector.shape_cast %963 : vector<8xf32> to vector<8x1xf32>
    %965 = tpu.reciprocal %964 {approx = true} : vector<8x1xf32> -> vector<8x1xf32>
    %966 = vector.broadcast %965 : vector<8x1xf32> to vector<8x8xf32>
    %967 = arith.mulf %962, %966 : vector<8x8xf32>
    %968 = arith.truncf %967 : vector<8x8xf32> to vector<8x8xbf16>
    %969 = vector.extract_strided_slice %916 {offsets = [0, 16], sizes = [8, 8], strides = [1, 1]} : vector<8x32xbf16> to vector<8x8xbf16>
    %cst_380 = arith.constant dense<0.000000e+00> : vector<8x8xf32>
    %970 = tpu.matmul %968, %969, %cst_380 {dimension_numbers = #tpu.dot_dimension_numbers<[1], [0], [0], [1], [0, 0, 1, 1], [], []>} : vector<8x8xbf16>, vector<8x8xbf16>, vector<8x8xf32> -> vector<8x8xf32>
    %971 = vector.extract_strided_slice %914 {offsets = [0, 24], sizes = [8, 8], strides = [1, 1]} : vector<8x32xbf16> to vector<8x8xbf16>
    %972 = vector.extract_strided_slice %915 {offsets = [0, 24], sizes = [8, 8], strides = [1, 1]} : vector<8x32xbf16> to vector<8x8xbf16>
    "tpu.trace_start"() <{level = 10 : i32, message = "qd,kd->qk"}> : () -> ()
    %cst_381 = arith.constant dense<0.000000e+00> : vector<8x8xf32>
    %973 = tpu.matmul %971, %972, %cst_381 {dimension_numbers = #tpu.dot_dimension_numbers<[1], [1], [0], [0], [0, 0, 1, 0], [], []>} : vector<8x8xbf16>, vector<8x8xbf16>, vector<8x8xf32> -> vector<8x8xf32>
    "tpu.trace_stop"() : () -> ()
    %974 = vector.broadcast %1 : vector<1x8xf32> to vector<8x8xf32>
    %975 = arith.addf %973, %974 : vector<8x8xf32>
    %cst_382 = arith.constant dense<0xFF800000> : vector<8xf32>
    %976 = vector.multi_reduction <maximumf>, %975, %cst_382 [1] : vector<8x8xf32> to vector<8xf32>
    %977 = vector.shape_cast %976 : vector<8xf32> to vector<8x1xf32>
    %978 = vector.broadcast %977 : vector<8x1xf32> to vector<8x8xf32>
    %979 = arith.subf %975, %978 : vector<8x8xf32>
    %980 = math.exp %979 : vector<8x8xf32>
    %cst_383 = arith.constant dense<0.000000e+00> : vector<8xf32>
    %981 = vector.multi_reduction <add>, %980, %cst_383 [1] : vector<8x8xf32> to vector<8xf32>
    %982 = vector.shape_cast %981 : vector<8xf32> to vector<8x1xf32>
    %983 = tpu.reciprocal %982 {approx = true} : vector<8x1xf32> -> vector<8x1xf32>
    %984 = vector.broadcast %983 : vector<8x1xf32> to vector<8x8xf32>
    %985 = arith.mulf %980, %984 : vector<8x8xf32>
    %986 = arith.truncf %985 : vector<8x8xf32> to vector<8x8xbf16>
    %987 = vector.extract_strided_slice %916 {offsets = [0, 24], sizes = [8, 8], strides = [1, 1]} : vector<8x32xbf16> to vector<8x8xbf16>
    %cst_384 = arith.constant dense<0.000000e+00> : vector<8x8xf32>
    %988 = tpu.matmul %986, %987, %cst_384 {dimension_numbers = #tpu.dot_dimension_numbers<[1], [0], [0], [1], [0, 0, 1, 1], [], []>} : vector<8x8xbf16>, vector<8x8xbf16>, vector<8x8xf32> -> vector<8x8xf32>
    %989 = tpu.concatenate %934, %952, %970, %988 in 1 : vector<8x8xf32>, vector<8x8xf32>, vector<8x8xf32>, vector<8x8xf32> -> vector<8x32xf32>
    %990 = arith.truncf %989 : vector<8x32xf32> to vector<8x32xbf16>
    %cst_385 = arith.constant dense<0.000000e+00> : vector<8x32xf32>
    %991 = tpu.matmul %990, %880, %cst_385 {dimension_numbers = #tpu.dot_dimension_numbers<[1], [0], [0], [1], [0, 0, 1, 1], [], []>} : vector<8x32xbf16>, vector<32x32xbf16>, vector<8x32xf32> -> vector<8x32xf32>
    %992 = arith.addf %866, %991 : vector<8x32xf32>
    %993 = vector.broadcast %882 : vector<1x32xf32> to vector<8x32xf32>
    %994 = arith.addf %992, %993 : vector<8x32xf32>
    %c1_386 = arith.constant 1 : index
    %c0_387 = arith.constant 0 : index
    %c0_388 = arith.constant 0 : index
    %995 = vector.load %arg29[%c1_386, %c0_387, %c0_388] : memref<2x1x32xf32, #tpu.memory_space<vmem>>, vector<1x1x32xf32>
    %996 = vector.shape_cast %995 : vector<1x1x32xf32> to vector<1x32xf32>
    %c1_389 = arith.constant 1 : index
    %c0_390 = arith.constant 0 : index
    %c0_391 = arith.constant 0 : index
    %997 = vector.load %arg30[%c1_389, %c0_390, %c0_391] : memref<2x1x32xf32, #tpu.memory_space<vmem>>, vector<1x1x32xf32>
    %998 = vector.shape_cast %997 : vector<1x1x32xf32> to vector<1x32xf32>
    %c1_392 = arith.constant 1 : index
    %c0_393 = arith.constant 0 : index
    %c0_394 = arith.constant 0 : index
    %999 = vector.load %arg31[%c1_392, %c0_393, %c0_394] : memref<2x32x64xbf16, #tpu.memory_space<vmem>>, vector<1x32x64xbf16>
    %1000 = vector.shape_cast %999 : vector<1x32x64xbf16> to vector<32x64xbf16>
    %c1_395 = arith.constant 1 : index
    %c0_396 = arith.constant 0 : index
    %c0_397 = arith.constant 0 : index
    %1001 = vector.load %arg32[%c1_395, %c0_396, %c0_397] : memref<2x1x64xf32, #tpu.memory_space<vmem>>, vector<1x1x64xf32>
    %1002 = vector.shape_cast %1001 : vector<1x1x64xf32> to vector<1x64xf32>
    %c1_398 = arith.constant 1 : index
    %c0_399 = arith.constant 0 : index
    %c0_400 = arith.constant 0 : index
    %1003 = vector.load %arg33[%c1_398, %c0_399, %c0_400] : memref<2x64x32xbf16, #tpu.memory_space<vmem>>, vector<1x64x32xbf16>
    %1004 = vector.shape_cast %1003 : vector<1x64x32xbf16> to vector<64x32xbf16>
    %c1_401 = arith.constant 1 : index
    %c0_402 = arith.constant 0 : index
    %c0_403 = arith.constant 0 : index
    %1005 = vector.load %arg34[%c1_401, %c0_402, %c0_403] : memref<2x1x32xf32, #tpu.memory_space<vmem>>, vector<1x1x32xf32>
    %1006 = vector.shape_cast %1005 : vector<1x1x32xf32> to vector<1x32xf32>
    %cst_404 = arith.constant dense<0.000000e+00> : vector<8xf32>
    %1007 = vector.multi_reduction <add>, %994, %cst_404 [1] : vector<8x32xf32> to vector<8xf32>
    %1008 = vector.shape_cast %1007 : vector<8xf32> to vector<8x1xf32>
    %cst_405 = arith.constant 3.200000e+01 : f32
    %1009 = vector.broadcast %cst_405 : f32 to vector<8x1xf32>
    %1010 = arith.divf %1008, %1009 : vector<8x1xf32>
    %1011 = vector.broadcast %1010 : vector<8x1xf32> to vector<8x32xf32>
    %1012 = arith.subf %994, %1011 : vector<8x32xf32>
    %1013 = arith.mulf %1012, %1012 : vector<8x32xf32>
    %cst_406 = arith.constant dense<0.000000e+00> : vector<8xf32>
    %1014 = vector.multi_reduction <add>, %1013, %cst_406 [1] : vector<8x32xf32> to vector<8xf32>
    %1015 = vector.shape_cast %1014 : vector<8xf32> to vector<8x1xf32>
    %cst_407 = arith.constant 3.200000e+01 : f32
    %1016 = vector.broadcast %cst_407 : f32 to vector<8x1xf32>
    %1017 = arith.divf %1015, %1016 : vector<8x1xf32>
    %1018 = vector.broadcast %1010 : vector<8x1xf32> to vector<8x32xf32>
    %1019 = arith.subf %994, %1018 : vector<8x32xf32>
    %cst_408 = arith.constant 9.99999974E-6 : f32
    %1020 = vector.broadcast %cst_408 : f32 to vector<8x1xf32>
    %1021 = arith.addf %1017, %1020 : vector<8x1xf32>
    %1022 = math.rsqrt %1021 : vector<8x1xf32>
    %1023 = vector.broadcast %1022 : vector<8x1xf32> to vector<8x32xf32>
    %1024 = arith.mulf %1019, %1023 : vector<8x32xf32>
    %1025 = vector.broadcast %996 : vector<1x32xf32> to vector<8x32xf32>
    %1026 = arith.mulf %1024, %1025 : vector<8x32xf32>
    %1027 = vector.broadcast %998 : vector<1x32xf32> to vector<8x32xf32>
    %1028 = arith.addf %1026, %1027 : vector<8x32xf32>
    %1029 = arith.truncf %1028 : vector<8x32xf32> to vector<8x32xbf16>
    %cst_409 = arith.constant dense<0.000000e+00> : vector<8x64xf32>
    %1030 = tpu.matmul %1029, %1000, %cst_409 {dimension_numbers = #tpu.dot_dimension_numbers<[1], [0], [0], [1], [0, 0, 1, 1], [], []>} : vector<8x32xbf16>, vector<32x64xbf16>, vector<8x64xf32> -> vector<8x64xf32>
    %1031 = vector.broadcast %1002 : vector<1x64xf32> to vector<8x64xf32>
    %1032 = arith.addf %1030, %1031 : vector<8x64xf32>
    %cst_410 = arith.constant 5.000000e-01 : f32
    %1033 = vector.broadcast %cst_410 : f32 to vector<8x64xf32>
    %1034 = arith.mulf %1033, %1032 : vector<8x64xf32>
    %cst_411 = arith.constant 4.471500e-02 : f32
    %1035 = vector.broadcast %cst_411 : f32 to vector<8x64xf32>
    %1036 = arith.mulf %1035, %1032 : vector<8x64xf32>
    %1037 = arith.mulf %1036, %1032 : vector<8x64xf32>
    %1038 = arith.mulf %1037, %1032 : vector<8x64xf32>
    %1039 = arith.addf %1032, %1038 : vector<8x64xf32>
    %cst_412 = arith.constant 0.797884583 : f32
    %1040 = vector.broadcast %cst_412 : f32 to vector<8x64xf32>
    %1041 = arith.mulf %1040, %1039 : vector<8x64xf32>
    %1042 = math.tanh %1041 : vector<8x64xf32>
    %cst_413 = arith.constant 1.000000e+00 : f32
    %1043 = vector.broadcast %cst_413 : f32 to vector<8x64xf32>
    %1044 = arith.addf %1043, %1042 : vector<8x64xf32>
    %1045 = arith.mulf %1034, %1044 : vector<8x64xf32>
    %1046 = arith.truncf %1045 : vector<8x64xf32> to vector<8x64xbf16>
    %cst_414 = arith.constant dense<0.000000e+00> : vector<8x32xf32>
    %1047 = tpu.matmul %1046, %1004, %cst_414 {dimension_numbers = #tpu.dot_dimension_numbers<[1], [0], [0], [1], [0, 0, 1, 1], [], []>} : vector<8x64xbf16>, vector<64x32xbf16>, vector<8x32xf32> -> vector<8x32xf32>
    %1048 = arith.addf %994, %1047 : vector<8x32xf32>
    %1049 = vector.broadcast %1006 : vector<1x32xf32> to vector<8x32xf32>
    %1050 = arith.addf %1048, %1049 : vector<8x32xf32>
    %c0_415 = arith.constant 0 : index
    %c0_416 = arith.constant 0 : index
    %1051 = vector.load %arg43[%c0_415, %c0_416] : memref<1x32xf32, #tpu.memory_space<vmem>>, vector<1x32xf32>
    %c0_417 = arith.constant 0 : index
    %c0_418 = arith.constant 0 : index
    %1052 = vector.load %arg44[%c0_417, %c0_418] : memref<1x32xf32, #tpu.memory_space<vmem>>, vector<1x32xf32>
    %cst_419 = arith.constant dense<0.000000e+00> : vector<8xf32>
    %1053 = vector.multi_reduction <add>, %1050, %cst_419 [1] : vector<8x32xf32> to vector<8xf32>
    %1054 = vector.shape_cast %1053 : vector<8xf32> to vector<8x1xf32>
    %cst_420 = arith.constant 3.200000e+01 : f32
    %1055 = vector.broadcast %cst_420 : f32 to vector<8x1xf32>
    %1056 = arith.divf %1054, %1055 : vector<8x1xf32>
    %1057 = vector.broadcast %1056 : vector<8x1xf32> to vector<8x32xf32>
    %1058 = arith.subf %1050, %1057 : vector<8x32xf32>
    %1059 = arith.mulf %1058, %1058 : vector<8x32xf32>
    %cst_421 = arith.constant dense<0.000000e+00> : vector<8xf32>
    %1060 = vector.multi_reduction <add>, %1059, %cst_421 [1] : vector<8x32xf32> to vector<8xf32>
    %1061 = vector.shape_cast %1060 : vector<8xf32> to vector<8x1xf32>
    %cst_422 = arith.constant 3.200000e+01 : f32
    %1062 = vector.broadcast %cst_422 : f32 to vector<8x1xf32>
    %1063 = arith.divf %1061, %1062 : vector<8x1xf32>
    %1064 = vector.broadcast %1056 : vector<8x1xf32> to vector<8x32xf32>
    %1065 = arith.subf %1050, %1064 : vector<8x32xf32>
    %cst_423 = arith.constant 9.99999974E-6 : f32
    %1066 = vector.broadcast %cst_423 : f32 to vector<8x1xf32>
    %1067 = arith.addf %1063, %1066 : vector<8x1xf32>
    %1068 = math.rsqrt %1067 : vector<8x1xf32>
    %1069 = vector.broadcast %1068 : vector<8x1xf32> to vector<8x32xf32>
    %1070 = arith.mulf %1065, %1069 : vector<8x32xf32>
    %1071 = vector.broadcast %1051 : vector<1x32xf32> to vector<8x32xf32>
    %1072 = arith.mulf %1070, %1071 : vector<8x32xf32>
    %1073 = vector.broadcast %1052 : vector<1x32xf32> to vector<8x32xf32>
    %1074 = arith.addf %1072, %1073 : vector<8x32xf32>
    %1075 = arith.truncf %1074 : vector<8x32xf32> to vector<8x32xbf16>
    %c0_424 = arith.constant 0 : index
    %c0_425 = arith.constant 0 : index
    %1076 = vector.load %arg45[%c0_424, %c0_425] : memref<32x128xbf16, #tpu.memory_space<vmem>>, vector<32x128xbf16>
    %cst_426 = arith.constant dense<0.000000e+00> : vector<8x128xf32>
    %1077 = tpu.matmul %1075, %1076, %cst_426 {dimension_numbers = #tpu.dot_dimension_numbers<[1], [0], [0], [1], [0, 0, 1, 1], [], []>} : vector<8x32xbf16>, vector<32x128xbf16>, vector<8x128xf32> -> vector<8x128xf32>
    %c0_427 = arith.constant 0 : index
    %c0_428 = arith.constant 0 : index
    %1078 = vector.load %arg46[%c0_427, %c0_428] : memref<1x128xf32, #tpu.memory_space<vmem>>, vector<1x128xf32>
    %1079 = vector.broadcast %1078 : vector<1x128xf32> to vector<8x128xf32>
    %1080 = arith.addf %1077, %1079 : vector<8x128xf32>
    %c0_429 = arith.constant 0 : index
    %c0_430 = arith.constant 0 : index
    %c0_431 = arith.constant 0 : index
    %1081 = vector.load %arg47[%c0_429, %c0_430, %c0_431] : memref<1x8x128xf32, #tpu.memory_space<vmem>>, vector<1x8x128xf32>
    %1082 = vector.shape_cast %1081 : vector<1x8x128xf32> to vector<8x128xf32>
    %1083 = vector.shape_cast %1080 : vector<8x128xf32> to vector<1x8x128xf32>
    tpu.vector_store %arg47[%c0_429, %c0_430, %c0_431], %1083 {strides = array<i32>} : memref<1x8x128xf32, #tpu.memory_space<vmem>>, vector<1x8x128xf32>,
    return
  }
  func.func @transform_0(%arg0: i32) -> (i32, i32, i32) {
    %c0_i32 = arith.constant 0 : i32
    %c0_i32_0 = arith.constant 0 : i32
    %c0_i32_1 = arith.constant 0 : i32
    return %arg0, %c0_i32, %c0_i32_0 : i32, i32, i32
  }
  func.func @transform_1(%arg0: i32) -> (i32, i32, i32) {
    %c0_i32 = arith.constant 0 : i32
    %c0_i32_0 = arith.constant 0 : i32
    %c0_i32_1 = arith.constant 0 : i32
    return %arg0, %c0_i32, %c0_i32_0 : i32, i32, i32
  }
  func.func @transform_2(%arg0: i32) -> (i32, i32, i32) {
    %c0_i32 = arith.constant 0 : i32
    %c0_i32_0 = arith.constant 0 : i32
    %c0_i32_1 = arith.constant 0 : i32
    return %arg0, %c0_i32, %c0_i32_0 : i32, i32, i32
  }
  func.func @transform_3(%arg0: i32) -> (i32, i32, i32) {
    %c0_i32 = arith.constant 0 : i32
    %c0_i32_0 = arith.constant 0 : i32
    %c0_i32_1 = arith.constant 0 : i32
    return %arg0, %c0_i32, %c0_i32_0 : i32, i32, i32
  }
  func.func @transform_4(%arg0: i32) -> (i32, i32) {
    %c0_i32 = arith.constant 0 : i32
    %c0_i32_0 = arith.constant 0 : i32
    %c0_i32_1 = arith.constant 0 : i32
    return %c0_i32, %c0_i32_0 : i32, i32
  }
  func.func @transform_5(%arg0: i32) -> (i32, i32) {
    %c0_i32 = arith.constant 0 : i32
    %c0_i32_0 = arith.constant 0 : i32
    %c0_i32_1 = arith.constant 0 : i32
    return %c0_i32, %c0_i32_0 : i32, i32
  }
  func.func @transform_6(%arg0: i32) -> (i32, i32, i32) {
    %c0_i32 = arith.constant 0 : i32
    %c0_i32_0 = arith.constant 0 : i32
    %c0_i32_1 = arith.constant 0 : i32
    %c0_i32_2 = arith.constant 0 : i32
    return %c0_i32, %c0_i32_0, %c0_i32_1 : i32, i32, i32
  }
  func.func @transform_7(%arg0: i32) -> (i32, i32, i32) {
    %c0_i32 = arith.constant 0 : i32
    %c0_i32_0 = arith.constant 0 : i32
    %c0_i32_1 = arith.constant 0 : i32
    %c0_i32_2 = arith.constant 0 : i32
    return %c0_i32, %c0_i32_0, %c0_i32_1 : i32, i32, i32
  }
  func.func @transform_8(%arg0: i32) -> (i32, i32, i32) {
    %c0_i32 = arith.constant 0 : i32
    %c0_i32_0 = arith.constant 0 : i32
    %c0_i32_1 = arith.constant 0 : i32
    %c0_i32_2 = arith.constant 0 : i32
    return %c0_i32, %c0_i32_0, %c0_i32_1 : i32, i32, i32
  }
  func.func @transform_9(%arg0: i32) -> (i32, i32, i32) {
    %c0_i32 = arith.constant 0 : i32
    %c0_i32_0 = arith.constant 0 : i32
    %c0_i32_1 = arith.constant 0 : i32
    %c0_i32_2 = arith.constant 0 : i32
    return %c0_i32, %c0_i32_0, %c0_i32_1 : i32, i32, i32
  }
  func.func @transform_10(%arg0: i32) -> (i32, i32, i32) {
    %c0_i32 = arith.constant 0 : i32
    %c0_i32_0 = arith.constant 0 : i32
    %c0_i32_1 = arith.constant 0 : i32
    %c0_i32_2 = arith.constant 0 : i32
    return %c0_i32, %c0_i32_0, %c0_i32_1 : i32, i32, i32
  }
  func.func @transform_11(%arg0: i32) -> (i32, i32, i32) {
    %c0_i32 = arith.constant 0 : i32
    %c0_i32_0 = arith.constant 0 : i32
    %c0_i32_1 = arith.constant 0 : i32
    %c0_i32_2 = arith.constant 0 : i32
    return %c0_i32, %c0_i32_0, %c0_i32_1 : i32, i32, i32
  }
  func.func @transform_12(%arg0: i32) -> (i32, i32, i32) {
    %c0_i32 = arith.constant 0 : i32
    %c0_i32_0 = arith.constant 0 : i32
    %c0_i32_1 = arith.constant 0 : i32
    %c0_i32_2 = arith.constant 0 : i32
    return %c0_i32, %c0_i32_0, %c0_i32_1 : i32, i32, i32
  }
  func.func @transform_13(%arg0: i32) -> (i32, i32, i32) {
    %c0_i32 = arith.constant 0 : i32
    %c0_i32_0 = arith.constant 0 : i32
    %c0_i32_1 = arith.constant 0 : i32
    %c0_i32_2 = arith.constant 0 : i32
    return %c0_i32, %c0_i32_0, %c0_i32_1 : i32, i32, i32
  }
  func.func @transform_14(%arg0: i32) -> (i32, i32, i32) {
    %c0_i32 = arith.constant 0 : i32
    %c0_i32_0 = arith.constant 0 : i32
    %c0_i32_1 = arith.constant 0 : i32
    %c0_i32_2 = arith.constant 0 : i32
    return %c0_i32, %c0_i32_0, %c0_i32_1 : i32, i32, i32
  }
  func.func @transform_15(%arg0: i32) -> (i32, i32, i32) {
    %c0_i32 = arith.constant 0 : i32
    %c0_i32_0 = arith.constant 0 : i32
    %c0_i32_1 = arith.constant 0 : i32
    %c0_i32_2 = arith.constant 0 : i32
    return %c0_i32, %c0_i32_0, %c0_i32_1 : i32, i32, i32
  }
  func.func @transform_16(%arg0: i32) -> (i32, i32, i32) {
    %c0_i32 = arith.constant 0 : i32
    %c0_i32_0 = arith.constant 0 : i32
    %c0_i32_1 = arith.constant 0 : i32
    %c0_i32_2 = arith.constant 0 : i32
    return %c0_i32, %c0_i32_0, %c0_i32_1 : i32, i32, i32
  }
  func.func @transform_17(%arg0: i32) -> (i32, i32, i32) {
    %c0_i32 = arith.constant 0 : i32
    %c0_i32_0 = arith.constant 0 : i32
    %c0_i32_1 = arith.constant 0 : i32
    %c0_i32_2 = arith.constant 0 : i32
    return %c0_i32, %c0_i32_0, %c0_i32_1 : i32, i32, i32
  }
  func.func @transform_18(%arg0: i32) -> (i32, i32) {
    %c0_i32 = arith.constant 0 : i32
    %c0_i32_0 = arith.constant 0 : i32
    %c0_i32_1 = arith.constant 0 : i32
    return %c0_i32, %c0_i32_0 : i32, i32
  }
  func.func @transform_19(%arg0: i32) -> (i32, i32) {
    %c0_i32 = arith.constant 0 : i32
    %c0_i32_0 = arith.constant 0 : i32
    %c0_i32_1 = arith.constant 0 : i32
    return %c0_i32, %c0_i32_0 : i32, i32
  }
  func.func @transform_20(%arg0: i32) -> (i32, i32) {
    %c0_i32 = arith.constant 0 : i32
    %c0_i32_0 = arith.constant 0 : i32
    %c0_i32_1 = arith.constant 0 : i32
    return %c0_i32, %c0_i32_0 : i32, i32
  }
  func.func @transform_21(%arg0: i32) -> (i32, i32) {
    %c0_i32 = arith.constant 0 : i32
    %c0_i32_0 = arith.constant 0 : i32
    %c0_i32_1 = arith.constant 0 : i32
    return %c0_i32, %c0_i32_0 : i32, i32
  }
  func.func @transform_22(%arg0: i32) -> (i32, i32, i32) {
    %c0_i32 = arith.constant 0 : i32
    %c0_i32_0 = arith.constant 0 : i32
    %c0_i32_1 = arith.constant 0 : i32
    %c0_i32_2 = arith.constant 0 : i32
    return %c0_i32, %c0_i32_0, %c0_i32_1 : i32, i32, i32
  }
  func.func @transform_23(%arg0: i32) -> (i32, i32, i32) {
    %c0_i32 = arith.constant 0 : i32
    %c0_i32_0 = arith.constant 0 : i32
    %c0_i32_1 = arith.constant 0 : i32
    %c0_i32_2 = arith.constant 0 : i32
    return %c0_i32, %c0_i32_0, %c0_i32_1 : i32, i32, i32
  }
  func.func @transform_24(%arg0: i32) -> (i32, i32, i32) {
    %c0_i32 = arith.constant 0 : i32
    %c0_i32_0 = arith.constant 0 : i32
    %c0_i32_1 = arith.constant 0 : i32
    %c0_i32_2 = arith.constant 0 : i32
    return %c0_i32, %c0_i32_0, %c0_i32_1 : i32, i32, i32
  }
  func.func @transform_25(%arg0: i32) -> (i32, i32, i32) {
    %c0_i32 = arith.constant 0 : i32
    %c0_i32_0 = arith.constant 0 : i32
    %c0_i32_1 = arith.constant 0 : i32
    %c0_i32_2 = arith.constant 0 : i32
    return %c0_i32, %c0_i32_0, %c0_i32_1 : i32, i32, i32
  }
  func.func @transform_26(%arg0: i32) -> (i32, i32, i32) {
    %c0_i32 = arith.constant 0 : i32
    %c0_i32_0 = arith.constant 0 : i32
    %c0_i32_1 = arith.constant 0 : i32
    %c0_i32_2 = arith.constant 0 : i32
    return %c0_i32, %c0_i32_0, %c0_i32_1 : i32, i32, i32
  }
  func.func @transform_27(%arg0: i32) -> (i32, i32, i32) {
    %c0_i32 = arith.constant 0 : i32
    %c0_i32_0 = arith.constant 0 : i32
    %c0_i32_1 = arith.constant 0 : i32
    %c0_i32_2 = arith.constant 0 : i32
    return %c0_i32, %c0_i32_0, %c0_i32_1 : i32, i32, i32
  }
  func.func @transform_28(%arg0: i32) -> (i32, i32, i32) {
    %c0_i32 = arith.constant 0 : i32
    %c0_i32_0 = arith.constant 0 : i32
    %c0_i32_1 = arith.constant 0 : i32
    %c0_i32_2 = arith.constant 0 : i32
    return %c0_i32, %c0_i32_0, %c0_i32_1 : i32, i32, i32
  }
  func.func @transform_29(%arg0: i32) -> (i32, i32, i32) {
    %c0_i32 = arith.constant 0 : i32
    %c0_i32_0 = arith.constant 0 : i32
    %c0_i32_1 = arith.constant 0 : i32
    %c0_i32_2 = arith.constant 0 : i32
    return %c0_i32, %c0_i32_0, %c0_i32_1 : i32, i32, i32
  }
  func.func @transform_30(%arg0: i32) -> (i32, i32, i32) {
    %c0_i32 = arith.constant 0 : i32
    %c0_i32_0 = arith.constant 0 : i32
    %c0_i32_1 = arith.constant 0 : i32
    %c0_i32_2 = arith.constant 0 : i32
    return %c0_i32, %c0_i32_0, %c0_i32_1 : i32, i32, i32
  }
  func.func @transform_31(%arg0: i32) -> (i32, i32, i32) {
    %c0_i32 = arith.constant 0 : i32
    %c0_i32_0 = arith.constant 0 : i32
    %c0_i32_1 = arith.constant 0 : i32
    %c0_i32_2 = arith.constant 0 : i32
    return %c0_i32, %c0_i32_0, %c0_i32_1 : i32, i32, i32
  }
  func.func @transform_32(%arg0: i32) -> (i32, i32, i32) {
    %c0_i32 = arith.constant 0 : i32
    %c0_i32_0 = arith.constant 0 : i32
    %c0_i32_1 = arith.constant 0 : i32
    %c0_i32_2 = arith.constant 0 : i32
    return %c0_i32, %c0_i32_0, %c0_i32_1 : i32, i32, i32
  }
  func.func @transform_33(%arg0: i32) -> (i32, i32, i32) {
    %c0_i32 = arith.constant 0 : i32
    %c0_i32_0 = arith.constant 0 : i32
    %c0_i32_1 = arith.constant 0 : i32
    %c0_i32_2 = arith.constant 0 : i32
    return %c0_i32, %c0_i32_0, %c0_i32_1 : i32, i32, i32
  }
  func.func @transform_34(%arg0: i32) -> (i32, i32, i32) {
    %c0_i32 = arith.constant 0 : i32
    %c0_i32_0 = arith.constant 0 : i32
    %c0_i32_1 = arith.constant 0 : i32
    %c0_i32_2 = arith.constant 0 : i32
    return %c0_i32, %c0_i32_0, %c0_i32_1 : i32, i32, i32
  }
  func.func @transform_35(%arg0: i32) -> (i32, i32, i32) {
    %c0_i32 = arith.constant 0 : i32
    %c0_i32_0 = arith.constant 0 : i32
    %c0_i32_1 = arith.constant 0 : i32
    %c0_i32_2 = arith.constant 0 : i32
    return %c0_i32, %c0_i32_0, %c0_i32_1 : i32, i32, i32
  }
  func.func @transform_36(%arg0: i32) -> (i32, i32, i32) {
    %c0_i32 = arith.constant 0 : i32
    %c0_i32_0 = arith.constant 0 : i32
    %c0_i32_1 = arith.constant 0 : i32
    %c0_i32_2 = arith.constant 0 : i32
    return %c0_i32, %c0_i32_0, %c0_i32_1 : i32, i32, i32
  }
  func.func @transform_37(%arg0: i32) -> (i32, i32, i32) {
    %c0_i32 = arith.constant 0 : i32
    %c0_i32_0 = arith.constant 0 : i32
    %c0_i32_1 = arith.constant 0 : i32
    %c0_i32_2 = arith.constant 0 : i32
    return %c0_i32, %c0_i32_0, %c0_i32_1 : i32, i32, i32
  }
  func.func @transform_38(%arg0: i32) -> (i32, i32, i32) {
    %c0_i32 = arith.constant 0 : i32
    %c0_i32_0 = arith.constant 0 : i32
    %c0_i32_1 = arith.constant 0 : i32
    %c0_i32_2 = arith.constant 0 : i32
    return %c0_i32, %c0_i32_0, %c0_i32_1 : i32, i32, i32
  }
  func.func @transform_39(%arg0: i32) -> (i32, i32, i32) {
    %c0_i32 = arith.constant 0 : i32
    %c0_i32_0 = arith.constant 0 : i32
    %c0_i32_1 = arith.constant 0 : i32
    %c0_i32_2 = arith.constant 0 : i32
    return %c0_i32, %c0_i32_0, %c0_i32_1 : i32, i32, i32
  }
  func.func @transform_40(%arg0: i32) -> (i32, i32, i32) {
    %c0_i32 = arith.constant 0 : i32
    %c0_i32_0 = arith.constant 0 : i32
    %c0_i32_1 = arith.constant 0 : i32
    %c0_i32_2 = arith.constant 0 : i32
    return %c0_i32, %c0_i32_0, %c0_i32_1 : i32, i32, i32
  }
  func.func @transform_41(%arg0: i32) -> (i32, i32, i32) {
    %c0_i32 = arith.constant 0 : i32
    %c0_i32_0 = arith.constant 0 : i32
    %c0_i32_1 = arith.constant 0 : i32
    %c0_i32_2 = arith.constant 0 : i32
    return %c0_i32, %c0_i32_0, %c0_i32_1 : i32, i32, i32
  }
  func.func @transform_42(%arg0: i32) -> (i32, i32) {
    %c0_i32 = arith.constant 0 : i32
    %c0_i32_0 = arith.constant 0 : i32
    %c0_i32_1 = arith.constant 0 : i32
    return %c0_i32, %c0_i32_0 : i32, i32
  }
  func.func @transform_43(%arg0: i32) -> (i32, i32) {
    %c0_i32 = arith.constant 0 : i32
    %c0_i32_0 = arith.constant 0 : i32
    %c0_i32_1 = arith.constant 0 : i32
    return %c0_i32, %c0_i32_0 : i32, i32
  }
  func.func @transform_44(%arg0: i32) -> (i32, i32) {
    %c0_i32 = arith.constant 0 : i32
    %c0_i32_0 = arith.constant 0 : i32
    %c0_i32_1 = arith.constant 0 : i32
    return %c0_i32, %c0_i32_0 : i32, i32
  }
  func.func @transform_45(%arg0: i32) -> (i32, i32) {
    %c0_i32 = arith.constant 0 : i32
    %c0_i32_0 = arith.constant 0 : i32
    %c0_i32_1 = arith.constant 0 : i32
    return %c0_i32, %c0_i32_0 : i32, i32
  }
  func.func @transform_46(%arg0: i32) -> (i32, i32, i32) {
    %c0_i32 = arith.constant 0 : i32
    %c0_i32_0 = arith.constant 0 : i32
    %c0_i32_1 = arith.constant 0 : i32
    return %arg0, %c0_i32, %c0_i32_0 : i32, i32, i32
  }
}

</mosaic_0001>

<llo_original>
// kernel: mbart_forward.1
$region0: #{mbart_forward.1}
  #allocation0 [shape = 'u32[]', space=smem, size = 0x4, offset = 0x4, fixed_abs, tag = 'smem constant byte address 0x4 - core index']
  #allocation1 [shape = 'u32[72,128]{1,0:T(1,128)}', space=vmem, size = 0x9000, scoped, tag = 'internal scratch']
  %s0 = inlined_call_operand.smem [shape: u32[47], index: -1, kind: input, shape index: {}]
  %s1 = sld [smem:[%s0]]
  %s2 = scalar_lea.smem %s0, 1
  %s3 = sld [smem:[%s2]]
  %s4 = scalar_lea.smem %s0, 2
  %s5 = sld [smem:[%s4]]
  %s6 = scalar_lea.smem %s0, 3
  %s7 = sld [smem:[%s6]]
  %s8 = scalar_lea.smem %s0, 4
  %s9 = sld [smem:[%s8]]
  %s10 = scalar_lea.smem %s0, 5
  %s11 = sld [smem:[%s10]]
  %s12 = scalar_lea.smem %s0, 6
  %s13 = sld [smem:[%s12]]
  %s14 = scalar_lea.smem %s0, 7
  %s15 = sld [smem:[%s14]]
  %s16 = scalar_lea.smem %s0, 8
  %s17 = sld [smem:[%s16]]
  %s18 = scalar_lea.smem %s0, 9
  %s19 = sld [smem:[%s18]]
  %s20 = scalar_lea.smem %s0, 10
  %s21 = sld [smem:[%s20]]
  %s22 = scalar_lea.smem %s0, 11
  %s23 = sld [smem:[%s22]]
  %s24 = scalar_lea.smem %s0, 12
  %s25 = sld [smem:[%s24]]
  %s26 = scalar_lea.smem %s0, 13
  %s27 = sld [smem:[%s26]]
  %s28 = scalar_lea.smem %s0, 14
  %s29 = sld [smem:[%s28]]
  %s30 = scalar_lea.smem %s0, 15
  %s31 = sld [smem:[%s30]]
  %s32 = scalar_lea.smem %s0, 16
  %s33 = sld [smem:[%s32]]
  %s34 = scalar_lea.smem %s0, 17
  %s35 = sld [smem:[%s34]]
  %s36 = scalar_lea.smem %s0, 18
  %s37 = sld [smem:[%s36]]
  %s38 = scalar_lea.smem %s0, 19
  %s39 = sld [smem:[%s38]]
  %s40 = scalar_lea.smem %s0, 20
  %s41 = sld [smem:[%s40]]
  %s42 = scalar_lea.smem %s0, 21
  %s43 = sld [smem:[%s42]]
  %s44 = scalar_lea.smem %s0, 22
  %s45 = sld [smem:[%s44]]
  %s46 = scalar_lea.smem %s0, 23
  %s47 = sld [smem:[%s46]]
  %s48 = scalar_lea.smem %s0, 24
  %s49 = sld [smem:[%s48]]
  %s50 = scalar_lea.smem %s0, 25
  %s51 = sld [smem:[%s50]]
  %s52 = scalar_lea.smem %s0, 26
  %s53 = sld [smem:[%s52]]
  %s54 = scalar_lea.smem %s0, 27
  %s55 = sld [smem:[%s54]]
  %s56 = scalar_lea.smem %s0, 28
  %s57 = sld [smem:[%s56]]
  %s58 = scalar_lea.smem %s0, 29
  %s59 = sld [smem:[%s58]]
  %s60 = scalar_lea.smem %s0, 30
  %s61 = sld [smem:[%s60]]
  %s62 = scalar_lea.smem %s0, 31
  %s63 = sld [smem:[%s62]]
  %s64 = scalar_lea.smem %s0, 32
  %s65 = sld [smem:[%s64]]
  %s66 = scalar_lea.smem %s0, 33
  %s67 = sld [smem:[%s66]]
  %s68 = scalar_lea.smem %s0, 34
  %s69 = sld [smem:[%s68]]
  %s70 = scalar_lea.smem %s0, 35
  %s71 = sld [smem:[%s70]]
  %s72 = scalar_lea.smem %s0, 36
  %s73 = sld [smem:[%s72]]
  %s74 = scalar_lea.smem %s0, 37
  %s75 = sld [smem:[%s74]]
  %s76 = scalar_lea.smem %s0, 38
  %s77 = sld [smem:[%s76]]
  %s78 = scalar_lea.smem %s0, 39
  %s79 = sld [smem:[%s78]]
  %s80 = scalar_lea.smem %s0, 40
  %s81 = sld [smem:[%s80]]
  %s82 = scalar_lea.smem %s0, 41
  %s83 = sld [smem:[%s82]]
  %s84 = scalar_lea.smem %s0, 42
  %s85 = sld [smem:[%s84]]
  %s86 = scalar_lea.smem %s0, 43
  %s87 = sld [smem:[%s86]]
  %s88 = scalar_lea.smem %s0, 44
  %s89 = sld [smem:[%s88]]
  %s90 = scalar_lea.smem %s0, 45
  %s91 = sld [smem:[%s90]]
  %s92 = scalar_lea.smem %s0, 46
  %s93 = sld [smem:[%s92]]
  %s94 = sld [smem:[#allocation0]]
  $region225: #{mbart_forward.1} parent=0
    _
  %s96 = ssub.s32 1, %s94
  %s97 = scalar_select 0, %s96, %s94
  $region1: #{mbart_forward.1} parent=0
    #allocation2 [shape = 'u8[512]{0}', space=vmem, size = 0x400, scoped, tag = 'input window, operand 43, single buffered']
    #allocation3 [shape = 's32[2]{0}', space=sflag, size = 0x8, scoped, tag = 'scoped memory for mbart_forward.1']
    #allocation4 [shape = 's32[2]{0}', space=sflag, size = 0x8, scoped, tag = 'scoped memory for mbart_forward.1']
    #allocation5 [shape = 'u8[512]{0}', space=vmem, size = 0x400, scoped, tag = 'input window, operand 45, single buffered']
    #allocation6 [shape = 's32[1]{0}', space=sflag, size = 0x4, scoped, tag = 'scoped memory for mbart_forward.1']
    #allocation7 [shape = 'u8[8192]{0}', space=vmem, size = 0x2000, scoped, tag = 'output window, operand 0']
    %98 = vsyncpa [#allocation3], 0
    %99 = vsyncpa [#allocation6], 0
    %100 = vsyncpa [#allocation4], 0
    %s101 = scalar_lea.sflag [#allocation4], 1
    %102 = vsyncpa %s101, 0
    loop: start=0, step=1, limit=4
    $region2: #{mbart_forward.1} parent=1 // loop_pre_header
      _
    $region3: #{mbart_forward.1} parent=1 // loop_header
      %s104 = sphi 0, %s108
      %p105 = scmp.ge.s32.totalorder %s104, 4
      %s114 = sphi 0, %s116
      %s117 = sphi 0, %s114
      %s118 = sphi 0, %s117
      %s134 = sphi 0, %s118
      %s140 = sphi 0, %s142
      %s143 = sphi 0, %s140
      %s144 = sphi 0, %s143
      %s160 = sphi 0, %s144
      %s166 = sphi 0, %s168
      %s169 = sphi 0, %s166
      %s170 = sphi 0, %s169
      %s186 = sphi 0, %s170
      %s192 = sphi 0, %s194
      %s195 = sphi 0, %s192
      %s196 = sphi 0, %s195
      %s212 = sphi 0, %s196
      %s216 = sphi 0, %s216
      %s218 = sphi 0, %s216
      %s219 = sphi 0, %s218
      %s233 = sphi 0, %s219
      %s237 = sphi 0, %s237
      %s239 = sphi 0, %s237
      %s240 = sphi 0, %s239
      %s254 = sphi 0, %s240
      %s258 = sphi 0, %s258
      %s260 = sphi 0, %s258
      %s261 = sphi 0, %s260
      %s275 = sphi 0, %s261
      %s279 = sphi 0, %s279
      %s281 = sphi 0, %s279
      %s282 = sphi 0, %s281
      %s296 = sphi 0, %s282
      %s300 = sphi 0, %s300
      %s302 = sphi 0, %s300
      %s303 = sphi 0, %s302
      %s317 = sphi 0, %s303
      %s321 = sphi 0, %s321
      %s323 = sphi 0, %s321
      %s324 = sphi 0, %s323
      %s338 = sphi 0, %s324
      %s342 = sphi 0, %s342
      %s344 = sphi 0, %s342
      %s345 = sphi 0, %s344
      %s359 = sphi 0, %s345
      %s363 = sphi 0, %s363
      %s365 = sphi 0, %s363
      %s366 = sphi 0, %s365
      %s380 = sphi 0, %s366
      %s384 = sphi 0, %s384
      %s386 = sphi 0, %s384
      %s387 = sphi 0, %s386
      %s401 = sphi 0, %s387
      %s405 = sphi 0, %s405
      %s407 = sphi 0, %s405
      %s408 = sphi 0, %s407
      %s422 = sphi 0, %s408
      %s426 = sphi 0, %s426
      %s428 = sphi 0, %s426
      %s429 = sphi 0, %s428
      %s443 = sphi 0, %s429
      %s447 = sphi 0, %s447
      %s449 = sphi 0, %s447
      %s450 = sphi 0, %s449
      %s464 = sphi 0, %s450
      %s468 = sphi 0, %s468
      %s470 = sphi 0, %s468
      %s471 = sphi 0, %s470
      %s485 = sphi 0, %s471
      %s489 = sphi 0, %s489
      %s491 = sphi 0, %s489
      %s492 = sphi 0, %s491
      %s506 = sphi 0, %s492
      %s510 = sphi 0, %s510
      %s512 = sphi 0, %s510
      %s513 = sphi 0, %s512
      %s527 = sphi 0, %s513
      %s531 = sphi 0, %s531
      %s533 = sphi 0, %s531
      %s534 = sphi 0, %s533
      %s548 = sphi 0, %s534
      %s552 = sphi 0, %s552
      %s554 = sphi 0, %s552
      %s555 = sphi 0, %s554
      %s569 = sphi 0, %s555
      %s573 = sphi 0, %s573
      %s575 = sphi 0, %s573
      %s576 = sphi 0, %s575
      %s590 = sphi 0, %s576
      %s594 = sphi 0, %s594
      %s596 = sphi 0, %s594
      %s597 = sphi 0, %s596
      %s611 = sphi 0, %s597
      %s615 = sphi 0, %s615
      %s617 = sphi 0, %s615
      %s618 = sphi 0, %s617
      %s632 = sphi 0, %s618
      %s636 = sphi 0, %s636
      %s638 = sphi 0, %s636
      %s639 = sphi 0, %s638
      %s653 = sphi 0, %s639
      %s657 = sphi 0, %s657
      %s659 = sphi 0, %s657
      %s660 = sphi 0, %s659
      %s674 = sphi 0, %s660
      %s678 = sphi 0, %s678
      %s680 = sphi 0, %s678
      %s681 = sphi 0, %s680
      %s695 = sphi 0, %s681
      %s699 = sphi 0, %s699
      %s701 = sphi 0, %s699
      %s702 = sphi 0, %s701
      %s716 = sphi 0, %s702
      %s720 = sphi 0, %s720
      %s722 = sphi 0, %s720
      %s723 = sphi 0, %s722
      %s737 = sphi 0, %s723
      %s741 = sphi 0, %s741
      %s743 = sphi 0, %s741
      %s744 = sphi 0, %s743
      %s758 = sphi 0, %s744
      %s762 = sphi 0, %s762
      %s764 = sphi 0, %s762
      %s765 = sphi 0, %s764
      %s779 = sphi 0, %s765
      %s783 = sphi 0, %s783
      %s785 = sphi 0, %s783
      %s786 = sphi 0, %s785
      %s800 = sphi 0, %s786
      %s804 = sphi 0, %s804
      %s806 = sphi 0, %s804
      %s807 = sphi 0, %s806
      %s821 = sphi 0, %s807
      %s825 = sphi 0, %s825
      %s827 = sphi 0, %s825
      %s828 = sphi 0, %s827
      %s842 = sphi 0, %s828
      %s846 = sphi 0, %s846
      %s848 = sphi 0, %s846
      %s849 = sphi 0, %s848
      %s863 = sphi 0, %s849
      %s867 = sphi 0, %s867
      %s869 = sphi 0, %s867
      %s870 = sphi 0, %s869
      %s884 = sphi 0, %s870
      %s888 = sphi 0, %s888
      %s890 = sphi 0, %s888
      %s891 = sphi 0, %s890
      %s905 = sphi 0, %s891
      %s909 = sphi 0, %s909
      %s911 = sphi 0, %s909
      %s912 = sphi 0, %s911
      %s926 = sphi 0, %s912
      %s930 = sphi 0, %s930
      %s932 = sphi 0, %s930
      %s933 = sphi 0, %s932
      %s947 = sphi 0, %s933
      %s951 = sphi 0, %s951
      %s953 = sphi 0, %s951
      %s954 = sphi 0, %s953
      %s968 = sphi 0, %s954
      %s972 = sphi 0, %s972
      %s974 = sphi 0, %s972
      %s975 = sphi 0, %s974
      %s989 = sphi 0, %s975
      %s993 = sphi 0, %s993
      %s995 = sphi 0, %s993
      %s996 = sphi 0, %s995
      %s1010 = sphi 0, %s996
      %s1014 = sphi 0, %s1014
      %s1016 = sphi 0, %s1014
      %s1017 = sphi 0, %s1016
      %s1031 = sphi 0, %s1017
      %s1035 = sphi 0, %s1035
      %s1037 = sphi 0, %s1035
      %s1038 = sphi 0, %s1037
      %s1052 = sphi 0, %s1038
      %s1056 = sphi 0, %s1056
      %s1058 = sphi 0, %s1056
      %s1059 = sphi 0, %s1058
      %s1073 = sphi 0, %s1059
      %s1077 = sphi 0, %s1077
      %s1079 = sphi 0, %s1077
      %s1080 = sphi 0, %s1079
      %s1094 = sphi 0, %s1080
      %s1100 = sphi 0, %s1102
      %s1103 = sphi 0, %s1100
      %s1104 = sphi 0, %s1103
      %s1120 = sphi 0, %s1104
    $region4: #{mbart_forward.1} parent=1 // loop_header_branch
      %107 = sbr.rel (%p105) target = $region8
    $region5: #{mbart_forward.1} parent=1 // loop_body
      %s109 = ssub.s32 %s104, 1
      %s110 = ssub.s32 %s104, 2
      %s111 = sadd.s32 %s104, 1
      %s112 = ssub.s32 %s104, %s111
      %p113 = scmp.eq.s32.totalorder %s112, 0
      %s115 = sadd.s32 %s114, 1
      %s116 = scalar_select %p113, %s114, %s115
      %p119 = pneg %p113
      %p120 = scmp.eq.s32.totalorder %s104, 1
      %p121 = por %p119, %p120
      %p122 = scmp.ne.s32.totalorder %s114, %s117
      %p123 = scmp.eq.s32.totalorder %s104, 0
      %p124 = por %p122, %p123
      %p125 = scmp.ne.s32.totalorder %s114, %s117
      %p126 = scmp.eq.s32.totalorder %s109, 1
      %p127 = por %p125, %p126
      %p128 = scmp.ne.s32.totalorder %s117, %s118
      %p129 = scmp.eq.s32.totalorder %s109, 0
      %p130 = por %p128, %p129
      %p131 = scmp.ne.s32.totalorder %s117, %s118
      %p132 = scmp.eq.s32.totalorder %s110, 1
      %p133 = por %p131, %p132
      %p135 = scmp.ne.s32.totalorder %s118, %s134
      %p136 = scmp.eq.s32.totalorder %s110, 0
      %p137 = por %p135, %p136
      %s138 = ssub.s32 %s104, %s111
      %p139 = scmp.eq.s32.totalorder %s138, 0
      %s141 = sadd.s32 %s140, 1
      %s142 = scalar_select %p139, %s140, %s141
      %p145 = pneg %p139
      %p146 = scmp.eq.s32.totalorder %s104, 1
      %p147 = por %p145, %p146
      %p148 = scmp.ne.s32.totalorder %s140, %s143
      %p149 = scmp.eq.s32.totalorder %s104, 0
      %p150 = por %p148, %p149
      %p151 = scmp.ne.s32.totalorder %s140, %s143
      %p152 = scmp.eq.s32.totalorder %s109, 1
      %p153 = por %p151, %p152
      %p154 = scmp.ne.s32.totalorder %s143, %s144
      %p155 = scmp.eq.s32.totalorder %s109, 0
      %p156 = por %p154, %p155
      %p157 = scmp.ne.s32.totalorder %s143, %s144
      %p158 = scmp.eq.s32.totalorder %s110, 1
      %p159 = por %p157, %p158
      %p161 = scmp.ne.s32.totalorder %s144, %s160
      %p162 = scmp.eq.s32.totalorder %s110, 0
      %p163 = por %p161, %p162
      %s164 = ssub.s32 %s104, %s111
      %p165 = scmp.eq.s32.totalorder %s164, 0
      %s167 = sadd.s32 %s166, 1
      %s168 = scalar_select %p165, %s166, %s167
      %p171 = pneg %p165
      %p172 = scmp.eq.s32.totalorder %s104, 1
      %p173 = por %p171, %p172
      %p174 = scmp.ne.s32.totalorder %s166, %s169
      %p175 = scmp.eq.s32.totalorder %s104, 0
      %p176 = por %p174, %p175
      %p177 = scmp.ne.s32.totalorder %s166, %s169
      %p178 = scmp.eq.s32.totalorder %s109, 1
      %p179 = por %p177, %p178
      %p180 = scmp.ne.s32.totalorder %s169, %s170
      %p181 = scmp.eq.s32.totalorder %s109, 0
      %p182 = por %p180, %p181
      %p183 = scmp.ne.s32.totalorder %s169, %s170
      %p184 = scmp.eq.s32.totalorder %s110, 1
      %p185 = por %p183, %p184
      %p187 = scmp.ne.s32.totalorder %s170, %s186
      %p188 = scmp.eq.s32.totalorder %s110, 0
      %p189 = por %p187, %p188
      %s190 = ssub.s32 %s104, %s111
      %p191 = scmp.eq.s32.totalorder %s190, 0
      %s193 = sadd.s32 %s192, 1
      %s194 = scalar_select %p191, %s192, %s193
      %p197 = pneg %p191
      %p198 = scmp.eq.s32.totalorder %s104, 1
      %p199 = por %p197, %p198
      %p200 = scmp.ne.s32.totalorder %s192, %s195
      %p201 = scmp.eq.s32.totalorder %s104, 0
      %p202 = por %p200, %p201
      %p203 = scmp.ne.s32.totalorder %s192, %s195
      %p204 = scmp.eq.s32.totalorder %s109, 1
      %p205 = por %p203, %p204
      %p206 = scmp.ne.s32.totalorder %s195, %s196
      %p207 = scmp.eq.s32.totalorder %s109, 0
      %p208 = por %p206, %p207
      %p209 = scmp.ne.s32.totalorder %s195, %s196
      %p210 = scmp.eq.s32.totalorder %s110, 1
      %p211 = por %p209, %p210
      %p213 = scmp.ne.s32.totalorder %s196, %s212
      %p214 = scmp.eq.s32.totalorder %s110, 0
      %p215 = por %p213, %p214
      %s217 = sadd.s32 %s216, 1
      %p220 = scmp.eq.s32.totalorder %s104, 1
      %p221 = scmp.ne.s32.totalorder %s216, %s218
      %p222 = scmp.eq.s32.totalorder %s104, 0
      %p223 = por %p221, %p222
      %p224 = scmp.ne.s32.totalorder %s216, %s218
      %p225 = scmp.eq.s32.totalorder %s109, 1
      %p226 = por %p224, %p225
      %p227 = scmp.ne.s32.totalorder %s218, %s219
      %p228 = scmp.eq.s32.totalorder %s109, 0
      %p229 = por %p227, %p228
      %p230 = scmp.ne.s32.totalorder %s218, %s219
      %p231 = scmp.eq.s32.totalorder %s110, 1
      %p232 = por %p230, %p231
      %p234 = scmp.ne.s32.totalorder %s219, %s233
      %p235 = scmp.eq.s32.totalorder %s110, 0
      %p236 = por %p234, %p235
      %s238 = sadd.s32 %s237, 1
      %p241 = scmp.eq.s32.totalorder %s104, 1
      %p242 = scmp.ne.s32.totalorder %s237, %s239
      %p243 = scmp.eq.s32.totalorder %s104, 0
      %p244 = por %p242, %p243
      %p245 = scmp.ne.s32.totalorder %s237, %s239
      %p246 = scmp.eq.s32.totalorder %s109, 1
      %p247 = por %p245, %p246
      %p248 = scmp.ne.s32.totalorder %s239, %s240
      %p249 = scmp.eq.s32.totalorder %s109, 0
      %p250 = por %p248, %p249
      %p251 = scmp.ne.s32.totalorder %s239, %s240
      %p252 = scmp.eq.s32.totalorder %s110, 1
      %p253 = por %p251, %p252
      %p255 = scmp.ne.s32.totalorder %s240, %s254
      %p256 = scmp.eq.s32.totalorder %s110, 0
      %p257 = por %p255, %p256
      %s259 = sadd.s32 %s258, 1
      %p262 = scmp.eq.s32.totalorder %s104, 1
      %p263 = scmp.ne.s32.totalorder %s258, %s260
      %p264 = scmp.eq.s32.totalorder %s104, 0
      %p265 = por %p263, %p264
      %p266 = scmp.ne.s32.totalorder %s258, %s260
      %p267 = scmp.eq.s32.totalorder %s109, 1
      %p268 = por %p266, %p267
      %p269 = scmp.ne.s32.totalorder %s260, %s261
      %p270 = scmp.eq.s32.totalorder %s109, 0
      %p271 = por %p269, %p270
      %p272 = scmp.ne.s32.totalorder %s260, %s261
      %p273 = scmp.eq.s32.totalorder %s110, 1
      %p274 = por %p272, %p273
      %p276 = scmp.ne.s32.totalorder %s261, %s275
      %p277 = scmp.eq.s32.totalorder %s110, 0
      %p278 = por %p276, %p277
      %s280 = sadd.s32 %s279, 1
      %p283 = scmp.eq.s32.totalorder %s104, 1
      %p284 = scmp.ne.s32.totalorder %s279, %s281
      %p285 = scmp.eq.s32.totalorder %s104, 0
      %p286 = por %p284, %p285
      %p287 = scmp.ne.s32.totalorder %s279, %s281
      %p288 = scmp.eq.s32.totalorder %s109, 1
      %p289 = por %p287, %p288
      %p290 = scmp.ne.s32.totalorder %s281, %s282
      %p291 = scmp.eq.s32.totalorder %s109, 0
      %p292 = por %p290, %p291
      %p293 = scmp.ne.s32.totalorder %s281, %s282
      %p294 = scmp.eq.s32.totalorder %s110, 1
      %p295 = por %p293, %p294
      %p297 = scmp.ne.s32.totalorder %s282, %s296
      %p298 = scmp.eq.s32.totalorder %s110, 0
      %p299 = por %p297, %p298
      %s301 = sadd.s32 %s300, 1
      %p304 = scmp.eq.s32.totalorder %s104, 1
      %p305 = scmp.ne.s32.totalorder %s300, %s302
      %p306 = scmp.eq.s32.totalorder %s104, 0
      %p307 = por %p305, %p306
      %p308 = scmp.ne.s32.totalorder %s300, %s302
      %p309 = scmp.eq.s32.totalorder %s109, 1
      %p310 = por %p308, %p309
      %p311 = scmp.ne.s32.totalorder %s302, %s303
      %p312 = scmp.eq.s32.totalorder %s109, 0
      %p313 = por %p311, %p312
      %p314 = scmp.ne.s32.totalorder %s302, %s303
      %p315 = scmp.eq.s32.totalorder %s110, 1
      %p316 = por %p314, %p315
      %p318 = scmp.ne.s32.totalorder %s303, %s317
      %p319 = scmp.eq.s32.totalorder %s110, 0
      %p320 = por %p318, %p319
      %s322 = sadd.s32 %s321, 1
      %p325 = scmp.eq.s32.totalorder %s104, 1
      %p326 = scmp.ne.s32.totalorder %s321, %s323
      %p327 = scmp.eq.s32.totalorder %s104, 0
      %p328 = por %p326, %p327
      %p329 = scmp.ne.s32.totalorder %s321, %s323
      %p330 = scmp.eq.s32.totalorder %s109, 1
      %p331 = por %p329, %p330
      %p332 = scmp.ne.s32.totalorder %s323, %s324
      %p333 = scmp.eq.s32.totalorder %s109, 0
      %p334 = por %p332, %p333
      %p335 = scmp.ne.s32.totalorder %s323, %s324
      %p336 = scmp.eq.s32.totalorder %s110, 1
      %p337 = por %p335, %p336
      %p339 = scmp.ne.s32.totalorder %s324, %s338
      %p340 = scmp.eq.s32.totalorder %s110, 0
      %p341 = por %p339, %p340
      %s343 = sadd.s32 %s342, 1
      %p346 = scmp.eq.s32.totalorder %s104, 1
      %p347 = scmp.ne.s32.totalorder %s342, %s344
      %p348 = scmp.eq.s32.totalorder %s104, 0
      %p349 = por %p347, %p348
      %p350 = scmp.ne.s32.totalorder %s342, %s344
      %p351 = scmp.eq.s32.totalorder %s109, 1
      %p352 = por %p350, %p351
      %p353 = scmp.ne.s32.totalorder %s344, %s345
      %p354 = scmp.eq.s32.totalorder %s109, 0
      %p355 = por %p353, %p354
      %p356 = scmp.ne.s32.totalorder %s344, %s345
      %p357 = scmp.eq.s32.totalorder %s110, 1
      %p358 = por %p356, %p357
      %p360 = scmp.ne.s32.totalorder %s345, %s359
      %p361 = scmp.eq.s32.totalorder %s110, 0
      %p362 = por %p360, %p361
      %s364 = sadd.s32 %s363, 1
      %p367 = scmp.eq.s32.totalorder %s104, 1
      %p368 = scmp.ne.s32.totalorder %s363, %s365
      %p369 = scmp.eq.s32.totalorder %s104, 0
      %p370 = por %p368, %p369
      %p371 = scmp.ne.s32.totalorder %s363, %s365
      %p372 = scmp.eq.s32.totalorder %s109, 1
      %p373 = por %p371, %p372
      %p374 = scmp.ne.s32.totalorder %s365, %s366
      %p375 = scmp.eq.s32.totalorder %s109, 0
      %p376 = por %p374, %p375
      %p377 = scmp.ne.s32.totalorder %s365, %s366
      %p378 = scmp.eq.s32.totalorder %s110, 1
      %p379 = por %p377, %p378
      %p381 = scmp.ne.s32.totalorder %s366, %s380
      %p382 = scmp.eq.s32.totalorder %s110, 0
      %p383 = por %p381, %p382
      %s385 = sadd.s32 %s384, 1
      %p388 = scmp.eq.s32.totalorder %s104, 1
      %p389 = scmp.ne.s32.totalorder %s384, %s386
      %p390 = scmp.eq.s32.totalorder %s104, 0
      %p391 = por %p389, %p390
      %p392 = scmp.ne.s32.totalorder %s384, %s386
      %p393 = scmp.eq.s32.totalorder %s109, 1
      %p394 = por %p392, %p393
      %p395 = scmp.ne.s32.totalorder %s386, %s387
      %p396 = scmp.eq.s32.totalorder %s109, 0
      %p397 = por %p395, %p396
      %p398 = scmp.ne.s32.totalorder %s386, %s387
      %p399 = scmp.eq.s32.totalorder %s110, 1
      %p400 = por %p398, %p399
      %p402 = scmp.ne.s32.totalorder %s387, %s401
      %p403 = scmp.eq.s32.totalorder %s110, 0
      %p404 = por %p402, %p403
      %s406 = sadd.s32 %s405, 1
      %p409 = scmp.eq.s32.totalorder %s104, 1
      %p410 = scmp.ne.s32.totalorder %s405, %s407
      %p411 = scmp.eq.s32.totalorder %s104, 0
      %p412 = por %p410, %p411
      %p413 = scmp.ne.s32.totalorder %s405, %s407
      %p414 = scmp.eq.s32.totalorder %s109, 1
      %p415 = por %p413, %p414
      %p416 = scmp.ne.s32.totalorder %s407, %s408
      %p417 = scmp.eq.s32.totalorder %s109, 0
      %p418 = por %p416, %p417
      %p419 = scmp.ne.s32.totalorder %s407, %s408
      %p420 = scmp.eq.s32.totalorder %s110, 1
      %p421 = por %p419, %p420
      %p423 = scmp.ne.s32.totalorder %s408, %s422
      %p424 = scmp.eq.s32.totalorder %s110, 0
      %p425 = por %p423, %p424
      %s427 = sadd.s32 %s426, 1
      %p430 = scmp.eq.s32.totalorder %s104, 1
      %p431 = scmp.ne.s32.totalorder %s426, %s428
      %p432 = scmp.eq.s32.totalorder %s104, 0
      %p433 = por %p431, %p432
      %p434 = scmp.ne.s32.totalorder %s426, %s428
      %p435 = scmp.eq.s32.totalorder %s109, 1
      %p436 = por %p434, %p435
      %p437 = scmp.ne.s32.totalorder %s428, %s429
      %p438 = scmp.eq.s32.totalorder %s109, 0
      %p439 = por %p437, %p438
      %p440 = scmp.ne.s32.totalorder %s428, %s429
      %p441 = scmp.eq.s32.totalorder %s110, 1
      %p442 = por %p440, %p441
      %p444 = scmp.ne.s32.totalorder %s429, %s443
      %p445 = scmp.eq.s32.totalorder %s110, 0
      %p446 = por %p444, %p445
      %s448 = sadd.s32 %s447, 1
      %p451 = scmp.eq.s32.totalorder %s104, 1
      %p452 = scmp.ne.s32.totalorder %s447, %s449
      %p453 = scmp.eq.s32.totalorder %s104, 0
      %p454 = por %p452, %p453
      %p455 = scmp.ne.s32.totalorder %s447, %s449
      %p456 = scmp.eq.s32.totalorder %s109, 1
      %p457 = por %p455, %p456
      %p458 = scmp.ne.s32.totalorder %s449, %s450
      %p459 = scmp.eq.s32.totalorder %s109, 0
      %p460 = por %p458, %p459
      %p461 = scmp.ne.s32.totalorder %s449, %s450
      %p462 = scmp.eq.s32.totalorder %s110, 1
      %p463 = por %p461, %p462
      %p465 = scmp.ne.s32.totalorder %s450, %s464
      %p466 = scmp.eq.s32.totalorder %s110, 0
      %p467 = por %p465, %p466
      %s469 = sadd.s32 %s468, 1
      %p472 = scmp.eq.s32.totalorder %s104, 1
      %p473 = scmp.ne.s32.totalorder %s468, %s470
      %p474 = scmp.eq.s32.totalorder %s104, 0
      %p475 = por %p473, %p474
      %p476 = scmp.ne.s32.totalorder %s468, %s470
      %p477 = scmp.eq.s32.totalorder %s109, 1
      %p478 = por %p476, %p477
      %p479 = scmp.ne.s32.totalorder %s470, %s471
      %p480 = scmp.eq.s32.totalorder %s109, 0
      %p481 = por %p479, %p480
      %p482 = scmp.ne.s32.totalorder %s470, %s471
      %p483 = scmp.eq.s32.totalorder %s110, 1
      %p484 = por %p482, %p483
      %p486 = scmp.ne.s32.totalorder %s471, %s485
      %p487 = scmp.eq.s32.totalorder %s110, 0
      %p488 = por %p486, %p487
      %s490 = sadd.s32 %s489, 1
      %p493 = scmp.eq.s32.totalorder %s104, 1
      %p494 = scmp.ne.s32.totalorder %s489, %s491
      %p495 = scmp.eq.s32.totalorder %s104, 0
      %p496 = por %p494, %p495
      %p497 = scmp.ne.s32.totalorder %s489, %s491
      %p498 = scmp.eq.s32.totalorder %s109, 1
      %p499 = por %p497, %p498
      %p500 = scmp.ne.s32.totalorder %s491, %s492
      %p501 = scmp.eq.s32.totalorder %s109, 0
      %p502 = por %p500, %p501
      %p503 = scmp.ne.s32.totalorder %s491, %s492
      %p504 = scmp.eq.s32.totalorder %s110, 1
      %p505 = por %p503, %p504
      %p507 = scmp.ne.s32.totalorder %s492, %s506
      %p508 = scmp.eq.s32.totalorder %s110, 0
      %p509 = por %p507, %p508
      %s511 = sadd.s32 %s510, 1
      %p514 = scmp.eq.s32.totalorder %s104, 1
      %p515 = scmp.ne.s32.totalorder %s510, %s512
      %p516 = scmp.eq.s32.totalorder %s104, 0
      %p517 = por %p515, %p516
      %p518 = scmp.ne.s32.totalorder %s510, %s512
      %p519 = scmp.eq.s32.totalorder %s109, 1
      %p520 = por %p518, %p519
      %p521 = scmp.ne.s32.totalorder %s512, %s513
      %p522 = scmp.eq.s32.totalorder %s109, 0
      %p523 = por %p521, %p522
      %p524 = scmp.ne.s32.totalorder %s512, %s513
      %p525 = scmp.eq.s32.totalorder %s110, 1
      %p526 = por %p524, %p525
      %p528 = scmp.ne.s32.totalorder %s513, %s527
      %p529 = scmp.eq.s32.totalorder %s110, 0
      %p530 = por %p528, %p529
      %s532 = sadd.s32 %s531, 1
      %p535 = scmp.eq.s32.totalorder %s104, 1
      %p536 = scmp.ne.s32.totalorder %s531, %s533
      %p537 = scmp.eq.s32.totalorder %s104, 0
      %p538 = por %p536, %p537
      %p539 = scmp.ne.s32.totalorder %s531, %s533
      %p540 = scmp.eq.s32.totalorder %s109, 1
      %p541 = por %p539, %p540
      %p542 = scmp.ne.s32.totalorder %s533, %s534
      %p543 = scmp.eq.s32.totalorder %s109, 0
      %p544 = por %p542, %p543
      %p545 = scmp.ne.s32.totalorder %s533, %s534
      %p546 = scmp.eq.s32.totalorder %s110, 1
      %p547 = por %p545, %p546
      %p549 = scmp.ne.s32.totalorder %s534, %s548
      %p550 = scmp.eq.s32.totalorder %s110, 0
      %p551 = por %p549, %p550
      %s553 = sadd.s32 %s552, 1
      %p556 = scmp.eq.s32.totalorder %s104, 1
      %p557 = scmp.ne.s32.totalorder %s552, %s554
      %p558 = scmp.eq.s32.totalorder %s104, 0
      %p559 = por %p557, %p558
      %p560 = scmp.ne.s32.totalorder %s552, %s554
      %p561 = scmp.eq.s32.totalorder %s109, 1
      %p562 = por %p560, %p561
      %p563 = scmp.ne.s32.totalorder %s554, %s555
      %p564 = scmp.eq.s32.totalorder %s109, 0
      %p565 = por %p563, %p564
      %p566 = scmp.ne.s32.totalorder %s554, %s555
      %p567 = scmp.eq.s32.totalorder %s110, 1
      %p568 = por %p566, %p567
      %p570 = scmp.ne.s32.totalorder %s555, %s569
      %p571 = scmp.eq.s32.totalorder %s110, 0
      %p572 = por %p570, %p571
      %s574 = sadd.s32 %s573, 1
      %p577 = scmp.eq.s32.totalorder %s104, 1
      %p578 = scmp.ne.s32.totalorder %s573, %s575
      %p579 = scmp.eq.s32.totalorder %s104, 0
      %p580 = por %p578, %p579
      %p581 = scmp.ne.s32.totalorder %s573, %s575
      %p582 = scmp.eq.s32.totalorder %s109, 1
      %p583 = por %p581, %p582
      %p584 = scmp.ne.s32.totalorder %s575, %s576
      %p585 = scmp.eq.s32.totalorder %s109, 0
      %p586 = por %p584, %p585
      %p587 = scmp.ne.s32.totalorder %s575, %s576
      %p588 = scmp.eq.s32.totalorder %s110, 1
      %p589 = por %p587, %p588
      %p591 = scmp.ne.s32.totalorder %s576, %s590
      %p592 = scmp.eq.s32.totalorder %s110, 0
      %p593 = por %p591, %p592
      %s595 = sadd.s32 %s594, 1
      %p598 = scmp.eq.s32.totalorder %s104, 1
      %p599 = scmp.ne.s32.totalorder %s594, %s596
      %p600 = scmp.eq.s32.totalorder %s104, 0
      %p601 = por %p599, %p600
      %p602 = scmp.ne.s32.totalorder %s594, %s596
      %p603 = scmp.eq.s32.totalorder %s109, 1
      %p604 = por %p602, %p603
      %p605 = scmp.ne.s32.totalorder %s596, %s597
      %p606 = scmp.eq.s32.totalorder %s109, 0
      %p607 = por %p605, %p606
      %p608 = scmp.ne.s32.totalorder %s596, %s597
      %p609 = scmp.eq.s32.totalorder %s110, 1
      %p610 = por %p608, %p609
      %p612 = scmp.ne.s32.totalorder %s597, %s611
      %p613 = scmp.eq.s32.totalorder %s110, 0
      %p614 = por %p612, %p613
      %s616 = sadd.s32 %s615, 1
      %p619 = scmp.eq.s32.totalorder %s104, 1
      %p620 = scmp.ne.s32.totalorder %s615, %s617
      %p621 = scmp.eq.s32.totalorder %s104, 0
      %p622 = por %p620, %p621
      %p623 = scmp.ne.s32.totalorder %s615, %s617
      %p624 = scmp.eq.s32.totalorder %s109, 1
      %p625 = por %p623, %p624
      %p626 = scmp.ne.s32.totalorder %s617, %s618
      %p627 = scmp.eq.s32.totalorder %s109, 0
      %p628 = por %p626, %p627
      %p629 = scmp.ne.s32.totalorder %s617, %s618
      %p630 = scmp.eq.s32.totalorder %s110, 1
      %p631 = por %p629, %p630
      %p633 = scmp.ne.s32.totalorder %s618, %s632
      %p634 = scmp.eq.s32.totalorder %s110, 0
      %p635 = por %p633, %p634
      %s637 = sadd.s32 %s636, 1
      %p640 = scmp.eq.s32.totalorder %s104, 1
      %p641 = scmp.ne.s32.totalorder %s636, %s638
      %p642 = scmp.eq.s32.totalorder %s104, 0
      %p643 = por %p641, %p642
      %p644 = scmp.ne.s32.totalorder %s636, %s638
      %p645 = scmp.eq.s32.totalorder %s109, 1
      %p646 = por %p644, %p645
      %p647 = scmp.ne.s32.totalorder %s638, %s639
      %p648 = scmp.eq.s32.totalorder %s109, 0
      %p649 = por %p647, %p648
      %p650 = scmp.ne.s32.totalorder %s638, %s639
      %p651 = scmp.eq.s32.totalorder %s110, 1
      %p652 = por %p650, %p651
      %p654 = scmp.ne.s32.totalorder %s639, %s653
      %p655 = scmp.eq.s32.totalorder %s110, 0
      %p656 = por %p654, %p655
      %s658 = sadd.s32 %s657, 1
      %p661 = scmp.eq.s32.totalorder %s104, 1
      %p662 = scmp.ne.s32.totalorder %s657, %s659
      %p663 = scmp.eq.s32.totalorder %s104, 0
      %p664 = por %p662, %p663
      %p665 = scmp.ne.s32.totalorder %s657, %s659
      %p666 = scmp.eq.s32.totalorder %s109, 1
      %p667 = por %p665, %p666
      %p668 = scmp.ne.s32.totalorder %s659, %s660
      %p669 = scmp.eq.s32.totalorder %s109, 0
      %p670 = por %p668, %p669
      %p671 = scmp.ne.s32.totalorder %s659, %s660
      %p672 = scmp.eq.s32.totalorder %s110, 1
      %p673 = por %p671, %p672
      %p675 = scmp.ne.s32.totalorder %s660, %s674
      %p676 = scmp.eq.s32.totalorder %s110, 0
      %p677 = por %p675, %p676
      %s679 = sadd.s32 %s678, 1
      %p682 = scmp.eq.s32.totalorder %s104, 1
      %p683 = scmp.ne.s32.totalorder %s678, %s680
      %p684 = scmp.eq.s32.totalorder %s104, 0
      %p685 = por %p683, %p684
      %p686 = scmp.ne.s32.totalorder %s678, %s680
      %p687 = scmp.eq.s32.totalorder %s109, 1
      %p688 = por %p686, %p687
      %p689 = scmp.ne.s32.totalorder %s680, %s681
      %p690 = scmp.eq.s32.totalorder %s109, 0
      %p691 = por %p689, %p690
      %p692 = scmp.ne.s32.totalorder %s680, %s681
      %p693 = scmp.eq.s32.totalorder %s110, 1
      %p694 = por %p692, %p693
      %p696 = scmp.ne.s32.totalorder %s681, %s695
      %p697 = scmp.eq.s32.totalorder %s110, 0
      %p698 = por %p696, %p697
      %s700 = sadd.s32 %s699, 1
      %p703 = scmp.eq.s32.totalorder %s104, 1
      %p704 = scmp.ne.s32.totalorder %s699, %s701
      %p705 = scmp.eq.s32.totalorder %s104, 0
      %p706 = por %p704, %p705
      %p707 = scmp.ne.s32.totalorder %s699, %s701
      %p708 = scmp.eq.s32.totalorder %s109, 1
      %p709 = por %p707, %p708
      %p710 = scmp.ne.s32.totalorder %s701, %s702
      %p711 = scmp.eq.s32.totalorder %s109, 0
      %p712 = por %p710, %p711
      %p713 = scmp.ne.s32.totalorder %s701, %s702
      %p714 = scmp.eq.s32.totalorder %s110, 1
      %p715 = por %p713, %p714
      %p717 = scmp.ne.s32.totalorder %s702, %s716
      %p718 = scmp.eq.s32.totalorder %s110, 0
      %p719 = por %p717, %p718
      %s721 = sadd.s32 %s720, 1
      %p724 = scmp.eq.s32.totalorder %s104, 1
      %p725 = scmp.ne.s32.totalorder %s720, %s722
      %p726 = scmp.eq.s32.totalorder %s104, 0
      %p727 = por %p725, %p726
      %p728 = scmp.ne.s32.totalorder %s720, %s722
      %p729 = scmp.eq.s32.totalorder %s109, 1
      %p730 = por %p728, %p729
      %p731 = scmp.ne.s32.totalorder %s722, %s723
      %p732 = scmp.eq.s32.totalorder %s109, 0
      %p733 = por %p731, %p732
      %p734 = scmp.ne.s32.totalorder %s722, %s723
      %p735 = scmp.eq.s32.totalorder %s110, 1
      %p736 = por %p734, %p735
      %p738 = scmp.ne.s32.totalorder %s723, %s737
      %p739 = scmp.eq.s32.totalorder %s110, 0
      %p740 = por %p738, %p739
      %s742 = sadd.s32 %s741, 1
      %p745 = scmp.eq.s32.totalorder %s104, 1
      %p746 = scmp.ne.s32.totalorder %s741, %s743
      %p747 = scmp.eq.s32.totalorder %s104, 0
      %p748 = por %p746, %p747
      %p749 = scmp.ne.s32.totalorder %s741, %s743
      %p750 = scmp.eq.s32.totalorder %s109, 1
      %p751 = por %p749, %p750
      %p752 = scmp.ne.s32.totalorder %s743, %s744
      %p753 = scmp.eq.s32.totalorder %s109, 0
      %p754 = por %p752, %p753
      %p755 = scmp.ne.s32.totalorder %s743, %s744
      %p756 = scmp.eq.s32.totalorder %s110, 1
      %p757 = por %p755, %p756
      %p759 = scmp.ne.s32.totalorder %s744, %s758
      %p760 = scmp.eq.s32.totalorder %s110, 0
      %p761 = por %p759, %p760
      %s763 = sadd.s32 %s762, 1
      %p766 = scmp.eq.s32.totalorder %s104, 1
      %p767 = scmp.ne.s32.totalorder %s762, %s764
      %p768 = scmp.eq.s32.totalorder %s104, 0
      %p769 = por %p767, %p768
      %p770 = scmp.ne.s32.totalorder %s762, %s764
      %p771 = scmp.eq.s32.totalorder %s109, 1
      %p772 = por %p770, %p771
      %p773 = scmp.ne.s32.totalorder %s764, %s765
      %p774 = scmp.eq.s32.totalorder %s109, 0
      %p775 = por %p773, %p774
      %p776 = scmp.ne.s32.totalorder %s764, %s765
      %p777 = scmp.eq.s32.totalorder %s110, 1
      %p778 = por %p776, %p777
      %p780 = scmp.ne.s32.totalorder %s765, %s779
      %p781 = scmp.eq.s32.totalorder %s110, 0
      %p782 = por %p780, %p781
      %s784 = sadd.s32 %s783, 1
      %p787 = scmp.eq.s32.totalorder %s104, 1
      %p788 = scmp.ne.s32.totalorder %s783, %s785
      %p789 = scmp.eq.s32.totalorder %s104, 0
      %p790 = por %p788, %p789
      %p791 = scmp.ne.s32.totalorder %s783, %s785
      %p792 = scmp.eq.s32.totalorder %s109, 1
      %p793 = por %p791, %p792
      %p794 = scmp.ne.s32.totalorder %s785, %s786
      %p795 = scmp.eq.s32.totalorder %s109, 0
      %p796 = por %p794, %p795
      %p797 = scmp.ne.s32.totalorder %s785, %s786
      %p798 = scmp.eq.s32.totalorder %s110, 1
      %p799 = por %p797, %p798
      %p801 = scmp.ne.s32.totalorder %s786, %s800
      %p802 = scmp.eq.s32.totalorder %s110, 0
      %p803 = por %p801, %p802
      %s805 = sadd.s32 %s804, 1
      %p808 = scmp.eq.s32.totalorder %s104, 1
      %p809 = scmp.ne.s32.totalorder %s804, %s806
      %p810 = scmp.eq.s32.totalorder %s104, 0
      %p811 = por %p809, %p810
      %p812 = scmp.ne.s32.totalorder %s804, %s806
      %p813 = scmp.eq.s32.totalorder %s109, 1
      %p814 = por %p812, %p813
      %p815 = scmp.ne.s32.totalorder %s806, %s807
      %p816 = scmp.eq.s32.totalorder %s109, 0
      %p817 = por %p815, %p816
      %p818 = scmp.ne.s32.totalorder %s806, %s807
      %p819 = scmp.eq.s32.totalorder %s110, 1
      %p820 = por %p818, %p819
      %p822 = scmp.ne.s32.totalorder %s807, %s821
      %p823 = scmp.eq.s32.totalorder %s110, 0
      %p824 = por %p822, %p823
      %s826 = sadd.s32 %s825, 1
      %p829 = scmp.eq.s32.totalorder %s104, 1
      %p830 = scmp.ne.s32.totalorder %s825, %s827
      %p831 = scmp.eq.s32.totalorder %s104, 0
      %p832 = por %p830, %p831
      %p833 = scmp.ne.s32.totalorder %s825, %s827
      %p834 = scmp.eq.s32.totalorder %s109, 1
      %p835 = por %p833, %p834
      %p836 = scmp.ne.s32.totalorder %s827, %s828
      %p837 = scmp.eq.s32.totalorder %s109, 0
      %p838 = por %p836, %p837
      %p839 = scmp.ne.s32.totalorder %s827, %s828
      %p840 = scmp.eq.s32.totalorder %s110, 1
      %p841 = por %p839, %p840
      %p843 = scmp.ne.s32.totalorder %s828, %s842
      %p844 = scmp.eq.s32.totalorder %s110, 0
      %p845 = por %p843, %p844
      %s847 = sadd.s32 %s846, 1
      %p850 = scmp.eq.s32.totalorder %s104, 1
      %p851 = scmp.ne.s32.totalorder %s846, %s848
      %p852 = scmp.eq.s32.totalorder %s104, 0
      %p853 = por %p851, %p852
      %p854 = scmp.ne.s32.totalorder %s846, %s848
      %p855 = scmp.eq.s32.totalorder %s109, 1
      %p856 = por %p854, %p855
      %p857 = scmp.ne.s32.totalorder %s848, %s849
      %p858 = scmp.eq.s32.totalorder %s109, 0
      %p859 = por %p857, %p858
      %p860 = scmp.ne.s32.totalorder %s848, %s849
      %p861 = scmp.eq.s32.totalorder %s110, 1
      %p862 = por %p860, %p861
      %p864 = scmp.ne.s32.totalorder %s849, %s863
      %p865 = scmp.eq.s32.totalorder %s110, 0
      %p866 = por %p864, %p865
      %s868 = sadd.s32 %s867, 1
      %p871 = scmp.eq.s32.totalorder %s104, 1
      %p872 = scmp.ne.s32.totalorder %s867, %s869
      %p873 = scmp.eq.s32.totalorder %s104, 0
      %p874 = por %p872, %p873
      %p875 = scmp.ne.s32.totalorder %s867, %s869
      %p876 = scmp.eq.s32.totalorder %s109, 1
      %p877 = por %p875, %p876
      %p878 = scmp.ne.s32.totalorder %s869, %s870
      %p879 = scmp.eq.s32.totalorder %s109, 0
      %p880 = por %p878, %p879
      %p881 = scmp.ne.s32.totalorder %s869, %s870
      %p882 = scmp.eq.s32.totalorder %s110, 1
      %p883 = por %p881, %p882
      %p885 = scmp.ne.s32.totalorder %s870, %s884
      %p886 = scmp.eq.s32.totalorder %s110, 0
      %p887 = por %p885, %p886
      %s889 = sadd.s32 %s888, 1
      %p892 = scmp.eq.s32.totalorder %s104, 1
      %p893 = scmp.ne.s32.totalorder %s888, %s890
      %p894 = scmp.eq.s32.totalorder %s104, 0
      %p895 = por %p893, %p894
      %p896 = scmp.ne.s32.totalorder %s888, %s890
      %p897 = scmp.eq.s32.totalorder %s109, 1
      %p898 = por %p896, %p897
      %p899 = scmp.ne.s32.totalorder %s890, %s891
      %p900 = scmp.eq.s32.totalorder %s109, 0
      %p901 = por %p899, %p900
      %p902 = scmp.ne.s32.totalorder %s890, %s891
      %p903 = scmp.eq.s32.totalorder %s110, 1
      %p904 = por %p902, %p903
      %p906 = scmp.ne.s32.totalorder %s891, %s905
      %p907 = scmp.eq.s32.totalorder %s110, 0
      %p908 = por %p906, %p907
      %s910 = sadd.s32 %s909, 1
      %p913 = scmp.eq.s32.totalorder %s104, 1
      %p914 = scmp.ne.s32.totalorder %s909, %s911
      %p915 = scmp.eq.s32.totalorder %s104, 0
      %p916 = por %p914, %p915
      %p917 = scmp.ne.s32.totalorder %s909, %s911
      %p918 = scmp.eq.s32.totalorder %s109, 1
      %p919 = por %p917, %p918
      %p920 = scmp.ne.s32.totalorder %s911, %s912
      %p921 = scmp.eq.s32.totalorder %s109, 0
      %p922 = por %p920, %p921
      %p923 = scmp.ne.s32.totalorder %s911, %s912
      %p924 = scmp.eq.s32.totalorder %s110, 1
      %p925 = por %p923, %p924
      %p927 = scmp.ne.s32.totalorder %s912, %s926
      %p928 = scmp.eq.s32.totalorder %s110, 0
      %p929 = por %p927, %p928
      %s931 = sadd.s32 %s930, 1
      %p934 = scmp.eq.s32.totalorder %s104, 1
      %p935 = scmp.ne.s32.totalorder %s930, %s932
      %p936 = scmp.eq.s32.totalorder %s104, 0
      %p937 = por %p935, %p936
      %p938 = scmp.ne.s32.totalorder %s930, %s932
      %p939 = scmp.eq.s32.totalorder %s109, 1
      %p940 = por %p938, %p939
      %p941 = scmp.ne.s32.totalorder %s932, %s933
      %p942 = scmp.eq.s32.totalorder %s109, 0
      %p943 = por %p941, %p942
      %p944 = scmp.ne.s32.totalorder %s932, %s933
      %p945 = scmp.eq.s32.totalorder %s110, 1
      %p946 = por %p944, %p945
      %p948 = scmp.ne.s32.totalorder %s933, %s947
      %p949 = scmp.eq.s32.totalorder %s110, 0
      %p950 = por %p948, %p949
      %s952 = sadd.s32 %s951, 1
      %p955 = scmp.eq.s32.totalorder %s104, 1
      %p956 = scmp.ne.s32.totalorder %s951, %s953
      %p957 = scmp.eq.s32.totalorder %s104, 0
      %p958 = por %p956, %p957
      %p959 = scmp.ne.s32.totalorder %s951, %s953
      %p960 = scmp.eq.s32.totalorder %s109, 1
      %p961 = por %p959, %p960
      %p962 = scmp.ne.s32.totalorder %s953, %s954
      %p963 = scmp.eq.s32.totalorder %s109, 0
      %p964 = por %p962, %p963
      %p965 = scmp.ne.s32.totalorder %s953, %s954
      %p966 = scmp.eq.s32.totalorder %s110, 1
      %p967 = por %p965, %p966
      %p969 = scmp.ne.s32.totalorder %s954, %s968
      %p970 = scmp.eq.s32.totalorder %s110, 0
      %p971 = por %p969, %p970
      %s973 = sadd.s32 %s972, 1
      %p976 = scmp.eq.s32.totalorder %s104, 1
      %p977 = scmp.ne.s32.totalorder %s972, %s974
      %p978 = scmp.eq.s32.totalorder %s104, 0
      %p979 = por %p977, %p978
      %p980 = scmp.ne.s32.totalorder %s972, %s974
      %p981 = scmp.eq.s32.totalorder %s109, 1
      %p982 = por %p980, %p981
      %p983 = scmp.ne.s32.totalorder %s974, %s975
      %p984 = scmp.eq.s32.totalorder %s109, 0
      %p985 = por %p983, %p984
      %p986 = scmp.ne.s32.totalorder %s974, %s975
      %p987 = scmp.eq.s32.totalorder %s110, 1
      %p988 = por %p986, %p987
      %p990 = scmp.ne.s32.totalorder %s975, %s989
      %p991 = scmp.eq.s32.totalorder %s110, 0
      %p992 = por %p990, %p991
      %s994 = sadd.s32 %s993, 1
      %p997 = scmp.eq.s32.totalorder %s104, 1
      %p998 = scmp.ne.s32.totalorder %s993, %s995
      %p999 = scmp.eq.s32.totalorder %s104, 0
      %p1000 = por %p998, %p999
      %p1001 = scmp.ne.s32.totalorder %s993, %s995
      %p1002 = scmp.eq.s32.totalorder %s109, 1
      %p1003 = por %p1001, %p1002
      %p1004 = scmp.ne.s32.totalorder %s995, %s996
      %p1005 = scmp.eq.s32.totalorder %s109, 0
      %p1006 = por %p1004, %p1005
      %p1007 = scmp.ne.s32.totalorder %s995, %s996
      %p1008 = scmp.eq.s32.totalorder %s110, 1
      %p1009 = por %p1007, %p1008
      %p1011 = scmp.ne.s32.totalorder %s996, %s1010
      %p1012 = scmp.eq.s32.totalorder %s110, 0
      %p1013 = por %p1011, %p1012
      %s1015 = sadd.s32 %s1014, 1
      %p1018 = scmp.eq.s32.totalorder %s104, 1
      %p1019 = scmp.ne.s32.totalorder %s1014, %s1016
      %p1020 = scmp.eq.s32.totalorder %s104, 0
      %p1021 = por %p1019, %p1020
      %p1022 = scmp.ne.s32.totalorder %s1014, %s1016
      %p1023 = scmp.eq.s32.totalorder %s109, 1
      %p1024 = por %p1022, %p1023
      %p1025 = scmp.ne.s32.totalorder %s1016, %s1017
      %p1026 = scmp.eq.s32.totalorder %s109, 0
      %p1027 = por %p1025, %p1026
      %p1028 = scmp.ne.s32.totalorder %s1016, %s1017
      %p1029 = scmp.eq.s32.totalorder %s110, 1
      %p1030 = por %p1028, %p1029
      %p1032 = scmp.ne.s32.totalorder %s1017, %s1031
      %p1033 = scmp.eq.s32.totalorder %s110, 0
      %p1034 = por %p1032, %p1033
      %s1036 = sadd.s32 %s1035, 1
      %p1039 = scmp.eq.s32.totalorder %s104, 1
      %p1040 = scmp.ne.s32.totalorder %s1035, %s1037
      %p1041 = scmp.eq.s32.totalorder %s104, 0
      %p1042 = por %p1040, %p1041
      %p1043 = scmp.ne.s32.totalorder %s1035, %s1037
      %p1044 = scmp.eq.s32.totalorder %s109, 1
      %p1045 = por %p1043, %p1044
      %p1046 = scmp.ne.s32.totalorder %s1037, %s1038
      %p1047 = scmp.eq.s32.totalorder %s109, 0
      %p1048 = por %p1046, %p1047
      %p1049 = scmp.ne.s32.totalorder %s1037, %s1038
      %p1050 = scmp.eq.s32.totalorder %s110, 1
      %p1051 = por %p1049, %p1050
      %p1053 = scmp.ne.s32.totalorder %s1038, %s1052
      %p1054 = scmp.eq.s32.totalorder %s110, 0
      %p1055 = por %p1053, %p1054
      %s1057 = sadd.s32 %s1056, 1
      %p1060 = scmp.eq.s32.totalorder %s104, 1
      %p1061 = scmp.ne.s32.totalorder %s1056, %s1058
      %p1062 = scmp.eq.s32.totalorder %s104, 0
      %p1063 = por %p1061, %p1062
      %p1064 = scmp.ne.s32.totalorder %s1056, %s1058
      %p1065 = scmp.eq.s32.totalorder %s109, 1
      %p1066 = por %p1064, %p1065
      %p1067 = scmp.ne.s32.totalorder %s1058, %s1059
      %p1068 = scmp.eq.s32.totalorder %s109, 0
      %p1069 = por %p1067, %p1068
      %p1070 = scmp.ne.s32.totalorder %s1058, %s1059
      %p1071 = scmp.eq.s32.totalorder %s110, 1
      %p1072 = por %p1070, %p1071
      %p1074 = scmp.ne.s32.totalorder %s1059, %s1073
      %p1075 = scmp.eq.s32.totalorder %s110, 0
      %p1076 = por %p1074, %p1075
      %s1078 = sadd.s32 %s1077, 1
      %p1081 = scmp.eq.s32.totalorder %s104, 1
      %p1082 = scmp.ne.s32.totalorder %s1077, %s1079
      %p1083 = scmp.eq.s32.totalorder %s104, 0
      %p1084 = por %p1082, %p1083
      %p1085 = scmp.ne.s32.totalorder %s1077, %s1079
      %p1086 = scmp.eq.s32.totalorder %s109, 1
      %p1087 = por %p1085, %p1086
      %p1088 = scmp.ne.s32.totalorder %s1079, %s1080
      %p1089 = scmp.eq.s32.totalorder %s109, 0
      %p1090 = por %p1088, %p1089
      %p1091 = scmp.ne.s32.totalorder %s1079, %s1080
      %p1092 = scmp.eq.s32.totalorder %s110, 1
      %p1093 = por %p1091, %p1092
      %p1095 = scmp.ne.s32.totalorder %s1080, %s1094
      %p1096 = scmp.eq.s32.totalorder %s110, 0
      %p1097 = por %p1095, %p1096
      %s1098 = ssub.s32 %s104, %s111
      %p1099 = scmp.eq.s32.totalorder %s1098, 0
      %s1101 = sadd.s32 %s1100, 1
      %s1102 = scalar_select %p1099, %s1100, %s1101
      %p1105 = pneg %p1099
      %p1106 = scmp.eq.s32.totalorder %s104, 1
      %p1107 = por %p1105, %p1106
      %p1108 = scmp.ne.s32.totalorder %s1100, %s1103
      %p1109 = scmp.eq.s32.totalorder %s104, 0
      %p1110 = por %p1108, %p1109
      %p1111 = scmp.ne.s32.totalorder %s1100, %s1103
      %p1112 = scmp.eq.s32.totalorder %s109, 1
      %p1113 = por %p1111, %p1112
      %p1114 = scmp.ne.s32.totalorder %s1103, %s1104
      %p1115 = scmp.eq.s32.totalorder %s109, 0
      %p1116 = por %p1114, %p1115
      %p1117 = scmp.ne.s32.totalorder %s1103, %s1104
      %p1118 = scmp.eq.s32.totalorder %s110, 1
      %p1119 = por %p1117, %p1118
      %p1121 = scmp.ne.s32.totalorder %s1104, %s1120
      %p1122 = scmp.eq.s32.totalorder %s110, 0
      %p1123 = por %p1121, %p1122
      %p1124 = scmp.le.s32.totalorder 1, %s104
      %p1125 = scmp.lt.s32.totalorder %s104, 3
      %p1126 = pnand %p1124, %p1125
      %p1127 = pneg %p1126
      // Predicated region
      $region9: #{mbart_forward.1} parent=5 // pred_check
        _
      $region10: #{mbart_forward.1} parent=5 // pred_check_branch
        %1129 = sbr.rel (%p1126) target = $region12
      $region11: #{mbart_forward.1} parent=5 // pred_region
        %s1130 = ssub.s32 %s104, 1
        // Predicated region
        $region13: #{mbart_forward.1} parent=11 // pred_check
          %p1131 = pneg %p229
        $region14: #{mbart_forward.1} parent=11 // pred_check_branch
          %1133 = sbr.rel (%p1131) target = $region16
        $region15: #{mbart_forward.1} parent=11 // pred_region
          _
        $region16: #{mbart_forward.1} parent=11 // pred_fallthru
          _
        // Predicated region
        $region17: #{mbart_forward.1} parent=11 // pred_check
          %p1134 = pneg %p250
        $region18: #{mbart_forward.1} parent=11 // pred_check_branch
          %1136 = sbr.rel (%p1134) target = $region20
        $region19: #{mbart_forward.1} parent=11 // pred_region
          _
        $region20: #{mbart_forward.1} parent=11 // pred_fallthru
          _
        // Predicated region
        $region21: #{mbart_forward.1} parent=11 // pred_check
          %p1137 = pneg %p271
        $region22: #{mbart_forward.1} parent=11 // pred_check_branch
          %1139 = sbr.rel (%p1137) target = $region24
        $region23: #{mbart_forward.1} parent=11 // pred_region
          _
        $region24: #{mbart_forward.1} parent=11 // pred_fallthru
          _
        // Predicated region
        $region25: #{mbart_forward.1} parent=11 // pred_check
          %p1140 = pneg %p292
        $region26: #{mbart_forward.1} parent=11 // pred_check_branch
          %1142 = sbr.rel (%p1140) target = $region28
        $region27: #{mbart_forward.1} parent=11 // pred_region
          _
        $region28: #{mbart_forward.1} parent=11 // pred_fallthru
          _
        // Predicated region
        $region29: #{mbart_forward.1} parent=11 // pred_check
          %p1143 = pneg %p313
        $region30: #{mbart_forward.1} parent=11 // pred_check_branch
          %1145 = sbr.rel (%p1143) target = $region32
        $region31: #{mbart_forward.1} parent=11 // pred_region
          _
        $region32: #{mbart_forward.1} parent=11 // pred_fallthru
          _
        // Predicated region
        $region33: #{mbart_forward.1} parent=11 // pred_check
          %p1146 = pneg %p334
        $region34: #{mbart_forward.1} parent=11 // pred_check_branch
          %1148 = sbr.rel (%p1146) target = $region36
        $region35: #{mbart_forward.1} parent=11 // pred_region
          _
        $region36: #{mbart_forward.1} parent=11 // pred_fallthru
          _
        // Predicated region
        $region37: #{mbart_forward.1} parent=11 // pred_check
          %p1149 = pneg %p355
        $region38: #{mbart_forward.1} parent=11 // pred_check_branch
          %1151 = sbr.rel (%p1149) target = $region40
        $region39: #{mbart_forward.1} parent=11 // pred_region
          _
        $region40: #{mbart_forward.1} parent=11 // pred_fallthru
          _
        // Predicated region
        $region41: #{mbart_forward.1} parent=11 // pred_check
          %p1152 = pneg %p376
        $region42: #{mbart_forward.1} parent=11 // pred_check_branch
          %1154 = sbr.rel (%p1152) target = $region44
        $region43: #{mbart_forward.1} parent=11 // pred_region
          _
        $region44: #{mbart_forward.1} parent=11 // pred_fallthru
          _
        // Predicated region
        $region45: #{mbart_forward.1} parent=11 // pred_check
          %p1155 = pneg %p397
        $region46: #{mbart_forward.1} parent=11 // pred_check_branch
          %1157 = sbr.rel (%p1155) target = $region48
        $region47: #{mbart_forward.1} parent=11 // pred_region
          _
        $region48: #{mbart_forward.1} parent=11 // pred_fallthru
          _
        // Predicated region
        $region49: #{mbart_forward.1} parent=11 // pred_check
          %p1158 = pneg %p418
        $region50: #{mbart_forward.1} parent=11 // pred_check_branch
          %1160 = sbr.rel (%p1158) target = $region52
        $region51: #{mbart_forward.1} parent=11 // pred_region
          _
        $region52: #{mbart_forward.1} parent=11 // pred_fallthru
          _
        // Predicated region
        $region53: #{mbart_forward.1} parent=11 // pred_check
          %p1161 = pneg %p439
        $region54: #{mbart_forward.1} parent=11 // pred_check_branch
          %1163 = sbr.rel (%p1161) target = $region56
        $region55: #{mbart_forward.1} parent=11 // pred_region
          _
        $region56: #{mbart_forward.1} parent=11 // pred_fallthru
          _
        // Predicated region
        $region57: #{mbart_forward.1} parent=11 // pred_check
          %p1164 = pneg %p460
        $region58: #{mbart_forward.1} parent=11 // pred_check_branch
          %1166 = sbr.rel (%p1164) target = $region60
        $region59: #{mbart_forward.1} parent=11 // pred_region
          _
        $region60: #{mbart_forward.1} parent=11 // pred_fallthru
          _
        // Predicated region
        $region61: #{mbart_forward.1} parent=11 // pred_check
          %p1167 = pneg %p481
        $region62: #{mbart_forward.1} parent=11 // pred_check_branch
          %1169 = sbr.rel (%p1167) target = $region64
        $region63: #{mbart_forward.1} parent=11 // pred_region
          _
        $region64: #{mbart_forward.1} parent=11 // pred_fallthru
          _
        // Predicated region
        $region65: #{mbart_forward.1} parent=11 // pred_check
          %p1170 = pneg %p502
        $region66: #{mbart_forward.1} parent=11 // pred_check_branch
          %1172 = sbr.rel (%p1170) target = $region68
        $region67: #{mbart_forward.1} parent=11 // pred_region
          _
        $region68: #{mbart_forward.1} parent=11 // pred_fallthru
          _
        // Predicated region
        $region69: #{mbart_forward.1} parent=11 // pred_check
          %p1173 = pneg %p523
        $region70: #{mbart_forward.1} parent=11 // pred_check_branch
          %1175 = sbr.rel (%p1173) target = $region72
        $region71: #{mbart_forward.1} parent=11 // pred_region
          _
        $region72: #{mbart_forward.1} parent=11 // pred_fallthru
          _
        // Predicated region
        $region73: #{mbart_forward.1} parent=11 // pred_check
          %p1176 = pneg %p544
        $region74: #{mbart_forward.1} parent=11 // pred_check_branch
          %1178 = sbr.rel (%p1176) target = $region76
        $region75: #{mbart_forward.1} parent=11 // pred_region
          _
        $region76: #{mbart_forward.1} parent=11 // pred_fallthru
          _
        // Predicated region
        $region77: #{mbart_forward.1} parent=11 // pred_check
          %p1179 = pneg %p565
        $region78: #{mbart_forward.1} parent=11 // pred_check_branch
          %1181 = sbr.rel (%p1179) target = $region80
        $region79: #{mbart_forward.1} parent=11 // pred_region
          _
        $region80: #{mbart_forward.1} parent=11 // pred_fallthru
          _
        // Predicated region
        $region81: #{mbart_forward.1} parent=11 // pred_check
          %p1182 = pneg %p586
        $region82: #{mbart_forward.1} parent=11 // pred_check_branch
          %1184 = sbr.rel (%p1182) target = $region84
        $region83: #{mbart_forward.1} parent=11 // pred_region
          _
        $region84: #{mbart_forward.1} parent=11 // pred_fallthru
          _
        // Predicated region
        $region85: #{mbart_forward.1} parent=11 // pred_check
          %p1185 = pneg %p607
        $region86: #{mbart_forward.1} parent=11 // pred_check_branch
          %1187 = sbr.rel (%p1185) target = $region88
        $region87: #{mbart_forward.1} parent=11 // pred_region
          _
        $region88: #{mbart_forward.1} parent=11 // pred_fallthru
          _
        // Predicated region
        $region89: #{mbart_forward.1} parent=11 // pred_check
          %p1188 = pneg %p628
        $region90: #{mbart_forward.1} parent=11 // pred_check_branch
          %1190 = sbr.rel (%p1188) target = $region92
        $region91: #{mbart_forward.1} parent=11 // pred_region
          _
        $region92: #{mbart_forward.1} parent=11 // pred_fallthru
          _
        // Predicated region
        $region93: #{mbart_forward.1} parent=11 // pred_check
          %p1191 = pneg %p649
        $region94: #{mbart_forward.1} parent=11 // pred_check_branch
          %1193 = sbr.rel (%p1191) target = $region96
        $region95: #{mbart_forward.1} parent=11 // pred_region
          _
        $region96: #{mbart_forward.1} parent=11 // pred_fallthru
          _
        // Predicated region
        $region97: #{mbart_forward.1} parent=11 // pred_check
          %p1194 = pneg %p670
        $region98: #{mbart_forward.1} parent=11 // pred_check_branch
          %1196 = sbr.rel (%p1194) target = $region100
        $region99: #{mbart_forward.1} parent=11 // pred_region
          _
        $region100: #{mbart_forward.1} parent=11 // pred_fallthru
          _
        // Predicated region
        $region101: #{mbart_forward.1} parent=11 // pred_check
          %p1197 = pneg %p691
        $region102: #{mbart_forward.1} parent=11 // pred_check_branch
          %1199 = sbr.rel (%p1197) target = $region104
        $region103: #{mbart_forward.1} parent=11 // pred_region
          _
        $region104: #{mbart_forward.1} parent=11 // pred_fallthru
          _
        // Predicated region
        $region105: #{mbart_forward.1} parent=11 // pred_check
          %p1200 = pneg %p712
        $region106: #{mbart_forward.1} parent=11 // pred_check_branch
          %1202 = sbr.rel (%p1200) target = $region108
        $region107: #{mbart_forward.1} parent=11 // pred_region
          _
        $region108: #{mbart_forward.1} parent=11 // pred_fallthru
          _
        // Predicated region
        $region109: #{mbart_forward.1} parent=11 // pred_check
          %p1203 = pneg %p733
        $region110: #{mbart_forward.1} parent=11 // pred_check_branch
          %1205 = sbr.rel (%p1203) target = $region112
        $region111: #{mbart_forward.1} parent=11 // pred_region
          _
        $region112: #{mbart_forward.1} parent=11 // pred_fallthru
          _
        // Predicated region
        $region113: #{mbart_forward.1} parent=11 // pred_check
          %p1206 = pneg %p754
        $region114: #{mbart_forward.1} parent=11 // pred_check_branch
          %1208 = sbr.rel (%p1206) target = $region116
        $region115: #{mbart_forward.1} parent=11 // pred_region
          _
        $region116: #{mbart_forward.1} parent=11 // pred_fallthru
          _
        // Predicated region
        $region117: #{mbart_forward.1} parent=11 // pred_check
          %p1209 = pneg %p775
        $region118: #{mbart_forward.1} parent=11 // pred_check_branch
          %1211 = sbr.rel (%p1209) target = $region120
        $region119: #{mbart_forward.1} parent=11 // pred_region
          _
        $region120: #{mbart_forward.1} parent=11 // pred_fallthru
          _
        // Predicated region
        $region121: #{mbart_forward.1} parent=11 // pred_check
          %p1212 = pneg %p796
        $region122: #{mbart_forward.1} parent=11 // pred_check_branch
          %1214 = sbr.rel (%p1212) target = $region124
        $region123: #{mbart_forward.1} parent=11 // pred_region
          _
        $region124: #{mbart_forward.1} parent=11 // pred_fallthru
          _
        // Predicated region
        $region125: #{mbart_forward.1} parent=11 // pred_check
          %p1215 = pneg %p817
        $region126: #{mbart_forward.1} parent=11 // pred_check_branch
          %1217 = sbr.rel (%p1215) target = $region128
        $region127: #{mbart_forward.1} parent=11 // pred_region
          _
        $region128: #{mbart_forward.1} parent=11 // pred_fallthru
          _
        // Predicated region
        $region129: #{mbart_forward.1} parent=11 // pred_check
          %p1218 = pneg %p838
        $region130: #{mbart_forward.1} parent=11 // pred_check_branch
          %1220 = sbr.rel (%p1218) target = $region132
        $region131: #{mbart_forward.1} parent=11 // pred_region
          _
        $region132: #{mbart_forward.1} parent=11 // pred_fallthru
          _
        // Predicated region
        $region133: #{mbart_forward.1} parent=11 // pred_check
          %p1221 = pneg %p859
        $region134: #{mbart_forward.1} parent=11 // pred_check_branch
          %1223 = sbr.rel (%p1221) target = $region136
        $region135: #{mbart_forward.1} parent=11 // pred_region
          _
        $region136: #{mbart_forward.1} parent=11 // pred_fallthru
          _
        // Predicated region
        $region137: #{mbart_forward.1} parent=11 // pred_check
          %p1224 = pneg %p880
        $region138: #{mbart_forward.1} parent=11 // pred_check_branch
          %1226 = sbr.rel (%p1224) target = $region140
        $region139: #{mbart_forward.1} parent=11 // pred_region
          _
        $region140: #{mbart_forward.1} parent=11 // pred_fallthru
          _
        // Predicated region
        $region141: #{mbart_forward.1} parent=11 // pred_check
          %p1227 = pneg %p901
        $region142: #{mbart_forward.1} parent=11 // pred_check_branch
          %1229 = sbr.rel (%p1227) target = $region144
        $region143: #{mbart_forward.1} parent=11 // pred_region
          _
        $region144: #{mbart_forward.1} parent=11 // pred_fallthru
          _
        // Predicated region
        $region145: #{mbart_forward.1} parent=11 // pred_check
          %p1230 = pneg %p922
        $region146: #{mbart_forward.1} parent=11 // pred_check_branch
          %1232 = sbr.rel (%p1230) target = $region148
        $region147: #{mbart_forward.1} parent=11 // pred_region
          _
        $region148: #{mbart_forward.1} parent=11 // pred_fallthru
          _
        // Predicated region
        $region149: #{mbart_forward.1} parent=11 // pred_check
          %p1233 = pneg %p943
        $region150: #{mbart_forward.1} parent=11 // pred_check_branch
          %1235 = sbr.rel (%p1233) target = $region152
        $region151: #{mbart_forward.1} parent=11 // pred_region
          _
        $region152: #{mbart_forward.1} parent=11 // pred_fallthru
          _
        // Predicated region
        $region153: #{mbart_forward.1} parent=11 // pred_check
          %p1236 = pneg %p964
        $region154: #{mbart_forward.1} parent=11 // pred_check_branch
          %1238 = sbr.rel (%p1236) target = $region156
        $region155: #{mbart_forward.1} parent=11 // pred_region
          _
        $region156: #{mbart_forward.1} parent=11 // pred_fallthru
          _
        // Predicated region
        $region157: #{mbart_forward.1} parent=11 // pred_check
          %p1239 = pneg %p985
        $region158: #{mbart_forward.1} parent=11 // pred_check_branch
          %1241 = sbr.rel (%p1239) target = $region160
        $region159: #{mbart_forward.1} parent=11 // pred_region
          _
        $region160: #{mbart_forward.1} parent=11 // pred_fallthru
          _
        // Predicated region
        $region161: #{mbart_forward.1} parent=11 // pred_check
          %p1242 = pneg %p1006
        $region162: #{mbart_forward.1} parent=11 // pred_check_branch
          %1244 = sbr.rel (%p1242) target = $region164
        $region163: #{mbart_forward.1} parent=11 // pred_region
          _
        $region164: #{mbart_forward.1} parent=11 // pred_fallthru
          _
        // Predicated region
        $region165: #{mbart_forward.1} parent=11 // pred_check
          %p1245 = pneg %p1027
        $region166: #{mbart_forward.1} parent=11 // pred_check_branch
          %1247 = sbr.rel (%p1245) target = $region168
        $region167: #{mbart_forward.1} parent=11 // pred_region
          _
        $region168: #{mbart_forward.1} parent=11 // pred_fallthru
          _
        // Predicated region
        $region169: #{mbart_forward.1} parent=11 // pred_check
          %p1248 = pneg %p1048
        $region170: #{mbart_forward.1} parent=11 // pred_check_branch
          %1250 = sbr.rel (%p1248) target = $region172
        $region171: #{mbart_forward.1} parent=11 // pred_region
          %1252 = vsyncadd [#allocation3], 0
          %s1254 = sshll.u32 %s87, 4
          %s1255 = int_to_ptr.hbm [resolvable:$true] %s1254
          %s1256 = sshll.u32 [#allocation2], 4
          %s1257 = int_to_ptr.vmem [resolvable:$true] %s1256
          %1259 = dma.hbm_to_vmem [thread:$0]  %s1255, 16, %s1257, [#allocation3]
        $region172: #{mbart_forward.1} parent=11 // pred_fallthru
          _
        // Predicated region
        $region173: #{mbart_forward.1} parent=11 // pred_check
          %p1260 = pneg %p1069
        $region174: #{mbart_forward.1} parent=11 // pred_check_branch
          %1262 = sbr.rel (%p1260) target = $region176
        $region175: #{mbart_forward.1} parent=11 // pred_region
          _
        $region176: #{mbart_forward.1} parent=11 // pred_fallthru
          _
        // Predicated region
        $region177: #{mbart_forward.1} parent=11 // pred_check
          %p1263 = pneg %p1090
        $region178: #{mbart_forward.1} parent=11 // pred_check_branch
          %1265 = sbr.rel (%p1263) target = $region180
        $region179: #{mbart_forward.1} parent=11 // pred_region
          %1267 = vsyncadd [#allocation6], 0
          %s1269 = sshll.u32 %s91, 4
          %s1270 = int_to_ptr.hbm [resolvable:$true] %s1269
          %s1271 = sshll.u32 [#allocation5], 4
          %s1272 = int_to_ptr.vmem [resolvable:$true] %s1271
          %1274 = dma.hbm_to_vmem [thread:$0]  %s1270, 16, %s1272, [#allocation6]
        $region180: #{mbart_forward.1} parent=11 // pred_fallthru
          _
      $region12: #{mbart_forward.1} parent=5 // pred_fallthru
        _
      %p1275 = scmp.lt.s32.totalorder %s104, 2
      // Predicated region
      $region181: #{mbart_forward.1} parent=5 // pred_check
        %p1276 = pneg %p1275
      $region182: #{mbart_forward.1} parent=5 // pred_check_branch
        %1278 = sbr.rel (%p1276) target = $region184
      $region183: #{mbart_forward.1} parent=5 // pred_region
        // Predicated region
        $region185: #{mbart_forward.1} parent=183 // pred_check
          %p1279 = pneg %p124
        $region186: #{mbart_forward.1} parent=183 // pred_check_branch
          %1281 = sbr.rel (%p1279) target = $region188
        $region187: #{mbart_forward.1} parent=183 // pred_region
          %p1282 = scmp.lt.s32.totalorder %s104, 1
          %s1283 = scalar_select %p1282, %s104, 1
          %s1284 = smul.addr %s1283, 8
          %s1285 = scalar_lea.vmem %s1, %s1284
        $region188: #{mbart_forward.1} parent=183 // pred_fallthru
          _
        // Predicated region
        $region189: #{mbart_forward.1} parent=183 // pred_check
          %p1286 = pneg %p150
        $region190: #{mbart_forward.1} parent=183 // pred_check_branch
          %1288 = sbr.rel (%p1286) target = $region192
        $region191: #{mbart_forward.1} parent=183 // pred_region
          %p1289 = scmp.lt.s32.totalorder %s104, 1
          %s1290 = scalar_select %p1289, %s104, 1
          %s1291 = smul.addr %s1290, 8
          %s1292 = scalar_lea.vmem %s3, %s1291
        $region192: #{mbart_forward.1} parent=183 // pred_fallthru
          _
        // Predicated region
        $region193: #{mbart_forward.1} parent=183 // pred_check
          %p1293 = pneg %p176
        $region194: #{mbart_forward.1} parent=183 // pred_check_branch
          %1295 = sbr.rel (%p1293) target = $region196
        $region195: #{mbart_forward.1} parent=183 // pred_region
          %p1296 = scmp.lt.s32.totalorder %s104, 1
          %s1297 = scalar_select %p1296, %s104, 1
          %s1298 = scalar_lea.vmem %s5, %s1297
        $region196: #{mbart_forward.1} parent=183 // pred_fallthru
          _
        // Predicated region
        $region197: #{mbart_forward.1} parent=183 // pred_check
          %p1299 = pneg %p202
        $region198: #{mbart_forward.1} parent=183 // pred_check_branch
          %1301 = sbr.rel (%p1299) target = $region200
        $region199: #{mbart_forward.1} parent=183 // pred_region
          %p1302 = scmp.lt.s32.totalorder %s104, 1
          %s1303 = scalar_select %p1302, %s104, 1
          %s1304 = scalar_lea.vmem %s7, %s1303
        $region200: #{mbart_forward.1} parent=183 // pred_fallthru
          _
      $region184: #{mbart_forward.1} parent=5 // pred_fallthru
        _
      %p1305 = scmp.le.s32.totalorder 1, %s104
      %p1306 = scmp.lt.s32.totalorder %s104, 3
      %p1307 = pnand %p1305, %p1306
      %p1308 = pneg %p1307
      // Predicated region
      $region201: #{mbart_forward.1} parent=5 // pred_check
        _
      $region202: #{mbart_forward.1} parent=5 // pred_check_branch
        %1310 = sbr.rel (%p1307) target = $region204
      $region203: #{mbart_forward.1} parent=5 // pred_region
        %s1311 = ssub.s32 %s104, 1
        // Predicated region
        $region205: #{mbart_forward.1} parent=203 // pred_check
          %p1312 = pneg %p1048
        $region206: #{mbart_forward.1} parent=203 // pred_check_branch
          %1314 = sbr.rel (%p1312) target = $region208
        $region207: #{mbart_forward.1} parent=203 // pred_region
          %1316 = dma.done [#allocation3], 16
        $region208: #{mbart_forward.1} parent=203 // pred_fallthru
          _
        // Predicated region
        $region209: #{mbart_forward.1} parent=203 // pred_check
          %p1317 = pneg %p1090
        $region210: #{mbart_forward.1} parent=203 // pred_check_branch
          %1319 = sbr.rel (%p1317) target = $region212
        $region211: #{mbart_forward.1} parent=203 // pred_region
          %1321 = dma.done [#allocation6], 16
        $region212: #{mbart_forward.1} parent=203 // pred_fallthru
          _
        %p1322 = scmp.lt.s32.totalorder %s109, 1
        %s1323 = scalar_select %p1322, %s109, 1
        %s1324 = smul.addr %s1323, 8
        %s1325 = scalar_lea.vmem %s1, %s1324
        %p1326 = pneg %p130
        %p1327 = pneg %p127
        %p1328 = scmp.lt.s32.totalorder %s109, 1
        %s1329 = scalar_select %p1328, %s109, 1
        %s1330 = smul.addr %s1329, 8
        %s1331 = scalar_lea.vmem %s3, %s1330
        %p1332 = pneg %p156
        %p1333 = pneg %p153
        %p1334 = scmp.lt.s32.totalorder %s109, 1
        %s1335 = scalar_select %p1334, %s109, 1
        %s1336 = scalar_lea.vmem %s5, %s1335
        %p1337 = pneg %p182
        %p1338 = pneg %p179
        %p1339 = scmp.lt.s32.totalorder %s109, 1
        %s1340 = scalar_select %p1339, %s109, 1
        %s1341 = scalar_lea.vmem %s7, %s1340
        %p1342 = pneg %p208
        %p1343 = pneg %p205
        %p1344 = pneg %p229
        %p1345 = pneg %p226
        %p1346 = pneg %p250
        %p1347 = pneg %p247
        %p1348 = pneg %p271
        %p1349 = pneg %p268
        %p1350 = pneg %p292
        %p1351 = pneg %p289
        %p1352 = pneg %p313
        %p1353 = pneg %p310
        %p1354 = pneg %p334
        %p1355 = pneg %p331
        %p1356 = pneg %p355
        %p1357 = pneg %p352
        %p1358 = pneg %p376
        %p1359 = pneg %p373
        %p1360 = pneg %p397
        %p1361 = pneg %p394
        %p1362 = pneg %p418
        %p1363 = pneg %p415
        %p1364 = pneg %p439
        %p1365 = pneg %p436
        %p1366 = pneg %p460
        %p1367 = pneg %p457
        %p1368 = pneg %p481
        %p1369 = pneg %p478
        %p1370 = pneg %p502
        %p1371 = pneg %p499
        %p1372 = pneg %p523
        %p1373 = pneg %p520
        %p1374 = pneg %p544
        %p1375 = pneg %p541
        %p1376 = pneg %p565
        %p1377 = pneg %p562
        %p1378 = pneg %p586
        %p1379 = pneg %p583
        %p1380 = pneg %p607
        %p1381 = pneg %p604
        %p1382 = pneg %p628
        %p1383 = pneg %p625
        %p1384 = pneg %p649
        %p1385 = pneg %p646
        %p1386 = pneg %p670
        %p1387 = pneg %p667
        %p1388 = pneg %p691
        %p1389 = pneg %p688
        %p1390 = pneg %p712
        %p1391 = pneg %p709
        %p1392 = pneg %p733
        %p1393 = pneg %p730
        %p1394 = pneg %p754
        %p1395 = pneg %p751
        %p1396 = pneg %p775
        %p1397 = pneg %p772
        %p1398 = pneg %p796
        %p1399 = pneg %p793
        %p1400 = pneg %p817
        %p1401 = pneg %p814
        %p1402 = pneg %p838
        %p1403 = pneg %p835
        %p1404 = pneg %p859
        %p1405 = pneg %p856
        %p1406 = pneg %p880
        %p1407 = pneg %p877
        %p1408 = pneg %p901
        %p1409 = pneg %p898
        %p1410 = pneg %p922
        %p1411 = pneg %p919
        %p1412 = pneg %p943
        %p1413 = pneg %p940
        %p1414 = pneg %p964
        %p1415 = pneg %p961
        %p1416 = pneg %p985
        %p1417 = pneg %p982
        %p1418 = pneg %p1006
        %p1419 = pneg %p1003
        %p1420 = pneg %p1027
        %p1421 = pneg %p1024
        %p1422 = pneg %p1048
        %p1423 = pneg %p1045
        %p1424 = pneg %p1069
        %p1425 = pneg %p1066
        %p1426 = pneg %p1090
        %p1427 = pneg %p1087
        %p1428 = pneg %p1116
        %p1429 = pneg %p1113
        %s1430 = sand.u32 %s1103, 1
        %s1431 = scalar_lea.sflag [#allocation4], %s1430
        %s1432 = sand.u32 %s1103, 1
        %s1433 = smul.addr %s1432, 8
        %s1434 = scalar_lea.vmem [#allocation7], %s1433
        %p1435 = scmp.lt.s32.totalorder %s109, 1
        %s1436 = scalar_select %p1435, %s109, 1
        %s1437 = smul.addr %s1436, 8
        %s1438 = scalar_lea.vmem %s1, %s1437
        %p1439 = scmp.lt.s32.totalorder %s109, 1
        %s1440 = scalar_select %p1439, %s109, 1
        %s1441 = smul.addr %s1440, 8
        %s1442 = scalar_lea.vmem %s3, %s1441
        %p1443 = scmp.lt.s32.totalorder %s109, 1
        %s1444 = scalar_select %p1443, %s109, 1
        %s1445 = scalar_lea.vmem %s5, %s1444
        %p1446 = scmp.lt.s32.totalorder %s109, 1
        %s1447 = scalar_select %p1446, %s109, 1
        %s1448 = scalar_lea.vmem %s7, %s1447
        %v1450 = vld [vmem:[%s1445] sm:$0x1]
        %v1451 = vld [vmem:[%s1438] sm:$0xff]
        %v1452 = vld [vmem:[%s9] sm:$0x1]
        %v1453 = vld [vmem:[%s11] sm:$0x1]
        %vm1454 = vcmask 261120
        %v1455 = vsel %vm1454, %v1451, 0.0
        %1456 = vadd.xlane.f32.xlu0 %v1455
        %v1457 = vpop.xlane.xlu0 %1456
        %v1458 = vrcp.pop 32.0
        %v1459 = vmul.f32 32.0, %v1458
        %v1460 = vsub.f32 1.0, %v1459
        %v1461 = vmul.f32 %v1458, %v1460
        %v1462 = vadd.f32 %v1458, %v1461
        %vm1463 = vweird.f32 %v1458
        %v1464 = vsel %vm1463, %v1458, %v1462
        %v1465 = vmul.f32 %v1457, %v1464
        %v1466 = vsub.f32 %v1451, %v1465
        %v1467 = vmul.f32 %v1466, %v1466
        %v1468 = vsel %vm1454, %v1467, 0.0
        %1469 = vadd.xlane.f32.xlu0 %v1468
        %v1470 = vpop.xlane.xlu0 %1469
        %v1471 = vmul.f32 %v1470, %v1464
        %v1472 = vadd.f32 %v1471, 1e-05
        %v1473 = vrsqrt.pop %v1472
        %v1474 = vmul.f32 %v1473, %v1472
        %v1475 = vmul.f32 %v1474, %v1473
        %v1476 = vmul.f32 0.5, %v1475
        %v1477 = vsub.f32 1.5, %v1476
        %v1478 = vmul.f32 %v1473, %v1477
        %vm1479 = vweird.f32 %v1472
        %vm1480 = vweird.f32 %v1473
        %vm1481 = vmor %vm1479, %vm1480
        %v1482 = vsel %vm1481, %v1473, %v1478
        %v1483 = vmul.f32 %v1466, %v1482
        %v1485 = vperm.slane %v1452, 0
        %v1487 = vmul.f32 %v1483, %v1485
        %v1489 = vperm.slane %v1453, 0
        %v1491 = vadd.f32 %v1487, %v1489
        %v1492 = vld [vmem:[%s13] sm:$0x1]
        %v1493 = vld [vmem:[%s15] sm:$0x1]
        %v1494 = vld [vmem:[%s17] sm:$0xf]
        %v1495 = vld [vmem:[%s17 + $0x4] sm:$0xf]
        %v1496 = vld [vmem:[%s17 + $0x8] sm:$0xf]
        %v1497 = vld [vmem:[%s17 + $0xc] sm:$0xf]
        %v1498 = vld [vmem:[%s19] sm:$0x1]
        %v1499 = vld [vmem:[%s21] sm:$0xf]
        %v1500 = vld [vmem:[%s21 + $0x4] sm:$0xf]
        %v1501 = vld [vmem:[%s21 + $0x8] sm:$0xf]
        %v1502 = vld [vmem:[%s21 + $0xc] sm:$0xf]
        %v1503 = vld [vmem:[%s23] sm:$0x1]
        %v1504 = vsel %vm1454, %v1491, 0.0
        %1505 = vadd.xlane.f32.xlu0 %v1504
        %v1506 = vpop.xlane.xlu0 %1505
        %v1507 = vmul.f32 %v1506, %v1464
        %v1508 = vsub.f32 %v1491, %v1507
        %v1509 = vmul.f32 %v1508, %v1508
        %v1510 = vsel %vm1454, %v1509, 0.0
        %1511 = vadd.xlane.f32.xlu0 %v1510
        %v1512 = vpop.xlane.xlu0 %1511
        %v1513 = vmul.f32 %v1512, %v1464
        %v1514 = vadd.f32 %v1513, 1e-05
        %v1515 = vrsqrt.pop %v1514
        %v1516 = vmul.f32 %v1515, %v1514
        %v1517 = vmul.f32 %v1516, %v1515
        %v1518 = vmul.f32 0.5, %v1517
        %v1519 = vsub.f32 1.5, %v1518
        %v1520 = vmul.f32 %v1515, %v1519
        %vm1521 = vweird.f32 %v1514
        %vm1522 = vweird.f32 %v1515
        %vm1523 = vmor %vm1521, %vm1522
        %v1524 = vsel %vm1523, %v1515, %v1520
        %v1525 = vmul.f32 %v1508, %v1524
        %v1527 = vperm.slane %v1492, 0
        %v1529 = vmul.f32 %v1525, %v1527
        %v1531 = vperm.slane %v1493, 0
        %v1533 = vadd.f32 %v1529, %v1531
        %v1534 = vpack.c.bf16 %v1533, %v1533
        %v1536 = vperm.slane %v1498, 0
        %v1542 = vunpack.c.l.b16 %v1494
        %v1543 = vunpack.c.l.b16 %v1495
        %v1544 = vunpack.c.l.b16 %v1496
        %v1545 = vunpack.c.l.b16 %v1497
        %v1546 = vpack.c.b16 %v1543, %v1542
        %v1547 = vpack.c.b16 %v1545, %v1544
        %v1551 = vsel %vm1454, %v1534, 0
        %1553 = vmatpush.bf16.msra.mxu0 0
        %1554 = vmatpush.bf16.msra.mxu0 0
        %1555 = vmatpush.bf16.msra.mxu0 0
        %1556 = vmatpush.bf16.msra.mxu0 0
        %1557 = vmatpush.bf16.msra.mxu0 0
        %1558 = vmatpush.bf16.msra.mxu0 0
        %1559 = vmatpush.bf16.msra.mxu0 %v1547
        %1560 = vmatpush.bf16.msra.mxu0 %v1546
        %1561 = vmatmul.bf16.gmra.mxu0 %v1551
        %v1562 = vpop.f32.mrf.mxu0
        %v1563 = vadd.f32 %v1536, %v1562
        %v1564 = vpop.f32.mrf.mxu0
        %1565 = vdwg.mxu0
        %v1566 = vpack.c.bf16 %v1563, %v1563
        %v1568 = vperm.slane %v1450, 0
        %v1571 = vunpack.c.l.b16 %v1566
        %v1572 = vpack.c.b16 %v1571, %v1571
        %1573 = vrot.lane.b32.xlu0 %v1572, 96
        %v1574 = vpop.permute.xlu0 %1573
        %vm1575 = vcmask 64512
        %v1577 = vsel %vm1575, %v1566, 0
        %v1580 = vsel %vm1575, %v1574, 0
        %1582 = vmatpush.bf16.xpose.msra.mxu0 0
        %1583 = vmatpush.bf16.xpose.msra.mxu0 0
        %1584 = vmatpush.bf16.xpose.msra.mxu0 0
        %1585 = vmatpush.bf16.xpose.msra.mxu0 0
        %1586 = vmatpush.bf16.xpose.msra.mxu0 0
        %1587 = vmatpush.bf16.xpose.msra.mxu0 0
        %1588 = vmatpush.bf16.xpose.msra.mxu0 0
        %1589 = vmatpush.bf16.xpose.msra.mxu0 %v1580
        %1590 = vmatmul.bf16.gmra.mxu0 %v1577
        %v1591 = vpop.f32.mrf.mxu0
        %v1592 = vadd.f32 %v1568, %v1591
        %v1593 = vpop.f32.mrf.mxu0
        %1594 = vdwg.mxu0
        %v1595 = vsel %vm1575, %v1592, -inf
        %1596 = vmax.xlane.f32.xlu0 %v1595
        %v1597 = vpop.xlane.xlu0 %1596
        %v1598 = vsub.f32 %v1592, %v1597
        %v1599 = vmul.f32 %v1598, 1.442695
        %v1600 = vpow.pop %v1599
        %v1601 = vsel %vm1575, %v1600, 0.0
        %1602 = vadd.xlane.f32.xlu0 %v1601
        %v1603 = vpop.xlane.xlu0 %1602
        %v1604 = vrcp.pop %v1603
        %v1605 = vmul.f32 %v1600, %v1604
        %v1606 = vpack.c.bf16 %v1605, %v1605
        %1607 = vrot.lane.b32.xlu0 %v1572, 64
        %v1608 = vpop.permute.xlu0 %1607
        %v1610 = vsel %vm1575, %v1606, 0
        %vm1612 = vcmask 1043456
        %v1614 = vsel %vm1612, %v1608, 0
        %1616 = vmatpush.bf16.msra.mxu0 0
        %1617 = vmatpush.bf16.msra.mxu0 0
        %1618 = vmatpush.bf16.msra.mxu0 0
        %1619 = vmatpush.bf16.msra.mxu0 0
        %1620 = vmatpush.bf16.msra.mxu0 0
        %1621 = vmatpush.bf16.msra.mxu0 0
        %1622 = vmatpush.bf16.msra.mxu0 0
        %1623 = vmatpush.bf16.msra.mxu0 %v1614
        %1624 = vmatmul.bf16.gmra.mxu0 %v1610
        %v1625 = vpop.f32.mrf.mxu0
        %v1626 = vadd.f32 0.0, %v1625
        %v1627 = vpop.f32.mrf.mxu0
        %1628 = vdwg.mxu0
        %1629 = vrot.lane.b32.xlu0 %v1572, 120
        %v1630 = vpop.permute.xlu0 %1629
        %1631 = vrot.lane.b32.xlu0 %v1572, 88
        %v1632 = vpop.permute.xlu0 %1631
        %v1634 = vsel %vm1575, %v1630, 0
        %v1637 = vsel %vm1575, %v1632, 0
        %1639 = vmatpush.bf16.xpose.msra.mxu0 0
        %1640 = vmatpush.bf16.xpose.msra.mxu0 0
        %1641 = vmatpush.bf16.xpose.msra.mxu0 0
        %1642 = vmatpush.bf16.xpose.msra.mxu0 0
        %1643 = vmatpush.bf16.xpose.msra.mxu0 0
        %1644 = vmatpush.bf16.xpose.msra.mxu0 0
        %1645 = vmatpush.bf16.xpose.msra.mxu0 0
        %1646 = vmatpush.bf16.xpose.msra.mxu0 %v1637
        %1647 = vmatmul.bf16.gmra.mxu0 %v1634
        %v1648 = vpop.f32.mrf.mxu0
        %v1649 = vadd.f32 %v1568, %v1648
        %v1650 = vpop.f32.mrf.mxu0
        %1651 = vdwg.mxu0
        %v1652 = vsel %vm1575, %v1649, -inf
        %1653 = vmax.xlane.f32.xlu0 %v1652
        %v1654 = vpop.xlane.xlu0 %1653
        %v1655 = vsub.f32 %v1649, %v1654
        %v1656 = vmul.f32 %v1655, 1.442695
        %v1657 = vpow.pop %v1656
        %v1658 = vsel %vm1575, %v1657, 0.0
        %1659 = vadd.xlane.f32.xlu0 %v1658
        %v1660 = vpop.xlane.xlu0 %1659
        %v1661 = vrcp.pop %v1660
        %v1662 = vmul.f32 %v1657, %v1661
        %v1663 = vpack.c.bf16 %v1662, %v1662
        %1664 = vrot.lane.b32.xlu0 %v1572, 56
        %v1665 = vpop.permute.xlu0 %1664
        %v1667 = vsel %vm1575, %v1663, 0
        %v1670 = vsel %vm1612, %v1665, 0
        %1672 = vmatpush.bf16.msra.mxu0 0
        %1673 = vmatpush.bf16.msra.mxu0 0
        %1674 = vmatpush.bf16.msra.mxu0 0
        %1675 = vmatpush.bf16.msra.mxu0 0
        %1676 = vmatpush.bf16.msra.mxu0 0
        %1677 = vmatpush.bf16.msra.mxu0 0
        %1678 = vmatpush.bf16.msra.mxu0 0
        %1679 = vmatpush.bf16.msra.mxu0 %v1670
        %1680 = vmatmul.bf16.gmra.mxu0 %v1667
        %v1681 = vpop.f32.mrf.mxu0
        %v1682 = vadd.f32 0.0, %v1681
        %v1683 = vpop.f32.mrf.mxu0
        %1684 = vdwg.mxu0
        %1685 = vrot.lane.b32.xlu0 %v1572, 112
        %v1686 = vpop.permute.xlu0 %1685
        %1687 = vrot.lane.b32.xlu0 %v1572, 80
        %v1688 = vpop.permute.xlu0 %1687
        %v1690 = vsel %vm1575, %v1686, 0
        %v1693 = vsel %vm1575, %v1688, 0
        %1695 = vmatpush.bf16.xpose.msra.mxu0 0
        %1696 = vmatpush.bf16.xpose.msra.mxu0 0
        %1697 = vmatpush.bf16.xpose.msra.mxu0 0
        %1698 = vmatpush.bf16.xpose.msra.mxu0 0
        %1699 = vmatpush.bf16.xpose.msra.mxu0 0
        %1700 = vmatpush.bf16.xpose.msra.mxu0 0
        %1701 = vmatpush.bf16.xpose.msra.mxu0 0
        %1702 = vmatpush.bf16.xpose.msra.mxu0 %v1693
        %1703 = vmatmul.bf16.gmra.mxu0 %v1690
        %v1704 = vpop.f32.mrf.mxu0
        %v1705 = vadd.f32 %v1568, %v1704
        %v1706 = vpop.f32.mrf.mxu0
        %1707 = vdwg.mxu0
        %v1708 = vsel %vm1575, %v1705, -inf
        %1709 = vmax.xlane.f32.xlu0 %v1708
        %v1710 = vpop.xlane.xlu0 %1709
        %v1711 = vsub.f32 %v1705, %v1710
        %v1712 = vmul.f32 %v1711, 1.442695
        %v1713 = vpow.pop %v1712
        %v1714 = vsel %vm1575, %v1713, 0.0
        %1715 = vadd.xlane.f32.xlu0 %v1714
        %v1716 = vpop.xlane.xlu0 %1715
        %v1717 = vrcp.pop %v1716
        %v1718 = vmul.f32 %v1713, %v1717
        %v1719 = vpack.c.bf16 %v1718, %v1718
        %1720 = vrot.lane.b32.xlu0 %v1572, 48
        %v1721 = vpop.permute.xlu0 %1720
        %v1723 = vsel %vm1575, %v1719, 0
        %v1726 = vsel %vm1612, %v1721, 0
        %1728 = vmatpush.bf16.msra.mxu0 0
        %1729 = vmatpush.bf16.msra.mxu0 0
        %1730 = vmatpush.bf16.msra.mxu0 0
        %1731 = vmatpush.bf16.msra.mxu0 0
        %1732 = vmatpush.bf16.msra.mxu0 0
        %1733 = vmatpush.bf16.msra.mxu0 0
        %1734 = vmatpush.bf16.msra.mxu0 0
        %1735 = vmatpush.bf16.msra.mxu0 %v1726
        %1736 = vmatmul.bf16.gmra.mxu0 %v1723
        %v1737 = vpop.f32.mrf.mxu0
        %v1738 = vadd.f32 0.0, %v1737
        %v1739 = vpop.f32.mrf.mxu0
        %1740 = vdwg.mxu0
        %1741 = vrot.lane.b32.xlu0 %v1572, 104
        %v1742 = vpop.permute.xlu0 %1741
        %1743 = vrot.lane.b32.xlu0 %v1572, 72
        %v1744 = vpop.permute.xlu0 %1743
        %v1746 = vsel %vm1575, %v1742, 0
        %v1749 = vsel %vm1575, %v1744, 0
        %1751 = vmatpush.bf16.xpose.msra.mxu0 0
        %1752 = vmatpush.bf16.xpose.msra.mxu0 0
        %1753 = vmatpush.bf16.xpose.msra.mxu0 0
        %1754 = vmatpush.bf16.xpose.msra.mxu0 0
        %1755 = vmatpush.bf16.xpose.msra.mxu0 0
        %1756 = vmatpush.bf16.xpose.msra.mxu0 0
        %1757 = vmatpush.bf16.xpose.msra.mxu0 0
        %1758 = vmatpush.bf16.xpose.msra.mxu0 %v1749
        %1759 = vmatmul.bf16.gmra.mxu0 %v1746
        %v1760 = vpop.f32.mrf.mxu0
        %v1761 = vadd.f32 %v1568, %v1760
        %v1762 = vpop.f32.mrf.mxu0
        %1763 = vdwg.mxu0
        %v1764 = vsel %vm1575, %v1761, -inf
        %1765 = vmax.xlane.f32.xlu0 %v1764
        %v1766 = vpop.xlane.xlu0 %1765
        %v1767 = vsub.f32 %v1761, %v1766
        %v1768 = vmul.f32 %v1767, 1.442695
        %v1769 = vpow.pop %v1768
        %v1770 = vsel %vm1575, %v1769, 0.0
        %1771 = vadd.xlane.f32.xlu0 %v1770
        %v1772 = vpop.xlane.xlu0 %1771
        %v1773 = vrcp.pop %v1772
        %v1774 = vmul.f32 %v1769, %v1773
        %v1775 = vpack.c.bf16 %v1774, %v1774
        %1776 = vrot.lane.b32.xlu0 %v1572, 40
        %v1777 = vpop.permute.xlu0 %1776
        %v1779 = vsel %vm1575, %v1775, 0
        %v1782 = vsel %vm1612, %v1777, 0
        %1784 = vmatpush.bf16.msra.mxu0 0
        %1785 = vmatpush.bf16.msra.mxu0 0
        %1786 = vmatpush.bf16.msra.mxu0 0
        %1787 = vmatpush.bf16.msra.mxu0 0
        %1788 = vmatpush.bf16.msra.mxu0 0
        %1789 = vmatpush.bf16.msra.mxu0 0
        %1790 = vmatpush.bf16.msra.mxu0 0
        %1791 = vmatpush.bf16.msra.mxu0 %v1782
        %1792 = vmatmul.bf16.gmra.mxu0 %v1779
        %v1793 = vpop.f32.mrf.mxu0
        %v1794 = vadd.f32 0.0, %v1793
        %v1795 = vpop.f32.mrf.mxu0
        %1796 = vdwg.mxu0
        %1798 = vrot.lane.b32.xlu0 %v1682, 8
        %v1799 = vpop.permute.xlu0 %1798
        %1802 = vrot.lane.b32.xlu0 %v1738, 16
        %v1803 = vpop.permute.xlu0 %1802
        %1806 = vrot.lane.b32.xlu0 %v1794, 24
        %v1807 = vpop.permute.xlu0 %1806
        %v1809 = vsel %vm1575, %v1626, %v1799
        %vm1810 = vcmask 130048
        %v1811 = vsel %vm1810, %v1809, %v1803
        %vm1812 = vcmask 195584
        %v1813 = vsel %vm1812, %v1811, %v1807
        %v1814 = vpack.c.bf16 %v1813, %v1813
        %v1819 = vunpack.c.l.b16 %v1499
        %v1820 = vunpack.c.l.b16 %v1500
        %v1821 = vunpack.c.l.b16 %v1501
        %v1822 = vunpack.c.l.b16 %v1502
        %v1823 = vpack.c.b16 %v1820, %v1819
        %v1824 = vpack.c.b16 %v1822, %v1821
        %v1828 = vsel %vm1454, %v1814, 0
        %1830 = vmatpush.bf16.msra.mxu0 0
        %1831 = vmatpush.bf16.msra.mxu0 0
        %1832 = vmatpush.bf16.msra.mxu0 0
        %1833 = vmatpush.bf16.msra.mxu0 0
        %1834 = vmatpush.bf16.msra.mxu0 0
        %1835 = vmatpush.bf16.msra.mxu0 0
        %1836 = vmatpush.bf16.msra.mxu0 %v1824
        %1837 = vmatpush.bf16.msra.mxu0 %v1823
        %1838 = vmatmul.bf16.gmra.mxu0 %v1828
        %v1839 = vpop.f32.mrf.mxu0
        %v1840 = vadd.f32 0.0, %v1839
        %v1841 = vpop.f32.mrf.mxu0
        %1842 = vdwg.mxu0
        %v1843 = vadd.f32 %v1491, %v1840
        %v1845 = vperm.slane %v1503, 0
        %v1847 = vadd.f32 %v1843, %v1845
        %v1848 = vld [vmem:[%s25] sm:$0x1]
        %v1849 = vld [vmem:[%s27] sm:$0x1]
        %v1850 = vld [vmem:[%s29] sm:$0xf]
        %v1851 = vld [vmem:[%s29 + $0x4] sm:$0xf]
        %v1852 = vld [vmem:[%s29 + $0x8] sm:$0xf]
        %v1853 = vld [vmem:[%s29 + $0xc] sm:$0xf]
        %v1854 = vld [vmem:[%s31] sm:$0x1]
        %v1855 = vld [vmem:[%s33] sm:$0xf]
        %v1856 = vld [vmem:[%s33 + $0x4] sm:$0xf]
        %v1857 = vld [vmem:[%s33 + $0x8] sm:$0xf]
        %v1858 = vld [vmem:[%s33 + $0xc] sm:$0xf]
        %v1859 = vld [vmem:[%s33 + $0x10] sm:$0xf]
        %v1860 = vld [vmem:[%s33 + $0x14] sm:$0xf]
        %v1861 = vld [vmem:[%s33 + $0x18] sm:$0xf]
        %v1862 = vld [vmem:[%s33 + $0x1c] sm:$0xf]
        %v1863 = vld [vmem:[%s35] sm:$0x1]
        %v1864 = vsel %vm1454, %v1847, 0.0
        %1865 = vadd.xlane.f32.xlu0 %v1864
        %v1866 = vpop.xlane.xlu0 %1865
        %v1867 = vmul.f32 %v1866, %v1464
        %v1868 = vsub.f32 %v1847, %v1867
        %v1869 = vmul.f32 %v1868, %v1868
        %v1870 = vsel %vm1454, %v1869, 0.0
        %1871 = vadd.xlane.f32.xlu0 %v1870
        %v1872 = vpop.xlane.xlu0 %1871
        %v1873 = vmul.f32 %v1872, %v1464
        %v1874 = vadd.f32 %v1873, 1e-05
        %v1875 = vrsqrt.pop %v1874
        %v1876 = vmul.f32 %v1875, %v1874
        %v1877 = vmul.f32 %v1876, %v1875
        %v1878 = vmul.f32 0.5, %v1877
        %v1879 = vsub.f32 1.5, %v1878
        %v1880 = vmul.f32 %v1875, %v1879
        %vm1881 = vweird.f32 %v1874
        %vm1882 = vweird.f32 %v1875
        %vm1883 = vmor %vm1881, %vm1882
        %v1884 = vsel %vm1883, %v1875, %v1880
        %v1885 = vmul.f32 %v1868, %v1884
        %v1887 = vperm.slane %v1848, 0
        %v1889 = vmul.f32 %v1885, %v1887
        %v1891 = vperm.slane %v1849, 0
        %v1893 = vadd.f32 %v1889, %v1891
        %v1894 = vpack.c.bf16 %v1893, %v1893
        %v1896 = vperm.slane %v1854, 0
        %v1902 = vunpack.c.l.b16 %v1850
        %v1903 = vunpack.c.l.b16 %v1851
        %v1904 = vunpack.c.l.b16 %v1852
        %v1905 = vunpack.c.l.b16 %v1853
        %v1906 = vpack.c.b16 %v1903, %v1902
        %v1907 = vpack.c.b16 %v1905, %v1904
        %v1911 = vsel %vm1454, %v1894, 0
        %1913 = vmatpush.bf16.msra.mxu0 0
        %1914 = vmatpush.bf16.msra.mxu0 0
        %1915 = vmatpush.bf16.msra.mxu0 0
        %1916 = vmatpush.bf16.msra.mxu0 0
        %1917 = vmatpush.bf16.msra.mxu0 0
        %1918 = vmatpush.bf16.msra.mxu0 0
        %1919 = vmatpush.bf16.msra.mxu0 %v1907
        %1920 = vmatpush.bf16.msra.mxu0 %v1906
        %1921 = vmatmul.bf16.gmra.mxu0 %v1911
        %v1922 = vpop.f32.mrf.mxu0
        %v1923 = vadd.f32 %v1896, %v1922
        %v1924 = vpop.f32.mrf.mxu0
        %1925 = vdwg.mxu0
        %v1926 = vmul.f32 %v1923, 0.5
        %v1927 = vmul.f32 %v1923, 0.044715
        %v1928 = vmul.f32 %v1927, %v1923
        %v1929 = vmul.f32 %v1928, %v1923
        %v1930 = vadd.f32 %v1923, %v1929
        %v1931 = vmul.f32 %v1930, 0.7978846
        %v1932 = vtanh.pop %v1931
        %v1933 = vadd.f32 %v1932, 1.0
        %v1934 = vmul.f32 %v1926, %v1933
        %v1935 = vpack.c.bf16 %v1934, %v1934
        %v1944 = vunpack.c.l.b16 %v1855
        %v1945 = vunpack.c.l.b16 %v1856
        %v1946 = vunpack.c.l.b16 %v1857
        %v1947 = vunpack.c.l.b16 %v1858
        %v1948 = vunpack.c.l.b16 %v1859
        %v1949 = vunpack.c.l.b16 %v1860
        %v1950 = vunpack.c.l.b16 %v1861
        %v1951 = vunpack.c.l.b16 %v1862
        %v1952 = vpack.c.b16 %v1945, %v1944
        %v1953 = vpack.c.b16 %v1947, %v1946
        %v1954 = vpack.c.b16 %v1949, %v1948
        %v1955 = vpack.c.b16 %v1951, %v1950
        %vm1960 = vcmask 523264
        %v1962 = vsel %vm1960, %v1935, 0
        %1964 = vmatpush.bf16.msra.mxu0 0
        %1965 = vmatpush.bf16.msra.mxu0 0
        %1966 = vmatpush.bf16.msra.mxu0 0
        %1967 = vmatpush.bf16.msra.mxu0 0
        %1968 = vmatpush.bf16.msra.mxu0 %v1955
        %1969 = vmatpush.bf16.msra.mxu0 %v1954
        %1970 = vmatpush.bf16.msra.mxu0 %v1953
        %1971 = vmatpush.bf16.msra.mxu0 %v1952
        %1972 = vmatmul.bf16.gmra.mxu0 %v1962
        %v1973 = vpop.f32.mrf.mxu0
        %v1974 = vadd.f32 0.0, %v1973
        %v1975 = vpop.f32.mrf.mxu0
        %1976 = vdwg.mxu0
        %v1977 = vadd.f32 %v1847, %v1974
        %v1979 = vperm.slane %v1863, 0
        %v1981 = vadd.f32 %v1977, %v1979
        %s1982 = scalar_lea.vmem %s13, 1
        %v1983 = vld [vmem:[%s1982] sm:$0x1]
        %s1984 = scalar_lea.vmem %s15, 1
        %v1985 = vld [vmem:[%s1984] sm:$0x1]
        %s1986 = scalar_lea.vmem %s17, 16
        %v1987 = vld [vmem:[%s1986] sm:$0xf]
        %v1988 = vld [vmem:[%s1986 + $0x4] sm:$0xf]
        %v1989 = vld [vmem:[%s1986 + $0x8] sm:$0xf]
        %v1990 = vld [vmem:[%s1986 + $0xc] sm:$0xf]
        %s1991 = scalar_lea.vmem %s19, 1
        %v1992 = vld [vmem:[%s1991] sm:$0x1]
        %s1993 = scalar_lea.vmem %s21, 16
        %v1994 = vld [vmem:[%s1993] sm:$0xf]
        %v1995 = vld [vmem:[%s1993 + $0x4] sm:$0xf]
        %v1996 = vld [vmem:[%s1993 + $0x8] sm:$0xf]
        %v1997 = vld [vmem:[%s1993 + $0xc] sm:$0xf]
        %s1998 = scalar_lea.vmem %s23, 1
        %v1999 = vld [vmem:[%s1998] sm:$0x1]
        %v2000 = vsel %vm1454, %v1981, 0.0
        %2001 = vadd.xlane.f32.xlu0 %v2000
        %v2002 = vpop.xlane.xlu0 %2001
        %v2003 = vmul.f32 %v2002, %v1464
        %v2004 = vsub.f32 %v1981, %v2003
        %v2005 = vmul.f32 %v2004, %v2004
        %v2006 = vsel %vm1454, %v2005, 0.0
        %2007 = vadd.xlane.f32.xlu0 %v2006
        %v2008 = vpop.xlane.xlu0 %2007
        %v2009 = vmul.f32 %v2008, %v1464
        %v2010 = vadd.f32 %v2009, 1e-05
        %v2011 = vrsqrt.pop %v2010
        %v2012 = vmul.f32 %v2011, %v2010
        %v2013 = vmul.f32 %v2012, %v2011
        %v2014 = vmul.f32 0.5, %v2013
        %v2015 = vsub.f32 1.5, %v2014
        %v2016 = vmul.f32 %v2011, %v2015
        %vm2017 = vweird.f32 %v2010
        %vm2018 = vweird.f32 %v2011
        %vm2019 = vmor %vm2017, %vm2018
        %v2020 = vsel %vm2019, %v2011, %v2016
        %v2021 = vmul.f32 %v2004, %v2020
        %v2023 = vperm.slane %v1983, 0
        %v2025 = vmul.f32 %v2021, %v2023
        %v2027 = vperm.slane %v1985, 0
        %v2029 = vadd.f32 %v2025, %v2027
        %v2030 = vpack.c.bf16 %v2029, %v2029
        %v2032 = vperm.slane %v1992, 0
        %v2038 = vunpack.c.l.b16 %v1987
        %v2039 = vunpack.c.l.b16 %v1988
        %v2040 = vunpack.c.l.b16 %v1989
        %v2041 = vunpack.c.l.b16 %v1990
        %v2042 = vpack.c.b16 %v2039, %v2038
        %v2043 = vpack.c.b16 %v2041, %v2040
        %v2047 = vsel %vm1454, %v2030, 0
        %2049 = vmatpush.bf16.msra.mxu0 0
        %2050 = vmatpush.bf16.msra.mxu0 0
        %2051 = vmatpush.bf16.msra.mxu0 0
        %2052 = vmatpush.bf16.msra.mxu0 0
        %2053 = vmatpush.bf16.msra.mxu0 0
        %2054 = vmatpush.bf16.msra.mxu0 0
        %2055 = vmatpush.bf16.msra.mxu0 %v2043
        %2056 = vmatpush.bf16.msra.mxu0 %v2042
        %2057 = vmatmul.bf16.gmra.mxu0 %v2047
        %v2058 = vpop.f32.mrf.mxu0
        %v2059 = vadd.f32 %v2032, %v2058
        %v2060 = vpop.f32.mrf.mxu0
        %2061 = vdwg.mxu0
        %v2062 = vpack.c.bf16 %v2059, %v2059
        %v2064 = vunpack.c.l.b16 %v2062
        %v2065 = vpack.c.b16 %v2064, %v2064
        %2066 = vrot.lane.b32.xlu0 %v2065, 96
        %v2067 = vpop.permute.xlu0 %2066
        %v2069 = vsel %vm1575, %v2062, 0
        %v2072 = vsel %vm1575, %v2067, 0
        %2074 = vmatpush.bf16.xpose.msra.mxu0 0
        %2075 = vmatpush.bf16.xpose.msra.mxu0 0
        %2076 = vmatpush.bf16.xpose.msra.mxu0 0
        %2077 = vmatpush.bf16.xpose.msra.mxu0 0
        %2078 = vmatpush.bf16.xpose.msra.mxu0 0
        %2079 = vmatpush.bf16.xpose.msra.mxu0 0
        %2080 = vmatpush.bf16.xpose.msra.mxu0 0
        %2081 = vmatpush.bf16.xpose.msra.mxu0 %v2072
        %2082 = vmatmul.bf16.gmra.mxu0 %v2069
        %v2083 = vpop.f32.mrf.mxu0
        %v2084 = vadd.f32 %v1568, %v2083
        %v2085 = vpop.f32.mrf.mxu0
        %2086 = vdwg.mxu0
        %v2087 = vsel %vm1575, %v2084, -inf
        %2088 = vmax.xlane.f32.xlu0 %v2087
        %v2089 = vpop.xlane.xlu0 %2088
        %v2090 = vsub.f32 %v2084, %v2089
        %v2091 = vmul.f32 %v2090, 1.442695
        %v2092 = vpow.pop %v2091
        %v2093 = vsel %vm1575, %v2092, 0.0
        %2094 = vadd.xlane.f32.xlu0 %v2093
        %v2095 = vpop.xlane.xlu0 %2094
        %v2096 = vrcp.pop %v2095
        %v2097 = vmul.f32 %v2092, %v2096
        %v2098 = vpack.c.bf16 %v2097, %v2097
        %2099 = vrot.lane.b32.xlu0 %v2065, 64
        %v2100 = vpop.permute.xlu0 %2099
        %v2102 = vsel %vm1575, %v2098, 0
        %v2105 = vsel %vm1612, %v2100, 0
        %2107 = vmatpush.bf16.msra.mxu0 0
        %2108 = vmatpush.bf16.msra.mxu0 0
        %2109 = vmatpush.bf16.msra.mxu0 0
        %2110 = vmatpush.bf16.msra.mxu0 0
        %2111 = vmatpush.bf16.msra.mxu0 0
        %2112 = vmatpush.bf16.msra.mxu0 0
        %2113 = vmatpush.bf16.msra.mxu0 0
        %2114 = vmatpush.bf16.msra.mxu0 %v2105
        %2115 = vmatmul.bf16.gmra.mxu0 %v2102
        %v2116 = vpop.f32.mrf.mxu0
        %v2117 = vadd.f32 0.0, %v2116
        %v2118 = vpop.f32.mrf.mxu0
        %2119 = vdwg.mxu0
        %2120 = vrot.lane.b32.xlu0 %v2065, 120
        %v2121 = vpop.permute.xlu0 %2120
        %2122 = vrot.lane.b32.xlu0 %v2065, 88
        %v2123 = vpop.permute.xlu0 %2122
        %v2125 = vsel %vm1575, %v2121, 0
        %v2128 = vsel %vm1575, %v2123, 0
        %2130 = vmatpush.bf16.xpose.msra.mxu0 0
        %2131 = vmatpush.bf16.xpose.msra.mxu0 0
        %2132 = vmatpush.bf16.xpose.msra.mxu0 0
        %2133 = vmatpush.bf16.xpose.msra.mxu0 0
        %2134 = vmatpush.bf16.xpose.msra.mxu0 0
        %2135 = vmatpush.bf16.xpose.msra.mxu0 0
        %2136 = vmatpush.bf16.xpose.msra.mxu0 0
        %2137 = vmatpush.bf16.xpose.msra.mxu0 %v2128
        %2138 = vmatmul.bf16.gmra.mxu0 %v2125
        %v2139 = vpop.f32.mrf.mxu0
        %v2140 = vadd.f32 %v1568, %v2139
        %v2141 = vpop.f32.mrf.mxu0
        %2142 = vdwg.mxu0
        %v2143 = vsel %vm1575, %v2140, -inf
        %2144 = vmax.xlane.f32.xlu0 %v2143
        %v2145 = vpop.xlane.xlu0 %2144
        %v2146 = vsub.f32 %v2140, %v2145
        %v2147 = vmul.f32 %v2146, 1.442695
        %v2148 = vpow.pop %v2147
        %v2149 = vsel %vm1575, %v2148, 0.0
        %2150 = vadd.xlane.f32.xlu0 %v2149
        %v2151 = vpop.xlane.xlu0 %2150
        %v2152 = vrcp.pop %v2151
        %v2153 = vmul.f32 %v2148, %v2152
        %v2154 = vpack.c.bf16 %v2153, %v2153
        %2155 = vrot.lane.b32.xlu0 %v2065, 56
        %v2156 = vpop.permute.xlu0 %2155
        %v2158 = vsel %vm1575, %v2154, 0
        %v2161 = vsel %vm1612, %v2156, 0
        %2163 = vmatpush.bf16.msra.mxu0 0
        %2164 = vmatpush.bf16.msra.mxu0 0
        %2165 = vmatpush.bf16.msra.mxu0 0
        %2166 = vmatpush.bf16.msra.mxu0 0
        %2167 = vmatpush.bf16.msra.mxu0 0
        %2168 = vmatpush.bf16.msra.mxu0 0
        %2169 = vmatpush.bf16.msra.mxu0 0
        %2170 = vmatpush.bf16.msra.mxu0 %v2161
        %2171 = vmatmul.bf16.gmra.mxu0 %v2158
        %v2172 = vpop.f32.mrf.mxu0
        %v2173 = vadd.f32 0.0, %v2172
        %v2174 = vpop.f32.mrf.mxu0
        %2175 = vdwg.mxu0
        %2176 = vrot.lane.b32.xlu0 %v2065, 112
        %v2177 = vpop.permute.xlu0 %2176
        %2178 = vrot.lane.b32.xlu0 %v2065, 80
        %v2179 = vpop.permute.xlu0 %2178
        %v2181 = vsel %vm1575, %v2177, 0
        %v2184 = vsel %vm1575, %v2179, 0
        %2186 = vmatpush.bf16.xpose.msra.mxu0 0
        %2187 = vmatpush.bf16.xpose.msra.mxu0 0
        %2188 = vmatpush.bf16.xpose.msra.mxu0 0
        %2189 = vmatpush.bf16.xpose.msra.mxu0 0
        %2190 = vmatpush.bf16.xpose.msra.mxu0 0
        %2191 = vmatpush.bf16.xpose.msra.mxu0 0
        %2192 = vmatpush.bf16.xpose.msra.mxu0 0
        %2193 = vmatpush.bf16.xpose.msra.mxu0 %v2184
        %2194 = vmatmul.bf16.gmra.mxu0 %v2181
        %v2195 = vpop.f32.mrf.mxu0
        %v2196 = vadd.f32 %v1568, %v2195
        %v2197 = vpop.f32.mrf.mxu0
        %2198 = vdwg.mxu0
        %v2199 = vsel %vm1575, %v2196, -inf
        %2200 = vmax.xlane.f32.xlu0 %v2199
        %v2201 = vpop.xlane.xlu0 %2200
        %v2202 = vsub.f32 %v2196, %v2201
        %v2203 = vmul.f32 %v2202, 1.442695
        %v2204 = vpow.pop %v2203
        %v2205 = vsel %vm1575, %v2204, 0.0
        %2206 = vadd.xlane.f32.xlu0 %v2205
        %v2207 = vpop.xlane.xlu0 %2206
        %v2208 = vrcp.pop %v2207
        %v2209 = vmul.f32 %v2204, %v2208
        %v2210 = vpack.c.bf16 %v2209, %v2209
        %2211 = vrot.lane.b32.xlu0 %v2065, 48
        %v2212 = vpop.permute.xlu0 %2211
        %v2214 = vsel %vm1575, %v2210, 0
        %v2217 = vsel %vm1612, %v2212, 0
        %2219 = vmatpush.bf16.msra.mxu0 0
        %2220 = vmatpush.bf16.msra.mxu0 0
        %2221 = vmatpush.bf16.msra.mxu0 0
        %2222 = vmatpush.bf16.msra.mxu0 0
        %2223 = vmatpush.bf16.msra.mxu0 0
        %2224 = vmatpush.bf16.msra.mxu0 0
        %2225 = vmatpush.bf16.msra.mxu0 0
        %2226 = vmatpush.bf16.msra.mxu0 %v2217
        %2227 = vmatmul.bf16.gmra.mxu0 %v2214
        %v2228 = vpop.f32.mrf.mxu0
        %v2229 = vadd.f32 0.0, %v2228
        %v2230 = vpop.f32.mrf.mxu0
        %2231 = vdwg.mxu0
        %2232 = vrot.lane.b32.xlu0 %v2065, 104
        %v2233 = vpop.permute.xlu0 %2232
        %2234 = vrot.lane.b32.xlu0 %v2065, 72
        %v2235 = vpop.permute.xlu0 %2234
        %v2237 = vsel %vm1575, %v2233, 0
        %v2240 = vsel %vm1575, %v2235, 0
        %2242 = vmatpush.bf16.xpose.msra.mxu0 0
        %2243 = vmatpush.bf16.xpose.msra.mxu0 0
        %2244 = vmatpush.bf16.xpose.msra.mxu0 0
        %2245 = vmatpush.bf16.xpose.msra.mxu0 0
        %2246 = vmatpush.bf16.xpose.msra.mxu0 0
        %2247 = vmatpush.bf16.xpose.msra.mxu0 0
        %2248 = vmatpush.bf16.xpose.msra.mxu0 0
        %2249 = vmatpush.bf16.xpose.msra.mxu0 %v2240
        %2250 = vmatmul.bf16.gmra.mxu0 %v2237
        %v2251 = vpop.f32.mrf.mxu0
        %v2252 = vadd.f32 %v1568, %v2251
        %v2253 = vpop.f32.mrf.mxu0
        %2254 = vdwg.mxu0
        %v2255 = vsel %vm1575, %v2252, -inf
        %2256 = vmax.xlane.f32.xlu0 %v2255
        %v2257 = vpop.xlane.xlu0 %2256
        %v2258 = vsub.f32 %v2252, %v2257
        %v2259 = vmul.f32 %v2258, 1.442695
        %v2260 = vpow.pop %v2259
        %v2261 = vsel %vm1575, %v2260, 0.0
        %2262 = vadd.xlane.f32.xlu0 %v2261
        %v2263 = vpop.xlane.xlu0 %2262
        %v2264 = vrcp.pop %v2263
        %v2265 = vmul.f32 %v2260, %v2264
        %v2266 = vpack.c.bf16 %v2265, %v2265
        %2267 = vrot.lane.b32.xlu0 %v2065, 40
        %v2268 = vpop.permute.xlu0 %2267
        %v2270 = vsel %vm1575, %v2266, 0
        %v2273 = vsel %vm1612, %v2268, 0
        %2275 = vmatpush.bf16.msra.mxu0 0
        %2276 = vmatpush.bf16.msra.mxu0 0
        %2277 = vmatpush.bf16.msra.mxu0 0
        %2278 = vmatpush.bf16.msra.mxu0 0
        %2279 = vmatpush.bf16.msra.mxu0 0
        %2280 = vmatpush.bf16.msra.mxu0 0
        %2281 = vmatpush.bf16.msra.mxu0 0
        %2282 = vmatpush.bf16.msra.mxu0 %v2273
        %2283 = vmatmul.bf16.gmra.mxu0 %v2270
        %v2284 = vpop.f32.mrf.mxu0
        %v2285 = vadd.f32 0.0, %v2284
        %v2286 = vpop.f32.mrf.mxu0
        %2287 = vdwg.mxu0
        %2289 = vrot.lane.b32.xlu0 %v2173, 8
        %v2290 = vpop.permute.xlu0 %2289
        %2293 = vrot.lane.b32.xlu0 %v2229, 16
        %v2294 = vpop.permute.xlu0 %2293
        %2297 = vrot.lane.b32.xlu0 %v2285, 24
        %v2298 = vpop.permute.xlu0 %2297
        %v2300 = vsel %vm1575, %v2117, %v2290
        %v2301 = vsel %vm1810, %v2300, %v2294
        %v2302 = vsel %vm1812, %v2301, %v2298
        %v2303 = vpack.c.bf16 %v2302, %v2302
        %v2308 = vunpack.c.l.b16 %v1994
        %v2309 = vunpack.c.l.b16 %v1995
        %v2310 = vunpack.c.l.b16 %v1996
        %v2311 = vunpack.c.l.b16 %v1997
        %v2312 = vpack.c.b16 %v2309, %v2308
        %v2313 = vpack.c.b16 %v2311, %v2310
        %v2317 = vsel %vm1454, %v2303, 0
        %2319 = vmatpush.bf16.msra.mxu0 0
        %2320 = vmatpush.bf16.msra.mxu0 0
        %2321 = vmatpush.bf16.msra.mxu0 0
        %2322 = vmatpush.bf16.msra.mxu0 0
        %2323 = vmatpush.bf16.msra.mxu0 0
        %2324 = vmatpush.bf16.msra.mxu0 0
        %2325 = vmatpush.bf16.msra.mxu0 %v2313
        %2326 = vmatpush.bf16.msra.mxu0 %v2312
        %2327 = vmatmul.bf16.gmra.mxu0 %v2317
        %v2328 = vpop.f32.mrf.mxu0
        %v2329 = vadd.f32 0.0, %v2328
        %v2330 = vpop.f32.mrf.mxu0
        %2331 = vdwg.mxu0
        %v2332 = vadd.f32 %v1981, %v2329
        %v2334 = vperm.slane %v1999, 0
        %v2336 = vadd.f32 %v2332, %v2334
        %s2337 = scalar_lea.vmem %s25, 1
        %v2338 = vld [vmem:[%s2337] sm:$0x1]
        %s2339 = scalar_lea.vmem %s27, 1
        %v2340 = vld [vmem:[%s2339] sm:$0x1]
        %s2341 = scalar_lea.vmem %s29, 16
        %v2342 = vld [vmem:[%s2341] sm:$0xf]
        %v2343 = vld [vmem:[%s2341 + $0x4] sm:$0xf]
        %v2344 = vld [vmem:[%s2341 + $0x8] sm:$0xf]
        %v2345 = vld [vmem:[%s2341 + $0xc] sm:$0xf]
        %s2346 = scalar_lea.vmem %s31, 1
        %v2347 = vld [vmem:[%s2346] sm:$0x1]
        %s2348 = scalar_lea.vmem %s33, 32
        %v2349 = vld [vmem:[%s2348] sm:$0xf]
        %v2350 = vld [vmem:[%s2348 + $0x4] sm:$0xf]
        %v2351 = vld [vmem:[%s2348 + $0x8] sm:$0xf]
        %v2352 = vld [vmem:[%s2348 + $0xc] sm:$0xf]
        %v2353 = vld [vmem:[%s2348 + $0x10] sm:$0xf]
        %v2354 = vld [vmem:[%s2348 + $0x14] sm:$0xf]
        %v2355 = vld [vmem:[%s2348 + $0x18] sm:$0xf]
        %v2356 = vld [vmem:[%s2348 + $0x1c] sm:$0xf]
        %s2357 = scalar_lea.vmem %s35, 1
        %v2358 = vld [vmem:[%s2357] sm:$0x1]
        %v2359 = vsel %vm1454, %v2336, 0.0
        %2360 = vadd.xlane.f32.xlu0 %v2359
        %v2361 = vpop.xlane.xlu0 %2360
        %v2362 = vmul.f32 %v2361, %v1464
        %v2363 = vsub.f32 %v2336, %v2362
        %v2364 = vmul.f32 %v2363, %v2363
        %v2365 = vsel %vm1454, %v2364, 0.0
        %2366 = vadd.xlane.f32.xlu0 %v2365
        %v2367 = vpop.xlane.xlu0 %2366
        %v2368 = vmul.f32 %v2367, %v1464
        %v2369 = vadd.f32 %v2368, 1e-05
        %v2370 = vrsqrt.pop %v2369
        %v2371 = vmul.f32 %v2370, %v2369
        %v2372 = vmul.f32 %v2371, %v2370
        %v2373 = vmul.f32 0.5, %v2372
        %v2374 = vsub.f32 1.5, %v2373
        %v2375 = vmul.f32 %v2370, %v2374
        %vm2376 = vweird.f32 %v2369
        %vm2377 = vweird.f32 %v2370
        %vm2378 = vmor %vm2376, %vm2377
        %v2379 = vsel %vm2378, %v2370, %v2375
        %v2380 = vmul.f32 %v2363, %v2379
        %v2382 = vperm.slane %v2338, 0
        %v2384 = vmul.f32 %v2380, %v2382
        %v2386 = vperm.slane %v2340, 0
        %v2388 = vadd.f32 %v2384, %v2386
        %v2389 = vpack.c.bf16 %v2388, %v2388
        %v2391 = vperm.slane %v2347, 0
        %v2397 = vunpack.c.l.b16 %v2342
        %v2398 = vunpack.c.l.b16 %v2343
        %v2399 = vunpack.c.l.b16 %v2344
        %v2400 = vunpack.c.l.b16 %v2345
        %v2401 = vpack.c.b16 %v2398, %v2397
        %v2402 = vpack.c.b16 %v2400, %v2399
        %v2406 = vsel %vm1454, %v2389, 0
        %2408 = vmatpush.bf16.msra.mxu0 0
        %2409 = vmatpush.bf16.msra.mxu0 0
        %2410 = vmatpush.bf16.msra.mxu0 0
        %2411 = vmatpush.bf16.msra.mxu0 0
        %2412 = vmatpush.bf16.msra.mxu0 0
        %2413 = vmatpush.bf16.msra.mxu0 0
        %2414 = vmatpush.bf16.msra.mxu0 %v2402
        %2415 = vmatpush.bf16.msra.mxu0 %v2401
        %2416 = vmatmul.bf16.gmra.mxu0 %v2406
        %v2417 = vpop.f32.mrf.mxu0
        %v2418 = vadd.f32 %v2391, %v2417
        %v2419 = vpop.f32.mrf.mxu0
        %2420 = vdwg.mxu0
        %v2421 = vmul.f32 %v2418, 0.5
        %v2422 = vmul.f32 %v2418, 0.044715
        %v2423 = vmul.f32 %v2422, %v2418
        %v2424 = vmul.f32 %v2423, %v2418
        %v2425 = vadd.f32 %v2418, %v2424
        %v2426 = vmul.f32 %v2425, 0.7978846
        %v2427 = vtanh.pop %v2426
        %v2428 = vadd.f32 %v2427, 1.0
        %v2429 = vmul.f32 %v2421, %v2428
        %v2430 = vpack.c.bf16 %v2429, %v2429
        %v2439 = vunpack.c.l.b16 %v2349
        %v2440 = vunpack.c.l.b16 %v2350
        %v2441 = vunpack.c.l.b16 %v2351
        %v2442 = vunpack.c.l.b16 %v2352
        %v2443 = vunpack.c.l.b16 %v2353
        %v2444 = vunpack.c.l.b16 %v2354
        %v2445 = vunpack.c.l.b16 %v2355
        %v2446 = vunpack.c.l.b16 %v2356
        %v2447 = vpack.c.b16 %v2440, %v2439
        %v2448 = vpack.c.b16 %v2442, %v2441
        %v2449 = vpack.c.b16 %v2444, %v2443
        %v2450 = vpack.c.b16 %v2446, %v2445
        %v2456 = vsel %vm1960, %v2430, 0
        %2458 = vmatpush.bf16.msra.mxu0 0
        %2459 = vmatpush.bf16.msra.mxu0 0
        %2460 = vmatpush.bf16.msra.mxu0 0
        %2461 = vmatpush.bf16.msra.mxu0 0
        %2462 = vmatpush.bf16.msra.mxu0 %v2450
        %2463 = vmatpush.bf16.msra.mxu0 %v2449
        %2464 = vmatpush.bf16.msra.mxu0 %v2448
        %2465 = vmatpush.bf16.msra.mxu0 %v2447
        %2466 = vmatmul.bf16.gmra.mxu0 %v2456
        %v2467 = vpop.f32.mrf.mxu0
        %v2468 = vadd.f32 0.0, %v2467
        %v2469 = vpop.f32.mrf.mxu0
        %2470 = vdwg.mxu0
        %v2471 = vadd.f32 %v2336, %v2468
        %v2473 = vperm.slane %v2358, 0
        %v2475 = vadd.f32 %v2471, %v2473
        %v2476 = vld [vmem:[%s37] sm:$0x1]
        %v2477 = vld [vmem:[%s39] sm:$0x1]
        %v2478 = vsel %vm1454, %v2475, 0.0
        %2479 = vadd.xlane.f32.xlu0 %v2478
        %v2480 = vpop.xlane.xlu0 %2479
        %v2481 = vmul.f32 %v2480, %v1464
        %v2482 = vsub.f32 %v2475, %v2481
        %v2483 = vmul.f32 %v2482, %v2482
        %v2484 = vsel %vm1454, %v2483, 0.0
        %2485 = vadd.xlane.f32.xlu0 %v2484
        %v2486 = vpop.xlane.xlu0 %2485
        %v2487 = vmul.f32 %v2486, %v1464
        %v2488 = vadd.f32 %v2487, 1e-05
        %v2489 = vrsqrt.pop %v2488
        %v2490 = vmul.f32 %v2489, %v2488
        %v2491 = vmul.f32 %v2490, %v2489
        %v2492 = vmul.f32 0.5, %v2491
        %v2493 = vsub.f32 1.5, %v2492
        %v2494 = vmul.f32 %v2489, %v2493
        %vm2495 = vweird.f32 %v2488
        %vm2496 = vweird.f32 %v2489
        %vm2497 = vmor %vm2495, %vm2496
        %v2498 = vsel %vm2497, %v2489, %v2494
        %v2499 = vmul.f32 %v2482, %v2498
        %v2501 = vperm.slane %v2476, 0
        %v2503 = vmul.f32 %v2499, %v2501
        %v2505 = vperm.slane %v2477, 0
        %v2507 = vadd.f32 %v2503, %v2505
        %v2508 = vpack.c.bf16 %v2507, %v2507
        %v2509 = vlaneseq
        %v2510 = vshrl.u32 %v2509, 7
        %v2511 = vlaneseq
        %v2512 = vand.u32 %v2511, 127
        %vm2513 = vcmp.gt.s32.totalorder %v2512, %v2510
        %v2514 = vsel %vm2513, -1e+09, 0.0
        %v2515 = vld [vmem:[%s1448] sm:$0x1]
        %v2517 = vperm.slane %v2515, 0
        %v2519 = vadd.f32 %v2517, %v2514
        %v2520 = vmax.f32 %v2519, -1e+09
        %v2521 = vld [vmem:[%s1442] sm:$0xff]
        %v2522 = vld [vmem:[%s41] sm:$0x1]
        %v2523 = vld [vmem:[%s43] sm:$0x1]
        %v2524 = vsel %vm1454, %v2521, 0.0
        %2525 = vadd.xlane.f32.xlu0 %v2524
        %v2526 = vpop.xlane.xlu0 %2525
        %v2527 = vmul.f32 %v2526, %v1464
        %v2528 = vsub.f32 %v2521, %v2527
        %v2529 = vmul.f32 %v2528, %v2528
        %v2530 = vsel %vm1454, %v2529, 0.0
        %2531 = vadd.xlane.f32.xlu0 %v2530
        %v2532 = vpop.xlane.xlu0 %2531
        %v2533 = vmul.f32 %v2532, %v1464
        %v2534 = vadd.f32 %v2533, 1e-05
        %v2535 = vrsqrt.pop %v2534
        %v2536 = vmul.f32 %v2535, %v2534
        %v2537 = vmul.f32 %v2536, %v2535
        %v2538 = vmul.f32 0.5, %v2537
        %v2539 = vsub.f32 1.5, %v2538
        %v2540 = vmul.f32 %v2535, %v2539
        %vm2541 = vweird.f32 %v2534
        %vm2542 = vweird.f32 %v2535
        %vm2543 = vmor %vm2541, %vm2542
        %v2544 = vsel %vm2543, %v2535, %v2540
        %v2545 = vmul.f32 %v2528, %v2544
        %v2547 = vperm.slane %v2522, 0
        %v2549 = vmul.f32 %v2545, %v2547
        %v2551 = vperm.slane %v2523, 0
        %v2553 = vadd.f32 %v2549, %v2551
        %v2554 = vld [vmem:[%s45] sm:$0x1]
        %v2555 = vld [vmem:[%s47] sm:$0x1]
        %v2556 = vld [vmem:[%s49] sm:$0xf]
        %v2557 = vld [vmem:[%s49 + $0x4] sm:$0xf]
        %v2558 = vld [vmem:[%s49 + $0x8] sm:$0xf]
        %v2559 = vld [vmem:[%s49 + $0xc] sm:$0xf]
        %v2560 = vld [vmem:[%s51] sm:$0x1]
        %v2561 = vld [vmem:[%s53] sm:$0xf]
        %v2562 = vld [vmem:[%s53 + $0x4] sm:$0xf]
        %v2563 = vld [vmem:[%s53 + $0x8] sm:$0xf]
        %v2564 = vld [vmem:[%s53 + $0xc] sm:$0xf]
        %v2565 = vld [vmem:[%s55] sm:$0x1]
        %v2566 = vsel %vm1454, %v2553, 0.0
        %2567 = vadd.xlane.f32.xlu0 %v2566
        %v2568 = vpop.xlane.xlu0 %2567
        %v2569 = vmul.f32 %v2568, %v1464
        %v2570 = vsub.f32 %v2553, %v2569
        %v2571 = vmul.f32 %v2570, %v2570
        %v2572 = vsel %vm1454, %v2571, 0.0
        %2573 = vadd.xlane.f32.xlu0 %v2572
        %v2574 = vpop.xlane.xlu0 %2573
        %v2575 = vmul.f32 %v2574, %v1464
        %v2576 = vadd.f32 %v2575, 1e-05
        %v2577 = vrsqrt.pop %v2576
        %v2578 = vmul.f32 %v2577, %v2576
        %v2579 = vmul.f32 %v2578, %v2577
        %v2580 = vmul.f32 0.5, %v2579
        %v2581 = vsub.f32 1.5, %v2580
        %v2582 = vmul.f32 %v2577, %v2581
        %vm2583 = vweird.f32 %v2576
        %vm2584 = vweird.f32 %v2577
        %vm2585 = vmor %vm2583, %vm2584
        %v2586 = vsel %vm2585, %v2577, %v2582
        %v2587 = vmul.f32 %v2570, %v2586
        %v2589 = vperm.slane %v2554, 0
        %v2591 = vmul.f32 %v2587, %v2589
        %v2593 = vperm.slane %v2555, 0
        %v2595 = vadd.f32 %v2591, %v2593
        %v2596 = vpack.c.bf16 %v2595, %v2595
        %v2598 = vperm.slane %v2560, 0
        %v2604 = vunpack.c.l.b16 %v2556
        %v2605 = vunpack.c.l.b16 %v2557
        %v2606 = vunpack.c.l.b16 %v2558
        %v2607 = vunpack.c.l.b16 %v2559
        %v2608 = vpack.c.b16 %v2605, %v2604
        %v2609 = vpack.c.b16 %v2607, %v2606
        %v2613 = vsel %vm1454, %v2596, 0
        %2615 = vmatpush.bf16.msra.mxu0 0
        %2616 = vmatpush.bf16.msra.mxu0 0
        %2617 = vmatpush.bf16.msra.mxu0 0
        %2618 = vmatpush.bf16.msra.mxu0 0
        %2619 = vmatpush.bf16.msra.mxu0 0
        %2620 = vmatpush.bf16.msra.mxu0 0
        %2621 = vmatpush.bf16.msra.mxu0 %v2609
        %2622 = vmatpush.bf16.msra.mxu0 %v2608
        %2623 = vmatmul.bf16.gmra.mxu0 %v2613
        %v2624 = vpop.f32.mrf.mxu0
        %v2625 = vadd.f32 %v2598, %v2624
        %v2626 = vpop.f32.mrf.mxu0
        %2627 = vdwg.mxu0
        %v2628 = vpack.c.bf16 %v2625, %v2625
        %v2630 = vunpack.c.l.b16 %v2628
        %v2631 = vpack.c.b16 %v2630, %v2630
        %2632 = vrot.lane.b32.xlu0 %v2631, 96
        %v2633 = vpop.permute.xlu0 %2632
        %v2635 = vsel %vm1575, %v2628, 0
        %v2638 = vsel %vm1575, %v2633, 0
        %2640 = vmatpush.bf16.xpose.msra.mxu0 0
        %2641 = vmatpush.bf16.xpose.msra.mxu0 0
        %2642 = vmatpush.bf16.xpose.msra.mxu0 0
        %2643 = vmatpush.bf16.xpose.msra.mxu0 0
        %2644 = vmatpush.bf16.xpose.msra.mxu0 0
        %2645 = vmatpush.bf16.xpose.msra.mxu0 0
        %2646 = vmatpush.bf16.xpose.msra.mxu0 0
        %2647 = vmatpush.bf16.xpose.msra.mxu0 %v2638
        %2648 = vmatmul.bf16.gmra.mxu0 %v2635
        %v2649 = vpop.f32.mrf.mxu0
        %v2650 = vadd.f32 %v2520, %v2649
        %v2651 = vpop.f32.mrf.mxu0
        %2652 = vdwg.mxu0
        %v2653 = vsel %vm1575, %v2650, -inf
        %2654 = vmax.xlane.f32.xlu0 %v2653
        %v2655 = vpop.xlane.xlu0 %2654
        %v2656 = vsub.f32 %v2650, %v2655
        %v2657 = vmul.f32 %v2656, 1.442695
        %v2658 = vpow.pop %v2657
        %v2659 = vsel %vm1575, %v2658, 0.0
        %2660 = vadd.xlane.f32.xlu0 %v2659
        %v2661 = vpop.xlane.xlu0 %2660
        %v2662 = vrcp.pop %v2661
        %v2663 = vmul.f32 %v2658, %v2662
        %v2664 = vpack.c.bf16 %v2663, %v2663
        %2665 = vrot.lane.b32.xlu0 %v2631, 64
        %v2666 = vpop.permute.xlu0 %2665
        %v2668 = vsel %vm1575, %v2664, 0
        %v2671 = vsel %vm1612, %v2666, 0
        %2673 = vmatpush.bf16.msra.mxu0 0
        %2674 = vmatpush.bf16.msra.mxu0 0
        %2675 = vmatpush.bf16.msra.mxu0 0
        %2676 = vmatpush.bf16.msra.mxu0 0
        %2677 = vmatpush.bf16.msra.mxu0 0
        %2678 = vmatpush.bf16.msra.mxu0 0
        %2679 = vmatpush.bf16.msra.mxu0 0
        %2680 = vmatpush.bf16.msra.mxu0 %v2671
        %2681 = vmatmul.bf16.gmra.mxu0 %v2668
        %v2682 = vpop.f32.mrf.mxu0
        %v2683 = vadd.f32 0.0, %v2682
        %v2684 = vpop.f32.mrf.mxu0
        %2685 = vdwg.mxu0
        %2686 = vrot.lane.b32.xlu0 %v2631, 120
        %v2687 = vpop.permute.xlu0 %2686
        %2688 = vrot.lane.b32.xlu0 %v2631, 88
        %v2689 = vpop.permute.xlu0 %2688
        %v2691 = vsel %vm1575, %v2687, 0
        %v2694 = vsel %vm1575, %v2689, 0
        %2696 = vmatpush.bf16.xpose.msra.mxu0 0
        %2697 = vmatpush.bf16.xpose.msra.mxu0 0
        %2698 = vmatpush.bf16.xpose.msra.mxu0 0
        %2699 = vmatpush.bf16.xpose.msra.mxu0 0
        %2700 = vmatpush.bf16.xpose.msra.mxu0 0
        %2701 = vmatpush.bf16.xpose.msra.mxu0 0
        %2702 = vmatpush.bf16.xpose.msra.mxu0 0
        %2703 = vmatpush.bf16.xpose.msra.mxu0 %v2694
        %2704 = vmatmul.bf16.gmra.mxu0 %v2691
        %v2705 = vpop.f32.mrf.mxu0
        %v2706 = vadd.f32 %v2520, %v2705
        %v2707 = vpop.f32.mrf.mxu0
        %2708 = vdwg.mxu0
        %v2709 = vsel %vm1575, %v2706, -inf
        %2710 = vmax.xlane.f32.xlu0 %v2709
        %v2711 = vpop.xlane.xlu0 %2710
        %v2712 = vsub.f32 %v2706, %v2711
        %v2713 = vmul.f32 %v2712, 1.442695
        %v2714 = vpow.pop %v2713
        %v2715 = vsel %vm1575, %v2714, 0.0
        %2716 = vadd.xlane.f32.xlu0 %v2715
        %v2717 = vpop.xlane.xlu0 %2716
        %v2718 = vrcp.pop %v2717
        %v2719 = vmul.f32 %v2714, %v2718
        %v2720 = vpack.c.bf16 %v2719, %v2719
        %2721 = vrot.lane.b32.xlu0 %v2631, 56
        %v2722 = vpop.permute.xlu0 %2721
        %v2724 = vsel %vm1575, %v2720, 0
        %v2727 = vsel %vm1612, %v2722, 0
        %2729 = vmatpush.bf16.msra.mxu0 0
        %2730 = vmatpush.bf16.msra.mxu0 0
        %2731 = vmatpush.bf16.msra.mxu0 0
        %2732 = vmatpush.bf16.msra.mxu0 0
        %2733 = vmatpush.bf16.msra.mxu0 0
        %2734 = vmatpush.bf16.msra.mxu0 0
        %2735 = vmatpush.bf16.msra.mxu0 0
        %2736 = vmatpush.bf16.msra.mxu0 %v2727
        %2737 = vmatmul.bf16.gmra.mxu0 %v2724
        %v2738 = vpop.f32.mrf.mxu0
        %v2739 = vadd.f32 0.0, %v2738
        %v2740 = vpop.f32.mrf.mxu0
        %2741 = vdwg.mxu0
        %2742 = vrot.lane.b32.xlu0 %v2631, 112
        %v2743 = vpop.permute.xlu0 %2742
        %2744 = vrot.lane.b32.xlu0 %v2631, 80
        %v2745 = vpop.permute.xlu0 %2744
        %v2747 = vsel %vm1575, %v2743, 0
        %v2750 = vsel %vm1575, %v2745, 0
        %2752 = vmatpush.bf16.xpose.msra.mxu0 0
        %2753 = vmatpush.bf16.xpose.msra.mxu0 0
        %2754 = vmatpush.bf16.xpose.msra.mxu0 0
        %2755 = vmatpush.bf16.xpose.msra.mxu0 0
        %2756 = vmatpush.bf16.xpose.msra.mxu0 0
        %2757 = vmatpush.bf16.xpose.msra.mxu0 0
        %2758 = vmatpush.bf16.xpose.msra.mxu0 0
        %2759 = vmatpush.bf16.xpose.msra.mxu0 %v2750
        %2760 = vmatmul.bf16.gmra.mxu0 %v2747
        %v2761 = vpop.f32.mrf.mxu0
        %v2762 = vadd.f32 %v2520, %v2761
        %v2763 = vpop.f32.mrf.mxu0
        %2764 = vdwg.mxu0
        %v2765 = vsel %vm1575, %v2762, -inf
        %2766 = vmax.xlane.f32.xlu0 %v2765
        %v2767 = vpop.xlane.xlu0 %2766
        %v2768 = vsub.f32 %v2762, %v2767
        %v2769 = vmul.f32 %v2768, 1.442695
        %v2770 = vpow.pop %v2769
        %v2771 = vsel %vm1575, %v2770, 0.0
        %2772 = vadd.xlane.f32.xlu0 %v2771
        %v2773 = vpop.xlane.xlu0 %2772
        %v2774 = vrcp.pop %v2773
        %v2775 = vmul.f32 %v2770, %v2774
        %v2776 = vpack.c.bf16 %v2775, %v2775
        %2777 = vrot.lane.b32.xlu0 %v2631, 48
        %v2778 = vpop.permute.xlu0 %2777
        %v2780 = vsel %vm1575, %v2776, 0
        %v2783 = vsel %vm1612, %v2778, 0
        %2785 = vmatpush.bf16.msra.mxu0 0
        %2786 = vmatpush.bf16.msra.mxu0 0
        %2787 = vmatpush.bf16.msra.mxu0 0
        %2788 = vmatpush.bf16.msra.mxu0 0
        %2789 = vmatpush.bf16.msra.mxu0 0
        %2790 = vmatpush.bf16.msra.mxu0 0
        %2791 = vmatpush.bf16.msra.mxu0 0
        %2792 = vmatpush.bf16.msra.mxu0 %v2783
        %2793 = vmatmul.bf16.gmra.mxu0 %v2780
        %v2794 = vpop.f32.mrf.mxu0
        %v2795 = vadd.f32 0.0, %v2794
        %v2796 = vpop.f32.mrf.mxu0
        %2797 = vdwg.mxu0
        %2798 = vrot.lane.b32.xlu0 %v2631, 104
        %v2799 = vpop.permute.xlu0 %2798
        %2800 = vrot.lane.b32.xlu0 %v2631, 72
        %v2801 = vpop.permute.xlu0 %2800
        %v2803 = vsel %vm1575, %v2799, 0
        %v2806 = vsel %vm1575, %v2801, 0
        %2808 = vmatpush.bf16.xpose.msra.mxu0 0
        %2809 = vmatpush.bf16.xpose.msra.mxu0 0
        %2810 = vmatpush.bf16.xpose.msra.mxu0 0
        %2811 = vmatpush.bf16.xpose.msra.mxu0 0
        %2812 = vmatpush.bf16.xpose.msra.mxu0 0
        %2813 = vmatpush.bf16.xpose.msra.mxu0 0
        %2814 = vmatpush.bf16.xpose.msra.mxu0 0
        %2815 = vmatpush.bf16.xpose.msra.mxu0 %v2806
        %2816 = vmatmul.bf16.gmra.mxu0 %v2803
        %v2817 = vpop.f32.mrf.mxu0
        %v2818 = vadd.f32 %v2520, %v2817
        %v2819 = vpop.f32.mrf.mxu0
        %2820 = vdwg.mxu0
        %v2821 = vsel %vm1575, %v2818, -inf
        %2822 = vmax.xlane.f32.xlu0 %v2821
        %v2823 = vpop.xlane.xlu0 %2822
        %v2824 = vsub.f32 %v2818, %v2823
        %v2825 = vmul.f32 %v2824, 1.442695
        %v2826 = vpow.pop %v2825
        %v2827 = vsel %vm1575, %v2826, 0.0
        %2828 = vadd.xlane.f32.xlu0 %v2827
        %v2829 = vpop.xlane.xlu0 %2828
        %v2830 = vrcp.pop %v2829
        %v2831 = vmul.f32 %v2826, %v2830
        %v2832 = vpack.c.bf16 %v2831, %v2831
        %2833 = vrot.lane.b32.xlu0 %v2631, 40
        %v2834 = vpop.permute.xlu0 %2833
        %v2836 = vsel %vm1575, %v2832, 0
        %v2839 = vsel %vm1612, %v2834, 0
        %2841 = vmatpush.bf16.msra.mxu0 0
        %2842 = vmatpush.bf16.msra.mxu0 0
        %2843 = vmatpush.bf16.msra.mxu0 0
        %2844 = vmatpush.bf16.msra.mxu0 0
        %2845 = vmatpush.bf16.msra.mxu0 0
        %2846 = vmatpush.bf16.msra.mxu0 0
        %2847 = vmatpush.bf16.msra.mxu0 0
        %2848 = vmatpush.bf16.msra.mxu0 %v2839
        %2849 = vmatmul.bf16.gmra.mxu0 %v2836
        %v2850 = vpop.f32.mrf.mxu0
        %v2851 = vadd.f32 0.0, %v2850
        %v2852 = vpop.f32.mrf.mxu0
        %2853 = vdwg.mxu0
        %2855 = vrot.lane.b32.xlu0 %v2739, 8
        %v2856 = vpop.permute.xlu0 %2855
        %2859 = vrot.lane.b32.xlu0 %v2795, 16
        %v2860 = vpop.permute.xlu0 %2859
        %2863 = vrot.lane.b32.xlu0 %v2851, 24
        %v2864 = vpop.permute.xlu0 %2863
        %v2866 = vsel %vm1575, %v2683, %v2856
        %v2867 = vsel %vm1810, %v2866, %v2860
        %v2868 = vsel %vm1812, %v2867, %v2864
        %v2869 = vpack.c.bf16 %v2868, %v2868
        %v2874 = vunpack.c.l.b16 %v2561
        %v2875 = vunpack.c.l.b16 %v2562
        %v2876 = vunpack.c.l.b16 %v2563
        %v2877 = vunpack.c.l.b16 %v2564
        %v2878 = vpack.c.b16 %v2875, %v2874
        %v2879 = vpack.c.b16 %v2877, %v2876
        %v2883 = vsel %vm1454, %v2869, 0
        %2885 = vmatpush.bf16.msra.mxu0 0
        %2886 = vmatpush.bf16.msra.mxu0 0
        %2887 = vmatpush.bf16.msra.mxu0 0
        %2888 = vmatpush.bf16.msra.mxu0 0
        %2889 = vmatpush.bf16.msra.mxu0 0
        %2890 = vmatpush.bf16.msra.mxu0 0
        %2891 = vmatpush.bf16.msra.mxu0 %v2879
        %2892 = vmatpush.bf16.msra.mxu0 %v2878
        %2893 = vmatmul.bf16.gmra.mxu0 %v2883
        %v2894 = vpop.f32.mrf.mxu0
        %v2895 = vadd.f32 0.0, %v2894
        %v2896 = vpop.f32.mrf.mxu0
        %2897 = vdwg.mxu0
        %v2898 = vadd.f32 %v2553, %v2895
        %v2900 = vperm.slane %v2565, 0
        %v2902 = vadd.f32 %v2898, %v2900
        %v2903 = vld [vmem:[%s69] sm:$0x1]
        %v2904 = vld [vmem:[%s71] sm:$0x1]
        %v2905 = vld [vmem:[%s73] sm:$0xf]
        %v2906 = vld [vmem:[%s73 + $0x4] sm:$0xf]
        %v2907 = vld [vmem:[%s73 + $0x8] sm:$0xf]
        %v2908 = vld [vmem:[%s73 + $0xc] sm:$0xf]
        %v2909 = vld [vmem:[%s75] sm:$0x1]
        %v2910 = vld [vmem:[%s77] sm:$0xf]
        %v2911 = vld [vmem:[%s77 + $0x4] sm:$0xf]
        %v2912 = vld [vmem:[%s77 + $0x8] sm:$0xf]
        %v2913 = vld [vmem:[%s77 + $0xc] sm:$0xf]
        %v2914 = vld [vmem:[%s79] sm:$0x1]
        %v2915 = vld [vmem:[%s81] sm:$0xf]
        %v2916 = vld [vmem:[%s81 + $0x4] sm:$0xf]
        %v2917 = vld [vmem:[%s81 + $0x8] sm:$0xf]
        %v2918 = vld [vmem:[%s81 + $0xc] sm:$0xf]
        %v2919 = vld [vmem:[%s83] sm:$0x1]
        %v2920 = vsel %vm1454, %v2902, 0.0
        %2921 = vadd.xlane.f32.xlu0 %v2920
        %v2922 = vpop.xlane.xlu0 %2921
        %v2923 = vmul.f32 %v2922, %v1464
        %v2924 = vsub.f32 %v2902, %v2923
        %v2925 = vmul.f32 %v2924, %v2924
        %v2926 = vsel %vm1454, %v2925, 0.0
        %2927 = vadd.xlane.f32.xlu0 %v2926
        %v2928 = vpop.xlane.xlu0 %2927
        %v2929 = vmul.f32 %v2928, %v1464
        %v2930 = vadd.f32 %v2929, 1e-05
        %v2931 = vrsqrt.pop %v2930
        %v2932 = vmul.f32 %v2931, %v2930
        %v2933 = vmul.f32 %v2932, %v2931
        %v2934 = vmul.f32 0.5, %v2933
        %v2935 = vsub.f32 1.5, %v2934
        %v2936 = vmul.f32 %v2931, %v2935
        %vm2937 = vweird.f32 %v2930
        %vm2938 = vweird.f32 %v2931
        %vm2939 = vmor %vm2937, %vm2938
        %v2940 = vsel %vm2939, %v2931, %v2936
        %v2941 = vmul.f32 %v2924, %v2940
        %v2943 = vperm.slane %v2903, 0
        %v2945 = vmul.f32 %v2941, %v2943
        %v2947 = vperm.slane %v2904, 0
        %v2949 = vadd.f32 %v2945, %v2947
        %v2950 = vpack.c.bf16 %v2949, %v2949
        %v2952 = vperm.slane %v2909, 0
        %v2958 = vunpack.c.l.b16 %v2905
        %v2959 = vunpack.c.l.b16 %v2906
        %v2960 = vunpack.c.l.b16 %v2907
        %v2961 = vunpack.c.l.b16 %v2908
        %v2962 = vpack.c.b16 %v2959, %v2958
        %v2963 = vpack.c.b16 %v2961, %v2960
        %v2967 = vsel %vm1454, %v2950, 0
        %2969 = vmatpush.bf16.msra.mxu0 0
        %2970 = vmatpush.bf16.msra.mxu0 0
        %2971 = vmatpush.bf16.msra.mxu0 0
        %2972 = vmatpush.bf16.msra.mxu0 0
        %2973 = vmatpush.bf16.msra.mxu0 0
        %2974 = vmatpush.bf16.msra.mxu0 0
        %2975 = vmatpush.bf16.msra.mxu0 %v2963
        %2976 = vmatpush.bf16.msra.mxu0 %v2962
        %2977 = vmatmul.bf16.gmra.mxu0 %v2967
        %v2978 = vpop.f32.mrf.mxu0
        %v2979 = vadd.f32 %v2952, %v2978
        %v2980 = vpop.f32.mrf.mxu0
        %2981 = vdwg.mxu0
        %v2983 = vperm.slane %v2914, 0
        %v2989 = vunpack.c.l.b16 %v2910
        %v2990 = vunpack.c.l.b16 %v2911
        %v2991 = vunpack.c.l.b16 %v2912
        %v2992 = vunpack.c.l.b16 %v2913
        %v2993 = vpack.c.b16 %v2990, %v2989
        %v2994 = vpack.c.b16 %v2992, %v2991
        %v2998 = vsel %vm1454, %v2508, 0
        %3000 = vmatpush.bf16.msra.mxu0 0
        %3001 = vmatpush.bf16.msra.mxu0 0
        %3002 = vmatpush.bf16.msra.mxu0 0
        %3003 = vmatpush.bf16.msra.mxu0 0
        %3004 = vmatpush.bf16.msra.mxu0 0
        %3005 = vmatpush.bf16.msra.mxu0 0
        %3006 = vmatpush.bf16.msra.mxu0 %v2994
        %3007 = vmatpush.bf16.msra.mxu0 %v2993
        %3008 = vmatmul.bf16.gmra.mxu0 %v2998
        %v3009 = vpop.f32.mrf.mxu0
        %v3010 = vadd.f32 %v2983, %v3009
        %v3011 = vpop.f32.mrf.mxu0
        %3012 = vdwg.mxu0
        %v3013 = vpack.c.bf16 %v2979, %v2979
        %v3014 = vpack.c.bf16 %v3010, %v3010
        %v3016 = vsel %vm1575, %v3013, 0
        %v3019 = vsel %vm1575, %v3014, 0
        %3021 = vmatpush.bf16.xpose.msra.mxu0 0
        %3022 = vmatpush.bf16.xpose.msra.mxu0 0
        %3023 = vmatpush.bf16.xpose.msra.mxu0 0
        %3024 = vmatpush.bf16.xpose.msra.mxu0 0
        %3025 = vmatpush.bf16.xpose.msra.mxu0 0
        %3026 = vmatpush.bf16.xpose.msra.mxu0 0
        %3027 = vmatpush.bf16.xpose.msra.mxu0 0
        %3028 = vmatpush.bf16.xpose.msra.mxu0 %v3019
        %3029 = vmatmul.bf16.gmra.mxu0 %v3016
        %v3030 = vpop.f32.mrf.mxu0
        %v3031 = vadd.f32 %v1568, %v3030
        %v3032 = vpop.f32.mrf.mxu0
        %3033 = vdwg.mxu0
        %v3034 = vsel %vm1575, %v3031, -inf
        %3035 = vmax.xlane.f32.xlu0 %v3034
        %v3036 = vpop.xlane.xlu0 %3035
        %v3037 = vsub.f32 %v3031, %v3036
        %v3038 = vmul.f32 %v3037, 1.442695
        %v3039 = vpow.pop %v3038
        %v3040 = vsel %vm1575, %v3039, 0.0
        %3041 = vadd.xlane.f32.xlu0 %v3040
        %v3042 = vpop.xlane.xlu0 %3041
        %v3043 = vrcp.pop %v3042
        %v3044 = vmul.f32 %v3039, %v3043
        %v3045 = vpack.c.bf16 %v3044, %v3044
        %v3047 = vunpack.c.l.b16 %v3014
        %v3048 = vpack.c.b16 %v3047, %v3047
        %3049 = vrot.lane.b32.xlu0 %v3048, 96
        %v3050 = vpop.permute.xlu0 %3049
        %v3052 = vsel %vm1575, %v3045, 0
        %v3055 = vsel %vm1612, %v3050, 0
        %3057 = vmatpush.bf16.msra.mxu0 0
        %3058 = vmatpush.bf16.msra.mxu0 0
        %3059 = vmatpush.bf16.msra.mxu0 0
        %3060 = vmatpush.bf16.msra.mxu0 0
        %3061 = vmatpush.bf16.msra.mxu0 0
        %3062 = vmatpush.bf16.msra.mxu0 0
        %3063 = vmatpush.bf16.msra.mxu0 0
        %3064 = vmatpush.bf16.msra.mxu0 %v3055
        %3065 = vmatmul.bf16.gmra.mxu0 %v3052
        %v3066 = vpop.f32.mrf.mxu0
        %v3067 = vadd.f32 0.0, %v3066
        %v3068 = vpop.f32.mrf.mxu0
        %3069 = vdwg.mxu0
        %v3071 = vunpack.c.l.b16 %v3013
        %v3072 = vpack.c.b16 %v3071, %v3071
        %3073 = vrot.lane.b32.xlu0 %v3072, 120
        %v3074 = vpop.permute.xlu0 %3073
        %3075 = vrot.lane.b32.xlu0 %v3048, 120
        %v3076 = vpop.permute.xlu0 %3075
        %v3078 = vsel %vm1575, %v3074, 0
        %v3081 = vsel %vm1575, %v3076, 0
        %3083 = vmatpush.bf16.xpose.msra.mxu0 0
        %3084 = vmatpush.bf16.xpose.msra.mxu0 0
        %3085 = vmatpush.bf16.xpose.msra.mxu0 0
        %3086 = vmatpush.bf16.xpose.msra.mxu0 0
        %3087 = vmatpush.bf16.xpose.msra.mxu0 0
        %3088 = vmatpush.bf16.xpose.msra.mxu0 0
        %3089 = vmatpush.bf16.xpose.msra.mxu0 0
        %3090 = vmatpush.bf16.xpose.msra.mxu0 %v3081
        %3091 = vmatmul.bf16.gmra.mxu0 %v3078
        %v3092 = vpop.f32.mrf.mxu0
        %v3093 = vadd.f32 %v1568, %v3092
        %v3094 = vpop.f32.mrf.mxu0
        %3095 = vdwg.mxu0
        %v3096 = vsel %vm1575, %v3093, -inf
        %3097 = vmax.xlane.f32.xlu0 %v3096
        %v3098 = vpop.xlane.xlu0 %3097
        %v3099 = vsub.f32 %v3093, %v3098
        %v3100 = vmul.f32 %v3099, 1.442695
        %v3101 = vpow.pop %v3100
        %v3102 = vsel %vm1575, %v3101, 0.0
        %3103 = vadd.xlane.f32.xlu0 %v3102
        %v3104 = vpop.xlane.xlu0 %3103
        %v3105 = vrcp.pop %v3104
        %v3106 = vmul.f32 %v3101, %v3105
        %v3107 = vpack.c.bf16 %v3106, %v3106
        %3108 = vrot.lane.b32.xlu0 %v3048, 88
        %v3109 = vpop.permute.xlu0 %3108
        %v3111 = vsel %vm1575, %v3107, 0
        %v3114 = vsel %vm1612, %v3109, 0
        %3116 = vmatpush.bf16.msra.mxu0 0
        %3117 = vmatpush.bf16.msra.mxu0 0
        %3118 = vmatpush.bf16.msra.mxu0 0
        %3119 = vmatpush.bf16.msra.mxu0 0
        %3120 = vmatpush.bf16.msra.mxu0 0
        %3121 = vmatpush.bf16.msra.mxu0 0
        %3122 = vmatpush.bf16.msra.mxu0 0
        %3123 = vmatpush.bf16.msra.mxu0 %v3114
        %3124 = vmatmul.bf16.gmra.mxu0 %v3111
        %v3125 = vpop.f32.mrf.mxu0
        %v3126 = vadd.f32 0.0, %v3125
        %v3127 = vpop.f32.mrf.mxu0
        %3128 = vdwg.mxu0
        %3129 = vrot.lane.b32.xlu0 %v3072, 112
        %v3130 = vpop.permute.xlu0 %3129
        %3131 = vrot.lane.b32.xlu0 %v3048, 112
        %v3132 = vpop.permute.xlu0 %3131
        %v3134 = vsel %vm1575, %v3130, 0
        %v3137 = vsel %vm1575, %v3132, 0
        %3139 = vmatpush.bf16.xpose.msra.mxu0 0
        %3140 = vmatpush.bf16.xpose.msra.mxu0 0
        %3141 = vmatpush.bf16.xpose.msra.mxu0 0
        %3142 = vmatpush.bf16.xpose.msra.mxu0 0
        %3143 = vmatpush.bf16.xpose.msra.mxu0 0
        %3144 = vmatpush.bf16.xpose.msra.mxu0 0
        %3145 = vmatpush.bf16.xpose.msra.mxu0 0
        %3146 = vmatpush.bf16.xpose.msra.mxu0 %v3137
        %3147 = vmatmul.bf16.gmra.mxu0 %v3134
        %v3148 = vpop.f32.mrf.mxu0
        %v3149 = vadd.f32 %v1568, %v3148
        %v3150 = vpop.f32.mrf.mxu0
        %3151 = vdwg.mxu0
        %v3152 = vsel %vm1575, %v3149, -inf
        %3153 = vmax.xlane.f32.xlu0 %v3152
        %v3154 = vpop.xlane.xlu0 %3153
        %v3155 = vsub.f32 %v3149, %v3154
        %v3156 = vmul.f32 %v3155, 1.442695
        %v3157 = vpow.pop %v3156
        %v3158 = vsel %vm1575, %v3157, 0.0
        %3159 = vadd.xlane.f32.xlu0 %v3158
        %v3160 = vpop.xlane.xlu0 %3159
        %v3161 = vrcp.pop %v3160
        %v3162 = vmul.f32 %v3157, %v3161
        %v3163 = vpack.c.bf16 %v3162, %v3162
        %3164 = vrot.lane.b32.xlu0 %v3048, 80
        %v3165 = vpop.permute.xlu0 %3164
        %v3167 = vsel %vm1575, %v3163, 0
        %v3170 = vsel %vm1612, %v3165, 0
        %3172 = vmatpush.bf16.msra.mxu0 0
        %3173 = vmatpush.bf16.msra.mxu0 0
        %3174 = vmatpush.bf16.msra.mxu0 0
        %3175 = vmatpush.bf16.msra.mxu0 0
        %3176 = vmatpush.bf16.msra.mxu0 0
        %3177 = vmatpush.bf16.msra.mxu0 0
        %3178 = vmatpush.bf16.msra.mxu0 0
        %3179 = vmatpush.bf16.msra.mxu0 %v3170
        %3180 = vmatmul.bf16.gmra.mxu0 %v3167
        %v3181 = vpop.f32.mrf.mxu0
        %v3182 = vadd.f32 0.0, %v3181
        %v3183 = vpop.f32.mrf.mxu0
        %3184 = vdwg.mxu0
        %3185 = vrot.lane.b32.xlu0 %v3072, 104
        %v3186 = vpop.permute.xlu0 %3185
        %3187 = vrot.lane.b32.xlu0 %v3048, 104
        %v3188 = vpop.permute.xlu0 %3187
        %v3190 = vsel %vm1575, %v3186, 0
        %v3193 = vsel %vm1575, %v3188, 0
        %3195 = vmatpush.bf16.xpose.msra.mxu0 0
        %3196 = vmatpush.bf16.xpose.msra.mxu0 0
        %3197 = vmatpush.bf16.xpose.msra.mxu0 0
        %3198 = vmatpush.bf16.xpose.msra.mxu0 0
        %3199 = vmatpush.bf16.xpose.msra.mxu0 0
        %3200 = vmatpush.bf16.xpose.msra.mxu0 0
        %3201 = vmatpush.bf16.xpose.msra.mxu0 0
        %3202 = vmatpush.bf16.xpose.msra.mxu0 %v3193
        %3203 = vmatmul.bf16.gmra.mxu0 %v3190
        %v3204 = vpop.f32.mrf.mxu0
        %v3205 = vadd.f32 %v1568, %v3204
        %v3206 = vpop.f32.mrf.mxu0
        %3207 = vdwg.mxu0
        %v3208 = vsel %vm1575, %v3205, -inf
        %3209 = vmax.xlane.f32.xlu0 %v3208
        %v3210 = vpop.xlane.xlu0 %3209
        %v3211 = vsub.f32 %v3205, %v3210
        %v3212 = vmul.f32 %v3211, 1.442695
        %v3213 = vpow.pop %v3212
        %v3214 = vsel %vm1575, %v3213, 0.0
        %3215 = vadd.xlane.f32.xlu0 %v3214
        %v3216 = vpop.xlane.xlu0 %3215
        %v3217 = vrcp.pop %v3216
        %v3218 = vmul.f32 %v3213, %v3217
        %v3219 = vpack.c.bf16 %v3218, %v3218
        %3220 = vrot.lane.b32.xlu0 %v3048, 72
        %v3221 = vpop.permute.xlu0 %3220
        %v3223 = vsel %vm1575, %v3219, 0
        %v3226 = vsel %vm1612, %v3221, 0
        %3228 = vmatpush.bf16.msra.mxu0 0
        %3229 = vmatpush.bf16.msra.mxu0 0
        %3230 = vmatpush.bf16.msra.mxu0 0
        %3231 = vmatpush.bf16.msra.mxu0 0
        %3232 = vmatpush.bf16.msra.mxu0 0
        %3233 = vmatpush.bf16.msra.mxu0 0
        %3234 = vmatpush.bf16.msra.mxu0 0
        %3235 = vmatpush.bf16.msra.mxu0 %v3226
        %3236 = vmatmul.bf16.gmra.mxu0 %v3223
        %v3237 = vpop.f32.mrf.mxu0
        %v3238 = vadd.f32 0.0, %v3237
        %v3239 = vpop.f32.mrf.mxu0
        %3240 = vdwg.mxu0
        %3242 = vrot.lane.b32.xlu0 %v3126, 8
        %v3243 = vpop.permute.xlu0 %3242
        %3246 = vrot.lane.b32.xlu0 %v3182, 16
        %v3247 = vpop.permute.xlu0 %3246
        %3250 = vrot.lane.b32.xlu0 %v3238, 24
        %v3251 = vpop.permute.xlu0 %3250
        %v3253 = vsel %vm1575, %v3067, %v3243
        %v3254 = vsel %vm1810, %v3253, %v3247
        %v3255 = vsel %vm1812, %v3254, %v3251
        %v3256 = vpack.c.bf16 %v3255, %v3255
        %v3261 = vunpack.c.l.b16 %v2915
        %v3262 = vunpack.c.l.b16 %v2916
        %v3263 = vunpack.c.l.b16 %v2917
        %v3264 = vunpack.c.l.b16 %v2918
        %v3265 = vpack.c.b16 %v3262, %v3261
        %v3266 = vpack.c.b16 %v3264, %v3263
        %v3270 = vsel %vm1454, %v3256, 0
        %3272 = vmatpush.bf16.msra.mxu0 0
        %3273 = vmatpush.bf16.msra.mxu0 0
        %3274 = vmatpush.bf16.msra.mxu0 0
        %3275 = vmatpush.bf16.msra.mxu0 0
        %3276 = vmatpush.bf16.msra.mxu0 0
        %3277 = vmatpush.bf16.msra.mxu0 0
        %3278 = vmatpush.bf16.msra.mxu0 %v3266
        %3279 = vmatpush.bf16.msra.mxu0 %v3265
        %3280 = vmatmul.bf16.gmra.mxu0 %v3270
        %v3281 = vpop.f32.mrf.mxu0
        %v3282 = vadd.f32 0.0, %v3281
        %v3283 = vpop.f32.mrf.mxu0
        %3284 = vdwg.mxu0
        %v3285 = vadd.f32 %v2902, %v3282
        %v3287 = vperm.slane %v2919, 0
        %v3289 = vadd.f32 %v3285, %v3287
        %v3290 = vld [vmem:[%s57] sm:$0x1]
        %v3291 = vld [vmem:[%s59] sm:$0x1]
        %v3292 = vld [vmem:[%s61] sm:$0xf]
        %v3293 = vld [vmem:[%s61 + $0x4] sm:$0xf]
        %v3294 = vld [vmem:[%s61 + $0x8] sm:$0xf]
        %v3295 = vld [vmem:[%s61 + $0xc] sm:$0xf]
        %v3296 = vld [vmem:[%s63] sm:$0x1]
        %v3297 = vld [vmem:[%s65] sm:$0xf]
        %v3298 = vld [vmem:[%s65 + $0x4] sm:$0xf]
        %v3299 = vld [vmem:[%s65 + $0x8] sm:$0xf]
        %v3300 = vld [vmem:[%s65 + $0xc] sm:$0xf]
        %v3301 = vld [vmem:[%s65 + $0x10] sm:$0xf]
        %v3302 = vld [vmem:[%s65 + $0x14] sm:$0xf]
        %v3303 = vld [vmem:[%s65 + $0x18] sm:$0xf]
        %v3304 = vld [vmem:[%s65 + $0x1c] sm:$0xf]
        %v3305 = vld [vmem:[%s67] sm:$0x1]
        %v3306 = vsel %vm1454, %v3289, 0.0
        %3307 = vadd.xlane.f32.xlu0 %v3306
        %v3308 = vpop.xlane.xlu0 %3307
        %v3309 = vmul.f32 %v3308, %v1464
        %v3310 = vsub.f32 %v3289, %v3309
        %v3311 = vmul.f32 %v3310, %v3310
        %v3312 = vsel %vm1454, %v3311, 0.0
        %3313 = vadd.xlane.f32.xlu0 %v3312
        %v3314 = vpop.xlane.xlu0 %3313
        %v3315 = vmul.f32 %v3314, %v1464
        %v3316 = vadd.f32 %v3315, 1e-05
        %v3317 = vrsqrt.pop %v3316
        %v3318 = vmul.f32 %v3317, %v3316
        %v3319 = vmul.f32 %v3318, %v3317
        %v3320 = vmul.f32 0.5, %v3319
        %v3321 = vsub.f32 1.5, %v3320
        %v3322 = vmul.f32 %v3317, %v3321
        %vm3323 = vweird.f32 %v3316
        %vm3324 = vweird.f32 %v3317
        %vm3325 = vmor %vm3323, %vm3324
        %v3326 = vsel %vm3325, %v3317, %v3322
        %v3327 = vmul.f32 %v3310, %v3326
        %v3329 = vperm.slane %v3290, 0
        %v3331 = vmul.f32 %v3327, %v3329
        %v3333 = vperm.slane %v3291, 0
        %v3335 = vadd.f32 %v3331, %v3333
        %v3336 = vpack.c.bf16 %v3335, %v3335
        %v3338 = vperm.slane %v3296, 0
        %v3344 = vunpack.c.l.b16 %v3292
        %v3345 = vunpack.c.l.b16 %v3293
        %v3346 = vunpack.c.l.b16 %v3294
        %v3347 = vunpack.c.l.b16 %v3295
        %v3348 = vpack.c.b16 %v3345, %v3344
        %v3349 = vpack.c.b16 %v3347, %v3346
        %v3353 = vsel %vm1454, %v3336, 0
        %3355 = vmatpush.bf16.msra.mxu0 0
        %3356 = vmatpush.bf16.msra.mxu0 0
        %3357 = vmatpush.bf16.msra.mxu0 0
        %3358 = vmatpush.bf16.msra.mxu0 0
        %3359 = vmatpush.bf16.msra.mxu0 0
        %3360 = vmatpush.bf16.msra.mxu0 0
        %3361 = vmatpush.bf16.msra.mxu0 %v3349
        %3362 = vmatpush.bf16.msra.mxu0 %v3348
        %3363 = vmatmul.bf16.gmra.mxu0 %v3353
        %v3364 = vpop.f32.mrf.mxu0
        %v3365 = vadd.f32 %v3338, %v3364
        %v3366 = vpop.f32.mrf.mxu0
        %3367 = vdwg.mxu0
        %v3368 = vmul.f32 %v3365, 0.5
        %v3369 = vmul.f32 %v3365, 0.044715
        %v3370 = vmul.f32 %v3369, %v3365
        %v3371 = vmul.f32 %v3370, %v3365
        %v3372 = vadd.f32 %v3365, %v3371
        %v3373 = vmul.f32 %v3372, 0.7978846
        %v3374 = vtanh.pop %v3373
        %v3375 = vadd.f32 %v3374, 1.0
        %v3376 = vmul.f32 %v3368, %v3375
        %v3377 = vpack.c.bf16 %v3376, %v3376
        %v3386 = vunpack.c.l.b16 %v3297
        %v3387 = vunpack.c.l.b16 %v3298
        %v3388 = vunpack.c.l.b16 %v3299
        %v3389 = vunpack.c.l.b16 %v3300
        %v3390 = vunpack.c.l.b16 %v3301
        %v3391 = vunpack.c.l.b16 %v3302
        %v3392 = vunpack.c.l.b16 %v3303
        %v3393 = vunpack.c.l.b16 %v3304
        %v3394 = vpack.c.b16 %v3387, %v3386
        %v3395 = vpack.c.b16 %v3389, %v3388
        %v3396 = vpack.c.b16 %v3391, %v3390
        %v3397 = vpack.c.b16 %v3393, %v3392
        %v3403 = vsel %vm1960, %v3377, 0
        %3405 = vmatpush.bf16.msra.mxu0 0
        %3406 = vmatpush.bf16.msra.mxu0 0
        %3407 = vmatpush.bf16.msra.mxu0 0
        %3408 = vmatpush.bf16.msra.mxu0 0
        %3409 = vmatpush.bf16.msra.mxu0 %v3397
        %3410 = vmatpush.bf16.msra.mxu0 %v3396
        %3411 = vmatpush.bf16.msra.mxu0 %v3395
        %3412 = vmatpush.bf16.msra.mxu0 %v3394
        %3413 = vmatmul.bf16.gmra.mxu0 %v3403
        %v3414 = vpop.f32.mrf.mxu0
        %v3415 = vadd.f32 0.0, %v3414
        %v3416 = vpop.f32.mrf.mxu0
        %3417 = vdwg.mxu0
        %v3418 = vadd.f32 %v3289, %v3415
        %v3420 = vperm.slane %v3305, 0
        %v3422 = vadd.f32 %v3418, %v3420
        %s3423 = scalar_lea.vmem %s45, 1
        %v3424 = vld [vmem:[%s3423] sm:$0x1]
        %s3425 = scalar_lea.vmem %s47, 1
        %v3426 = vld [vmem:[%s3425] sm:$0x1]
        %s3427 = scalar_lea.vmem %s49, 16
        %v3428 = vld [vmem:[%s3427] sm:$0xf]
        %v3429 = vld [vmem:[%s3427 + $0x4] sm:$0xf]
        %v3430 = vld [vmem:[%s3427 + $0x8] sm:$0xf]
        %v3431 = vld [vmem:[%s3427 + $0xc] sm:$0xf]
        %s3432 = scalar_lea.vmem %s51, 1
        %v3433 = vld [vmem:[%s3432] sm:$0x1]
        %s3434 = scalar_lea.vmem %s53, 16
        %v3435 = vld [vmem:[%s3434] sm:$0xf]
        %v3436 = vld [vmem:[%s3434 + $0x4] sm:$0xf]
        %v3437 = vld [vmem:[%s3434 + $0x8] sm:$0xf]
        %v3438 = vld [vmem:[%s3434 + $0xc] sm:$0xf]
        %s3439 = scalar_lea.vmem %s55, 1
        %v3440 = vld [vmem:[%s3439] sm:$0x1]
        %v3441 = vsel %vm1454, %v3422, 0.0
        %3442 = vadd.xlane.f32.xlu0 %v3441
        %v3443 = vpop.xlane.xlu0 %3442
        %v3444 = vmul.f32 %v3443, %v1464
        %v3445 = vsub.f32 %v3422, %v3444
        %v3446 = vmul.f32 %v3445, %v3445
        %v3447 = vsel %vm1454, %v3446, 0.0
        %3448 = vadd.xlane.f32.xlu0 %v3447
        %v3449 = vpop.xlane.xlu0 %3448
        %v3450 = vmul.f32 %v3449, %v1464
        %v3451 = vadd.f32 %v3450, 1e-05
        %v3452 = vrsqrt.pop %v3451
        %v3453 = vmul.f32 %v3452, %v3451
        %v3454 = vmul.f32 %v3453, %v3452
        %v3455 = vmul.f32 0.5, %v3454
        %v3456 = vsub.f32 1.5, %v3455
        %v3457 = vmul.f32 %v3452, %v3456
        %vm3458 = vweird.f32 %v3451
        %vm3459 = vweird.f32 %v3452
        %vm3460 = vmor %vm3458, %vm3459
        %v3461 = vsel %vm3460, %v3452, %v3457
        %v3462 = vmul.f32 %v3445, %v3461
        %v3464 = vperm.slane %v3424, 0
        %v3466 = vmul.f32 %v3462, %v3464
        %v3468 = vperm.slane %v3426, 0
        %v3470 = vadd.f32 %v3466, %v3468
        %v3471 = vpack.c.bf16 %v3470, %v3470
        %v3473 = vperm.slane %v3433, 0
        %v3479 = vunpack.c.l.b16 %v3428
        %v3480 = vunpack.c.l.b16 %v3429
        %v3481 = vunpack.c.l.b16 %v3430
        %v3482 = vunpack.c.l.b16 %v3431
        %v3483 = vpack.c.b16 %v3480, %v3479
        %v3484 = vpack.c.b16 %v3482, %v3481
        %v3488 = vsel %vm1454, %v3471, 0
        %3490 = vmatpush.bf16.msra.mxu0 0
        %3491 = vmatpush.bf16.msra.mxu0 0
        %3492 = vmatpush.bf16.msra.mxu0 0
        %3493 = vmatpush.bf16.msra.mxu0 0
        %3494 = vmatpush.bf16.msra.mxu0 0
        %3495 = vmatpush.bf16.msra.mxu0 0
        %3496 = vmatpush.bf16.msra.mxu0 %v3484
        %3497 = vmatpush.bf16.msra.mxu0 %v3483
        %3498 = vmatmul.bf16.gmra.mxu0 %v3488
        %v3499 = vpop.f32.mrf.mxu0
        %v3500 = vadd.f32 %v3473, %v3499
        %v3501 = vpop.f32.mrf.mxu0
        %3502 = vdwg.mxu0
        %v3503 = vpack.c.bf16 %v3500, %v3500
        %v3505 = vunpack.c.l.b16 %v3503
        %v3506 = vpack.c.b16 %v3505, %v3505
        %3507 = vrot.lane.b32.xlu0 %v3506, 96
        %v3508 = vpop.permute.xlu0 %3507
        %v3510 = vsel %vm1575, %v3503, 0
        %v3513 = vsel %vm1575, %v3508, 0
        %3515 = vmatpush.bf16.xpose.msra.mxu0 0
        %3516 = vmatpush.bf16.xpose.msra.mxu0 0
        %3517 = vmatpush.bf16.xpose.msra.mxu0 0
        %3518 = vmatpush.bf16.xpose.msra.mxu0 0
        %3519 = vmatpush.bf16.xpose.msra.mxu0 0
        %3520 = vmatpush.bf16.xpose.msra.mxu0 0
        %3521 = vmatpush.bf16.xpose.msra.mxu0 0
        %3522 = vmatpush.bf16.xpose.msra.mxu0 %v3513
        %3523 = vmatmul.bf16.gmra.mxu0 %v3510
        %v3524 = vpop.f32.mrf.mxu0
        %v3525 = vadd.f32 %v2520, %v3524
        %v3526 = vpop.f32.mrf.mxu0
        %3527 = vdwg.mxu0
        %v3528 = vsel %vm1575, %v3525, -inf
        %3529 = vmax.xlane.f32.xlu0 %v3528
        %v3530 = vpop.xlane.xlu0 %3529
        %v3531 = vsub.f32 %v3525, %v3530
        %v3532 = vmul.f32 %v3531, 1.442695
        %v3533 = vpow.pop %v3532
        %v3534 = vsel %vm1575, %v3533, 0.0
        %3535 = vadd.xlane.f32.xlu0 %v3534
        %v3536 = vpop.xlane.xlu0 %3535
        %v3537 = vrcp.pop %v3536
        %v3538 = vmul.f32 %v3533, %v3537
        %v3539 = vpack.c.bf16 %v3538, %v3538
        %3540 = vrot.lane.b32.xlu0 %v3506, 64
        %v3541 = vpop.permute.xlu0 %3540
        %v3543 = vsel %vm1575, %v3539, 0
        %v3546 = vsel %vm1612, %v3541, 0
        %3548 = vmatpush.bf16.msra.mxu0 0
        %3549 = vmatpush.bf16.msra.mxu0 0
        %3550 = vmatpush.bf16.msra.mxu0 0
        %3551 = vmatpush.bf16.msra.mxu0 0
        %3552 = vmatpush.bf16.msra.mxu0 0
        %3553 = vmatpush.bf16.msra.mxu0 0
        %3554 = vmatpush.bf16.msra.mxu0 0
        %3555 = vmatpush.bf16.msra.mxu0 %v3546
        %3556 = vmatmul.bf16.gmra.mxu0 %v3543
        %v3557 = vpop.f32.mrf.mxu0
        %v3558 = vadd.f32 0.0, %v3557
        %v3559 = vpop.f32.mrf.mxu0
        %3560 = vdwg.mxu0
        %3561 = vrot.lane.b32.xlu0 %v3506, 120
        %v3562 = vpop.permute.xlu0 %3561
        %3563 = vrot.lane.b32.xlu0 %v3506, 88
        %v3564 = vpop.permute.xlu0 %3563
        %v3566 = vsel %vm1575, %v3562, 0
        %v3569 = vsel %vm1575, %v3564, 0
        %3571 = vmatpush.bf16.xpose.msra.mxu0 0
        %3572 = vmatpush.bf16.xpose.msra.mxu0 0
        %3573 = vmatpush.bf16.xpose.msra.mxu0 0
        %3574 = vmatpush.bf16.xpose.msra.mxu0 0
        %3575 = vmatpush.bf16.xpose.msra.mxu0 0
        %3576 = vmatpush.bf16.xpose.msra.mxu0 0
        %3577 = vmatpush.bf16.xpose.msra.mxu0 0
        %3578 = vmatpush.bf16.xpose.msra.mxu0 %v3569
        %3579 = vmatmul.bf16.gmra.mxu0 %v3566
        %v3580 = vpop.f32.mrf.mxu0
        %v3581 = vadd.f32 %v2520, %v3580
        %v3582 = vpop.f32.mrf.mxu0
        %3583 = vdwg.mxu0
        %v3584 = vsel %vm1575, %v3581, -inf
        %3585 = vmax.xlane.f32.xlu0 %v3584
        %v3586 = vpop.xlane.xlu0 %3585
        %v3587 = vsub.f32 %v3581, %v3586
        %v3588 = vmul.f32 %v3587, 1.442695
        %v3589 = vpow.pop %v3588
        %v3590 = vsel %vm1575, %v3589, 0.0
        %3591 = vadd.xlane.f32.xlu0 %v3590
        %v3592 = vpop.xlane.xlu0 %3591
        %v3593 = vrcp.pop %v3592
        %v3594 = vmul.f32 %v3589, %v3593
        %v3595 = vpack.c.bf16 %v3594, %v3594
        %3596 = vrot.lane.b32.xlu0 %v3506, 56
        %v3597 = vpop.permute.xlu0 %3596
        %v3599 = vsel %vm1575, %v3595, 0
        %v3602 = vsel %vm1612, %v3597, 0
        %3604 = vmatpush.bf16.msra.mxu0 0
        %3605 = vmatpush.bf16.msra.mxu0 0
        %3606 = vmatpush.bf16.msra.mxu0 0
        %3607 = vmatpush.bf16.msra.mxu0 0
        %3608 = vmatpush.bf16.msra.mxu0 0
        %3609 = vmatpush.bf16.msra.mxu0 0
        %3610 = vmatpush.bf16.msra.mxu0 0
        %3611 = vmatpush.bf16.msra.mxu0 %v3602
        %3612 = vmatmul.bf16.gmra.mxu0 %v3599
        %v3613 = vpop.f32.mrf.mxu0
        %v3614 = vadd.f32 0.0, %v3613
        %v3615 = vpop.f32.mrf.mxu0
        %3616 = vdwg.mxu0
        %3617 = vrot.lane.b32.xlu0 %v3506, 112
        %v3618 = vpop.permute.xlu0 %3617
        %3619 = vrot.lane.b32.xlu0 %v3506, 80
        %v3620 = vpop.permute.xlu0 %3619
        %v3622 = vsel %vm1575, %v3618, 0
        %v3625 = vsel %vm1575, %v3620, 0
        %3627 = vmatpush.bf16.xpose.msra.mxu0 0
        %3628 = vmatpush.bf16.xpose.msra.mxu0 0
        %3629 = vmatpush.bf16.xpose.msra.mxu0 0
        %3630 = vmatpush.bf16.xpose.msra.mxu0 0
        %3631 = vmatpush.bf16.xpose.msra.mxu0 0
        %3632 = vmatpush.bf16.xpose.msra.mxu0 0
        %3633 = vmatpush.bf16.xpose.msra.mxu0 0
        %3634 = vmatpush.bf16.xpose.msra.mxu0 %v3625
        %3635 = vmatmul.bf16.gmra.mxu0 %v3622
        %v3636 = vpop.f32.mrf.mxu0
        %v3637 = vadd.f32 %v2520, %v3636
        %v3638 = vpop.f32.mrf.mxu0
        %3639 = vdwg.mxu0
        %v3640 = vsel %vm1575, %v3637, -inf
        %3641 = vmax.xlane.f32.xlu0 %v3640
        %v3642 = vpop.xlane.xlu0 %3641
        %v3643 = vsub.f32 %v3637, %v3642
        %v3644 = vmul.f32 %v3643, 1.442695
        %v3645 = vpow.pop %v3644
        %v3646 = vsel %vm1575, %v3645, 0.0
        %3647 = vadd.xlane.f32.xlu0 %v3646
        %v3648 = vpop.xlane.xlu0 %3647
        %v3649 = vrcp.pop %v3648
        %v3650 = vmul.f32 %v3645, %v3649
        %v3651 = vpack.c.bf16 %v3650, %v3650
        %3652 = vrot.lane.b32.xlu0 %v3506, 48
        %v3653 = vpop.permute.xlu0 %3652
        %v3655 = vsel %vm1575, %v3651, 0
        %v3658 = vsel %vm1612, %v3653, 0
        %3660 = vmatpush.bf16.msra.mxu0 0
        %3661 = vmatpush.bf16.msra.mxu0 0
        %3662 = vmatpush.bf16.msra.mxu0 0
        %3663 = vmatpush.bf16.msra.mxu0 0
        %3664 = vmatpush.bf16.msra.mxu0 0
        %3665 = vmatpush.bf16.msra.mxu0 0
        %3666 = vmatpush.bf16.msra.mxu0 0
        %3667 = vmatpush.bf16.msra.mxu0 %v3658
        %3668 = vmatmul.bf16.gmra.mxu0 %v3655
        %v3669 = vpop.f32.mrf.mxu0
        %v3670 = vadd.f32 0.0, %v3669
        %v3671 = vpop.f32.mrf.mxu0
        %3672 = vdwg.mxu0
        %3673 = vrot.lane.b32.xlu0 %v3506, 104
        %v3674 = vpop.permute.xlu0 %3673
        %3675 = vrot.lane.b32.xlu0 %v3506, 72
        %v3676 = vpop.permute.xlu0 %3675
        %v3678 = vsel %vm1575, %v3674, 0
        %v3681 = vsel %vm1575, %v3676, 0
        %3683 = vmatpush.bf16.xpose.msra.mxu0 0
        %3684 = vmatpush.bf16.xpose.msra.mxu0 0
        %3685 = vmatpush.bf16.xpose.msra.mxu0 0
        %3686 = vmatpush.bf16.xpose.msra.mxu0 0
        %3687 = vmatpush.bf16.xpose.msra.mxu0 0
        %3688 = vmatpush.bf16.xpose.msra.mxu0 0
        %3689 = vmatpush.bf16.xpose.msra.mxu0 0
        %3690 = vmatpush.bf16.xpose.msra.mxu0 %v3681
        %3691 = vmatmul.bf16.gmra.mxu0 %v3678
        %v3692 = vpop.f32.mrf.mxu0
        %v3693 = vadd.f32 %v2520, %v3692
        %v3694 = vpop.f32.mrf.mxu0
        %3695 = vdwg.mxu0
        %v3696 = vsel %vm1575, %v3693, -inf
        %3697 = vmax.xlane.f32.xlu0 %v3696
        %v3698 = vpop.xlane.xlu0 %3697
        %v3699 = vsub.f32 %v3693, %v3698
        %v3700 = vmul.f32 %v3699, 1.442695
        %v3701 = vpow.pop %v3700
        %v3702 = vsel %vm1575, %v3701, 0.0
        %3703 = vadd.xlane.f32.xlu0 %v3702
        %v3704 = vpop.xlane.xlu0 %3703
        %v3705 = vrcp.pop %v3704
        %v3706 = vmul.f32 %v3701, %v3705
        %v3707 = vpack.c.bf16 %v3706, %v3706
        %3708 = vrot.lane.b32.xlu0 %v3506, 40
        %v3709 = vpop.permute.xlu0 %3708
        %v3711 = vsel %vm1575, %v3707, 0
        %v3714 = vsel %vm1612, %v3709, 0
        %3716 = vmatpush.bf16.msra.mxu0 0
        %3717 = vmatpush.bf16.msra.mxu0 0
        %3718 = vmatpush.bf16.msra.mxu0 0
        %3719 = vmatpush.bf16.msra.mxu0 0
        %3720 = vmatpush.bf16.msra.mxu0 0
        %3721 = vmatpush.bf16.msra.mxu0 0
        %3722 = vmatpush.bf16.msra.mxu0 0
        %3723 = vmatpush.bf16.msra.mxu0 %v3714
        %3724 = vmatmul.bf16.gmra.mxu0 %v3711
        %v3725 = vpop.f32.mrf.mxu0
        %v3726 = vadd.f32 0.0, %v3725
        %v3727 = vpop.f32.mrf.mxu0
        %3728 = vdwg.mxu0
        %3730 = vrot.lane.b32.xlu0 %v3614, 8
        %v3731 = vpop.permute.xlu0 %3730
        %3734 = vrot.lane.b32.xlu0 %v3670, 16
        %v3735 = vpop.permute.xlu0 %3734
        %3738 = vrot.lane.b32.xlu0 %v3726, 24
        %v3739 = vpop.permute.xlu0 %3738
        %v3741 = vsel %vm1575, %v3558, %v3731
        %v3742 = vsel %vm1810, %v3741, %v3735
        %v3743 = vsel %vm1812, %v3742, %v3739
        %v3744 = vpack.c.bf16 %v3743, %v3743
        %v3749 = vunpack.c.l.b16 %v3435
        %v3750 = vunpack.c.l.b16 %v3436
        %v3751 = vunpack.c.l.b16 %v3437
        %v3752 = vunpack.c.l.b16 %v3438
        %v3753 = vpack.c.b16 %v3750, %v3749
        %v3754 = vpack.c.b16 %v3752, %v3751
        %v3758 = vsel %vm1454, %v3744, 0
        %3760 = vmatpush.bf16.msra.mxu0 0
        %3761 = vmatpush.bf16.msra.mxu0 0
        %3762 = vmatpush.bf16.msra.mxu0 0
        %3763 = vmatpush.bf16.msra.mxu0 0
        %3764 = vmatpush.bf16.msra.mxu0 0
        %3765 = vmatpush.bf16.msra.mxu0 0
        %3766 = vmatpush.bf16.msra.mxu0 %v3754
        %3767 = vmatpush.bf16.msra.mxu0 %v3753
        %3768 = vmatmul.bf16.gmra.mxu0 %v3758
        %v3769 = vpop.f32.mrf.mxu0
        %v3770 = vadd.f32 0.0, %v3769
        %v3771 = vpop.f32.mrf.mxu0
        %3772 = vdwg.mxu0
        %v3773 = vadd.f32 %v3422, %v3770
        %v3775 = vperm.slane %v3440, 0
        %v3777 = vadd.f32 %v3773, %v3775
        %s3778 = scalar_lea.vmem %s69, 1
        %v3779 = vld [vmem:[%s3778] sm:$0x1]
        %s3780 = scalar_lea.vmem %s71, 1
        %v3781 = vld [vmem:[%s3780] sm:$0x1]
        %s3782 = scalar_lea.vmem %s73, 16
        %v3783 = vld [vmem:[%s3782] sm:$0xf]
        %v3784 = vld [vmem:[%s3782 + $0x4] sm:$0xf]
        %v3785 = vld [vmem:[%s3782 + $0x8] sm:$0xf]
        %v3786 = vld [vmem:[%s3782 + $0xc] sm:$0xf]
        %s3787 = scalar_lea.vmem %s75, 1
        %v3788 = vld [vmem:[%s3787] sm:$0x1]
        %s3789 = scalar_lea.vmem %s77, 16
        %v3790 = vld [vmem:[%s3789] sm:$0xf]
        %v3791 = vld [vmem:[%s3789 + $0x4] sm:$0xf]
        %v3792 = vld [vmem:[%s3789 + $0x8] sm:$0xf]
        %v3793 = vld [vmem:[%s3789 + $0xc] sm:$0xf]
        %s3794 = scalar_lea.vmem %s79, 1
        %v3795 = vld [vmem:[%s3794] sm:$0x1]
        %s3796 = scalar_lea.vmem %s81, 16
        %v3797 = vld [vmem:[%s3796] sm:$0xf]
        %v3798 = vld [vmem:[%s3796 + $0x4] sm:$0xf]
        %v3799 = vld [vmem:[%s3796 + $0x8] sm:$0xf]
        %v3800 = vld [vmem:[%s3796 + $0xc] sm:$0xf]
        %s3801 = scalar_lea.vmem %s83, 1
        %v3802 = vld [vmem:[%s3801] sm:$0x1]
        %v3803 = vsel %vm1454, %v3777, 0.0
        %3804 = vadd.xlane.f32.xlu0 %v3803
        %v3805 = vpop.xlane.xlu0 %3804
        %v3806 = vmul.f32 %v3805, %v1464
        %v3807 = vsub.f32 %v3777, %v3806
        %v3808 = vmul.f32 %v3807, %v3807
        %v3809 = vsel %vm1454, %v3808, 0.0
        %3810 = vadd.xlane.f32.xlu0 %v3809
        %v3811 = vpop.xlane.xlu0 %3810
        %v3812 = vmul.f32 %v3811, %v1464
        %v3813 = vadd.f32 %v3812, 1e-05
        %v3814 = vrsqrt.pop %v3813
        %v3815 = vmul.f32 %v3814, %v3813
        %v3816 = vmul.f32 %v3815, %v3814
        %v3817 = vmul.f32 0.5, %v3816
        %v3818 = vsub.f32 1.5, %v3817
        %v3819 = vmul.f32 %v3814, %v3818
        %vm3820 = vweird.f32 %v3813
        %vm3821 = vweird.f32 %v3814
        %vm3822 = vmor %vm3820, %vm3821
        %v3823 = vsel %vm3822, %v3814, %v3819
        %v3824 = vmul.f32 %v3807, %v3823
        %v3826 = vperm.slane %v3779, 0
        %v3828 = vmul.f32 %v3824, %v3826
        %v3830 = vperm.slane %v3781, 0
        %v3832 = vadd.f32 %v3828, %v3830
        %v3833 = vpack.c.bf16 %v3832, %v3832
        %v3835 = vperm.slane %v3788, 0
        %v3841 = vunpack.c.l.b16 %v3783
        %v3842 = vunpack.c.l.b16 %v3784
        %v3843 = vunpack.c.l.b16 %v3785
        %v3844 = vunpack.c.l.b16 %v3786
        %v3845 = vpack.c.b16 %v3842, %v3841
        %v3846 = vpack.c.b16 %v3844, %v3843
        %v3850 = vsel %vm1454, %v3833, 0
        %3852 = vmatpush.bf16.msra.mxu0 0
        %3853 = vmatpush.bf16.msra.mxu0 0
        %3854 = vmatpush.bf16.msra.mxu0 0
        %3855 = vmatpush.bf16.msra.mxu0 0
        %3856 = vmatpush.bf16.msra.mxu0 0
        %3857 = vmatpush.bf16.msra.mxu0 0
        %3858 = vmatpush.bf16.msra.mxu0 %v3846
        %3859 = vmatpush.bf16.msra.mxu0 %v3845
        %3860 = vmatmul.bf16.gmra.mxu0 %v3850
        %v3861 = vpop.f32.mrf.mxu0
        %v3862 = vadd.f32 %v3835, %v3861
        %v3863 = vpop.f32.mrf.mxu0
        %3864 = vdwg.mxu0
        %v3866 = vperm.slane %v3795, 0
        %v3872 = vunpack.c.l.b16 %v3790
        %v3873 = vunpack.c.l.b16 %v3791
        %v3874 = vunpack.c.l.b16 %v3792
        %v3875 = vunpack.c.l.b16 %v3793
        %v3876 = vpack.c.b16 %v3873, %v3872
        %v3877 = vpack.c.b16 %v3875, %v3874
        %3880 = vmatpush.bf16.msra.mxu0 0
        %3881 = vmatpush.bf16.msra.mxu0 0
        %3882 = vmatpush.bf16.msra.mxu0 0
        %3883 = vmatpush.bf16.msra.mxu0 0
        %3884 = vmatpush.bf16.msra.mxu0 0
        %3885 = vmatpush.bf16.msra.mxu0 0
        %3886 = vmatpush.bf16.msra.mxu0 %v3877
        %3887 = vmatpush.bf16.msra.mxu0 %v3876
        %3888 = vmatmul.bf16.gmra.mxu0 %v2998
        %v3889 = vpop.f32.mrf.mxu0
        %v3890 = vadd.f32 %v3866, %v3889
        %v3891 = vpop.f32.mrf.mxu0
        %3892 = vdwg.mxu0
        %v3893 = vpack.c.bf16 %v3862, %v3862
        %v3894 = vpack.c.bf16 %v3890, %v3890
        %v3896 = vsel %vm1575, %v3893, 0
        %v3899 = vsel %vm1575, %v3894, 0
        %3901 = vmatpush.bf16.xpose.msra.mxu0 0
        %3902 = vmatpush.bf16.xpose.msra.mxu0 0
        %3903 = vmatpush.bf16.xpose.msra.mxu0 0
        %3904 = vmatpush.bf16.xpose.msra.mxu0 0
        %3905 = vmatpush.bf16.xpose.msra.mxu0 0
        %3906 = vmatpush.bf16.xpose.msra.mxu0 0
        %3907 = vmatpush.bf16.xpose.msra.mxu0 0
        %3908 = vmatpush.bf16.xpose.msra.mxu0 %v3899
        %3909 = vmatmul.bf16.gmra.mxu0 %v3896
        %v3910 = vpop.f32.mrf.mxu0
        %v3911 = vadd.f32 %v1568, %v3910
        %v3912 = vpop.f32.mrf.mxu0
        %3913 = vdwg.mxu0
        %v3914 = vsel %vm1575, %v3911, -inf
        %3915 = vmax.xlane.f32.xlu0 %v3914
        %v3916 = vpop.xlane.xlu0 %3915
        %v3917 = vsub.f32 %v3911, %v3916
        %v3918 = vmul.f32 %v3917, 1.442695
        %v3919 = vpow.pop %v3918
        %v3920 = vsel %vm1575, %v3919, 0.0
        %3921 = vadd.xlane.f32.xlu0 %v3920
        %v3922 = vpop.xlane.xlu0 %3921
        %v3923 = vrcp.pop %v3922
        %v3924 = vmul.f32 %v3919, %v3923
        %v3925 = vpack.c.bf16 %v3924, %v3924
        %v3927 = vunpack.c.l.b16 %v3894
        %v3928 = vpack.c.b16 %v3927, %v3927
        %3929 = vrot.lane.b32.xlu0 %v3928, 96
        %v3930 = vpop.permute.xlu0 %3929
        %v3932 = vsel %vm1575, %v3925, 0
        %v3935 = vsel %vm1612, %v3930, 0
        %3937 = vmatpush.bf16.msra.mxu0 0
        %3938 = vmatpush.bf16.msra.mxu0 0
        %3939 = vmatpush.bf16.msra.mxu0 0
        %3940 = vmatpush.bf16.msra.mxu0 0
        %3941 = vmatpush.bf16.msra.mxu0 0
        %3942 = vmatpush.bf16.msra.mxu0 0
        %3943 = vmatpush.bf16.msra.mxu0 0
        %3944 = vmatpush.bf16.msra.mxu0 %v3935
        %3945 = vmatmul.bf16.gmra.mxu0 %v3932
        %v3946 = vpop.f32.mrf.mxu0
        %v3947 = vadd.f32 0.0, %v3946
        %v3948 = vpop.f32.mrf.mxu0
        %3949 = vdwg.mxu0
        %v3951 = vunpack.c.l.b16 %v3893
        %v3952 = vpack.c.b16 %v3951, %v3951
        %3953 = vrot.lane.b32.xlu0 %v3952, 120
        %v3954 = vpop.permute.xlu0 %3953
        %3955 = vrot.lane.b32.xlu0 %v3928, 120
        %v3956 = vpop.permute.xlu0 %3955
        %v3958 = vsel %vm1575, %v3954, 0
        %v3961 = vsel %vm1575, %v3956, 0
        %3963 = vmatpush.bf16.xpose.msra.mxu0 0
        %3964 = vmatpush.bf16.xpose.msra.mxu0 0
        %3965 = vmatpush.bf16.xpose.msra.mxu0 0
        %3966 = vmatpush.bf16.xpose.msra.mxu0 0
        %3967 = vmatpush.bf16.xpose.msra.mxu0 0
        %3968 = vmatpush.bf16.xpose.msra.mxu0 0
        %3969 = vmatpush.bf16.xpose.msra.mxu0 0
        %3970 = vmatpush.bf16.xpose.msra.mxu0 %v3961
        %3971 = vmatmul.bf16.gmra.mxu0 %v3958
        %v3972 = vpop.f32.mrf.mxu0
        %v3973 = vadd.f32 %v1568, %v3972
        %v3974 = vpop.f32.mrf.mxu0
        %3975 = vdwg.mxu0
        %v3976 = vsel %vm1575, %v3973, -inf
        %3977 = vmax.xlane.f32.xlu0 %v3976
        %v3978 = vpop.xlane.xlu0 %3977
        %v3979 = vsub.f32 %v3973, %v3978
        %v3980 = vmul.f32 %v3979, 1.442695
        %v3981 = vpow.pop %v3980
        %v3982 = vsel %vm1575, %v3981, 0.0
        %3983 = vadd.xlane.f32.xlu0 %v3982
        %v3984 = vpop.xlane.xlu0 %3983
        %v3985 = vrcp.pop %v3984
        %v3986 = vmul.f32 %v3981, %v3985
        %v3987 = vpack.c.bf16 %v3986, %v3986
        %3988 = vrot.lane.b32.xlu0 %v3928, 88
        %v3989 = vpop.permute.xlu0 %3988
        %v3991 = vsel %vm1575, %v3987, 0
        %v3994 = vsel %vm1612, %v3989, 0
        %3996 = vmatpush.bf16.msra.mxu0 0
        %3997 = vmatpush.bf16.msra.mxu0 0
        %3998 = vmatpush.bf16.msra.mxu0 0
        %3999 = vmatpush.bf16.msra.mxu0 0
        %4000 = vmatpush.bf16.msra.mxu0 0
        %4001 = vmatpush.bf16.msra.mxu0 0
        %4002 = vmatpush.bf16.msra.mxu0 0
        %4003 = vmatpush.bf16.msra.mxu0 %v3994
        %4004 = vmatmul.bf16.gmra.mxu0 %v3991
        %v4005 = vpop.f32.mrf.mxu0
        %v4006 = vadd.f32 0.0, %v4005
        %v4007 = vpop.f32.mrf.mxu0
        %4008 = vdwg.mxu0
        %4009 = vrot.lane.b32.xlu0 %v3952, 112
        %v4010 = vpop.permute.xlu0 %4009
        %4011 = vrot.lane.b32.xlu0 %v3928, 112
        %v4012 = vpop.permute.xlu0 %4011
        %v4014 = vsel %vm1575, %v4010, 0
        %v4017 = vsel %vm1575, %v4012, 0
        %4019 = vmatpush.bf16.xpose.msra.mxu0 0
        %4020 = vmatpush.bf16.xpose.msra.mxu0 0
        %4021 = vmatpush.bf16.xpose.msra.mxu0 0
        %4022 = vmatpush.bf16.xpose.msra.mxu0 0
        %4023 = vmatpush.bf16.xpose.msra.mxu0 0
        %4024 = vmatpush.bf16.xpose.msra.mxu0 0
        %4025 = vmatpush.bf16.xpose.msra.mxu0 0
        %4026 = vmatpush.bf16.xpose.msra.mxu0 %v4017
        %4027 = vmatmul.bf16.gmra.mxu0 %v4014
        %v4028 = vpop.f32.mrf.mxu0
        %v4029 = vadd.f32 %v1568, %v4028
        %v4030 = vpop.f32.mrf.mxu0
        %4031 = vdwg.mxu0
        %v4032 = vsel %vm1575, %v4029, -inf
        %4033 = vmax.xlane.f32.xlu0 %v4032
        %v4034 = vpop.xlane.xlu0 %4033
        %v4035 = vsub.f32 %v4029, %v4034
        %v4036 = vmul.f32 %v4035, 1.442695
        %v4037 = vpow.pop %v4036
        %v4038 = vsel %vm1575, %v4037, 0.0
        %4039 = vadd.xlane.f32.xlu0 %v4038
        %v4040 = vpop.xlane.xlu0 %4039
        %v4041 = vrcp.pop %v4040
        %v4042 = vmul.f32 %v4037, %v4041
        %v4043 = vpack.c.bf16 %v4042, %v4042
        %4044 = vrot.lane.b32.xlu0 %v3928, 80
        %v4045 = vpop.permute.xlu0 %4044
        %v4047 = vsel %vm1575, %v4043, 0
        %v4050 = vsel %vm1612, %v4045, 0
        %4052 = vmatpush.bf16.msra.mxu0 0
        %4053 = vmatpush.bf16.msra.mxu0 0
        %4054 = vmatpush.bf16.msra.mxu0 0
        %4055 = vmatpush.bf16.msra.mxu0 0
        %4056 = vmatpush.bf16.msra.mxu0 0
        %4057 = vmatpush.bf16.msra.mxu0 0
        %4058 = vmatpush.bf16.msra.mxu0 0
        %4059 = vmatpush.bf16.msra.mxu0 %v4050
        %4060 = vmatmul.bf16.gmra.mxu0 %v4047
        %v4061 = vpop.f32.mrf.mxu0
        %v4062 = vadd.f32 0.0, %v4061
        %v4063 = vpop.f32.mrf.mxu0
        %4064 = vdwg.mxu0
        %4065 = vrot.lane.b32.xlu0 %v3952, 104
        %v4066 = vpop.permute.xlu0 %4065
        %4067 = vrot.lane.b32.xlu0 %v3928, 104
        %v4068 = vpop.permute.xlu0 %4067
        %v4070 = vsel %vm1575, %v4066, 0
        %v4073 = vsel %vm1575, %v4068, 0
        %4075 = vmatpush.bf16.xpose.msra.mxu0 0
        %4076 = vmatpush.bf16.xpose.msra.mxu0 0
        %4077 = vmatpush.bf16.xpose.msra.mxu0 0
        %4078 = vmatpush.bf16.xpose.msra.mxu0 0
        %4079 = vmatpush.bf16.xpose.msra.mxu0 0
        %4080 = vmatpush.bf16.xpose.msra.mxu0 0
        %4081 = vmatpush.bf16.xpose.msra.mxu0 0
        %4082 = vmatpush.bf16.xpose.msra.mxu0 %v4073
        %4083 = vmatmul.bf16.gmra.mxu0 %v4070
        %v4084 = vpop.f32.mrf.mxu0
        %v4085 = vadd.f32 %v1568, %v4084
        %v4086 = vpop.f32.mrf.mxu0
        %4087 = vdwg.mxu0
        %v4088 = vsel %vm1575, %v4085, -inf
        %4089 = vmax.xlane.f32.xlu0 %v4088
        %v4090 = vpop.xlane.xlu0 %4089
        %v4091 = vsub.f32 %v4085, %v4090
        %v4092 = vmul.f32 %v4091, 1.442695
        %v4093 = vpow.pop %v4092
        %v4094 = vsel %vm1575, %v4093, 0.0
        %4095 = vadd.xlane.f32.xlu0 %v4094
        %v4096 = vpop.xlane.xlu0 %4095
        %v4097 = vrcp.pop %v4096
        %v4098 = vmul.f32 %v4093, %v4097
        %v4099 = vpack.c.bf16 %v4098, %v4098
        %4100 = vrot.lane.b32.xlu0 %v3928, 72
        %v4101 = vpop.permute.xlu0 %4100
        %v4103 = vsel %vm1575, %v4099, 0
        %v4106 = vsel %vm1612, %v4101, 0
        %4108 = vmatpush.bf16.msra.mxu0 0
        %4109 = vmatpush.bf16.msra.mxu0 0
        %4110 = vmatpush.bf16.msra.mxu0 0
        %4111 = vmatpush.bf16.msra.mxu0 0
        %4112 = vmatpush.bf16.msra.mxu0 0
        %4113 = vmatpush.bf16.msra.mxu0 0
        %4114 = vmatpush.bf16.msra.mxu0 0
        %4115 = vmatpush.bf16.msra.mxu0 %v4106
        %4116 = vmatmul.bf16.gmra.mxu0 %v4103
        %v4117 = vpop.f32.mrf.mxu0
        %v4118 = vadd.f32 0.0, %v4117
        %v4119 = vpop.f32.mrf.mxu0
        %4120 = vdwg.mxu0
        %4122 = vrot.lane.b32.xlu0 %v4006, 8
        %v4123 = vpop.permute.xlu0 %4122
        %4126 = vrot.lane.b32.xlu0 %v4062, 16
        %v4127 = vpop.permute.xlu0 %4126
        %4130 = vrot.lane.b32.xlu0 %v4118, 24
        %v4131 = vpop.permute.xlu0 %4130
        %v4133 = vsel %vm1575, %v3947, %v4123
        %v4134 = vsel %vm1810, %v4133, %v4127
        %v4135 = vsel %vm1812, %v4134, %v4131
        %v4136 = vpack.c.bf16 %v4135, %v4135
        %v4141 = vunpack.c.l.b16 %v3797
        %v4142 = vunpack.c.l.b16 %v3798
        %v4143 = vunpack.c.l.b16 %v3799
        %v4144 = vunpack.c.l.b16 %v3800
        %v4145 = vpack.c.b16 %v4142, %v4141
        %v4146 = vpack.c.b16 %v4144, %v4143
        %v4150 = vsel %vm1454, %v4136, 0
        %4152 = vmatpush.bf16.msra.mxu0 0
        %4153 = vmatpush.bf16.msra.mxu0 0
        %4154 = vmatpush.bf16.msra.mxu0 0
        %4155 = vmatpush.bf16.msra.mxu0 0
        %4156 = vmatpush.bf16.msra.mxu0 0
        %4157 = vmatpush.bf16.msra.mxu0 0
        %4158 = vmatpush.bf16.msra.mxu0 %v4146
        %4159 = vmatpush.bf16.msra.mxu0 %v4145
        %4160 = vmatmul.bf16.gmra.mxu0 %v4150
        %v4161 = vpop.f32.mrf.mxu0
        %v4162 = vadd.f32 0.0, %v4161
        %v4163 = vpop.f32.mrf.mxu0
        %4164 = vdwg.mxu0
        %v4165 = vadd.f32 %v3777, %v4162
        %v4167 = vperm.slane %v3802, 0
        %v4169 = vadd.f32 %v4165, %v4167
        %s4170 = scalar_lea.vmem %s57, 1
        %v4171 = vld [vmem:[%s4170] sm:$0x1]
        %s4172 = scalar_lea.vmem %s59, 1
        %v4173 = vld [vmem:[%s4172] sm:$0x1]
        %s4174 = scalar_lea.vmem %s61, 16
        %v4175 = vld [vmem:[%s4174] sm:$0xf]
        %v4176 = vld [vmem:[%s4174 + $0x4] sm:$0xf]
        %v4177 = vld [vmem:[%s4174 + $0x8] sm:$0xf]
        %v4178 = vld [vmem:[%s4174 + $0xc] sm:$0xf]
        %s4179 = scalar_lea.vmem %s63, 1
        %v4180 = vld [vmem:[%s4179] sm:$0x1]
        %s4181 = scalar_lea.vmem %s65, 32
        %v4182 = vld [vmem:[%s4181] sm:$0xf]
        %v4183 = vld [vmem:[%s4181 + $0x4] sm:$0xf]
        %v4184 = vld [vmem:[%s4181 + $0x8] sm:$0xf]
        %v4185 = vld [vmem:[%s4181 + $0xc] sm:$0xf]
        %v4186 = vld [vmem:[%s4181 + $0x10] sm:$0xf]
        %v4187 = vld [vmem:[%s4181 + $0x14] sm:$0xf]
        %v4188 = vld [vmem:[%s4181 + $0x18] sm:$0xf]
        %v4189 = vld [vmem:[%s4181 + $0x1c] sm:$0xf]
        %s4190 = scalar_lea.vmem %s67, 1
        %v4191 = vld [vmem:[%s4190] sm:$0x1]
        %v4192 = vsel %vm1454, %v4169, 0.0
        %4193 = vadd.xlane.f32.xlu0 %v4192
        %v4194 = vpop.xlane.xlu0 %4193
        %v4195 = vmul.f32 %v4194, %v1464
        %v4196 = vsub.f32 %v4169, %v4195
        %v4197 = vmul.f32 %v4196, %v4196
        %v4198 = vsel %vm1454, %v4197, 0.0
        %4199 = vadd.xlane.f32.xlu0 %v4198
        %v4200 = vpop.xlane.xlu0 %4199
        %v4201 = vmul.f32 %v4200, %v1464
        %v4202 = vadd.f32 %v4201, 1e-05
        %v4203 = vrsqrt.pop %v4202
        %v4204 = vmul.f32 %v4203, %v4202
        %v4205 = vmul.f32 %v4204, %v4203
        %v4206 = vmul.f32 0.5, %v4205
        %v4207 = vsub.f32 1.5, %v4206
        %v4208 = vmul.f32 %v4203, %v4207
        %vm4209 = vweird.f32 %v4202
        %vm4210 = vweird.f32 %v4203
        %vm4211 = vmor %vm4209, %vm4210
        %v4212 = vsel %vm4211, %v4203, %v4208
        %v4213 = vmul.f32 %v4196, %v4212
        %v4215 = vperm.slane %v4171, 0
        %v4217 = vmul.f32 %v4213, %v4215
        %v4219 = vperm.slane %v4173, 0
        %v4221 = vadd.f32 %v4217, %v4219
        %v4222 = vpack.c.bf16 %v4221, %v4221
        %v4224 = vperm.slane %v4180, 0
        %v4230 = vunpack.c.l.b16 %v4175
        %v4231 = vunpack.c.l.b16 %v4176
        %v4232 = vunpack.c.l.b16 %v4177
        %v4233 = vunpack.c.l.b16 %v4178
        %v4234 = vpack.c.b16 %v4231, %v4230
        %v4235 = vpack.c.b16 %v4233, %v4232
        %v4239 = vsel %vm1454, %v4222, 0
        %4241 = vmatpush.bf16.msra.mxu0 0
        %4242 = vmatpush.bf16.msra.mxu0 0
        %4243 = vmatpush.bf16.msra.mxu0 0
        %4244 = vmatpush.bf16.msra.mxu0 0
        %4245 = vmatpush.bf16.msra.mxu0 0
        %4246 = vmatpush.bf16.msra.mxu0 0
        %4247 = vmatpush.bf16.msra.mxu0 %v4235
        %4248 = vmatpush.bf16.msra.mxu0 %v4234
        %4249 = vmatmul.bf16.gmra.mxu0 %v4239
        %v4250 = vpop.f32.mrf.mxu0
        %v4251 = vadd.f32 %v4224, %v4250
        %v4252 = vpop.f32.mrf.mxu0
        %4253 = vdwg.mxu0
        %v4254 = vmul.f32 %v4251, 0.5
        %v4255 = vmul.f32 %v4251, 0.044715
        %v4256 = vmul.f32 %v4255, %v4251
        %v4257 = vmul.f32 %v4256, %v4251
        %v4258 = vadd.f32 %v4251, %v4257
        %v4259 = vmul.f32 %v4258, 0.7978846
        %v4260 = vtanh.pop %v4259
        %v4261 = vadd.f32 %v4260, 1.0
        %v4262 = vmul.f32 %v4254, %v4261
        %v4263 = vpack.c.bf16 %v4262, %v4262
        %v4272 = vunpack.c.l.b16 %v4182
        %v4273 = vunpack.c.l.b16 %v4183
        %v4274 = vunpack.c.l.b16 %v4184
        %v4275 = vunpack.c.l.b16 %v4185
        %v4276 = vunpack.c.l.b16 %v4186
        %v4277 = vunpack.c.l.b16 %v4187
        %v4278 = vunpack.c.l.b16 %v4188
        %v4279 = vunpack.c.l.b16 %v4189
        %v4280 = vpack.c.b16 %v4273, %v4272
        %v4281 = vpack.c.b16 %v4275, %v4274
        %v4282 = vpack.c.b16 %v4277, %v4276
        %v4283 = vpack.c.b16 %v4279, %v4278
        %v4289 = vsel %vm1960, %v4263, 0
        %4291 = vmatpush.bf16.msra.mxu0 0
        %4292 = vmatpush.bf16.msra.mxu0 0
        %4293 = vmatpush.bf16.msra.mxu0 0
        %4294 = vmatpush.bf16.msra.mxu0 0
        %4295 = vmatpush.bf16.msra.mxu0 %v4283
        %4296 = vmatpush.bf16.msra.mxu0 %v4282
        %4297 = vmatpush.bf16.msra.mxu0 %v4281
        %4298 = vmatpush.bf16.msra.mxu0 %v4280
        %4299 = vmatmul.bf16.gmra.mxu0 %v4289
        %v4300 = vpop.f32.mrf.mxu0
        %v4301 = vadd.f32 0.0, %v4300
        %v4302 = vpop.f32.mrf.mxu0
        %4303 = vdwg.mxu0
        %v4304 = vadd.f32 %v4169, %v4301
        %v4306 = vperm.slane %v4191, 0
        %v4308 = vadd.f32 %v4304, %v4306
        %v4309 = vld [vmem:[%s85] sm:$0x1]
        %v4310 = vld [vmem:[#allocation2] sm:$0x1]
        %v4311 = vsel %vm1454, %v4308, 0.0
        %4312 = vadd.xlane.f32.xlu0 %v4311
        %v4313 = vpop.xlane.xlu0 %4312
        %v4314 = vmul.f32 %v4313, %v1464
        %v4315 = vsub.f32 %v4308, %v4314
        %v4316 = vmul.f32 %v4315, %v4315
        %v4317 = vsel %vm1454, %v4316, 0.0
        %4318 = vadd.xlane.f32.xlu0 %v4317
        %v4319 = vpop.xlane.xlu0 %4318
        %v4320 = vmul.f32 %v4319, %v1464
        %v4321 = vadd.f32 %v4320, 1e-05
        %v4322 = vrsqrt.pop %v4321
        %v4323 = vmul.f32 %v4322, %v4321
        %v4324 = vmul.f32 %v4323, %v4322
        %v4325 = vmul.f32 0.5, %v4324
        %v4326 = vsub.f32 1.5, %v4325
        %v4327 = vmul.f32 %v4322, %v4326
        %vm4328 = vweird.f32 %v4321
        %vm4329 = vweird.f32 %v4322
        %vm4330 = vmor %vm4328, %vm4329
        %v4331 = vsel %vm4330, %v4322, %v4327
        %v4332 = vmul.f32 %v4315, %v4331
        %v4334 = vperm.slane %v4309, 0
        %v4336 = vmul.f32 %v4332, %v4334
        %v4338 = vperm.slane %v4310, 0
        %v4340 = vadd.f32 %v4336, %v4338
        %v4341 = vpack.c.bf16 %v4340, %v4340
        %v4342 = vld [vmem:[%s89] sm:$0xf]
        %v4343 = vld [vmem:[%s89 + $0x4] sm:$0xf]
        %v4344 = vld [vmem:[%s89 + $0x8] sm:$0xf]
        %v4345 = vld [vmem:[%s89 + $0xc] sm:$0xf]
        %v4346 = vld [vmem:[#allocation5] sm:$0x1]
        %v4348 = vperm.slane %v4346, 0
        %v4354 = vunpack.c.l.b16 %v4342
        %v4355 = vunpack.c.l.b16 %v4343
        %v4356 = vunpack.c.l.b16 %v4344
        %v4357 = vunpack.c.l.b16 %v4345
        %v4358 = vpack.c.b16 %v4355, %v4354
        %v4359 = vpack.c.b16 %v4357, %v4356
        %v4363 = vsel %vm1454, %v4341, 0
        %4365 = vmatpush.bf16.msra.mxu0 0
        %4366 = vmatpush.bf16.msra.mxu0 0
        %4367 = vmatpush.bf16.msra.mxu0 0
        %4368 = vmatpush.bf16.msra.mxu0 0
        %4369 = vmatpush.bf16.msra.mxu0 0
        %4370 = vmatpush.bf16.msra.mxu0 0
        %4371 = vmatpush.bf16.msra.mxu0 %v4359
        %4372 = vmatpush.bf16.msra.mxu0 %v4358
        %4373 = vmatmul.bf16.gmra.mxu0 %v4363
        %v4374 = vpop.f32.mrf.mxu0
        %v4375 = vadd.f32 %v4348, %v4374
        %v4376 = vpop.f32.mrf.mxu0
        %4377 = vdwg.mxu0
        %4378 = vst [vmem:[%s1434] sm:$0xff] %v4375
        %s4379 = sand.u32 %s1103, 1
        %s4380 = scalar_lea.sflag [#allocation4], %s4379
        %s4381 = sand.u32 %s1103, 1
        %s4382 = smul.addr %s4381, 8
        %s4383 = scalar_lea.vmem [#allocation7], %s4382
        // Predicated region
        $region213: #{mbart_forward.1} parent=203 // pred_check
          %p4384 = pneg %p1113
        $region214: #{mbart_forward.1} parent=203 // pred_check_branch
          %4386 = sbr.rel (%p4384) target = $region216
        $region215: #{mbart_forward.1} parent=203 // pred_region
          %4388 = vsyncadd %s4380, 0
          %s4389 = smul.addr %s109, 8
          %s4390 = scalar_lea.hbm %s93, %s4389
          %s4392 = sshll.u32 %s4383, 4
          %s4393 = int_to_ptr.vmem [resolvable:$true] %s4392
          %s4394 = sshll.u32 %s4390, 4
          %s4395 = int_to_ptr.hbm [resolvable:$true] %s4394
          %4397 = dma.vmem_to_hbm [thread:$0]  %s4393, 128, %s4395, %s4380
        $region216: #{mbart_forward.1} parent=203 // pred_fallthru
          _
      $region204: #{mbart_forward.1} parent=5 // pred_fallthru
        _
      %p4398 = scmp.le.s32.totalorder 2, %s104
      // Predicated region
      $region217: #{mbart_forward.1} parent=5 // pred_check
        %p4399 = pneg %p4398
      $region218: #{mbart_forward.1} parent=5 // pred_check_branch
        %4401 = sbr.rel (%p4399) target = $region220
      $region219: #{mbart_forward.1} parent=5 // pred_region
        %s4402 = ssub.s32 %s104, 2
        // Predicated region
        $region221: #{mbart_forward.1} parent=219 // pred_check
          %p4403 = pneg %p1119
        $region222: #{mbart_forward.1} parent=219 // pred_check_branch
          %4405 = sbr.rel (%p4403) target = $region224
        $region223: #{mbart_forward.1} parent=219 // pred_region
          %s4406 = sand.u32 %s1104, 1
          %s4407 = scalar_lea.sflag [#allocation4], %s4406
          %s4408 = sand.u32 %s1104, 1
          %s4409 = smul.addr %s4408, 8
          %s4410 = scalar_lea.vmem [#allocation7], %s4409
          %4412 = dma.done %s4407, 128
        $region224: #{mbart_forward.1} parent=219 // pred_fallthru
          _
      $region220: #{mbart_forward.1} parent=5 // pred_fallthru
        _
    $region6: #{mbart_forward.1} parent=1 // loop_footer
      %s108 = sadd.s32 1, %s104
    $region7: #{mbart_forward.1} parent=1 // loop_footer_branch
      %103 = sbr.rel target = $region3
    $region8: #{mbart_forward.1} parent=1 // loop_exit
      _
    %4413 = vsyncpa [#allocation3], 1
    %s4414 = scalar_lea.sflag [#allocation3], 1
    %4415 = vsyncpa %s4414, 1
    %4416 = vsyncpa [#allocation6], 1
    %4417 = vsyncpa [#allocation4], 1
    %s4418 = scalar_lea.sflag [#allocation4], 1
    %4419 = vsyncpa %s4418, 1

</llo_original>
